<compile_context>
chip_gen: v7x
topology: tpu7x:2x2x1
jax: 0.10.0
libtpu: 0.0.40
codegen_flags: <defaults>
</compile_context>

<pallas_src>
import functools

import jax
import jax.numpy as jnp
from jax.experimental import pallas as pl
from jax.experimental.pallas import tpu as pltpu

EPS = 1e-5
NEG_SLOPE = 0.2


def _round_up(x, m):
    return (x + m - 1) // m * m


def _largest_divisor_le(n, cap):
    for b in range(min(n, cap), 0, -1):
        if n % b == 0:
            return b
    return 1


def _pick_batch_block(n, cap=8):
    """Images per grid step; keep an even number of grid steps when possible
    so a 'parallel' batch axis splits evenly across v7x's two TensorCores."""
    b = _largest_divisor_le(n, cap)
    while b > 1 and (n // b) % 2 == 1:
        b = b // 2 if b % 2 == 0 else _largest_divisor_le(n, b - 1)
    return b


def _vmem_limit(block_bytes, scratch_bytes=0):
    """Right-sized VMEM limit: double-buffered blocks + scratch + slack."""
    total = 2 * block_bytes + scratch_bytes + (2 << 20)
    return int(min(max(total, 4 << 20), 96 << 20))


# ----------------------------- Pallas kernels ------------------------------

def _conv_stats_kernel(x_ref, w_ref, y_ref, stats_ref, acc_ref, *,
                       offsets, m, ws, wo):
    """One grid step = B_blk images.

    x_ref:     (B, P, K)     bf16  padded space-to-depth (or tap-concat) rows
    w_ref:     (T, K, Cout)  bf16  per-tap weight matrices
    y_ref:     (B, m, Cout)  bf16  raw conv output (wrap-around rows included)
    stats_ref: (B, 2, Cout)  f32   per-image (sum, sumsq) over VALID pixels
    acc_ref:   (m, Cout)     f32   scratch accumulator (in-place MXU acc on v7x)
    """
    nb = y_ref.shape[0]

    # Validity mask for the BN statistics only.  Row j is a wrap-around row
    # iff (j % ws) == ws-1; it is still stored (and dropped by the host-side
    # slice) but excluded from the stats.  Computed with f32 floor so we never
    # need vector integer div/rem.
    j = jax.lax.broadcasted_iota(jnp.int32, (m, 1), 0).astype(jnp.float32)
    q = jnp.floor((j + 0.5) * (1.0 / ws))          # exact j // ws for j < 2^20
    col = j - q * ws
    valid = col < (wo - 0.5)                       # (m, 1) bool

    for b in range(nb):
        acc_ref[...] = jnp.dot(x_ref[b, offsets[0]:offsets[0] + m, :],
                               w_ref[0], preferred_element_type=jnp.float32)
        for t in range(1, len(offsets)):
            d = offsets[t]
            acc_ref[...] += jnp.dot(x_ref[b, d:d + m, :], w_ref[t],
                                    preferred_element_type=jnp.float32)
        acc = acc_ref[...]
        s1 = jnp.sum(jnp.where(valid, acc, 0.0), axis=0, keepdims=True)
        s2 = jnp.sum(jnp.where(valid, acc * acc, 0.0), axis=0, keepdims=True)
        stats_ref[b] = jnp.concatenate([s1, s2], axis=0)
        # TODO(synk): the raw-conv store still has Cout lanes (< 128 for small
        # ndf) -> masked vst; mitigated by bf16, the BN pass is fully
        # lane-dense.  A (m*Cout/128, 128) in-kernel relayout would finish it.
        y_ref[b] = acc.astype(y_ref.dtype)


def _bn_lrelu_kernel(y_ref, scale_ref, shift_ref, o_ref):
    """BatchNorm folded to y*scale + shift, then LeakyReLU(0.2).  Lane-dense."""
    z = y_ref[...].astype(jnp.float32) * scale_ref[...] + shift_ref[...]
    o_ref[...] = jnp.where(z >= 0.0, z, NEG_SLOPE * z).astype(o_ref.dtype)


def _final_dot_sigmoid_kernel(a_ref, w_ref, o_ref):
    """Per-image dot product (VPU reduction) + exact sigmoid."""
    y = jnp.sum(a_ref[...].astype(jnp.float32) * w_ref[...],
                axis=1, keepdims=True)
    o_ref[...] = 1.0 / (1.0 + jnp.exp(-y))


# ------------------------------ JAX glue ------------------------------------

def _weight_taps(w_pt):
    """(Cout, Cin, 4, 4) -> (4 taps, 4*Cin, Cout).

    Tap index = (kh//2)*2 + (kw//2); contracted index ordered
    (kh%2, kw%2, cin) to match the space-to-depth channel layout.
    """
    cout, cin = w_pt.shape[0], w_pt.shape[1]
    w = jnp.transpose(w_pt, (2, 3, 1, 0))        # (kh, kw, cin, cout)
    w = w.reshape(2, 2, 2, 2, cin, cout)         # (th, dh, tw, dw, ci, co)
    w = w.transpose(0, 2, 1, 3, 4, 5)            # (th, tw, dh, dw, ci, co)
    return w.reshape(4, 4 * cin, cout)


def _conv_bn_lrelu(x_nhwc, w_pt, gamma, beta, b_blk):
    """Conv2d(4, stride 2, pad 1, no bias) + BatchNorm2d (train) + LeakyReLU."""
    n, h, w, cin = x_nhwc.shape
    cout = w_pt.shape[0]
    hs, ws = (h + 2) // 2, (w + 2) // 2
    ho, wo = hs - 1, ws - 1
    m = ho * ws                              # rows incl. one wrap-around column
    c4 = 4 * cin

    # bf16 space-to-depth: input is already bf16, so every layout copy is half
    # the bytes of the old f32 chain.
    xp = jnp.pad(x_nhwc, ((0, 0), (1, 1), (1, 1), (0, 0)))
    s2d = xp.reshape(n, hs, 2, ws, 2, cin).transpose(0, 1, 3, 2, 4, 5)
    s2d = s2d.reshape(n, hs * ws, c4)
    w_taps = _weight_taps(w_pt).astype(jnp.bfloat16)          # (4, c4, cout)

    if 4 * c4 <= 128:
        # Layer-1 style specialization: one matmul with K = 16*Cin.
        p = _round_up(m, 8)
        src = jnp.pad(s2d, ((0, 0), (0, p + ws + 1 - hs * ws), (0, 0)))
        x_lhs = jnp.concatenate(
            [src[:, d:d + p, :] for d in (0, 1, ws, ws + 1)], axis=-1)
        w_lhs = w_taps.reshape(1, 4 * c4, cout)
        offsets = (0,)
    else:
        # 4 accumulated taps; p keeps the ws+1 tap slice in bounds (ws+1+m <= p).
        p = _round_up(hs * ws + ws + 2, 8)
        x_lhs = jnp.pad(s2d, ((0, 0), (0, p - hs * ws), (0, 0)))
        w_lhs = w_taps
        offsets = (0, 1, ws, ws + 1)

    p_rows, k_in = x_lhs.shape[1], x_lhs.shape[2]
    t = w_lhs.shape[0]

    blk_bytes = (b_blk * p_rows * k_in * 2 + t * k_in * cout * 2
                 + b_blk * m * cout * 2 + b_blk * 2 * cout * 4)
    scratch_bytes = m * cout * 4
    flops = 2 * n * m * (16 * cin) * cout
    bytes_accessed = (x_lhs.size * 2 + w_lhs.size * 2
                      + n * m * cout * 2 + n * 2 * cout * 4)

    conv_kernel = functools.partial(_conv_stats_kernel, offsets=offsets,
                                    m=m, ws=ws, wo=wo)
    y, stats = pl.pallas_call(
        conv_kernel,
        out_shape=(jax.ShapeDtypeStruct((n, m, cout), jnp.bfloat16),
                   jax.ShapeDtypeStruct((n, 2, cout), jnp.float32)),
        grid=(n // b_blk,),
        in_specs=[pl.BlockSpec((b_blk, p_rows, k_in), lambda i: (i, 0, 0)),
                  pl.BlockSpec((t, k_in, cout), lambda i: (0, 0, 0))],
        out_specs=(pl.BlockSpec((b_blk, m, cout), lambda i: (i, 0, 0)),
                   pl.BlockSpec((b_blk, 2, cout), lambda i: (i, 0, 0))),
        scratch_shapes=[pltpu.VMEM((m, cout), jnp.float32)],
        compiler_params=pltpu.CompilerParams(
            dimension_semantics=("parallel",),
            vmem_limit_bytes=_vmem_limit(blk_bytes, scratch_bytes)),
        cost_estimate=pl.CostEstimate(flops=flops, transcendentals=0,
                                      bytes_accessed=bytes_accessed),
    )(x_lhs, w_lhs)

    # Hoisted BN statistics -> per-channel scale/shift (tiny XLA op).
    # NOTE: biased (training) variance via E[y^2] - mean^2 in f32; fine at
    # these counts, switch to a centered pass if batch*spatial grows a lot.
    count = float(n * ho * wo)
    s = jnp.sum(stats, axis=0)                       # (2, cout)
    mean = s[0] / count
    var = s[1] / count - mean * mean
    scale = gamma * jax.lax.rsqrt(var + EPS)         # (cout,)
    shift = beta - mean * scale

    # Lane-dense view for the elementwise BN/LeakyReLU pass.
    if cout % 128 == 0:
        lanes = cout
    elif (128 % cout == 0) and ((m * cout) % 128 == 0):
        lanes = 128
    else:
        lanes = cout                                  # rare fallback
    rows = (m * cout) // lanes
    reps = lanes // cout
    y_ld = y.reshape(n, rows, lanes)
    scale_v = jnp.tile(scale, reps).reshape(1, lanes).astype(jnp.float32)
    shift_v = jnp.tile(shift, reps).reshape(1, lanes).astype(jnp.float32)

    bn_blk_bytes = 2 * b_blk * rows * lanes * 2 + 2 * lanes * 4
    a = pl.pallas_call(
        _bn_lrelu_kernel,
        out_shape=jax.ShapeDtypeStruct((n, rows, lanes), jnp.bfloat16),
        grid=(n // b_blk,),
        in_specs=[pl.BlockSpec((b_blk, rows, lanes), lambda i: (i, 0, 0)),
                  pl.BlockSpec((1, lanes), lambda i: (0, 0)),
                  pl.BlockSpec((1, lanes), lambda i: (0, 0))],
        out_specs=pl.BlockSpec((b_blk, rows, lanes), lambda i: (i, 0, 0)),
        compiler_params=pltpu.CompilerParams(
            dimension_semantics=("parallel",),
            vmem_limit_bytes=_vmem_limit(bn_blk_bytes)),
    )(y_ld, scale_v, shift_v)

    # Drop the wrap-around column, restore NHWC (contiguous reshapes, bf16).
    return a.reshape(n, ho, ws, cout)[:, :, :wo, :]


def _final_conv_sigmoid(a_nhwc, w_pt):
    """Final Conv2d(4, stride 2, pad 0) to 1 channel on a 4x4 map + Sigmoid."""
    n, h, w, cin = a_nhwc.shape
    k = h * w * cin
    x = a_nhwc.reshape(n, k)                                   # bf16
    wv = jnp.transpose(w_pt, (2, 3, 1, 0)).reshape(1, k).astype(jnp.float32)

    bn = min(n, 256)
    blk_bytes = bn * k * 2 + k * 4 + bn * 4
    out = pl.pallas_call(
        _final_dot_sigmoid_kernel,
        out_shape=jax.ShapeDtypeStruct((n, 1), jnp.float32),
        grid=(pl.cdiv(n, bn),),
        in_specs=[pl.BlockSpec((bn, k), lambda i: (i, 0)),
                  pl.BlockSpec((1, k), lambda i: (0, 0))],
        out_specs=pl.BlockSpec((bn, 1), lambda i: (i, 0)),
        compiler_params=pltpu.CompilerParams(
            dimension_semantics=("parallel",),
            vmem_limit_bytes=_vmem_limit(blk_bytes)),
    )(x, wv)
    return out.reshape(n, 1, 1, 1)


# --------------------------- Discriminator model ----------------------------

def init_discriminator_params(key, input_dim, ndf):
    """DCGAN-style init: conv weights ~ N(0, 0.02), BN gamma=1, beta=0."""
    chans = [input_dim, ndf, ndf * 2, ndf * 4, ndf * 8, 1]
    params = []
    for i in range(5):
        key, sub = jax.random.split(key)
        cin, cout = chans[i], chans[i + 1]
        w = 0.02 * jax.random.normal(sub, (cout, cin, 4, 4), dtype=jnp.float32)
        if i < 4:
            params.append((w, jnp.ones((cout,), jnp.float32),
                           jnp.zeros((cout,), jnp.float32)))
        else:
            params.append((w, None, None))
    return params


def discriminator_forward(x_nchw, params):
    """x_nchw: (N, input_dim, 64, 64) float32 -> (N, 1, 1, 1) float32."""
    x = jnp.transpose(x_nchw.astype(jnp.bfloat16), (0, 2, 3, 1))  # NCHW->NHWC
    b_blk = _pick_batch_block(x.shape[0])
    for (w, gamma, beta) in params[:-1]:
        x = _conv_bn_lrelu(x, w, gamma, beta, b_blk)
    y = _final_conv_sigmoid(x, params[-1][0])
    return jnp.transpose(y, (0, 3, 1, 2))                         # NHWC->NCHW


# ------------------------------ pure-JAX ref ---------------------------------

def _ref_forward(x_nchw, params):
    """Reference with the same precision policy (bf16 activations, f32 BN)."""
    x = jnp.transpose(x_nchw.astype(jnp.bfloat16), (0, 2, 3, 1))
    for (w, gamma, beta) in params[:-1]:
        wh = jnp.transpose(w, (2, 3, 1, 0)).astype(jnp.bfloat16)
        y = jax.lax.conv_general_dilated(
            x, wh, (2, 2), [(1, 1), (1, 1)],
            dimension_numbers=("NHWC", "HWIO", "NHWC"),
            preferred_element_type=jnp.float32)
        mean = jnp.mean(y, axis=(0, 1, 2), keepdims=True)
        var = jnp.mean(y * y, axis=(0, 1, 2), keepdims=True) - mean * mean
        scale = gamma * jax.lax.rsqrt(var + EPS)
        shift = beta - mean * scale
        yq = y.astype(jnp.bfloat16).astype(jnp.float32)   # kernel stores y bf16
        z = yq * scale + shift
        x = jnp.where(z >= 0, z, NEG_SLOPE * z).astype(jnp.bfloat16)
    wh = jnp.transpose(params[-1][0], (2, 3, 1, 0)).astype(jnp.float32)
    y = jax.lax.conv_general_dilated(
        x.astype(jnp.float32), wh, (2, 2), [(0, 0), (0, 0)],
        dimension_numbers=("NHWC", "HWIO", "NHWC"))
    y = jax.nn.sigmoid(y)
    return jnp.transpose(y, (0, 3, 1, 2))


# ---------------------------------- main -------------------------------------

if __name__ == "__main__":
    key = jax.random.PRNGKey(0)
    k_params, k_x = jax.random.split(key)

    # spatial must be 64 for the DCGAN stack: 64 -> 32 -> 16 -> 8 -> 4 -> 1
    batch, input_dim, ndf, spatial = 2, 3, 8, 64
    params = init_discriminator_params(k_params, input_dim, ndf)
    x = jax.random.normal(k_x, (batch, input_dim, spatial, spatial),
                          dtype=jnp.float32)

    fwd = jax.jit(discriminator_forward)
    out = jax.block_until_ready(fwd(x, params))

    assert out.shape == (batch, 1, 1, 1), out.shape
    assert bool(jnp.all(jnp.isfinite(out)))

    ref = jax.block_until_ready(_ref_forward(x, params))
    assert bool(jnp.allclose(out, ref, atol=5e-3, rtol=5e-3)), (out, ref)

    print("KERNEL_OK")
</pallas_src>

<mosaic_0001>
module attributes {stable_mosaic.version = 11 : i64} {
  func.func @_conv_stats_kernel(%arg0: i32, %arg1: memref<1x1056x48xbf16, #tpu.memory_space<vmem>>, %arg2: memref<1x48x8xbf16, #tpu.memory_space<vmem>>, %arg3: memref<1x1056x8xbf16, #tpu.memory_space<vmem>>, %arg4: memref<1x2x8xf32, #tpu.memory_space<vmem>>, %arg5: memref<1056x8xf32, #tpu.memory_space<vmem>>) attributes {dimension_semantics = [#tpu.dimension_semantics<parallel>], iteration_bounds = array<i64: 2>, scalar_prefetch = 0 : i64, scratch_operands = 1 : i64, tpu.core_type = #tpu.core_type<tc>, window_params = [{transform_indices = @transform_0, window_bounds = array<i64: 1, 1056, 48>}, {pipeline_mode = #tpu.pipeline_mode<synchronous>, transform_indices = @transform_1, window_bounds = array<i64: 1, 48, 8>}, {transform_indices = @transform_2, window_bounds = array<i64: 1, 1056, 8>}, {transform_indices = @transform_3, window_bounds = array<i64: 1, 2, 8>}]} {
    %0 = tpu.iota {dimensions = array<i32: 0>} : vector<1056x1xi32>
    %1 = arith.sitofp %0 : vector<1056x1xi32> to vector<1056x1xf32>
    %cst = arith.constant 5.000000e-01 : f32
    %2 = vector.broadcast %cst : f32 to vector<1056x1xf32>
    %3 = arith.addf %1, %2 : vector<1056x1xf32>
    %cst_0 = arith.constant 0.0303030312 : f32
    %4 = vector.broadcast %cst_0 : f32 to vector<1056x1xf32>
    %5 = arith.mulf %3, %4 : vector<1056x1xf32>
    %6 = math.floor %5 : vector<1056x1xf32>
    %cst_1 = arith.constant 3.300000e+01 : f32
    %7 = vector.broadcast %cst_1 : f32 to vector<1056x1xf32>
    %8 = arith.mulf %6, %7 : vector<1056x1xf32>
    %9 = arith.subf %1, %8 : vector<1056x1xf32>
    %cst_2 = arith.constant 3.150000e+01 : f32
    %10 = vector.broadcast %cst_2 : f32 to vector<1056x1xf32>
    %11 = arith.cmpf olt, %9, %10 : vector<1056x1xf32>
    %c0 = arith.constant 0 : index
    %c0_3 = arith.constant 0 : index
    %c0_4 = arith.constant 0 : index
    %12 = vector.load %arg1[%c0, %c0_3, %c0_4] : memref<1x1056x48xbf16, #tpu.memory_space<vmem>>, vector<1x1056x48xbf16>
    %13 = vector.shape_cast %12 : vector<1x1056x48xbf16> to vector<1056x48xbf16>
    %c0_5 = arith.constant 0 : index
    %c0_6 = arith.constant 0 : index
    %c0_7 = arith.constant 0 : index
    %14 = vector.load %arg2[%c0_5, %c0_6, %c0_7] : memref<1x48x8xbf16, #tpu.memory_space<vmem>>, vector<1x48x8xbf16>
    %15 = vector.shape_cast %14 : vector<1x48x8xbf16> to vector<48x8xbf16>
    %cst_8 = arith.constant dense<0.000000e+00> : vector<1056x8xf32>
    %16 = tpu.matmul %13, %15, %cst_8 {dimension_numbers = #tpu.dot_dimension_numbers<[1], [0], [0], [1], [0, 0, 1, 1], [], []>} : vector<1056x48xbf16>, vector<48x8xbf16>, vector<1056x8xf32> -> vector<1056x8xf32>
    %c0_9 = arith.constant 0 : index
    %c0_10 = arith.constant 0 : index
    %17 = vector.load %arg5[%c0_9, %c0_10] : memref<1056x8xf32, #tpu.memory_space<vmem>>, vector<1056x8xf32>
    tpu.vector_store %arg5[%c0_9, %c0_10], %16 {strides = array<i32>} : memref<1056x8xf32, #tpu.memory_space<vmem>>, vector<1056x8xf32>,
    %c0_11 = arith.constant 0 : index
    %c0_12 = arith.constant 0 : index
    %18 = vector.load %arg5[%c0_11, %c0_12] : memref<1056x8xf32, #tpu.memory_space<vmem>>, vector<1056x8xf32>
    %cst_13 = arith.constant 0.000000e+00 : f32
    %19 = vector.shape_cast %11 : vector<1056x1xi1> to vector<1056x1xi1>
    %20 = vector.broadcast %19 : vector<1056x1xi1> to vector<1056x8xi1>
    %21 = vector.broadcast %cst_13 : f32 to vector<1056x8xf32>
    %22 = arith.select %20, %18, %21 : vector<1056x8xi1>, vector<1056x8xf32>
    %cst_14 = arith.constant dense<0.000000e+00> : vector<8xf32>
    %23 = vector.multi_reduction <add>, %22, %cst_14 [0] : vector<1056x8xf32> to vector<8xf32>
    %24 = vector.shape_cast %23 : vector<8xf32> to vector<1x8xf32>
    %25 = arith.mulf %18, %18 : vector<1056x8xf32>
    %cst_15 = arith.constant 0.000000e+00 : f32
    %26 = vector.shape_cast %11 : vector<1056x1xi1> to vector<1056x1xi1>
    %27 = vector.broadcast %26 : vector<1056x1xi1> to vector<1056x8xi1>
    %28 = vector.broadcast %cst_15 : f32 to vector<1056x8xf32>
    %29 = arith.select %27, %25, %28 : vector<1056x8xi1>, vector<1056x8xf32>
    %cst_16 = arith.constant dense<0.000000e+00> : vector<8xf32>
    %30 = vector.multi_reduction <add>, %29, %cst_16 [0] : vector<1056x8xf32> to vector<8xf32>
    %31 = vector.shape_cast %30 : vector<8xf32> to vector<1x8xf32>
    %32 = tpu.concatenate %24, %31 in 0 : vector<1x8xf32>, vector<1x8xf32> -> vector<2x8xf32>
    %c0_17 = arith.constant 0 : index
    %c0_18 = arith.constant 0 : index
    %c0_19 = arith.constant 0 : index
    %33 = vector.load %arg4[%c0_17, %c0_18, %c0_19] : memref<1x2x8xf32, #tpu.memory_space<vmem>>, vector<1x2x8xf32>
    %34 = vector.shape_cast %33 : vector<1x2x8xf32> to vector<2x8xf32>
    %35 = vector.shape_cast %32 : vector<2x8xf32> to vector<1x2x8xf32>
    tpu.vector_store %arg4[%c0_17, %c0_18, %c0_19], %35 {strides = array<i32>} : memref<1x2x8xf32, #tpu.memory_space<vmem>>, vector<1x2x8xf32>,
    %36 = arith.truncf %18 : vector<1056x8xf32> to vector<1056x8xbf16>
    %c0_20 = arith.constant 0 : index
    %c0_21 = arith.constant 0 : index
    %c0_22 = arith.constant 0 : index
    %37 = vector.load %arg3[%c0_20, %c0_21, %c0_22] : memref<1x1056x8xbf16, #tpu.memory_space<vmem>>, vector<1x1056x8xbf16>
    %38 = vector.shape_cast %37 : vector<1x1056x8xbf16> to vector<1056x8xbf16>
    %39 = vector.shape_cast %36 : vector<1056x8xbf16> to vector<1x1056x8xbf16>
    tpu.vector_store %arg3[%c0_20, %c0_21, %c0_22], %39 {strides = array<i32>} : memref<1x1056x8xbf16, #tpu.memory_space<vmem>>, vector<1x1056x8xbf16>,
    return
  }
  func.func @transform_0(%arg0: i32) -> (i32, i32, i32) {
    %c0_i32 = arith.constant 0 : i32
    %c0_i32_0 = arith.constant 0 : i32
    %c0_i32_1 = arith.constant 0 : i32
    return %arg0, %c0_i32, %c0_i32_0 : i32, i32, i32
  }
  func.func @transform_1(%arg0: i32) -> (i32, i32, i32) {
    %c0_i32 = arith.constant 0 : i32
    %c0_i32_0 = arith.constant 0 : i32
    %c0_i32_1 = arith.constant 0 : i32
    %c0_i32_2 = arith.constant 0 : i32
    return %c0_i32, %c0_i32_0, %c0_i32_1 : i32, i32, i32
  }
  func.func @transform_2(%arg0: i32) -> (i32, i32, i32) {
    %c0_i32 = arith.constant 0 : i32
    %c0_i32_0 = arith.constant 0 : i32
    %c0_i32_1 = arith.constant 0 : i32
    return %arg0, %c0_i32, %c0_i32_0 : i32, i32, i32
  }
  func.func @transform_3(%arg0: i32) -> (i32, i32, i32) {
    %c0_i32 = arith.constant 0 : i32
    %c0_i32_0 = arith.constant 0 : i32
    %c0_i32_1 = arith.constant 0 : i32
    return %arg0, %c0_i32, %c0_i32_0 : i32, i32, i32
  }
}

module attributes {stable_mosaic.version = 11 : i64} {
  func.func @_bn_lrelu_kernel(%arg0: i32, %arg1: memref<1x66x128xbf16, #tpu.memory_space<vmem>>, %arg2: memref<1x128xf32, #tpu.memory_space<vmem>>, %arg3: memref<1x128xf32, #tpu.memory_space<vmem>>, %arg4: memref<1x66x128xbf16, #tpu.memory_space<vmem>>) attributes {dimension_semantics = [#tpu.dimension_semantics<parallel>], iteration_bounds = array<i64: 2>, scalar_prefetch = 0 : i64, scratch_operands = 0 : i64, tpu.core_type = #tpu.core_type<tc>, window_params = [{transform_indices = @transform_0, window_bounds = array<i64: 1, 66, 128>}, {pipeline_mode = #tpu.pipeline_mode<synchronous>, transform_indices = @transform_1, window_bounds = array<i64: 1, 128>}, {pipeline_mode = #tpu.pipeline_mode<synchronous>, transform_indices = @transform_2, window_bounds = array<i64: 1, 128>}, {transform_indices = @transform_3, window_bounds = array<i64: 1, 66, 128>}]} {
    %c0 = arith.constant 0 : index
    %c0_0 = arith.constant 0 : index
    %c0_1 = arith.constant 0 : index
    %0 = vector.load %arg1[%c0, %c0_0, %c0_1] : memref<1x66x128xbf16, #tpu.memory_space<vmem>>, vector<1x66x128xbf16>
    %1 = arith.extf %0 : vector<1x66x128xbf16> to vector<1x66x128xf32>
    %c0_2 = arith.constant 0 : index
    %c0_3 = arith.constant 0 : index
    %2 = vector.load %arg2[%c0_2, %c0_3] : memref<1x128xf32, #tpu.memory_space<vmem>>, vector<1x128xf32>
    %3 = vector.shape_cast %2 : vector<1x128xf32> to vector<1x1x128xf32>
    %4 = vector.broadcast %3 : vector<1x1x128xf32> to vector<1x66x128xf32>
    %5 = arith.mulf %1, %4 : vector<1x66x128xf32>
    %c0_4 = arith.constant 0 : index
    %c0_5 = arith.constant 0 : index
    %6 = vector.load %arg3[%c0_4, %c0_5] : memref<1x128xf32, #tpu.memory_space<vmem>>, vector<1x128xf32>
    %7 = vector.shape_cast %6 : vector<1x128xf32> to vector<1x1x128xf32>
    %8 = vector.broadcast %7 : vector<1x1x128xf32> to vector<1x66x128xf32>
    %9 = arith.addf %5, %8 : vector<1x66x128xf32>
    %cst = arith.constant 0.000000e+00 : f32
    %10 = vector.broadcast %cst : f32 to vector<1x66x128xf32>
    %11 = arith.cmpf oge, %9, %10 : vector<1x66x128xf32>
    %cst_6 = arith.constant 2.000000e-01 : f32
    %12 = vector.broadcast %cst_6 : f32 to vector<1x66x128xf32>
    %13 = arith.mulf %12, %9 : vector<1x66x128xf32>
    %14 = arith.select %11, %9, %13 : vector<1x66x128xi1>, vector<1x66x128xf32>
    %15 = arith.truncf %14 : vector<1x66x128xf32> to vector<1x66x128xbf16>
    %c0_7 = arith.constant 0 : index
    %c0_8 = arith.constant 0 : index
    %c0_9 = arith.constant 0 : index
    %16 = vector.load %arg4[%c0_7, %c0_8, %c0_9] : memref<1x66x128xbf16, #tpu.memory_space<vmem>>, vector<1x66x128xbf16>
    tpu.vector_store %arg4[%c0_7, %c0_8, %c0_9], %15 {strides = array<i32>} : memref<1x66x128xbf16, #tpu.memory_space<vmem>>, vector<1x66x128xbf16>,
    return
  }
  func.func @transform_0(%arg0: i32) -> (i32, i32, i32) {
    %c0_i32 = arith.constant 0 : i32
    %c0_i32_0 = arith.constant 0 : i32
    %c0_i32_1 = arith.constant 0 : i32
    return %arg0, %c0_i32, %c0_i32_0 : i32, i32, i32
  }
  func.func @transform_1(%arg0: i32) -> (i32, i32) {
    %c0_i32 = arith.constant 0 : i32
    %c0_i32_0 = arith.constant 0 : i32
    %c0_i32_1 = arith.constant 0 : i32
    return %c0_i32, %c0_i32_0 : i32, i32
  }
  func.func @transform_2(%arg0: i32) -> (i32, i32) {
    %c0_i32 = arith.constant 0 : i32
    %c0_i32_0 = arith.constant 0 : i32
    %c0_i32_1 = arith.constant 0 : i32
    return %c0_i32, %c0_i32_0 : i32, i32
  }
  func.func @transform_3(%arg0: i32) -> (i32, i32, i32) {
    %c0_i32 = arith.constant 0 : i32
    %c0_i32_0 = arith.constant 0 : i32
    %c0_i32_1 = arith.constant 0 : i32
    return %arg0, %c0_i32, %c0_i32_0 : i32, i32, i32
  }
}

module attributes {stable_mosaic.version = 11 : i64} {
  func.func @_conv_stats_kernel(%arg0: i32, %arg1: memref<1x272x128xbf16, #tpu.memory_space<vmem>>, %arg2: memref<1x128x16xbf16, #tpu.memory_space<vmem>>, %arg3: memref<1x272x16xbf16, #tpu.memory_space<vmem>>, %arg4: memref<1x2x16xf32, #tpu.memory_space<vmem>>, %arg5: memref<272x16xf32, #tpu.memory_space<vmem>>) attributes {dimension_semantics = [#tpu.dimension_semantics<parallel>], iteration_bounds = array<i64: 2>, scalar_prefetch = 0 : i64, scratch_operands = 1 : i64, tpu.core_type = #tpu.core_type<tc>, window_params = [{transform_indices = @transform_0, window_bounds = array<i64: 1, 272, 128>}, {pipeline_mode = #tpu.pipeline_mode<synchronous>, transform_indices = @transform_1, window_bounds = array<i64: 1, 128, 16>}, {transform_indices = @transform_2, window_bounds = array<i64: 1, 272, 16>}, {transform_indices = @transform_3, window_bounds = array<i64: 1, 2, 16>}]} {
    %0 = tpu.iota {dimensions = array<i32: 0>} : vector<272x1xi32>
    %1 = arith.sitofp %0 : vector<272x1xi32> to vector<272x1xf32>
    %cst = arith.constant 5.000000e-01 : f32
    %2 = vector.broadcast %cst : f32 to vector<272x1xf32>
    %3 = arith.addf %1, %2 : vector<272x1xf32>
    %cst_0 = arith.constant 0.0588235296 : f32
    %4 = vector.broadcast %cst_0 : f32 to vector<272x1xf32>
    %5 = arith.mulf %3, %4 : vector<272x1xf32>
    %6 = math.floor %5 : vector<272x1xf32>
    %cst_1 = arith.constant 1.700000e+01 : f32
    %7 = vector.broadcast %cst_1 : f32 to vector<272x1xf32>
    %8 = arith.mulf %6, %7 : vector<272x1xf32>
    %9 = arith.subf %1, %8 : vector<272x1xf32>
    %cst_2 = arith.constant 1.550000e+01 : f32
    %10 = vector.broadcast %cst_2 : f32 to vector<272x1xf32>
    %11 = arith.cmpf olt, %9, %10 : vector<272x1xf32>
    %c0 = arith.constant 0 : index
    %c0_3 = arith.constant 0 : index
    %c0_4 = arith.constant 0 : index
    %12 = vector.load %arg1[%c0, %c0_3, %c0_4] : memref<1x272x128xbf16, #tpu.memory_space<vmem>>, vector<1x272x128xbf16>
    %13 = vector.shape_cast %12 : vector<1x272x128xbf16> to vector<272x128xbf16>
    %c0_5 = arith.constant 0 : index
    %c0_6 = arith.constant 0 : index
    %c0_7 = arith.constant 0 : index
    %14 = vector.load %arg2[%c0_5, %c0_6, %c0_7] : memref<1x128x16xbf16, #tpu.memory_space<vmem>>, vector<1x128x16xbf16>
    %15 = vector.shape_cast %14 : vector<1x128x16xbf16> to vector<128x16xbf16>
    %cst_8 = arith.constant dense<0.000000e+00> : vector<272x16xf32>
    %16 = tpu.matmul %13, %15, %cst_8 {dimension_numbers = #tpu.dot_dimension_numbers<[1], [0], [0], [1], [0, 0, 1, 1], [], []>} : vector<272x128xbf16>, vector<128x16xbf16>, vector<272x16xf32> -> vector<272x16xf32>
    %c0_9 = arith.constant 0 : index
    %c0_10 = arith.constant 0 : index
    %17 = vector.load %arg5[%c0_9, %c0_10] : memref<272x16xf32, #tpu.memory_space<vmem>>, vector<272x16xf32>
    tpu.vector_store %arg5[%c0_9, %c0_10], %16 {strides = array<i32>} : memref<272x16xf32, #tpu.memory_space<vmem>>, vector<272x16xf32>,
    %c0_11 = arith.constant 0 : index
    %c0_12 = arith.constant 0 : index
    %18 = vector.load %arg5[%c0_11, %c0_12] : memref<272x16xf32, #tpu.memory_space<vmem>>, vector<272x16xf32>
    %cst_13 = arith.constant 0.000000e+00 : f32
    %19 = vector.shape_cast %11 : vector<272x1xi1> to vector<272x1xi1>
    %20 = vector.broadcast %19 : vector<272x1xi1> to vector<272x16xi1>
    %21 = vector.broadcast %cst_13 : f32 to vector<272x16xf32>
    %22 = arith.select %20, %18, %21 : vector<272x16xi1>, vector<272x16xf32>
    %cst_14 = arith.constant dense<0.000000e+00> : vector<16xf32>
    %23 = vector.multi_reduction <add>, %22, %cst_14 [0] : vector<272x16xf32> to vector<16xf32>
    %24 = vector.shape_cast %23 : vector<16xf32> to vector<1x16xf32>
    %25 = arith.mulf %18, %18 : vector<272x16xf32>
    %cst_15 = arith.constant 0.000000e+00 : f32
    %26 = vector.shape_cast %11 : vector<272x1xi1> to vector<272x1xi1>
    %27 = vector.broadcast %26 : vector<272x1xi1> to vector<272x16xi1>
    %28 = vector.broadcast %cst_15 : f32 to vector<272x16xf32>
    %29 = arith.select %27, %25, %28 : vector<272x16xi1>, vector<272x16xf32>
    %cst_16 = arith.constant dense<0.000000e+00> : vector<16xf32>
    %30 = vector.multi_reduction <add>, %29, %cst_16 [0] : vector<272x16xf32> to vector<16xf32>
    %31 = vector.shape_cast %30 : vector<16xf32> to vector<1x16xf32>
    %32 = tpu.concatenate %24, %31 in 0 : vector<1x16xf32>, vector<1x16xf32> -> vector<2x16xf32>
    %c0_17 = arith.constant 0 : index
    %c0_18 = arith.constant 0 : index
    %c0_19 = arith.constant 0 : index
    %33 = vector.load %arg4[%c0_17, %c0_18, %c0_19] : memref<1x2x16xf32, #tpu.memory_space<vmem>>, vector<1x2x16xf32>
    %34 = vector.shape_cast %33 : vector<1x2x16xf32> to vector<2x16xf32>
    %35 = vector.shape_cast %32 : vector<2x16xf32> to vector<1x2x16xf32>
    tpu.vector_store %arg4[%c0_17, %c0_18, %c0_19], %35 {strides = array<i32>} : memref<1x2x16xf32, #tpu.memory_space<vmem>>, vector<1x2x16xf32>,
    %36 = arith.truncf %18 : vector<272x16xf32> to vector<272x16xbf16>
    %c0_20 = arith.constant 0 : index
    %c0_21 = arith.constant 0 : index
    %c0_22 = arith.constant 0 : index
    %37 = vector.load %arg3[%c0_20, %c0_21, %c0_22] : memref<1x272x16xbf16, #tpu.memory_space<vmem>>, vector<1x272x16xbf16>
    %38 = vector.shape_cast %37 : vector<1x272x16xbf16> to vector<272x16xbf16>
    %39 = vector.shape_cast %36 : vector<272x16xbf16> to vector<1x272x16xbf16>
    tpu.vector_store %arg3[%c0_20, %c0_21, %c0_22], %39 {strides = array<i32>} : memref<1x272x16xbf16, #tpu.memory_space<vmem>>, vector<1x272x16xbf16>,
    return
  }
  func.func @transform_0(%arg0: i32) -> (i32, i32, i32) {
    %c0_i32 = arith.constant 0 : i32
    %c0_i32_0 = arith.constant 0 : i32
    %c0_i32_1 = arith.constant 0 : i32
    return %arg0, %c0_i32, %c0_i32_0 : i32, i32, i32
  }
  func.func @transform_1(%arg0: i32) -> (i32, i32, i32) {
    %c0_i32 = arith.constant 0 : i32
    %c0_i32_0 = arith.constant 0 : i32
    %c0_i32_1 = arith.constant 0 : i32
    %c0_i32_2 = arith.constant 0 : i32
    return %c0_i32, %c0_i32_0, %c0_i32_1 : i32, i32, i32
  }
  func.func @transform_2(%arg0: i32) -> (i32, i32, i32) {
    %c0_i32 = arith.constant 0 : i32
    %c0_i32_0 = arith.constant 0 : i32
    %c0_i32_1 = arith.constant 0 : i32
    return %arg0, %c0_i32, %c0_i32_0 : i32, i32, i32
  }
  func.func @transform_3(%arg0: i32) -> (i32, i32, i32) {
    %c0_i32 = arith.constant 0 : i32
    %c0_i32_0 = arith.constant 0 : i32
    %c0_i32_1 = arith.constant 0 : i32
    return %arg0, %c0_i32, %c0_i32_0 : i32, i32, i32
  }
}

module attributes {stable_mosaic.version = 11 : i64} {
  func.func @_bn_lrelu_kernel(%arg0: i32, %arg1: memref<1x34x128xbf16, #tpu.memory_space<vmem>>, %arg2: memref<1x128xf32, #tpu.memory_space<vmem>>, %arg3: memref<1x128xf32, #tpu.memory_space<vmem>>, %arg4: memref<1x34x128xbf16, #tpu.memory_space<vmem>>) attributes {dimension_semantics = [#tpu.dimension_semantics<parallel>], iteration_bounds = array<i64: 2>, scalar_prefetch = 0 : i64, scratch_operands = 0 : i64, tpu.core_type = #tpu.core_type<tc>, window_params = [{transform_indices = @transform_0, window_bounds = array<i64: 1, 34, 128>}, {pipeline_mode = #tpu.pipeline_mode<synchronous>, transform_indices = @transform_1, window_bounds = array<i64: 1, 128>}, {pipeline_mode = #tpu.pipeline_mode<synchronous>, transform_indices = @transform_2, window_bounds = array<i64: 1, 128>}, {transform_indices = @transform_3, window_bounds = array<i64: 1, 34, 128>}]} {
    %c0 = arith.constant 0 : index
    %c0_0 = arith.constant 0 : index
    %c0_1 = arith.constant 0 : index
    %0 = vector.load %arg1[%c0, %c0_0, %c0_1] : memref<1x34x128xbf16, #tpu.memory_space<vmem>>, vector<1x34x128xbf16>
    %1 = arith.extf %0 : vector<1x34x128xbf16> to vector<1x34x128xf32>
    %c0_2 = arith.constant 0 : index
    %c0_3 = arith.constant 0 : index
    %2 = vector.load %arg2[%c0_2, %c0_3] : memref<1x128xf32, #tpu.memory_space<vmem>>, vector<1x128xf32>
    %3 = vector.shape_cast %2 : vector<1x128xf32> to vector<1x1x128xf32>
    %4 = vector.broadcast %3 : vector<1x1x128xf32> to vector<1x34x128xf32>
    %5 = arith.mulf %1, %4 : vector<1x34x128xf32>
    %c0_4 = arith.constant 0 : index
    %c0_5 = arith.constant 0 : index
    %6 = vector.load %arg3[%c0_4, %c0_5] : memref<1x128xf32, #tpu.memory_space<vmem>>, vector<1x128xf32>
    %7 = vector.shape_cast %6 : vector<1x128xf32> to vector<1x1x128xf32>
    %8 = vector.broadcast %7 : vector<1x1x128xf32> to vector<1x34x128xf32>
    %9 = arith.addf %5, %8 : vector<1x34x128xf32>
    %cst = arith.constant 0.000000e+00 : f32
    %10 = vector.broadcast %cst : f32 to vector<1x34x128xf32>
    %11 = arith.cmpf oge, %9, %10 : vector<1x34x128xf32>
    %cst_6 = arith.constant 2.000000e-01 : f32
    %12 = vector.broadcast %cst_6 : f32 to vector<1x34x128xf32>
    %13 = arith.mulf %12, %9 : vector<1x34x128xf32>
    %14 = arith.select %11, %9, %13 : vector<1x34x128xi1>, vector<1x34x128xf32>
    %15 = arith.truncf %14 : vector<1x34x128xf32> to vector<1x34x128xbf16>
    %c0_7 = arith.constant 0 : index
    %c0_8 = arith.constant 0 : index
    %c0_9 = arith.constant 0 : index
    %16 = vector.load %arg4[%c0_7, %c0_8, %c0_9] : memref<1x34x128xbf16, #tpu.memory_space<vmem>>, vector<1x34x128xbf16>
    tpu.vector_store %arg4[%c0_7, %c0_8, %c0_9], %15 {strides = array<i32>} : memref<1x34x128xbf16, #tpu.memory_space<vmem>>, vector<1x34x128xbf16>,
    return
  }
  func.func @transform_0(%arg0: i32) -> (i32, i32, i32) {
    %c0_i32 = arith.constant 0 : i32
    %c0_i32_0 = arith.constant 0 : i32
    %c0_i32_1 = arith.constant 0 : i32
    return %arg0, %c0_i32, %c0_i32_0 : i32, i32, i32
  }
  func.func @transform_1(%arg0: i32) -> (i32, i32) {
    %c0_i32 = arith.constant 0 : i32
    %c0_i32_0 = arith.constant 0 : i32
    %c0_i32_1 = arith.constant 0 : i32
    return %c0_i32, %c0_i32_0 : i32, i32
  }
  func.func @transform_2(%arg0: i32) -> (i32, i32) {
    %c0_i32 = arith.constant 0 : i32
    %c0_i32_0 = arith.constant 0 : i32
    %c0_i32_1 = arith.constant 0 : i32
    return %c0_i32, %c0_i32_0 : i32, i32
  }
  func.func @transform_3(%arg0: i32) -> (i32, i32, i32) {
    %c0_i32 = arith.constant 0 : i32
    %c0_i32_0 = arith.constant 0 : i32
    %c0_i32_1 = arith.constant 0 : i32
    return %arg0, %c0_i32, %c0_i32_0 : i32, i32, i32
  }
}

module attributes {stable_mosaic.version = 11 : i64} {
  func.func @_conv_stats_kernel(%arg0: i32, %arg1: memref<1x96x64xbf16, #tpu.memory_space<vmem>>, %arg2: memref<4x64x32xbf16, #tpu.memory_space<vmem>>, %arg3: memref<1x72x32xbf16, #tpu.memory_space<vmem>>, %arg4: memref<1x2x32xf32, #tpu.memory_space<vmem>>, %arg5: memref<72x32xf32, #tpu.memory_space<vmem>>) attributes {dimension_semantics = [#tpu.dimension_semantics<parallel>], iteration_bounds = array<i64: 2>, scalar_prefetch = 0 : i64, scratch_operands = 1 : i64, tpu.core_type = #tpu.core_type<tc>, window_params = [{transform_indices = @transform_0, window_bounds = array<i64: 1, 96, 64>}, {pipeline_mode = #tpu.pipeline_mode<synchronous>, transform_indices = @transform_1, window_bounds = array<i64: 4, 64, 32>}, {transform_indices = @transform_2, window_bounds = array<i64: 1, 72, 32>}, {transform_indices = @transform_3, window_bounds = array<i64: 1, 2, 32>}]} {
    %0 = tpu.iota {dimensions = array<i32: 0>} : vector<72x1xi32>
    %1 = arith.sitofp %0 : vector<72x1xi32> to vector<72x1xf32>
    %cst = arith.constant 5.000000e-01 : f32
    %2 = vector.broadcast %cst : f32 to vector<72x1xf32>
    %3 = arith.addf %1, %2 : vector<72x1xf32>
    %cst_0 = arith.constant 0.111111112 : f32
    %4 = vector.broadcast %cst_0 : f32 to vector<72x1xf32>
    %5 = arith.mulf %3, %4 : vector<72x1xf32>
    %6 = math.floor %5 : vector<72x1xf32>
    %cst_1 = arith.constant 9.000000e+00 : f32
    %7 = vector.broadcast %cst_1 : f32 to vector<72x1xf32>
    %8 = arith.mulf %6, %7 : vector<72x1xf32>
    %9 = arith.subf %1, %8 : vector<72x1xf32>
    %cst_2 = arith.constant 7.500000e+00 : f32
    %10 = vector.broadcast %cst_2 : f32 to vector<72x1xf32>
    %11 = arith.cmpf olt, %9, %10 : vector<72x1xf32>
    %c0 = arith.constant 0 : index
    %c0_3 = arith.constant 0 : index
    %c0_4 = arith.constant 0 : index
    %12 = vector.load %arg1[%c0, %c0_3, %c0_4] : memref<1x96x64xbf16, #tpu.memory_space<vmem>>, vector<1x72x64xbf16>
    %13 = vector.shape_cast %12 : vector<1x72x64xbf16> to vector<72x64xbf16>
    %c0_5 = arith.constant 0 : index
    %c0_6 = arith.constant 0 : index
    %c0_7 = arith.constant 0 : index
    %14 = vector.load %arg2[%c0_5, %c0_6, %c0_7] : memref<4x64x32xbf16, #tpu.memory_space<vmem>>, vector<1x64x32xbf16>
    %15 = vector.shape_cast %14 : vector<1x64x32xbf16> to vector<64x32xbf16>
    %cst_8 = arith.constant dense<0.000000e+00> : vector<72x32xf32>
    %16 = tpu.matmul %13, %15, %cst_8 {dimension_numbers = #tpu.dot_dimension_numbers<[1], [0], [0], [1], [0, 0, 1, 1], [], []>} : vector<72x64xbf16>, vector<64x32xbf16>, vector<72x32xf32> -> vector<72x32xf32>
    %c0_9 = arith.constant 0 : index
    %c0_10 = arith.constant 0 : index
    %17 = vector.load %arg5[%c0_9, %c0_10] : memref<72x32xf32, #tpu.memory_space<vmem>>, vector<72x32xf32>
    tpu.vector_store %arg5[%c0_9, %c0_10], %16 {strides = array<i32>} : memref<72x32xf32, #tpu.memory_space<vmem>>, vector<72x32xf32>,
    %c0_11 = arith.constant 0 : index
    %c0_12 = arith.constant 0 : index
    %18 = vector.load %arg5[%c0_11, %c0_12] : memref<72x32xf32, #tpu.memory_space<vmem>>, vector<72x32xf32>
    %c0_13 = arith.constant 0 : index
    %c1 = arith.constant 1 : index
    %c0_14 = arith.constant 0 : index
    %19 = vector.load %arg1[%c0_13, %c1, %c0_14] : memref<1x96x64xbf16, #tpu.memory_space<vmem>>, vector<1x72x64xbf16>
    %20 = vector.shape_cast %19 : vector<1x72x64xbf16> to vector<72x64xbf16>
    %c1_15 = arith.constant 1 : index
    %c0_16 = arith.constant 0 : index
    %c0_17 = arith.constant 0 : index
    %21 = vector.load %arg2[%c1_15, %c0_16, %c0_17] : memref<4x64x32xbf16, #tpu.memory_space<vmem>>, vector<1x64x32xbf16>
    %22 = vector.shape_cast %21 : vector<1x64x32xbf16> to vector<64x32xbf16>
    %cst_18 = arith.constant dense<0.000000e+00> : vector<72x32xf32>
    %23 = tpu.matmul %20, %22, %cst_18 {dimension_numbers = #tpu.dot_dimension_numbers<[1], [0], [0], [1], [0, 0, 1, 1], [], []>} : vector<72x64xbf16>, vector<64x32xbf16>, vector<72x32xf32> -> vector<72x32xf32>
    %24 = arith.addf %18, %23 : vector<72x32xf32>
    %c0_19 = arith.constant 0 : index
    %c0_20 = arith.constant 0 : index
    %25 = vector.load %arg5[%c0_19, %c0_20] : memref<72x32xf32, #tpu.memory_space<vmem>>, vector<72x32xf32>
    tpu.vector_store %arg5[%c0_19, %c0_20], %24 {strides = array<i32>} : memref<72x32xf32, #tpu.memory_space<vmem>>, vector<72x32xf32>,
    %c0_21 = arith.constant 0 : index
    %c0_22 = arith.constant 0 : index
    %26 = vector.load %arg5[%c0_21, %c0_22] : memref<72x32xf32, #tpu.memory_space<vmem>>, vector<72x32xf32>
    %c0_23 = arith.constant 0 : index
    %c9 = arith.constant 9 : index
    %c0_24 = arith.constant 0 : index
    %27 = vector.load %arg1[%c0_23, %c9, %c0_24] : memref<1x96x64xbf16, #tpu.memory_space<vmem>>, vector<1x72x64xbf16>
    %28 = vector.shape_cast %27 : vector<1x72x64xbf16> to vector<72x64xbf16>
    %c2 = arith.constant 2 : index
    %c0_25 = arith.constant 0 : index
    %c0_26 = arith.constant 0 : index
    %29 = vector.load %arg2[%c2, %c0_25, %c0_26] : memref<4x64x32xbf16, #tpu.memory_space<vmem>>, vector<1x64x32xbf16>
    %30 = vector.shape_cast %29 : vector<1x64x32xbf16> to vector<64x32xbf16>
    %cst_27 = arith.constant dense<0.000000e+00> : vector<72x32xf32>
    %31 = tpu.matmul %28, %30, %cst_27 {dimension_numbers = #tpu.dot_dimension_numbers<[1], [0], [0], [1], [0, 0, 1, 1], [], []>} : vector<72x64xbf16>, vector<64x32xbf16>, vector<72x32xf32> -> vector<72x32xf32>
    %32 = arith.addf %26, %31 : vector<72x32xf32>
    %c0_28 = arith.constant 0 : index
    %c0_29 = arith.constant 0 : index
    %33 = vector.load %arg5[%c0_28, %c0_29] : memref<72x32xf32, #tpu.memory_space<vmem>>, vector<72x32xf32>
    tpu.vector_store %arg5[%c0_28, %c0_29], %32 {strides = array<i32>} : memref<72x32xf32, #tpu.memory_space<vmem>>, vector<72x32xf32>,
    %c0_30 = arith.constant 0 : index
    %c0_31 = arith.constant 0 : index
    %34 = vector.load %arg5[%c0_30, %c0_31] : memref<72x32xf32, #tpu.memory_space<vmem>>, vector<72x32xf32>
    %c0_32 = arith.constant 0 : index
    %c10 = arith.constant 10 : index
    %c0_33 = arith.constant 0 : index
    %35 = vector.load %arg1[%c0_32, %c10, %c0_33] : memref<1x96x64xbf16, #tpu.memory_space<vmem>>, vector<1x72x64xbf16>
    %36 = vector.shape_cast %35 : vector<1x72x64xbf16> to vector<72x64xbf16>
    %c3 = arith.constant 3 : index
    %c0_34 = arith.constant 0 : index
    %c0_35 = arith.constant 0 : index
    %37 = vector.load %arg2[%c3, %c0_34, %c0_35] : memref<4x64x32xbf16, #tpu.memory_space<vmem>>, vector<1x64x32xbf16>
    %38 = vector.shape_cast %37 : vector<1x64x32xbf16> to vector<64x32xbf16>
    %cst_36 = arith.constant dense<0.000000e+00> : vector<72x32xf32>
    %39 = tpu.matmul %36, %38, %cst_36 {dimension_numbers = #tpu.dot_dimension_numbers<[1], [0], [0], [1], [0, 0, 1, 1], [], []>} : vector<72x64xbf16>, vector<64x32xbf16>, vector<72x32xf32> -> vector<72x32xf32>
    %40 = arith.addf %34, %39 : vector<72x32xf32>
    %c0_37 = arith.constant 0 : index
    %c0_38 = arith.constant 0 : index
    %41 = vector.load %arg5[%c0_37, %c0_38] : memref<72x32xf32, #tpu.memory_space<vmem>>, vector<72x32xf32>
    tpu.vector_store %arg5[%c0_37, %c0_38], %40 {strides = array<i32>} : memref<72x32xf32, #tpu.memory_space<vmem>>, vector<72x32xf32>,
    %c0_39 = arith.constant 0 : index
    %c0_40 = arith.constant 0 : index
    %42 = vector.load %arg5[%c0_39, %c0_40] : memref<72x32xf32, #tpu.memory_space<vmem>>, vector<72x32xf32>
    %cst_41 = arith.constant 0.000000e+00 : f32
    %43 = vector.shape_cast %11 : vector<72x1xi1> to vector<72x1xi1>
    %44 = vector.broadcast %43 : vector<72x1xi1> to vector<72x32xi1>
    %45 = vector.broadcast %cst_41 : f32 to vector<72x32xf32>
    %46 = arith.select %44, %42, %45 : vector<72x32xi1>, vector<72x32xf32>
    %cst_42 = arith.constant dense<0.000000e+00> : vector<32xf32>
    %47 = vector.multi_reduction <add>, %46, %cst_42 [0] : vector<72x32xf32> to vector<32xf32>
    %48 = vector.shape_cast %47 : vector<32xf32> to vector<1x32xf32>
    %49 = arith.mulf %42, %42 : vector<72x32xf32>
    %cst_43 = arith.constant 0.000000e+00 : f32
    %50 = vector.shape_cast %11 : vector<72x1xi1> to vector<72x1xi1>
    %51 = vector.broadcast %50 : vector<72x1xi1> to vector<72x32xi1>
    %52 = vector.broadcast %cst_43 : f32 to vector<72x32xf32>
    %53 = arith.select %51, %49, %52 : vector<72x32xi1>, vector<72x32xf32>
    %cst_44 = arith.constant dense<0.000000e+00> : vector<32xf32>
    %54 = vector.multi_reduction <add>, %53, %cst_44 [0] : vector<72x32xf32> to vector<32xf32>
    %55 = vector.shape_cast %54 : vector<32xf32> to vector<1x32xf32>
    %56 = tpu.concatenate %48, %55 in 0 : vector<1x32xf32>, vector<1x32xf32> -> vector<2x32xf32>
    %c0_45 = arith.constant 0 : index
    %c0_46 = arith.constant 0 : index
    %c0_47 = arith.constant 0 : index
    %57 = vector.load %arg4[%c0_45, %c0_46, %c0_47] : memref<1x2x32xf32, #tpu.memory_space<vmem>>, vector<1x2x32xf32>
    %58 = vector.shape_cast %57 : vector<1x2x32xf32> to vector<2x32xf32>
    %59 = vector.shape_cast %56 : vector<2x32xf32> to vector<1x2x32xf32>
    tpu.vector_store %arg4[%c0_45, %c0_46, %c0_47], %59 {strides = array<i32>} : memref<1x2x32xf32, #tpu.memory_space<vmem>>, vector<1x2x32xf32>,
    %60 = arith.truncf %42 : vector<72x32xf32> to vector<72x32xbf16>
    %c0_48 = arith.constant 0 : index
    %c0_49 = arith.constant 0 : index
    %c0_50 = arith.constant 0 : index
    %61 = vector.load %arg3[%c0_48, %c0_49, %c0_50] : memref<1x72x32xbf16, #tpu.memory_space<vmem>>, vector<1x72x32xbf16>
    %62 = vector.shape_cast %61 : vector<1x72x32xbf16> to vector<72x32xbf16>
    %63 = vector.shape_cast %60 : vector<72x32xbf16> to vector<1x72x32xbf16>
    tpu.vector_store %arg3[%c0_48, %c0_49, %c0_50], %63 {strides = array<i32>} : memref<1x72x32xbf16, #tpu.memory_space<vmem>>, vector<1x72x32xbf16>,
    return
  }
  func.func @transform_0(%arg0: i32) -> (i32, i32, i32) {
    %c0_i32 = arith.constant 0 : i32
    %c0_i32_0 = arith.constant 0 : i32
    %c0_i32_1 = arith.constant 0 : i32
    return %arg0, %c0_i32, %c0_i32_0 : i32, i32, i32
  }
  func.func @transform_1(%arg0: i32) -> (i32, i32, i32) {
    %c0_i32 = arith.constant 0 : i32
    %c0_i32_0 = arith.constant 0 : i32
    %c0_i32_1 = arith.constant 0 : i32
    %c0_i32_2 = arith.constant 0 : i32
    return %c0_i32, %c0_i32_0, %c0_i32_1 : i32, i32, i32
  }
  func.func @transform_2(%arg0: i32) -> (i32, i32, i32) {
    %c0_i32 = arith.constant 0 : i32
    %c0_i32_0 = arith.constant 0 : i32
    %c0_i32_1 = arith.constant 0 : i32
    return %arg0, %c0_i32, %c0_i32_0 : i32, i32, i32
  }
  func.func @transform_3(%arg0: i32) -> (i32, i32, i32) {
    %c0_i32 = arith.constant 0 : i32
    %c0_i32_0 = arith.constant 0 : i32
    %c0_i32_1 = arith.constant 0 : i32
    return %arg0, %c0_i32, %c0_i32_0 : i32, i32, i32
  }
}

module attributes {stable_mosaic.version = 11 : i64} {
  func.func @_bn_lrelu_kernel(%arg0: i32, %arg1: memref<1x18x128xbf16, #tpu.memory_space<vmem>>, %arg2: memref<1x128xf32, #tpu.memory_space<vmem>>, %arg3: memref<1x128xf32, #tpu.memory_space<vmem>>, %arg4: memref<1x18x128xbf16, #tpu.memory_space<vmem>>) attributes {dimension_semantics = [#tpu.dimension_semantics<parallel>], iteration_bounds = array<i64: 2>, scalar_prefetch = 0 : i64, scratch_operands = 0 : i64, tpu.core_type = #tpu.core_type<tc>, window_params = [{transform_indices = @transform_0, window_bounds = array<i64: 1, 18, 128>}, {pipeline_mode = #tpu.pipeline_mode<synchronous>, transform_indices = @transform_1, window_bounds = array<i64: 1, 128>}, {pipeline_mode = #tpu.pipeline_mode<synchronous>, transform_indices = @transform_2, window_bounds = array<i64: 1, 128>}, {transform_indices = @transform_3, window_bounds = array<i64: 1, 18, 128>}]} {
    %c0 = arith.constant 0 : index
    %c0_0 = arith.constant 0 : index
    %c0_1 = arith.constant 0 : index
    %0 = vector.load %arg1[%c0, %c0_0, %c0_1] : memref<1x18x128xbf16, #tpu.memory_space<vmem>>, vector<1x18x128xbf16>
    %1 = arith.extf %0 : vector<1x18x128xbf16> to vector<1x18x128xf32>
    %c0_2 = arith.constant 0 : index
    %c0_3 = arith.constant 0 : index
    %2 = vector.load %arg2[%c0_2, %c0_3] : memref<1x128xf32, #tpu.memory_space<vmem>>, vector<1x128xf32>
    %3 = vector.shape_cast %2 : vector<1x128xf32> to vector<1x1x128xf32>
    %4 = vector.broadcast %3 : vector<1x1x128xf32> to vector<1x18x128xf32>
    %5 = arith.mulf %1, %4 : vector<1x18x128xf32>
    %c0_4 = arith.constant 0 : index
    %c0_5 = arith.constant 0 : index
    %6 = vector.load %arg3[%c0_4, %c0_5] : memref<1x128xf32, #tpu.memory_space<vmem>>, vector<1x128xf32>
    %7 = vector.shape_cast %6 : vector<1x128xf32> to vector<1x1x128xf32>
    %8 = vector.broadcast %7 : vector<1x1x128xf32> to vector<1x18x128xf32>
    %9 = arith.addf %5, %8 : vector<1x18x128xf32>
    %cst = arith.constant 0.000000e+00 : f32
    %10 = vector.broadcast %cst : f32 to vector<1x18x128xf32>
    %11 = arith.cmpf oge, %9, %10 : vector<1x18x128xf32>
    %cst_6 = arith.constant 2.000000e-01 : f32
    %12 = vector.broadcast %cst_6 : f32 to vector<1x18x128xf32>
    %13 = arith.mulf %12, %9 : vector<1x18x128xf32>
    %14 = arith.select %11, %9, %13 : vector<1x18x128xi1>, vector<1x18x128xf32>
    %15 = arith.truncf %14 : vector<1x18x128xf32> to vector<1x18x128xbf16>
    %c0_7 = arith.constant 0 : index
    %c0_8 = arith.constant 0 : index
    %c0_9 = arith.constant 0 : index
    %16 = vector.load %arg4[%c0_7, %c0_8, %c0_9] : memref<1x18x128xbf16, #tpu.memory_space<vmem>>, vector<1x18x128xbf16>
    tpu.vector_store %arg4[%c0_7, %c0_8, %c0_9], %15 {strides = array<i32>} : memref<1x18x128xbf16, #tpu.memory_space<vmem>>, vector<1x18x128xbf16>,
    return
  }
  func.func @transform_0(%arg0: i32) -> (i32, i32, i32) {
    %c0_i32 = arith.constant 0 : i32
    %c0_i32_0 = arith.constant 0 : i32
    %c0_i32_1 = arith.constant 0 : i32
    return %arg0, %c0_i32, %c0_i32_0 : i32, i32, i32
  }
  func.func @transform_1(%arg0: i32) -> (i32, i32) {
    %c0_i32 = arith.constant 0 : i32
    %c0_i32_0 = arith.constant 0 : i32
    %c0_i32_1 = arith.constant 0 : i32
    return %c0_i32, %c0_i32_0 : i32, i32
  }
  func.func @transform_2(%arg0: i32) -> (i32, i32) {
    %c0_i32 = arith.constant 0 : i32
    %c0_i32_0 = arith.constant 0 : i32
    %c0_i32_1 = arith.constant 0 : i32
    return %c0_i32, %c0_i32_0 : i32, i32
  }
  func.func @transform_3(%arg0: i32) -> (i32, i32, i32) {
    %c0_i32 = arith.constant 0 : i32
    %c0_i32_0 = arith.constant 0 : i32
    %c0_i32_1 = arith.constant 0 : i32
    return %arg0, %c0_i32, %c0_i32_0 : i32, i32, i32
  }
}

module attributes {stable_mosaic.version = 11 : i64} {
  func.func @_conv_stats_kernel(%arg0: i32, %arg1: memref<1x32x128xbf16, #tpu.memory_space<vmem>>, %arg2: memref<4x128x64xbf16, #tpu.memory_space<vmem>>, %arg3: memref<1x20x64xbf16, #tpu.memory_space<vmem>>, %arg4: memref<1x2x64xf32, #tpu.memory_space<vmem>>, %arg5: memref<20x64xf32, #tpu.memory_space<vmem>>) attributes {dimension_semantics = [#tpu.dimension_semantics<parallel>], iteration_bounds = array<i64: 2>, scalar_prefetch = 0 : i64, scratch_operands = 1 : i64, tpu.core_type = #tpu.core_type<tc>, window_params = [{transform_indices = @transform_0, window_bounds = array<i64: 1, 32, 128>}, {pipeline_mode = #tpu.pipeline_mode<synchronous>, transform_indices = @transform_1, window_bounds = array<i64: 4, 128, 64>}, {transform_indices = @transform_2, window_bounds = array<i64: 1, 20, 64>}, {transform_indices = @transform_3, window_bounds = array<i64: 1, 2, 64>}]} {
    %0 = tpu.iota {dimensions = array<i32: 0>} : vector<20x1xi32>
    %1 = arith.sitofp %0 : vector<20x1xi32> to vector<20x1xf32>
    %cst = arith.constant 5.000000e-01 : f32
    %2 = vector.broadcast %cst : f32 to vector<20x1xf32>
    %3 = arith.addf %1, %2 : vector<20x1xf32>
    %cst_0 = arith.constant 2.000000e-01 : f32
    %4 = vector.broadcast %cst_0 : f32 to vector<20x1xf32>
    %5 = arith.mulf %3, %4 : vector<20x1xf32>
    %6 = math.floor %5 : vector<20x1xf32>
    %cst_1 = arith.constant 5.000000e+00 : f32
    %7 = vector.broadcast %cst_1 : f32 to vector<20x1xf32>
    %8 = arith.mulf %6, %7 : vector<20x1xf32>
    %9 = arith.subf %1, %8 : vector<20x1xf32>
    %cst_2 = arith.constant 3.500000e+00 : f32
    %10 = vector.broadcast %cst_2 : f32 to vector<20x1xf32>
    %11 = arith.cmpf olt, %9, %10 : vector<20x1xf32>
    %c0 = arith.constant 0 : index
    %c0_3 = arith.constant 0 : index
    %c0_4 = arith.constant 0 : index
    %12 = vector.load %arg1[%c0, %c0_3, %c0_4] : memref<1x32x128xbf16, #tpu.memory_space<vmem>>, vector<1x20x128xbf16>
    %13 = vector.shape_cast %12 : vector<1x20x128xbf16> to vector<20x128xbf16>
    %c0_5 = arith.constant 0 : index
    %c0_6 = arith.constant 0 : index
    %c0_7 = arith.constant 0 : index
    %14 = vector.load %arg2[%c0_5, %c0_6, %c0_7] : memref<4x128x64xbf16, #tpu.memory_space<vmem>>, vector<1x128x64xbf16>
    %15 = vector.shape_cast %14 : vector<1x128x64xbf16> to vector<128x64xbf16>
    %cst_8 = arith.constant dense<0.000000e+00> : vector<20x64xf32>
    %16 = tpu.matmul %13, %15, %cst_8 {dimension_numbers = #tpu.dot_dimension_numbers<[1], [0], [0], [1], [0, 0, 1, 1], [], []>} : vector<20x128xbf16>, vector<128x64xbf16>, vector<20x64xf32> -> vector<20x64xf32>
    %c0_9 = arith.constant 0 : index
    %c0_10 = arith.constant 0 : index
    %17 = vector.load %arg5[%c0_9, %c0_10] : memref<20x64xf32, #tpu.memory_space<vmem>>, vector<20x64xf32>
    tpu.vector_store %arg5[%c0_9, %c0_10], %16 {strides = array<i32>} : memref<20x64xf32, #tpu.memory_space<vmem>>, vector<20x64xf32>,
    %c0_11 = arith.constant 0 : index
    %c0_12 = arith.constant 0 : index
    %18 = vector.load %arg5[%c0_11, %c0_12] : memref<20x64xf32, #tpu.memory_space<vmem>>, vector<20x64xf32>
    %c0_13 = arith.constant 0 : index
    %c1 = arith.constant 1 : index
    %c0_14 = arith.constant 0 : index
    %19 = vector.load %arg1[%c0_13, %c1, %c0_14] : memref<1x32x128xbf16, #tpu.memory_space<vmem>>, vector<1x20x128xbf16>
    %20 = vector.shape_cast %19 : vector<1x20x128xbf16> to vector<20x128xbf16>
    %c1_15 = arith.constant 1 : index
    %c0_16 = arith.constant 0 : index
    %c0_17 = arith.constant 0 : index
    %21 = vector.load %arg2[%c1_15, %c0_16, %c0_17] : memref<4x128x64xbf16, #tpu.memory_space<vmem>>, vector<1x128x64xbf16>
    %22 = vector.shape_cast %21 : vector<1x128x64xbf16> to vector<128x64xbf16>
    %cst_18 = arith.constant dense<0.000000e+00> : vector<20x64xf32>
    %23 = tpu.matmul %20, %22, %cst_18 {dimension_numbers = #tpu.dot_dimension_numbers<[1], [0], [0], [1], [0, 0, 1, 1], [], []>} : vector<20x128xbf16>, vector<128x64xbf16>, vector<20x64xf32> -> vector<20x64xf32>
    %24 = arith.addf %18, %23 : vector<20x64xf32>
    %c0_19 = arith.constant 0 : index
    %c0_20 = arith.constant 0 : index
    %25 = vector.load %arg5[%c0_19, %c0_20] : memref<20x64xf32, #tpu.memory_space<vmem>>, vector<20x64xf32>
    tpu.vector_store %arg5[%c0_19, %c0_20], %24 {strides = array<i32>} : memref<20x64xf32, #tpu.memory_space<vmem>>, vector<20x64xf32>,
    %c0_21 = arith.constant 0 : index
    %c0_22 = arith.constant 0 : index
    %26 = vector.load %arg5[%c0_21, %c0_22] : memref<20x64xf32, #tpu.memory_space<vmem>>, vector<20x64xf32>
    %c0_23 = arith.constant 0 : index
    %c5 = arith.constant 5 : index
    %c0_24 = arith.constant 0 : index
    %27 = vector.load %arg1[%c0_23, %c5, %c0_24] : memref<1x32x128xbf16, #tpu.memory_space<vmem>>, vector<1x20x128xbf16>
    %28 = vector.shape_cast %27 : vector<1x20x128xbf16> to vector<20x128xbf16>
    %c2 = arith.constant 2 : index
    %c0_25 = arith.constant 0 : index
    %c0_26 = arith.constant 0 : index
    %29 = vector.load %arg2[%c2, %c0_25, %c0_26] : memref<4x128x64xbf16, #tpu.memory_space<vmem>>, vector<1x128x64xbf16>
    %30 = vector.shape_cast %29 : vector<1x128x64xbf16> to vector<128x64xbf16>
    %cst_27 = arith.constant dense<0.000000e+00> : vector<20x64xf32>
    %31 = tpu.matmul %28, %30, %cst_27 {dimension_numbers = #tpu.dot_dimension_numbers<[1], [0], [0], [1], [0, 0, 1, 1], [], []>} : vector<20x128xbf16>, vector<128x64xbf16>, vector<20x64xf32> -> vector<20x64xf32>
    %32 = arith.addf %26, %31 : vector<20x64xf32>
    %c0_28 = arith.constant 0 : index
    %c0_29 = arith.constant 0 : index
    %33 = vector.load %arg5[%c0_28, %c0_29] : memref<20x64xf32, #tpu.memory_space<vmem>>, vector<20x64xf32>
    tpu.vector_store %arg5[%c0_28, %c0_29], %32 {strides = array<i32>} : memref<20x64xf32, #tpu.memory_space<vmem>>, vector<20x64xf32>,
    %c0_30 = arith.constant 0 : index
    %c0_31 = arith.constant 0 : index
    %34 = vector.load %arg5[%c0_30, %c0_31] : memref<20x64xf32, #tpu.memory_space<vmem>>, vector<20x64xf32>
    %c0_32 = arith.constant 0 : index
    %c6 = arith.constant 6 : index
    %c0_33 = arith.constant 0 : index
    %35 = vector.load %arg1[%c0_32, %c6, %c0_33] : memref<1x32x128xbf16, #tpu.memory_space<vmem>>, vector<1x20x128xbf16>
    %36 = vector.shape_cast %35 : vector<1x20x128xbf16> to vector<20x128xbf16>
    %c3 = arith.constant 3 : index
    %c0_34 = arith.constant 0 : index
    %c0_35 = arith.constant 0 : index
    %37 = vector.load %arg2[%c3, %c0_34, %c0_35] : memref<4x128x64xbf16, #tpu.memory_space<vmem>>, vector<1x128x64xbf16>
    %38 = vector.shape_cast %37 : vector<1x128x64xbf16> to vector<128x64xbf16>
    %cst_36 = arith.constant dense<0.000000e+00> : vector<20x64xf32>
    %39 = tpu.matmul %36, %38, %cst_36 {dimension_numbers = #tpu.dot_dimension_numbers<[1], [0], [0], [1], [0, 0, 1, 1], [], []>} : vector<20x128xbf16>, vector<128x64xbf16>, vector<20x64xf32> -> vector<20x64xf32>
    %40 = arith.addf %34, %39 : vector<20x64xf32>
    %c0_37 = arith.constant 0 : index
    %c0_38 = arith.constant 0 : index
    %41 = vector.load %arg5[%c0_37, %c0_38] : memref<20x64xf32, #tpu.memory_space<vmem>>, vector<20x64xf32>
    tpu.vector_store %arg5[%c0_37, %c0_38], %40 {strides = array<i32>} : memref<20x64xf32, #tpu.memory_space<vmem>>, vector<20x64xf32>,
    %c0_39 = arith.constant 0 : index
    %c0_40 = arith.constant 0 : index
    %42 = vector.load %arg5[%c0_39, %c0_40] : memref<20x64xf32, #tpu.memory_space<vmem>>, vector<20x64xf32>
    %cst_41 = arith.constant 0.000000e+00 : f32
    %43 = vector.shape_cast %11 : vector<20x1xi1> to vector<20x1xi1>
    %44 = vector.broadcast %43 : vector<20x1xi1> to vector<20x64xi1>
    %45 = vector.broadcast %cst_41 : f32 to vector<20x64xf32>
    %46 = arith.select %44, %42, %45 : vector<20x64xi1>, vector<20x64xf32>
    %cst_42 = arith.constant dense<0.000000e+00> : vector<64xf32>
    %47 = vector.multi_reduction <add>, %46, %cst_42 [0] : vector<20x64xf32> to vector<64xf32>
    %48 = vector.shape_cast %47 : vector<64xf32> to vector<1x64xf32>
    %49 = arith.mulf %42, %42 : vector<20x64xf32>
    %cst_43 = arith.constant 0.000000e+00 : f32
    %50 = vector.shape_cast %11 : vector<20x1xi1> to vector<20x1xi1>
    %51 = vector.broadcast %50 : vector<20x1xi1> to vector<20x64xi1>
    %52 = vector.broadcast %cst_43 : f32 to vector<20x64xf32>
    %53 = arith.select %51, %49, %52 : vector<20x64xi1>, vector<20x64xf32>
    %cst_44 = arith.constant dense<0.000000e+00> : vector<64xf32>
    %54 = vector.multi_reduction <add>, %53, %cst_44 [0] : vector<20x64xf32> to vector<64xf32>
    %55 = vector.shape_cast %54 : vector<64xf32> to vector<1x64xf32>
    %56 = tpu.concatenate %48, %55 in 0 : vector<1x64xf32>, vector<1x64xf32> -> vector<2x64xf32>
    %c0_45 = arith.constant 0 : index
    %c0_46 = arith.constant 0 : index
    %c0_47 = arith.constant 0 : index
    %57 = vector.load %arg4[%c0_45, %c0_46, %c0_47] : memref<1x2x64xf32, #tpu.memory_space<vmem>>, vector<1x2x64xf32>
    %58 = vector.shape_cast %57 : vector<1x2x64xf32> to vector<2x64xf32>
    %59 = vector.shape_cast %56 : vector<2x64xf32> to vector<1x2x64xf32>
    tpu.vector_store %arg4[%c0_45, %c0_46, %c0_47], %59 {strides = array<i32>} : memref<1x2x64xf32, #tpu.memory_space<vmem>>, vector<1x2x64xf32>,
    %60 = arith.truncf %42 : vector<20x64xf32> to vector<20x64xbf16>
    %c0_48 = arith.constant 0 : index
    %c0_49 = arith.constant 0 : index
    %c0_50 = arith.constant 0 : index
    %61 = vector.load %arg3[%c0_48, %c0_49, %c0_50] : memref<1x20x64xbf16, #tpu.memory_space<vmem>>, vector<1x20x64xbf16>
    %62 = vector.shape_cast %61 : vector<1x20x64xbf16> to vector<20x64xbf16>
    %63 = vector.shape_cast %60 : vector<20x64xbf16> to vector<1x20x64xbf16>
    tpu.vector_store %arg3[%c0_48, %c0_49, %c0_50], %63 {strides = array<i32>} : memref<1x20x64xbf16, #tpu.memory_space<vmem>>, vector<1x20x64xbf16>,
    return
  }
  func.func @transform_0(%arg0: i32) -> (i32, i32, i32) {
    %c0_i32 = arith.constant 0 : i32
    %c0_i32_0 = arith.constant 0 : i32
    %c0_i32_1 = arith.constant 0 : i32
    return %arg0, %c0_i32, %c0_i32_0 : i32, i32, i32
  }
  func.func @transform_1(%arg0: i32) -> (i32, i32, i32) {
    %c0_i32 = arith.constant 0 : i32
    %c0_i32_0 = arith.constant 0 : i32
    %c0_i32_1 = arith.constant 0 : i32
    %c0_i32_2 = arith.constant 0 : i32
    return %c0_i32, %c0_i32_0, %c0_i32_1 : i32, i32, i32
  }
  func.func @transform_2(%arg0: i32) -> (i32, i32, i32) {
    %c0_i32 = arith.constant 0 : i32
    %c0_i32_0 = arith.constant 0 : i32
    %c0_i32_1 = arith.constant 0 : i32
    return %arg0, %c0_i32, %c0_i32_0 : i32, i32, i32
  }
  func.func @transform_3(%arg0: i32) -> (i32, i32, i32) {
    %c0_i32 = arith.constant 0 : i32
    %c0_i32_0 = arith.constant 0 : i32
    %c0_i32_1 = arith.constant 0 : i32
    return %arg0, %c0_i32, %c0_i32_0 : i32, i32, i32
  }
}

module attributes {stable_mosaic.version = 11 : i64} {
  func.func @_bn_lrelu_kernel(%arg0: i32, %arg1: memref<1x10x128xbf16, #tpu.memory_space<vmem>>, %arg2: memref<1x128xf32, #tpu.memory_space<vmem>>, %arg3: memref<1x128xf32, #tpu.memory_space<vmem>>, %arg4: memref<1x10x128xbf16, #tpu.memory_space<vmem>>) attributes {dimension_semantics = [#tpu.dimension_semantics<parallel>], iteration_bounds = array<i64: 2>, scalar_prefetch = 0 : i64, scratch_operands = 0 : i64, tpu.core_type = #tpu.core_type<tc>, window_params = [{transform_indices = @transform_0, window_bounds = array<i64: 1, 10, 128>}, {pipeline_mode = #tpu.pipeline_mode<synchronous>, transform_indices = @transform_1, window_bounds = array<i64: 1, 128>}, {pipeline_mode = #tpu.pipeline_mode<synchronous>, transform_indices = @transform_2, window_bounds = array<i64: 1, 128>}, {transform_indices = @transform_3, window_bounds = array<i64: 1, 10, 128>}]} {
    %c0 = arith.constant 0 : index
    %c0_0 = arith.constant 0 : index
    %c0_1 = arith.constant 0 : index
    %0 = vector.load %arg1[%c0, %c0_0, %c0_1] : memref<1x10x128xbf16, #tpu.memory_space<vmem>>, vector<1x10x128xbf16>
    %1 = arith.extf %0 : vector<1x10x128xbf16> to vector<1x10x128xf32>
    %c0_2 = arith.constant 0 : index
    %c0_3 = arith.constant 0 : index
    %2 = vector.load %arg2[%c0_2, %c0_3] : memref<1x128xf32, #tpu.memory_space<vmem>>, vector<1x128xf32>
    %3 = vector.shape_cast %2 : vector<1x128xf32> to vector<1x1x128xf32>
    %4 = vector.broadcast %3 : vector<1x1x128xf32> to vector<1x10x128xf32>
    %5 = arith.mulf %1, %4 : vector<1x10x128xf32>
    %c0_4 = arith.constant 0 : index
    %c0_5 = arith.constant 0 : index
    %6 = vector.load %arg3[%c0_4, %c0_5] : memref<1x128xf32, #tpu.memory_space<vmem>>, vector<1x128xf32>
    %7 = vector.shape_cast %6 : vector<1x128xf32> to vector<1x1x128xf32>
    %8 = vector.broadcast %7 : vector<1x1x128xf32> to vector<1x10x128xf32>
    %9 = arith.addf %5, %8 : vector<1x10x128xf32>
    %cst = arith.constant 0.000000e+00 : f32
    %10 = vector.broadcast %cst : f32 to vector<1x10x128xf32>
    %11 = arith.cmpf oge, %9, %10 : vector<1x10x128xf32>
    %cst_6 = arith.constant 2.000000e-01 : f32
    %12 = vector.broadcast %cst_6 : f32 to vector<1x10x128xf32>
    %13 = arith.mulf %12, %9 : vector<1x10x128xf32>
    %14 = arith.select %11, %9, %13 : vector<1x10x128xi1>, vector<1x10x128xf32>
    %15 = arith.truncf %14 : vector<1x10x128xf32> to vector<1x10x128xbf16>
    %c0_7 = arith.constant 0 : index
    %c0_8 = arith.constant 0 : index
    %c0_9 = arith.constant 0 : index
    %16 = vector.load %arg4[%c0_7, %c0_8, %c0_9] : memref<1x10x128xbf16, #tpu.memory_space<vmem>>, vector<1x10x128xbf16>
    tpu.vector_store %arg4[%c0_7, %c0_8, %c0_9], %15 {strides = array<i32>} : memref<1x10x128xbf16, #tpu.memory_space<vmem>>, vector<1x10x128xbf16>,
    return
  }
  func.func @transform_0(%arg0: i32) -> (i32, i32, i32) {
    %c0_i32 = arith.constant 0 : i32
    %c0_i32_0 = arith.constant 0 : i32
    %c0_i32_1 = arith.constant 0 : i32
    return %arg0, %c0_i32, %c0_i32_0 : i32, i32, i32
  }
  func.func @transform_1(%arg0: i32) -> (i32, i32) {
    %c0_i32 = arith.constant 0 : i32
    %c0_i32_0 = arith.constant 0 : i32
    %c0_i32_1 = arith.constant 0 : i32
    return %c0_i32, %c0_i32_0 : i32, i32
  }
  func.func @transform_2(%arg0: i32) -> (i32, i32) {
    %c0_i32 = arith.constant 0 : i32
    %c0_i32_0 = arith.constant 0 : i32
    %c0_i32_1 = arith.constant 0 : i32
    return %c0_i32, %c0_i32_0 : i32, i32
  }
  func.func @transform_3(%arg0: i32) -> (i32, i32, i32) {
    %c0_i32 = arith.constant 0 : i32
    %c0_i32_0 = arith.constant 0 : i32
    %c0_i32_1 = arith.constant 0 : i32
    return %arg0, %c0_i32, %c0_i32_0 : i32, i32, i32
  }
}

module attributes {stable_mosaic.version = 11 : i64} {
  func.func @_final_dot_sigmoid_kernel(%arg0: i32, %arg1: memref<2x1024xbf16, #tpu.memory_space<vmem>>, %arg2: memref<1x1024xf32, #tpu.memory_space<vmem>>, %arg3: memref<2x1xf32, #tpu.memory_space<vmem>>) attributes {dimension_semantics = [#tpu.dimension_semantics<parallel>], iteration_bounds = array<i64: 1>, scalar_prefetch = 0 : i64, scratch_operands = 0 : i64, tpu.core_type = #tpu.core_type<tc>, window_params = [{transform_indices = @transform_0, window_bounds = array<i64: 2, 1024>}, {pipeline_mode = #tpu.pipeline_mode<synchronous>, transform_indices = @transform_1, window_bounds = array<i64: 1, 1024>}, {transform_indices = @transform_2, window_bounds = array<i64: 2, 1>}]} {
    %c0 = arith.constant 0 : index
    %c0_0 = arith.constant 0 : index
    %0 = vector.load %arg1[%c0, %c0_0] : memref<2x1024xbf16, #tpu.memory_space<vmem>>, vector<2x1024xbf16>
    %1 = arith.extf %0 : vector<2x1024xbf16> to vector<2x1024xf32>
    %c0_1 = arith.constant 0 : index
    %c0_2 = arith.constant 0 : index
    %2 = vector.load %arg2[%c0_1, %c0_2] : memref<1x1024xf32, #tpu.memory_space<vmem>>, vector<1x1024xf32>
    %3 = vector.broadcast %2 : vector<1x1024xf32> to vector<2x1024xf32>
    %4 = arith.mulf %1, %3 : vector<2x1024xf32>
    %cst = arith.constant dense<0.000000e+00> : vector<2xf32>
    %5 = vector.multi_reduction <add>, %4, %cst [1] : vector<2x1024xf32> to vector<2xf32>
    %6 = vector.shape_cast %5 : vector<2xf32> to vector<2x1xf32>
    %cst_3 = arith.constant 0.000000e+00 : f32
    %7 = vector.broadcast %cst_3 : f32 to vector<2x1xf32>
    %8 = arith.subf %7, %6 : vector<2x1xf32>
    %9 = math.exp %8 : vector<2x1xf32>
    %cst_4 = arith.constant 1.000000e+00 : f32
    %10 = vector.broadcast %cst_4 : f32 to vector<2x1xf32>
    %11 = arith.addf %10, %9 : vector<2x1xf32>
    %cst_5 = arith.constant 1.000000e+00 : f32
    %12 = vector.broadcast %cst_5 : f32 to vector<2x1xf32>
    %13 = arith.divf %12, %11 : vector<2x1xf32>
    %c0_6 = arith.constant 0 : index
    %c0_7 = arith.constant 0 : index
    %14 = vector.load %arg3[%c0_6, %c0_7] : memref<2x1xf32, #tpu.memory_space<vmem>>, vector<2x1xf32>
    tpu.vector_store %arg3[%c0_6, %c0_7], %13 {strides = array<i32>} : memref<2x1xf32, #tpu.memory_space<vmem>>, vector<2x1xf32>,
    return
  }
  func.func @transform_0(%arg0: i32) -> (i32, i32) {
    %c0_i32 = arith.constant 0 : i32
    %c0_i32_0 = arith.constant 0 : i32
    return %arg0, %c0_i32 : i32, i32
  }
  func.func @transform_1(%arg0: i32) -> (i32, i32) {
    %c0_i32 = arith.constant 0 : i32
    %c0_i32_0 = arith.constant 0 : i32
    %c0_i32_1 = arith.constant 0 : i32
    return %c0_i32, %c0_i32_0 : i32, i32
  }
  func.func @transform_2(%arg0: i32) -> (i32, i32) {
    %c0_i32 = arith.constant 0 : i32
    %c0_i32_0 = arith.constant 0 : i32
    return %arg0, %c0_i32 : i32, i32
  }
}

</mosaic_0001>

<llo_original>
// kernel: tile.43
$region0: #{tile.43}
  #allocation0 [shape = 's32[1]{0}', space=sflag, size = 0x4, scoped, tag = 'scoped memory for tile.43']
  %s0 = inlined_call_operand.vmem [shape: f32[8], index: 0, kind: input, shape index: {}]
  %s1 = inlined_call_operand.vmem [shape: f32[16,8], index: 1, kind: output, shape index: {}]
  // Predicated region
  $region2: #{tile.43} parent=0 // pred_check
    _
  $region3: #{tile.43} parent=0 // pred_check_branch
    %3 = sbr.rel (0) target = $region5
  $region4: #{tile.43} parent=0 // pred_region
    _
  $region5: #{tile.43} parent=0 // pred_fallthru
    _
  %v4 = vld [vmem:[%s0] ss:$0 sm:$0xff]
  %5 = vst [vmem:[%s1] sm:$0xff] %v4
  %s6 = scalar_lea.vmem %s1, 8
  %7 = vst [vmem:[%s6] sm:$0xff] %v4

// kernel: tile.44
$region0: #{tile.44}
  %s0 = inlined_call_operand.vmem [shape: f32[16,8], index: 0, kind: input, shape index: {}]
  %s1 = inlined_call_operand.vmem [shape: f32[1,128], index: 1, kind: output, shape index: {}]
  $region1: #{tile.44} parent=0
    #allocation0 [shape = 'u8[4096]{0}', space=vmem, size = 0x1000, scoped, tag = 'scoped mem for output reshape']
    %v2 = vld [vmem:[%s0] sm:$0x1]
    %vm3 = vcmask 64512
    %4 = vst.msk [vmem:[#allocation0] sm:$0x1] %vm3, %v2
    %s5 = scalar_lea.vmem %s0, 15
    %v6 = vld [vmem:[%s5] sm:$0x1]
    %7 = vrot.lane.b32.xlu0 %v6, 120
    %v8 = vpop.permute.xlu0 %7
    %vm9 = vcmask 1048512
    %10 = vst.msk [vmem:[#allocation0] sm:$0x1] %vm9, %v8
    %s11 = scalar_lea.vmem %s0, 14
    %v12 = vld [vmem:[%s11] sm:$0x1]
    %13 = vrot.lane.b32.xlu0 %v12, 112
    %v14 = vpop.permute.xlu0 %13
    %vm15 = vcmask 982912
    %16 = vst.msk [vmem:[#allocation0] sm:$0x1] %vm15, %v14
    %s17 = scalar_lea.vmem %s0, 13
    %v18 = vld [vmem:[%s17] sm:$0x1]
    %19 = vrot.lane.b32.xlu0 %v18, 104
    %v20 = vpop.permute.xlu0 %19
    %vm21 = vcmask 917312
    %22 = vst.msk [vmem:[#allocation0] sm:$0x1] %vm21, %v20
    %s23 = scalar_lea.vmem %s0, 12
    %v24 = vld [vmem:[%s23] sm:$0x1]
    %25 = vrot.lane.b32.xlu0 %v24, 96
    %v26 = vpop.permute.xlu0 %25
    %vm27 = vcmask 851712
    %28 = vst.msk [vmem:[#allocation0] sm:$0x1] %vm27, %v26
    %s29 = scalar_lea.vmem %s0, 11
    %v30 = vld [vmem:[%s29] sm:$0x1]
    %31 = vrot.lane.b32.xlu0 %v30, 88
    %v32 = vpop.permute.xlu0 %31
    %vm33 = vcmask 786112
    %34 = vst.msk [vmem:[#allocation0] sm:$0x1] %vm33, %v32
    %s35 = scalar_lea.vmem %s0, 10
    %v36 = vld [vmem:[%s35] sm:$0x1]
    %37 = vrot.lane.b32.xlu0 %v36, 80
    %v38 = vpop.permute.xlu0 %37
    %vm39 = vcmask 720512
    %40 = vst.msk [vmem:[#allocation0] sm:$0x1] %vm39, %v38
    %s41 = scalar_lea.vmem %s0, 9
    %v42 = vld [vmem:[%s41] sm:$0x1]
    %43 = vrot.lane.b32.xlu0 %v42, 72
    %v44 = vpop.permute.xlu0 %43
    %vm45 = vcmask 654912
    %46 = vst.msk [vmem:[#allocation0] sm:$0x1] %vm45, %v44
    %s47 = scalar_lea.vmem %s0, 8
    %v48 = vld [vmem:[%s47] sm:$0x1]
    %49 = vrot.lane.b32.xlu0 %v48, 64
    %v50 = vpop.permute.xlu0 %49
    %vm51 = vcmask 589312
    %52 = vst.msk [vmem:[#allocation0] sm:$0x1] %vm51, %v50
    %s53 = scalar_lea.vmem %s0, 7
    %v54 = vld [vmem:[%s53] sm:$0x1]
    %55 = vrot.lane.b32.xlu0 %v54, 56
    %v56 = vpop.permute.xlu0 %55
    %vm57 = vcmask 523712
    %58 = vst.msk [vmem:[#allocation0] sm:$0x1] %vm57, %v56
    %s59 = scalar_lea.vmem %s0, 6
    %v60 = vld [vmem:[%s59] sm:$0x1]
    %61 = vrot.lane.b32.xlu0 %v60, 48
    %v62 = vpop.permute.xlu0 %61
    %vm63 = vcmask 458112
    %64 = vst.msk [vmem:[#allocation0] sm:$0x1] %vm63, %v62
    %s65 = scalar_lea.vmem %s0, 5
    %v66 = vld [vmem:[%s65] sm:$0x1]
    %67 = vrot.lane.b32.xlu0 %v66, 40
    %v68 = vpop.permute.xlu0 %67
    %vm69 = vcmask 392512
    %70 = vst.msk [vmem:[#allocation0] sm:$0x1] %vm69, %v68
    %s71 = scalar_lea.vmem %s0, 4
    %v72 = vld [vmem:[%s71] sm:$0x1]
    %73 = vrot.lane.b32.xlu0 %v72, 32
    %v74 = vpop.permute.xlu0 %73
    %vm75 = vcmask 326912
    %76 = vst.msk [vmem:[#allocation0] sm:$0x1] %vm75, %v74
    %s77 = scalar_lea.vmem %s0, 3
    %v78 = vld [vmem:[%s77] sm:$0x1]
    %79 = vrot.lane.b32.xlu0 %v78, 24
    %v80 = vpop.permute.xlu0 %79
    %vm81 = vcmask 261312
    %82 = vst.msk [vmem:[#allocation0] sm:$0x1] %vm81, %v80
    %s83 = scalar_lea.vmem %s0, 2
    %v84 = vld [vmem:[%s83] sm:$0x1]
    %85 = vrot.lane.b32.xlu0 %v84, 16
    %v86 = vpop.permute.xlu0 %85
    %vm87 = vcmask 195712
    %88 = vst.msk [vmem:[#allocation0] sm:$0x1] %vm87, %v86
    %s89 = scalar_lea.vmem %s0, 1
    %v90 = vld [vmem:[%s89] sm:$0x1]
    %91 = vrot.lane.b32.xlu0 %v90, 8
    %v92 = vpop.permute.xlu0 %91
    %vm93 = vcmask 130112
    %94 = vst.msk [vmem:[#allocation0] sm:$0x1] %vm93, %v92
    %s96 = sshllo.u32 0, 1
    %v98 = vld [vmem:[#allocation0] sm:%s96]
    %s99 = sshllo.u32 0, 1
    %100 = vst [vmem:[%s1] sm:%s99] %v98

// kernel: discriminator_forward.10
$region0: #{discriminator_forward.10}
  #allocation0 [shape = 'u32[]', space=smem, size = 0x4, offset = 0x4, fixed_abs, tag = 'smem constant byte address 0x4 - core index']
  #allocation1 [shape = 'u32[144,128]{1,0:T(1,128)}', space=vmem, size = 0x12000, scoped, tag = 'internal scratch']
  %s0 = inlined_call_operand.vmem [shape: bf16[2,66,128], index: 0, kind: input, shape index: {}]
  %s1 = inlined_call_operand.vmem [shape: f32[1,128], index: 1, kind: input, shape index: {}]
  %s2 = inlined_call_operand.vmem [shape: f32[1,128], index: 2, kind: input, shape index: {}]
  %s3 = inlined_call_operand.vmem [shape: bf16[2,66,128], index: 3, kind: output, shape index: {}]
  %s4 = sld [smem:[#allocation0]]
  $region45: #{discriminator_forward.10} parent=0
    _
  %s6 = ssub.s32 1, %s4
  %s7 = scalar_select 0, %s6, %s4
  loop: start=0, step=1, limit=4
  $region2: #{discriminator_forward.10} parent=0 // loop_pre_header
    _
  $region3: #{discriminator_forward.10} parent=0 // loop_header
    %s9 = sphi 0, %s13
    %p10 = scmp.ge.s32.totalorder %s9, 4
    %s19 = sphi 0, %s21
    %s22 = sphi 0, %s19
    %s23 = sphi 0, %s22
    %s39 = sphi 0, %s23
    %s43 = sphi 0, %s43
    %s45 = sphi 0, %s43
    %s46 = sphi 0, %s45
    %s60 = sphi 0, %s46
    %s64 = sphi 0, %s64
    %s66 = sphi 0, %s64
    %s67 = sphi 0, %s66
    %s81 = sphi 0, %s67
    %s87 = sphi 0, %s89
    %s90 = sphi 0, %s87
    %s91 = sphi 0, %s90
    %s107 = sphi 0, %s91
  $region4: #{discriminator_forward.10} parent=0 // loop_header_branch
    %12 = sbr.rel (%p10) target = $region8
  $region5: #{discriminator_forward.10} parent=0 // loop_body
    %s14 = ssub.s32 %s9, 1
    %s15 = ssub.s32 %s9, 2
    %s16 = sadd.s32 %s9, 1
    %s17 = ssub.s32 %s9, %s16
    %p18 = scmp.eq.s32.totalorder %s17, 0
    %s20 = sadd.s32 %s19, 1
    %s21 = scalar_select %p18, %s19, %s20
    %p24 = pneg %p18
    %p25 = scmp.eq.s32.totalorder %s9, 1
    %p26 = por %p24, %p25
    %p27 = scmp.ne.s32.totalorder %s19, %s22
    %p28 = scmp.eq.s32.totalorder %s9, 0
    %p29 = por %p27, %p28
    %p30 = scmp.ne.s32.totalorder %s19, %s22
    %p31 = scmp.eq.s32.totalorder %s14, 1
    %p32 = por %p30, %p31
    %p33 = scmp.ne.s32.totalorder %s22, %s23
    %p34 = scmp.eq.s32.totalorder %s14, 0
    %p35 = por %p33, %p34
    %p36 = scmp.ne.s32.totalorder %s22, %s23
    %p37 = scmp.eq.s32.totalorder %s15, 1
    %p38 = por %p36, %p37
    %p40 = scmp.ne.s32.totalorder %s23, %s39
    %p41 = scmp.eq.s32.totalorder %s15, 0
    %p42 = por %p40, %p41
    %s44 = sadd.s32 %s43, 1
    %p47 = scmp.eq.s32.totalorder %s9, 1
    %p48 = scmp.ne.s32.totalorder %s43, %s45
    %p49 = scmp.eq.s32.totalorder %s9, 0
    %p50 = por %p48, %p49
    %p51 = scmp.ne.s32.totalorder %s43, %s45
    %p52 = scmp.eq.s32.totalorder %s14, 1
    %p53 = por %p51, %p52
    %p54 = scmp.ne.s32.totalorder %s45, %s46
    %p55 = scmp.eq.s32.totalorder %s14, 0
    %p56 = por %p54, %p55
    %p57 = scmp.ne.s32.totalorder %s45, %s46
    %p58 = scmp.eq.s32.totalorder %s15, 1
    %p59 = por %p57, %p58
    %p61 = scmp.ne.s32.totalorder %s46, %s60
    %p62 = scmp.eq.s32.totalorder %s15, 0
    %p63 = por %p61, %p62
    %s65 = sadd.s32 %s64, 1
    %p68 = scmp.eq.s32.totalorder %s9, 1
    %p69 = scmp.ne.s32.totalorder %s64, %s66
    %p70 = scmp.eq.s32.totalorder %s9, 0
    %p71 = por %p69, %p70
    %p72 = scmp.ne.s32.totalorder %s64, %s66
    %p73 = scmp.eq.s32.totalorder %s14, 1
    %p74 = por %p72, %p73
    %p75 = scmp.ne.s32.totalorder %s66, %s67
    %p76 = scmp.eq.s32.totalorder %s14, 0
    %p77 = por %p75, %p76
    %p78 = scmp.ne.s32.totalorder %s66, %s67
    %p79 = scmp.eq.s32.totalorder %s15, 1
    %p80 = por %p78, %p79
    %p82 = scmp.ne.s32.totalorder %s67, %s81
    %p83 = scmp.eq.s32.totalorder %s15, 0
    %p84 = por %p82, %p83
    %s85 = ssub.s32 %s9, %s16
    %p86 = scmp.eq.s32.totalorder %s85, 0
    %s88 = sadd.s32 %s87, 1
    %s89 = scalar_select %p86, %s87, %s88
    %p92 = pneg %p86
    %p93 = scmp.eq.s32.totalorder %s9, 1
    %p94 = por %p92, %p93
    %p95 = scmp.ne.s32.totalorder %s87, %s90
    %p96 = scmp.eq.s32.totalorder %s9, 0
    %p97 = por %p95, %p96
    %p98 = scmp.ne.s32.totalorder %s87, %s90
    %p99 = scmp.eq.s32.totalorder %s14, 1
    %p100 = por %p98, %p99
    %p101 = scmp.ne.s32.totalorder %s90, %s91
    %p102 = scmp.eq.s32.totalorder %s14, 0
    %p103 = por %p101, %p102
    %p104 = scmp.ne.s32.totalorder %s90, %s91
    %p105 = scmp.eq.s32.totalorder %s15, 1
    %p106 = por %p104, %p105
    %p108 = scmp.ne.s32.totalorder %s91, %s107
    %p109 = scmp.eq.s32.totalorder %s15, 0
    %p110 = por %p108, %p109
    %p111 = scmp.le.s32.totalorder 1, %s9
    %p112 = scmp.lt.s32.totalorder %s9, 3
    %p113 = pnand %p111, %p112
    %p114 = pneg %p113
    // Predicated region
    $region9: #{discriminator_forward.10} parent=5 // pred_check
      _
    $region10: #{discriminator_forward.10} parent=5 // pred_check_branch
      %116 = sbr.rel (%p113) target = $region12
    $region11: #{discriminator_forward.10} parent=5 // pred_region
      %s117 = ssub.s32 %s9, 1
      // Predicated region
      $region13: #{discriminator_forward.10} parent=11 // pred_check
        %p118 = pneg %p56
      $region14: #{discriminator_forward.10} parent=11 // pred_check_branch
        %120 = sbr.rel (%p118) target = $region16
      $region15: #{discriminator_forward.10} parent=11 // pred_region
        _
      $region16: #{discriminator_forward.10} parent=11 // pred_fallthru
        _
      // Predicated region
      $region17: #{discriminator_forward.10} parent=11 // pred_check
        %p121 = pneg %p77
      $region18: #{discriminator_forward.10} parent=11 // pred_check_branch
        %123 = sbr.rel (%p121) target = $region20
      $region19: #{discriminator_forward.10} parent=11 // pred_region
        _
      $region20: #{discriminator_forward.10} parent=11 // pred_fallthru
        _
    $region12: #{discriminator_forward.10} parent=5 // pred_fallthru
      _
    %p124 = scmp.lt.s32.totalorder %s9, 2
    // Predicated region
    $region21: #{discriminator_forward.10} parent=5 // pred_check
      %p125 = pneg %p124
    $region22: #{discriminator_forward.10} parent=5 // pred_check_branch
      %127 = sbr.rel (%p125) target = $region24
    $region23: #{discriminator_forward.10} parent=5 // pred_region
      // Predicated region
      $region25: #{discriminator_forward.10} parent=23 // pred_check
        %p128 = pneg %p29
      $region26: #{discriminator_forward.10} parent=23 // pred_check_branch
        %130 = sbr.rel (%p128) target = $region28
      $region27: #{discriminator_forward.10} parent=23 // pred_region
        %p131 = scmp.lt.s32.totalorder %s9, 1
        %s132 = scalar_select %p131, %s9, 1
        %s133 = smul.addr %s132, 9
        %s134 = smul.addr %s133, 4
        %s135 = scalar_lea.vmem %s0, %s134
      $region28: #{discriminator_forward.10} parent=23 // pred_fallthru
        _
    $region24: #{discriminator_forward.10} parent=5 // pred_fallthru
      _
    %p136 = scmp.le.s32.totalorder 1, %s9
    %p137 = scmp.lt.s32.totalorder %s9, 3
    %p138 = pnand %p136, %p137
    %p139 = pneg %p138
    // Predicated region
    $region29: #{discriminator_forward.10} parent=5 // pred_check
      _
    $region30: #{discriminator_forward.10} parent=5 // pred_check_branch
      %141 = sbr.rel (%p138) target = $region32
    $region31: #{discriminator_forward.10} parent=5 // pred_region
      %s142 = ssub.s32 %s9, 1
      %p143 = scmp.lt.s32.totalorder %s14, 1
      %s144 = scalar_select %p143, %s14, 1
      %s145 = smul.addr %s144, 9
      %s146 = smul.addr %s145, 4
      %s147 = scalar_lea.vmem %s0, %s146
      %p148 = pneg %p35
      %p149 = pneg %p32
      %p150 = pneg %p56
      %p151 = pneg %p53
      %p152 = pneg %p77
      %p153 = pneg %p74
      %p154 = pneg %p103
      %p155 = pneg %p100
      %p156 = scmp.lt.s32.totalorder %s14, 1
      %s157 = scalar_select %p156, %s14, 1
      %s158 = smul.addr %s157, 9
      %s159 = smul.addr %s158, 4
      %s160 = scalar_lea.vmem %s3, %s159
      %p161 = scmp.lt.s32.totalorder %s14, 1
      %s162 = scalar_select %p161, %s14, 1
      %s163 = smul.addr %s162, 9
      %s164 = smul.addr %s163, 4
      %s165 = scalar_lea.vmem %s0, %s164
      %p166 = scmp.lt.s32.totalorder %s14, 1
      %s167 = scalar_select %p166, %s14, 1
      %s168 = smul.addr %s167, 9
      %s169 = smul.addr %s168, 4
      %s170 = scalar_lea.vmem %s3, %s169
      %v171 = vld [vmem:[%s165] sm:$0xf]
      %v172 = vld [vmem:[%s165 + $0x4] sm:$0xf]
      %v173 = vld [vmem:[%s165 + $0x8] sm:$0xf]
      %v174 = vld [vmem:[%s165 + $0xc] sm:$0xf]
      %v175 = vld [vmem:[%s165 + $0x10] sm:$0xf]
      %v176 = vld [vmem:[%s165 + $0x14] sm:$0xf]
      %v177 = vld [vmem:[%s165 + $0x18] sm:$0xf]
      %v178 = vld [vmem:[%s165 + $0x1c] sm:$0xf]
      %v179 = vld [vmem:[%s165 + $0x20] sm:$0x1]
      %v180 = vunpack.c.l.bf16 %v171
      %v181 = vunpack.c.l.bf16 %v172
      %v182 = vunpack.c.l.bf16 %v173
      %v183 = vunpack.c.l.bf16 %v174
      %v184 = vunpack.c.l.bf16 %v175
      %v185 = vunpack.c.l.bf16 %v176
      %v186 = vunpack.c.l.bf16 %v177
      %v187 = vunpack.c.l.bf16 %v178
      %v188 = vunpack.c.l.bf16 %v179
      %v189 = vld [vmem:[%s1] sm:$0x1]
      %v191 = vlaneseq
      %v192 = vshrl.u32 %v191, 7
      %v193 = vsub.s32 0, %v192
      %v194 = vrot.slane %v189, %v193
      %v196 = vmul.f32 %v180, %v194
      %v197 = vmul.f32 %v181, %v194
      %v198 = vmul.f32 %v182, %v194
      %v199 = vmul.f32 %v183, %v194
      %v200 = vmul.f32 %v184, %v194
      %v201 = vmul.f32 %v185, %v194
      %v202 = vmul.f32 %v186, %v194
      %v203 = vmul.f32 %v187, %v194
      %v204 = vmul.f32 %v188, %v194
      %v205 = vld [vmem:[%s2] sm:$0x1]
      %v207 = vlaneseq
      %v208 = vshrl.u32 %v207, 7
      %v209 = vsub.s32 0, %v208
      %v210 = vrot.slane %v205, %v209
      %v212 = vadd.f32 %v196, %v210
      %v213 = vadd.f32 %v197, %v210
      %v214 = vadd.f32 %v198, %v210
      %v215 = vadd.f32 %v199, %v210
      %v216 = vadd.f32 %v200, %v210
      %v217 = vadd.f32 %v201, %v210
      %v218 = vadd.f32 %v202, %v210
      %v219 = vadd.f32 %v203, %v210
      %v220 = vadd.f32 %v204, %v210
      %vm221 = vcmp.ge.f32.partialorder %v212, 0.0
      %vm222 = vcmp.ge.f32.partialorder %v213, 0.0
      %vm223 = vcmp.ge.f32.partialorder %v214, 0.0
      %vm224 = vcmp.ge.f32.partialorder %v215, 0.0
      %vm225 = vcmp.ge.f32.partialorder %v216, 0.0
      %vm226 = vcmp.ge.f32.partialorder %v217, 0.0
      %vm227 = vcmp.ge.f32.partialorder %v218, 0.0
      %vm228 = vcmp.ge.f32.partialorder %v219, 0.0
      %vm229 = vcmp.ge.f32.partialorder %v220, 0.0
      %v230 = vmul.f32 %v212, 0.2
      %v231 = vmul.f32 %v213, 0.2
      %v232 = vmul.f32 %v214, 0.2
      %v233 = vmul.f32 %v215, 0.2
      %v234 = vmul.f32 %v216, 0.2
      %v235 = vmul.f32 %v217, 0.2
      %v236 = vmul.f32 %v218, 0.2
      %v237 = vmul.f32 %v219, 0.2
      %v238 = vmul.f32 %v220, 0.2
      %v239 = vsel %vm221, %v212, %v230
      %v240 = vsel %vm222, %v213, %v231
      %v241 = vsel %vm223, %v214, %v232
      %v242 = vsel %vm224, %v215, %v233
      %v243 = vsel %vm225, %v216, %v234
      %v244 = vsel %vm226, %v217, %v235
      %v245 = vsel %vm227, %v218, %v236
      %v246 = vsel %vm228, %v219, %v237
      %v247 = vsel %vm229, %v220, %v238
      %v248 = vpack.c.bf16 %v240, %v239
      %v249 = vpack.c.bf16 %v242, %v241
      %v250 = vpack.c.bf16 %v244, %v243
      %v251 = vpack.c.bf16 %v246, %v245
      %v252 = vpack.c.bf16 %v247, %v247
      %v258 = vunpack.c.l.b16 %v248
      %v259 = vunpack.c.h.b16 %v248
      %v260 = vunpack.c.l.b16 %v249
      %v261 = vunpack.c.h.b16 %v249
      %v262 = vunpack.c.l.b16 %v250
      %v263 = vunpack.c.h.b16 %v250
      %v264 = vunpack.c.l.b16 %v251
      %v265 = vunpack.c.h.b16 %v251
      %v266 = vunpack.c.l.b16 %v252
      %v267 = vpack.c.b16 %v258, %v258
      %v268 = vpack.c.b16 %v259, %v259
      %v269 = vpack.c.b16 %v260, %v260
      %v270 = vpack.c.b16 %v261, %v261
      %v271 = vpack.c.b16 %v262, %v262
      %v272 = vpack.c.b16 %v263, %v263
      %v273 = vpack.c.b16 %v264, %v264
      %v274 = vpack.c.b16 %v265, %v265
      %v275 = vpack.c.b16 %v266, %v266
      %285 = vst [vmem:[%s170] sm:$0xf] %v267
      %286 = vst [vmem:[%s170 + $0x4] sm:$0xf] %v268
      %287 = vst [vmem:[%s170 + $0x8] sm:$0xf] %v269
      %288 = vst [vmem:[%s170 + $0xc] sm:$0xf] %v270
      %289 = vst [vmem:[%s170 + $0x10] sm:$0xf] %v271
      %290 = vst [vmem:[%s170 + $0x14] sm:$0xf] %v272
      %291 = vst [vmem:[%s170 + $0x18] sm:$0xf] %v273
      %292 = vst [vmem:[%s170 + $0x1c] sm:$0xf] %v274
      %293 = vst [vmem:[%s170 + $0x20] sm:$0x1] %v275
      %p294 = scmp.lt.s32.totalorder %s14, 1
      %s295 = scalar_select %p294, %s14, 1
      %s296 = smul.addr %s295, 9
      %s297 = smul.addr %s296, 4
      %s298 = scalar_lea.vmem %s3, %s297
      // Predicated region
      $region33: #{discriminator_forward.10} parent=31 // pred_check
        %p299 = pneg %p100
      $region34: #{discriminator_forward.10} parent=31 // pred_check_branch
        %301 = sbr.rel (%p299) target = $region36
      $region35: #{discriminator_forward.10} parent=31 // pred_region
        _
      $region36: #{discriminator_forward.10} parent=31 // pred_fallthru
        _
    $region32: #{discriminator_forward.10} parent=5 // pred_fallthru
      _
    %p302 = scmp.le.s32.totalorder 2, %s9
    // Predicated region
    $region37: #{discriminator_forward.10} parent=5 // pred_check
      %p303 = pneg %p302
    $region38: #{discriminator_forward.10} parent=5 // pred_check_branch
      %305 = sbr.rel (%p303) target = $region40
    $region39: #{discriminator_forward.10} parent=5 // pred_region
      %s306 = ssub.s32 %s9, 2
      // Predicated region
      $region41: #{discriminator_forward.10} parent=39 // pred_check
        %p307 = pneg %p106
      $region42: #{discriminator_forward.10} parent=39 // pred_check_branch
        %309 = sbr.rel (%p307) target = $region44
      $region43: #{discriminator_forward.10} parent=39 // pred_region
        %p310 = scmp.lt.s32.totalorder %s15, 1
        %s311 = scalar_select %p310, %s15, 1
        %s312 = smul.addr %s311, 9
        %s313 = smul.addr %s312, 4
        %s314 = scalar_lea.vmem %s3, %s313
      $region44: #{discriminator_forward.10} parent=39 // pred_fallthru
        _
    $region40: #{discriminator_forward.10} parent=5 // pred_fallthru
      _
  $region6: #{discriminator_forward.10} parent=0 // loop_footer
    %s13 = sadd.s32 1, %s9
  $region7: #{discriminator_forward.10} parent=0 // loop_footer_branch
    %8 = sbr.rel target = $region3
  $region8: #{discriminator_forward.10} parent=0 // loop_exit
    _

// kernel: discriminator_forward.9
$region0: #{discriminator_forward.9}
  #allocation0 [shape = 'u32[]', space=smem, size = 0x4, offset = 0x4, fixed_abs, tag = 'smem constant byte address 0x4 - core index']
  #allocation1 [shape = 'u32[144,128]{1,0:T(1,128)}', space=vmem, size = 0x12000, scoped, tag = 'internal scratch']
  #allocation2 [shape = 'f32[1056,8]{1,0:T(8,128)}', space=vmem, size = 0x84000, scoped, tag = 'scratch operand']
  %s0 = inlined_call_operand.vmem [shape: bf16[2,1056,48], index: 0, kind: input, shape index: {}]
  %s1 = inlined_call_operand.vmem [shape: bf16[1,48,8], index: 1, kind: input, shape index: {}]
  %s2 = inlined_call_operand.vmem [shape: bf16[2,1056,8], index: 2, kind: output, shape index: {0}]
  %s3 = inlined_call_operand.vmem [shape: f32[2,2,8], index: 3, kind: output, shape index: {1}]
  %4 = xla_tuple %s2, %s3
  %s5 = sld [smem:[#allocation0]]
  $region49: #{discriminator_forward.9} parent=0
    _
  %s7 = ssub.s32 1, %s5
  %s8 = scalar_select 0, %s7, %s5
  loop: start=0, step=1, limit=4
  $region2: #{discriminator_forward.9} parent=0 // loop_pre_header
    _
  $region3: #{discriminator_forward.9} parent=0 // loop_header
    %s10 = sphi 0, %s14
    %p11 = scmp.ge.s32.totalorder %s10, 4
    %s20 = sphi 0, %s22
    %s23 = sphi 0, %s20
    %s24 = sphi 0, %s23
    %s40 = sphi 0, %s24
    %s44 = sphi 0, %s44
    %s46 = sphi 0, %s44
    %s47 = sphi 0, %s46
    %s61 = sphi 0, %s47
    %s67 = sphi 0, %s69
    %s70 = sphi 0, %s67
    %s71 = sphi 0, %s70
    %s87 = sphi 0, %s71
    %s93 = sphi 0, %s95
    %s96 = sphi 0, %s93
    %s97 = sphi 0, %s96
    %s113 = sphi 0, %s97
  $region4: #{discriminator_forward.9} parent=0 // loop_header_branch
    %13 = sbr.rel (%p11) target = $region8
  $region5: #{discriminator_forward.9} parent=0 // loop_body
    %s15 = ssub.s32 %s10, 1
    %s16 = ssub.s32 %s10, 2
    %s17 = sadd.s32 %s10, 1
    %s18 = ssub.s32 %s10, %s17
    %p19 = scmp.eq.s32.totalorder %s18, 0
    %s21 = sadd.s32 %s20, 1
    %s22 = scalar_select %p19, %s20, %s21
    %p25 = pneg %p19
    %p26 = scmp.eq.s32.totalorder %s10, 1
    %p27 = por %p25, %p26
    %p28 = scmp.ne.s32.totalorder %s20, %s23
    %p29 = scmp.eq.s32.totalorder %s10, 0
    %p30 = por %p28, %p29
    %p31 = scmp.ne.s32.totalorder %s20, %s23
    %p32 = scmp.eq.s32.totalorder %s15, 1
    %p33 = por %p31, %p32
    %p34 = scmp.ne.s32.totalorder %s23, %s24
    %p35 = scmp.eq.s32.totalorder %s15, 0
    %p36 = por %p34, %p35
    %p37 = scmp.ne.s32.totalorder %s23, %s24
    %p38 = scmp.eq.s32.totalorder %s16, 1
    %p39 = por %p37, %p38
    %p41 = scmp.ne.s32.totalorder %s24, %s40
    %p42 = scmp.eq.s32.totalorder %s16, 0
    %p43 = por %p41, %p42
    %s45 = sadd.s32 %s44, 1
    %p48 = scmp.eq.s32.totalorder %s10, 1
    %p49 = scmp.ne.s32.totalorder %s44, %s46
    %p50 = scmp.eq.s32.totalorder %s10, 0
    %p51 = por %p49, %p50
    %p52 = scmp.ne.s32.totalorder %s44, %s46
    %p53 = scmp.eq.s32.totalorder %s15, 1
    %p54 = por %p52, %p53
    %p55 = scmp.ne.s32.totalorder %s46, %s47
    %p56 = scmp.eq.s32.totalorder %s15, 0
    %p57 = por %p55, %p56
    %p58 = scmp.ne.s32.totalorder %s46, %s47
    %p59 = scmp.eq.s32.totalorder %s16, 1
    %p60 = por %p58, %p59
    %p62 = scmp.ne.s32.totalorder %s47, %s61
    %p63 = scmp.eq.s32.totalorder %s16, 0
    %p64 = por %p62, %p63
    %s65 = ssub.s32 %s10, %s17
    %p66 = scmp.eq.s32.totalorder %s65, 0
    %s68 = sadd.s32 %s67, 1
    %s69 = scalar_select %p66, %s67, %s68
    %p72 = pneg %p66
    %p73 = scmp.eq.s32.totalorder %s10, 1
    %p74 = por %p72, %p73
    %p75 = scmp.ne.s32.totalorder %s67, %s70
    %p76 = scmp.eq.s32.totalorder %s10, 0
    %p77 = por %p75, %p76
    %p78 = scmp.ne.s32.totalorder %s67, %s70
    %p79 = scmp.eq.s32.totalorder %s15, 1
    %p80 = por %p78, %p79
    %p81 = scmp.ne.s32.totalorder %s70, %s71
    %p82 = scmp.eq.s32.totalorder %s15, 0
    %p83 = por %p81, %p82
    %p84 = scmp.ne.s32.totalorder %s70, %s71
    %p85 = scmp.eq.s32.totalorder %s16, 1
    %p86 = por %p84, %p85
    %p88 = scmp.ne.s32.totalorder %s71, %s87
    %p89 = scmp.eq.s32.totalorder %s16, 0
    %p90 = por %p88, %p89
    %s91 = ssub.s32 %s10, %s17
    %p92 = scmp.eq.s32.totalorder %s91, 0
    %s94 = sadd.s32 %s93, 1
    %s95 = scalar_select %p92, %s93, %s94
    %p98 = pneg %p92
    %p99 = scmp.eq.s32.totalorder %s10, 1
    %p100 = por %p98, %p99
    %p101 = scmp.ne.s32.totalorder %s93, %s96
    %p102 = scmp.eq.s32.totalorder %s10, 0
    %p103 = por %p101, %p102
    %p104 = scmp.ne.s32.totalorder %s93, %s96
    %p105 = scmp.eq.s32.totalorder %s15, 1
    %p106 = por %p104, %p105
    %p107 = scmp.ne.s32.totalorder %s96, %s97
    %p108 = scmp.eq.s32.totalorder %s15, 0
    %p109 = por %p107, %p108
    %p110 = scmp.ne.s32.totalorder %s96, %s97
    %p111 = scmp.eq.s32.totalorder %s16, 1
    %p112 = por %p110, %p111
    %p114 = scmp.ne.s32.totalorder %s97, %s113
    %p115 = scmp.eq.s32.totalorder %s16, 0
    %p116 = por %p114, %p115
    %p117 = scmp.le.s32.totalorder 1, %s10
    %p118 = scmp.lt.s32.totalorder %s10, 3
    %p119 = pnand %p117, %p118
    %p120 = pneg %p119
    // Predicated region
    $region9: #{discriminator_forward.9} parent=5 // pred_check
      _
    $region10: #{discriminator_forward.9} parent=5 // pred_check_branch
      %122 = sbr.rel (%p119) target = $region12
    $region11: #{discriminator_forward.9} parent=5 // pred_region
      %s123 = ssub.s32 %s10, 1
      // Predicated region
      $region13: #{discriminator_forward.9} parent=11 // pred_check
        %p124 = pneg %p57
      $region14: #{discriminator_forward.9} parent=11 // pred_check_branch
        %126 = sbr.rel (%p124) target = $region16
      $region15: #{discriminator_forward.9} parent=11 // pred_region
        _
      $region16: #{discriminator_forward.9} parent=11 // pred_fallthru
        _
    $region12: #{discriminator_forward.9} parent=5 // pred_fallthru
      _
    %p127 = scmp.lt.s32.totalorder %s10, 2
    // Predicated region
    $region17: #{discriminator_forward.9} parent=5 // pred_check
      %p128 = pneg %p127
    $region18: #{discriminator_forward.9} parent=5 // pred_check_branch
      %130 = sbr.rel (%p128) target = $region20
    $region19: #{discriminator_forward.9} parent=5 // pred_region
      // Predicated region
      $region21: #{discriminator_forward.9} parent=19 // pred_check
        %p131 = pneg %p30
      $region22: #{discriminator_forward.9} parent=19 // pred_check_branch
        %133 = sbr.rel (%p131) target = $region24
      $region23: #{discriminator_forward.9} parent=19 // pred_region
        %p134 = scmp.lt.s32.totalorder %s10, 1
        %s135 = scalar_select %p134, %s10, 1
        %s136 = smul.addr %s135, 132
        %s137 = smul.addr %s136, 4
        %s138 = scalar_lea.vmem %s0, %s137
      $region24: #{discriminator_forward.9} parent=19 // pred_fallthru
        _
    $region20: #{discriminator_forward.9} parent=5 // pred_fallthru
      _
    %p139 = scmp.le.s32.totalorder 1, %s10
    %p140 = scmp.lt.s32.totalorder %s10, 3
    %p141 = pnand %p139, %p140
    %p142 = pneg %p141
    // Predicated region
    $region25: #{discriminator_forward.9} parent=5 // pred_check
      _
    $region26: #{discriminator_forward.9} parent=5 // pred_check_branch
      %144 = sbr.rel (%p141) target = $region28
    $region27: #{discriminator_forward.9} parent=5 // pred_region
      %s145 = ssub.s32 %s10, 1
      %p146 = scmp.lt.s32.totalorder %s15, 1
      %s147 = scalar_select %p146, %s15, 1
      %s148 = smul.addr %s147, 132
      %s149 = smul.addr %s148, 4
      %s150 = scalar_lea.vmem %s0, %s149
      %p151 = pneg %p36
      %p152 = pneg %p33
      %p153 = pneg %p57
      %p154 = pneg %p54
      %p155 = pneg %p83
      %p156 = pneg %p80
      %p157 = scmp.lt.s32.totalorder %s15, 1
      %s158 = scalar_select %p157, %s15, 1
      %s159 = smul.addr %s158, 132
      %s160 = smul.addr %s159, 4
      %s161 = scalar_lea.vmem %s2, %s160
      %p162 = pneg %p109
      %p163 = pneg %p106
      %p164 = scmp.lt.s32.totalorder %s15, 1
      %s165 = scalar_select %p164, %s15, 1
      %s166 = smul.addr %s165, 2
      %s167 = scalar_lea.vmem %s3, %s166
      %p168 = scmp.lt.s32.totalorder %s15, 1
      %s169 = scalar_select %p168, %s15, 1
      %s170 = smul.addr %s169, 132
      %s171 = smul.addr %s170, 4
      %s172 = scalar_lea.vmem %s0, %s171
      %p173 = scmp.lt.s32.totalorder %s15, 1
      %s174 = scalar_select %p173, %s15, 1
      %s175 = smul.addr %s174, 132
      %s176 = smul.addr %s175, 4
      %s177 = scalar_lea.vmem %s2, %s176
      %p178 = scmp.lt.s32.totalorder %s15, 1
      %s179 = scalar_select %p178, %s15, 1
      %s180 = smul.addr %s179, 2
      %s181 = scalar_lea.vmem %s3, %s180
      %v183 = vlaneseq
      %v184 = vshrl.u32 %v183, 7
      %v185 = vadd.s32 %v184, 8
      %v186 = vadd.s32 %v184, 16
      %v187 = vadd.s32 %v184, 24
      %v188 = vadd.s32 %v184, 32
      %v189 = vadd.s32 %v184, 40
      %v190 = vadd.s32 %v184, 48
      %v191 = vadd.s32 %v184, 56
      %v192 = vadd.s32 %v184, 64
      %v193 = vadd.s32 %v184, 72
      %v194 = vadd.s32 %v184, 80
      %v195 = vadd.s32 %v184, 88
      %v196 = vadd.s32 %v184, 96
      %v197 = vadd.s32 %v184, 104
      %v198 = vadd.s32 %v184, 112
      %v199 = vadd.s32 %v184, 120
      %v200 = vadd.s32 %v184, 128
      %v201 = vadd.s32 %v184, 136
      %v202 = vadd.s32 %v184, 144
      %v203 = vadd.s32 %v184, 152
      %v204 = vadd.s32 %v184, 160
      %v205 = vadd.s32 %v184, 168
      %v206 = vadd.s32 %v184, 176
      %v207 = vadd.s32 %v184, 184
      %v208 = vadd.s32 %v184, 192
      %v209 = vadd.s32 %v184, 200
      %v210 = vadd.s32 %v184, 208
      %v211 = vadd.s32 %v184, 216
      %v212 = vadd.s32 %v184, 224
      %v213 = vadd.s32 %v184, 232
      %v214 = vadd.s32 %v184, 240
      %v215 = vadd.s32 %v184, 248
      %v216 = vadd.s32 %v184, 256
      %v217 = vadd.s32 %v184, 264
      %v218 = vadd.s32 %v184, 272
      %v219 = vadd.s32 %v184, 280
      %v220 = vadd.s32 %v184, 288
      %v221 = vadd.s32 %v184, 296
      %v222 = vadd.s32 %v184, 304
      %v223 = vadd.s32 %v184, 312
      %v224 = vadd.s32 %v184, 320
      %v225 = vadd.s32 %v184, 328
      %v226 = vadd.s32 %v184, 336
      %v227 = vadd.s32 %v184, 344
      %v228 = vadd.s32 %v184, 352
      %v229 = vadd.s32 %v184, 360
      %v230 = vadd.s32 %v184, 368
      %v231 = vadd.s32 %v184, 376
      %v232 = vadd.s32 %v184, 384
      %v233 = vadd.s32 %v184, 392
      %v234 = vadd.s32 %v184, 400
      %v235 = vadd.s32 %v184, 408
      %v236 = vadd.s32 %v184, 416
      %v237 = vadd.s32 %v184, 424
      %v238 = vadd.s32 %v184, 432
      %v239 = vadd.s32 %v184, 440
      %v240 = vadd.s32 %v184, 448
      %v241 = vadd.s32 %v184, 456
      %v242 = vadd.s32 %v184, 464
      %v243 = vadd.s32 %v184, 472
      %v244 = vadd.s32 %v184, 480
      %v245 = vadd.s32 %v184, 488
      %v246 = vadd.s32 %v184, 496
      %v247 = vadd.s32 %v184, 504
      %v248 = vadd.s32 %v184, 512
      %v249 = vadd.s32 %v184, 520
      %v250 = vadd.s32 %v184, 528
      %v251 = vadd.s32 %v184, 536
      %v252 = vadd.s32 %v184, 544
      %v253 = vadd.s32 %v184, 552
      %v254 = vadd.s32 %v184, 560
      %v255 = vadd.s32 %v184, 568
      %v256 = vadd.s32 %v184, 576
      %v257 = vadd.s32 %v184, 584
      %v258 = vadd.s32 %v184, 592
      %v259 = vadd.s32 %v184, 600
      %v260 = vadd.s32 %v184, 608
      %v261 = vadd.s32 %v184, 616
      %v262 = vadd.s32 %v184, 624
      %v263 = vadd.s32 %v184, 632
      %v264 = vadd.s32 %v184, 640
      %v265 = vadd.s32 %v184, 648
      %v266 = vadd.s32 %v184, 656
      %v267 = vadd.s32 %v184, 664
      %v268 = vadd.s32 %v184, 672
      %v269 = vadd.s32 %v184, 680
      %v270 = vadd.s32 %v184, 688
      %v271 = vadd.s32 %v184, 696
      %v272 = vadd.s32 %v184, 704
      %v273 = vadd.s32 %v184, 712
      %v274 = vadd.s32 %v184, 720
      %v275 = vadd.s32 %v184, 728
      %v276 = vadd.s32 %v184, 736
      %v277 = vadd.s32 %v184, 744
      %v278 = vadd.s32 %v184, 752
      %v279 = vadd.s32 %v184, 760
      %v280 = vadd.s32 %v184, 768
      %v281 = vadd.s32 %v184, 776
      %v282 = vadd.s32 %v184, 784
      %v283 = vadd.s32 %v184, 792
      %v284 = vadd.s32 %v184, 800
      %v285 = vadd.s32 %v184, 808
      %v286 = vadd.s32 %v184, 816
      %v287 = vadd.s32 %v184, 824
      %v288 = vadd.s32 %v184, 832
      %v289 = vadd.s32 %v184, 840
      %v290 = vadd.s32 %v184, 848
      %v291 = vadd.s32 %v184, 856
      %v292 = vadd.s32 %v184, 864
      %v293 = vadd.s32 %v184, 872
      %v294 = vadd.s32 %v184, 880
      %v295 = vadd.s32 %v184, 888
      %v296 = vadd.s32 %v184, 896
      %v297 = vadd.s32 %v184, 904
      %v298 = vadd.s32 %v184, 912
      %v299 = vadd.s32 %v184, 920
      %v300 = vadd.s32 %v184, 928
      %v301 = vadd.s32 %v184, 936
      %v302 = vadd.s32 %v184, 944
      %v303 = vadd.s32 %v184, 952
      %v304 = vadd.s32 %v184, 960
      %v305 = vadd.s32 %v184, 968
      %v306 = vadd.s32 %v184, 976
      %v307 = vadd.s32 %v184, 984
      %v308 = vadd.s32 %v184, 992
      %v309 = vadd.s32 %v184, 1000
      %v310 = vadd.s32 %v184, 1008
      %v311 = vadd.s32 %v184, 1016
      %v312 = vadd.s32 %v184, 1024
      %v313 = vadd.s32 %v184, 1032
      %v314 = vadd.s32 %v184, 1040
      %v315 = vadd.s32 %v184, 1048
      %v316 = vcvt.s32.f32 %v184
      %v317 = vcvt.s32.f32 %v185
      %v318 = vcvt.s32.f32 %v186
      %v319 = vcvt.s32.f32 %v187
      %v320 = vcvt.s32.f32 %v188
      %v321 = vcvt.s32.f32 %v189
      %v322 = vcvt.s32.f32 %v190
      %v323 = vcvt.s32.f32 %v191
      %v324 = vcvt.s32.f32 %v192
      %v325 = vcvt.s32.f32 %v193
      %v326 = vcvt.s32.f32 %v194
      %v327 = vcvt.s32.f32 %v195
      %v328 = vcvt.s32.f32 %v196
      %v329 = vcvt.s32.f32 %v197
      %v330 = vcvt.s32.f32 %v198
      %v331 = vcvt.s32.f32 %v199
      %v332 = vcvt.s32.f32 %v200
      %v333 = vcvt.s32.f32 %v201
      %v334 = vcvt.s32.f32 %v202
      %v335 = vcvt.s32.f32 %v203
      %v336 = vcvt.s32.f32 %v204
      %v337 = vcvt.s32.f32 %v205
      %v338 = vcvt.s32.f32 %v206
      %v339 = vcvt.s32.f32 %v207
      %v340 = vcvt.s32.f32 %v208
      %v341 = vcvt.s32.f32 %v209
      %v342 = vcvt.s32.f32 %v210
      %v343 = vcvt.s32.f32 %v211
      %v344 = vcvt.s32.f32 %v212
      %v345 = vcvt.s32.f32 %v213
      %v346 = vcvt.s32.f32 %v214
      %v347 = vcvt.s32.f32 %v215
      %v348 = vcvt.s32.f32 %v216
      %v349 = vcvt.s32.f32 %v217
      %v350 = vcvt.s32.f32 %v218
      %v351 = vcvt.s32.f32 %v219
      %v352 = vcvt.s32.f32 %v220
      %v353 = vcvt.s32.f32 %v221
      %v354 = vcvt.s32.f32 %v222
      %v355 = vcvt.s32.f32 %v223
      %v356 = vcvt.s32.f32 %v224
      %v357 = vcvt.s32.f32 %v225
      %v358 = vcvt.s32.f32 %v226
      %v359 = vcvt.s32.f32 %v227
      %v360 = vcvt.s32.f32 %v228
      %v361 = vcvt.s32.f32 %v229
      %v362 = vcvt.s32.f32 %v230
      %v363 = vcvt.s32.f32 %v231
      %v364 = vcvt.s32.f32 %v232
      %v365 = vcvt.s32.f32 %v233
      %v366 = vcvt.s32.f32 %v234
      %v367 = vcvt.s32.f32 %v235
      %v368 = vcvt.s32.f32 %v236
      %v369 = vcvt.s32.f32 %v237
      %v370 = vcvt.s32.f32 %v238
      %v371 = vcvt.s32.f32 %v239
      %v372 = vcvt.s32.f32 %v240
      %v373 = vcvt.s32.f32 %v241
      %v374 = vcvt.s32.f32 %v242
      %v375 = vcvt.s32.f32 %v243
      %v376 = vcvt.s32.f32 %v244
      %v377 = vcvt.s32.f32 %v245
      %v378 = vcvt.s32.f32 %v246
      %v379 = vcvt.s32.f32 %v247
      %v380 = vcvt.s32.f32 %v248
      %v381 = vcvt.s32.f32 %v249
      %v382 = vcvt.s32.f32 %v250
      %v383 = vcvt.s32.f32 %v251
      %v384 = vcvt.s32.f32 %v252
      %v385 = vcvt.s32.f32 %v253
      %v386 = vcvt.s32.f32 %v254
      %v387 = vcvt.s32.f32 %v255
      %v388 = vcvt.s32.f32 %v256
      %v389 = vcvt.s32.f32 %v257
      %v390 = vcvt.s32.f32 %v258
      %v391 = vcvt.s32.f32 %v259
      %v392 = vcvt.s32.f32 %v260
      %v393 = vcvt.s32.f32 %v261
      %v394 = vcvt.s32.f32 %v262
      %v395 = vcvt.s32.f32 %v263
      %v396 = vcvt.s32.f32 %v264
      %v397 = vcvt.s32.f32 %v265
      %v398 = vcvt.s32.f32 %v266
      %v399 = vcvt.s32.f32 %v267
      %v400 = vcvt.s32.f32 %v268
      %v401 = vcvt.s32.f32 %v269
      %v402 = vcvt.s32.f32 %v270
      %v403 = vcvt.s32.f32 %v271
      %v404 = vcvt.s32.f32 %v272
      %v405 = vcvt.s32.f32 %v273
      %v406 = vcvt.s32.f32 %v274
      %v407 = vcvt.s32.f32 %v275
      %v408 = vcvt.s32.f32 %v276
      %v409 = vcvt.s32.f32 %v277
      %v410 = vcvt.s32.f32 %v278
      %v411 = vcvt.s32.f32 %v279
      %v412 = vcvt.s32.f32 %v280
      %v413 = vcvt.s32.f32 %v281
      %v414 = vcvt.s32.f32 %v282
      %v415 = vcvt.s32.f32 %v283
      %v416 = vcvt.s32.f32 %v284
      %v417 = vcvt.s32.f32 %v285
      %v418 = vcvt.s32.f32 %v286
      %v419 = vcvt.s32.f32 %v287
      %v420 = vcvt.s32.f32 %v288
      %v421 = vcvt.s32.f32 %v289
      %v422 = vcvt.s32.f32 %v290
      %v423 = vcvt.s32.f32 %v291
      %v424 = vcvt.s32.f32 %v292
      %v425 = vcvt.s32.f32 %v293
      %v426 = vcvt.s32.f32 %v294
      %v427 = vcvt.s32.f32 %v295
      %v428 = vcvt.s32.f32 %v296
      %v429 = vcvt.s32.f32 %v297
      %v430 = vcvt.s32.f32 %v298
      %v431 = vcvt.s32.f32 %v299
      %v432 = vcvt.s32.f32 %v300
      %v433 = vcvt.s32.f32 %v301
      %v434 = vcvt.s32.f32 %v302
      %v435 = vcvt.s32.f32 %v303
      %v436 = vcvt.s32.f32 %v304
      %v437 = vcvt.s32.f32 %v305
      %v438 = vcvt.s32.f32 %v306
      %v439 = vcvt.s32.f32 %v307
      %v440 = vcvt.s32.f32 %v308
      %v441 = vcvt.s32.f32 %v309
      %v442 = vcvt.s32.f32 %v310
      %v443 = vcvt.s32.f32 %v311
      %v444 = vcvt.s32.f32 %v312
      %v445 = vcvt.s32.f32 %v313
      %v446 = vcvt.s32.f32 %v314
      %v447 = vcvt.s32.f32 %v315
      %v448 = vadd.f32 %v316, 0.5
      %v449 = vadd.f32 %v317, 0.5
      %v450 = vadd.f32 %v318, 0.5
      %v451 = vadd.f32 %v319, 0.5
      %v452 = vadd.f32 %v320, 0.5
      %v453 = vadd.f32 %v321, 0.5
      %v454 = vadd.f32 %v322, 0.5
      %v455 = vadd.f32 %v323, 0.5
      %v456 = vadd.f32 %v324, 0.5
      %v457 = vadd.f32 %v325, 0.5
      %v458 = vadd.f32 %v326, 0.5
      %v459 = vadd.f32 %v327, 0.5
      %v460 = vadd.f32 %v328, 0.5
      %v461 = vadd.f32 %v329, 0.5
      %v462 = vadd.f32 %v330, 0.5
      %v463 = vadd.f32 %v331, 0.5
      %v464 = vadd.f32 %v332, 0.5
      %v465 = vadd.f32 %v333, 0.5
      %v466 = vadd.f32 %v334, 0.5
      %v467 = vadd.f32 %v335, 0.5
      %v468 = vadd.f32 %v336, 0.5
      %v469 = vadd.f32 %v337, 0.5
      %v470 = vadd.f32 %v338, 0.5
      %v471 = vadd.f32 %v339, 0.5
      %v472 = vadd.f32 %v340, 0.5
      %v473 = vadd.f32 %v341, 0.5
      %v474 = vadd.f32 %v342, 0.5
      %v475 = vadd.f32 %v343, 0.5
      %v476 = vadd.f32 %v344, 0.5
      %v477 = vadd.f32 %v345, 0.5
      %v478 = vadd.f32 %v346, 0.5
      %v479 = vadd.f32 %v347, 0.5
      %v480 = vadd.f32 %v348, 0.5
      %v481 = vadd.f32 %v349, 0.5
      %v482 = vadd.f32 %v350, 0.5
      %v483 = vadd.f32 %v351, 0.5
      %v484 = vadd.f32 %v352, 0.5
      %v485 = vadd.f32 %v353, 0.5
      %v486 = vadd.f32 %v354, 0.5
      %v487 = vadd.f32 %v355, 0.5
      %v488 = vadd.f32 %v356, 0.5
      %v489 = vadd.f32 %v357, 0.5
      %v490 = vadd.f32 %v358, 0.5
      %v491 = vadd.f32 %v359, 0.5
      %v492 = vadd.f32 %v360, 0.5
      %v493 = vadd.f32 %v361, 0.5
      %v494 = vadd.f32 %v362, 0.5
      %v495 = vadd.f32 %v363, 0.5
      %v496 = vadd.f32 %v364, 0.5
      %v497 = vadd.f32 %v365, 0.5
      %v498 = vadd.f32 %v366, 0.5
      %v499 = vadd.f32 %v367, 0.5
      %v500 = vadd.f32 %v368, 0.5
      %v501 = vadd.f32 %v369, 0.5
      %v502 = vadd.f32 %v370, 0.5
      %v503 = vadd.f32 %v371, 0.5
      %v504 = vadd.f32 %v372, 0.5
      %v505 = vadd.f32 %v373, 0.5
      %v506 = vadd.f32 %v374, 0.5
      %v507 = vadd.f32 %v375, 0.5
      %v508 = vadd.f32 %v376, 0.5
      %v509 = vadd.f32 %v377, 0.5
      %v510 = vadd.f32 %v378, 0.5
      %v511 = vadd.f32 %v379, 0.5
      %v512 = vadd.f32 %v380, 0.5
      %v513 = vadd.f32 %v381, 0.5
      %v514 = vadd.f32 %v382, 0.5
      %v515 = vadd.f32 %v383, 0.5
      %v516 = vadd.f32 %v384, 0.5
      %v517 = vadd.f32 %v385, 0.5
      %v518 = vadd.f32 %v386, 0.5
      %v519 = vadd.f32 %v387, 0.5
      %v520 = vadd.f32 %v388, 0.5
      %v521 = vadd.f32 %v389, 0.5
      %v522 = vadd.f32 %v390, 0.5
      %v523 = vadd.f32 %v391, 0.5
      %v524 = vadd.f32 %v392, 0.5
      %v525 = vadd.f32 %v393, 0.5
      %v526 = vadd.f32 %v394, 0.5
      %v527 = vadd.f32 %v395, 0.5
      %v528 = vadd.f32 %v396, 0.5
      %v529 = vadd.f32 %v397, 0.5
      %v530 = vadd.f32 %v398, 0.5
      %v531 = vadd.f32 %v399, 0.5
      %v532 = vadd.f32 %v400, 0.5
      %v533 = vadd.f32 %v401, 0.5
      %v534 = vadd.f32 %v402, 0.5
      %v535 = vadd.f32 %v403, 0.5
      %v536 = vadd.f32 %v404, 0.5
      %v537 = vadd.f32 %v405, 0.5
      %v538 = vadd.f32 %v406, 0.5
      %v539 = vadd.f32 %v407, 0.5
      %v540 = vadd.f32 %v408, 0.5
      %v541 = vadd.f32 %v409, 0.5
      %v542 = vadd.f32 %v410, 0.5
      %v543 = vadd.f32 %v411, 0.5
      %v544 = vadd.f32 %v412, 0.5
      %v545 = vadd.f32 %v413, 0.5
      %v546 = vadd.f32 %v414, 0.5
      %v547 = vadd.f32 %v415, 0.5
      %v548 = vadd.f32 %v416, 0.5
      %v549 = vadd.f32 %v417, 0.5
      %v550 = vadd.f32 %v418, 0.5
      %v551 = vadd.f32 %v419, 0.5
      %v552 = vadd.f32 %v420, 0.5
      %v553 = vadd.f32 %v421, 0.5
      %v554 = vadd.f32 %v422, 0.5
      %v555 = vadd.f32 %v423, 0.5
      %v556 = vadd.f32 %v424, 0.5
      %v557 = vadd.f32 %v425, 0.5
      %v558 = vadd.f32 %v426, 0.5
      %v559 = vadd.f32 %v427, 0.5
      %v560 = vadd.f32 %v428, 0.5
      %v561 = vadd.f32 %v429, 0.5
      %v562 = vadd.f32 %v430, 0.5
      %v563 = vadd.f32 %v431, 0.5
      %v564 = vadd.f32 %v432, 0.5
      %v565 = vadd.f32 %v433, 0.5
      %v566 = vadd.f32 %v434, 0.5
      %v567 = vadd.f32 %v435, 0.5
      %v568 = vadd.f32 %v436, 0.5
      %v569 = vadd.f32 %v437, 0.5
      %v570 = vadd.f32 %v438, 0.5
      %v571 = vadd.f32 %v439, 0.5
      %v572 = vadd.f32 %v440, 0.5
      %v573 = vadd.f32 %v441, 0.5
      %v574 = vadd.f32 %v442, 0.5
      %v575 = vadd.f32 %v443, 0.5
      %v576 = vadd.f32 %v444, 0.5
      %v577 = vadd.f32 %v445, 0.5
      %v578 = vadd.f32 %v446, 0.5
      %v579 = vadd.f32 %v447, 0.5
      %v580 = vmul.f32 %v448, 0.030303031
      %v581 = vmul.f32 %v449, 0.030303031
      %v582 = vmul.f32 %v450, 0.030303031
      %v583 = vmul.f32 %v451, 0.030303031
      %v584 = vmul.f32 %v452, 0.030303031
      %v585 = vmul.f32 %v453, 0.030303031
      %v586 = vmul.f32 %v454, 0.030303031
      %v587 = vmul.f32 %v455, 0.030303031
      %v588 = vmul.f32 %v456, 0.030303031
      %v589 = vmul.f32 %v457, 0.030303031
      %v590 = vmul.f32 %v458, 0.030303031
      %v591 = vmul.f32 %v459, 0.030303031
      %v592 = vmul.f32 %v460, 0.030303031
      %v593 = vmul.f32 %v461, 0.030303031
      %v594 = vmul.f32 %v462, 0.030303031
      %v595 = vmul.f32 %v463, 0.030303031
      %v596 = vmul.f32 %v464, 0.030303031
      %v597 = vmul.f32 %v465, 0.030303031
      %v598 = vmul.f32 %v466, 0.030303031
      %v599 = vmul.f32 %v467, 0.030303031
      %v600 = vmul.f32 %v468, 0.030303031
      %v601 = vmul.f32 %v469, 0.030303031
      %v602 = vmul.f32 %v470, 0.030303031
      %v603 = vmul.f32 %v471, 0.030303031
      %v604 = vmul.f32 %v472, 0.030303031
      %v605 = vmul.f32 %v473, 0.030303031
      %v606 = vmul.f32 %v474, 0.030303031
      %v607 = vmul.f32 %v475, 0.030303031
      %v608 = vmul.f32 %v476, 0.030303031
      %v609 = vmul.f32 %v477, 0.030303031
      %v610 = vmul.f32 %v478, 0.030303031
      %v611 = vmul.f32 %v479, 0.030303031
      %v612 = vmul.f32 %v480, 0.030303031
      %v613 = vmul.f32 %v481, 0.030303031
      %v614 = vmul.f32 %v482, 0.030303031
      %v615 = vmul.f32 %v483, 0.030303031
      %v616 = vmul.f32 %v484, 0.030303031
      %v617 = vmul.f32 %v485, 0.030303031
      %v618 = vmul.f32 %v486, 0.030303031
      %v619 = vmul.f32 %v487, 0.030303031
      %v620 = vmul.f32 %v488, 0.030303031
      %v621 = vmul.f32 %v489, 0.030303031
      %v622 = vmul.f32 %v490, 0.030303031
      %v623 = vmul.f32 %v491, 0.030303031
      %v624 = vmul.f32 %v492, 0.030303031
      %v625 = vmul.f32 %v493, 0.030303031
      %v626 = vmul.f32 %v494, 0.030303031
      %v627 = vmul.f32 %v495, 0.030303031
      %v628 = vmul.f32 %v496, 0.030303031
      %v629 = vmul.f32 %v497, 0.030303031
      %v630 = vmul.f32 %v498, 0.030303031
      %v631 = vmul.f32 %v499, 0.030303031
      %v632 = vmul.f32 %v500, 0.030303031
      %v633 = vmul.f32 %v501, 0.030303031
      %v634 = vmul.f32 %v502, 0.030303031
      %v635 = vmul.f32 %v503, 0.030303031
      %v636 = vmul.f32 %v504, 0.030303031
      %v637 = vmul.f32 %v505, 0.030303031
      %v638 = vmul.f32 %v506, 0.030303031
      %v639 = vmul.f32 %v507, 0.030303031
      %v640 = vmul.f32 %v508, 0.030303031
      %v641 = vmul.f32 %v509, 0.030303031
      %v642 = vmul.f32 %v510, 0.030303031
      %v643 = vmul.f32 %v511, 0.030303031
      %v644 = vmul.f32 %v512, 0.030303031
      %v645 = vmul.f32 %v513, 0.030303031
      %v646 = vmul.f32 %v514, 0.030303031
      %v647 = vmul.f32 %v515, 0.030303031
      %v648 = vmul.f32 %v516, 0.030303031
      %v649 = vmul.f32 %v517, 0.030303031
      %v650 = vmul.f32 %v518, 0.030303031
      %v651 = vmul.f32 %v519, 0.030303031
      %v652 = vmul.f32 %v520, 0.030303031
      %v653 = vmul.f32 %v521, 0.030303031
      %v654 = vmul.f32 %v522, 0.030303031
      %v655 = vmul.f32 %v523, 0.030303031
      %v656 = vmul.f32 %v524, 0.030303031
      %v657 = vmul.f32 %v525, 0.030303031
      %v658 = vmul.f32 %v526, 0.030303031
      %v659 = vmul.f32 %v527, 0.030303031
      %v660 = vmul.f32 %v528, 0.030303031
      %v661 = vmul.f32 %v529, 0.030303031
      %v662 = vmul.f32 %v530, 0.030303031
      %v663 = vmul.f32 %v531, 0.030303031
      %v664 = vmul.f32 %v532, 0.030303031
      %v665 = vmul.f32 %v533, 0.030303031
      %v666 = vmul.f32 %v534, 0.030303031
      %v667 = vmul.f32 %v535, 0.030303031
      %v668 = vmul.f32 %v536, 0.030303031
      %v669 = vmul.f32 %v537, 0.030303031
      %v670 = vmul.f32 %v538, 0.030303031
      %v671 = vmul.f32 %v539, 0.030303031
      %v672 = vmul.f32 %v540, 0.030303031
      %v673 = vmul.f32 %v541, 0.030303031
      %v674 = vmul.f32 %v542, 0.030303031
      %v675 = vmul.f32 %v543, 0.030303031
      %v676 = vmul.f32 %v544, 0.030303031
      %v677 = vmul.f32 %v545, 0.030303031
      %v678 = vmul.f32 %v546, 0.030303031
      %v679 = vmul.f32 %v547, 0.030303031
      %v680 = vmul.f32 %v548, 0.030303031
      %v681 = vmul.f32 %v549, 0.030303031
      %v682 = vmul.f32 %v550, 0.030303031
      %v683 = vmul.f32 %v551, 0.030303031
      %v684 = vmul.f32 %v552, 0.030303031
      %v685 = vmul.f32 %v553, 0.030303031
      %v686 = vmul.f32 %v554, 0.030303031
      %v687 = vmul.f32 %v555, 0.030303031
      %v688 = vmul.f32 %v556, 0.030303031
      %v689 = vmul.f32 %v557, 0.030303031
      %v690 = vmul.f32 %v558, 0.030303031
      %v691 = vmul.f32 %v559, 0.030303031
      %v692 = vmul.f32 %v560, 0.030303031
      %v693 = vmul.f32 %v561, 0.030303031
      %v694 = vmul.f32 %v562, 0.030303031
      %v695 = vmul.f32 %v563, 0.030303031
      %v696 = vmul.f32 %v564, 0.030303031
      %v697 = vmul.f32 %v565, 0.030303031
      %v698 = vmul.f32 %v566, 0.030303031
      %v699 = vmul.f32 %v567, 0.030303031
      %v700 = vmul.f32 %v568, 0.030303031
      %v701 = vmul.f32 %v569, 0.030303031
      %v702 = vmul.f32 %v570, 0.030303031
      %v703 = vmul.f32 %v571, 0.030303031
      %v704 = vmul.f32 %v572, 0.030303031
      %v705 = vmul.f32 %v573, 0.030303031
      %v706 = vmul.f32 %v574, 0.030303031
      %v707 = vmul.f32 %v575, 0.030303031
      %v708 = vmul.f32 %v576, 0.030303031
      %v709 = vmul.f32 %v577, 0.030303031
      %v710 = vmul.f32 %v578, 0.030303031
      %v711 = vmul.f32 %v579, 0.030303031
      %v712 = vfloor.f32 %v580
      %v713 = vfloor.f32 %v581
      %v714 = vfloor.f32 %v582
      %v715 = vfloor.f32 %v583
      %v716 = vfloor.f32 %v584
      %v717 = vfloor.f32 %v585
      %v718 = vfloor.f32 %v586
      %v719 = vfloor.f32 %v587
      %v720 = vfloor.f32 %v588
      %v721 = vfloor.f32 %v589
      %v722 = vfloor.f32 %v590
      %v723 = vfloor.f32 %v591
      %v724 = vfloor.f32 %v592
      %v725 = vfloor.f32 %v593
      %v726 = vfloor.f32 %v594
      %v727 = vfloor.f32 %v595
      %v728 = vfloor.f32 %v596
      %v729 = vfloor.f32 %v597
      %v730 = vfloor.f32 %v598
      %v731 = vfloor.f32 %v599
      %v732 = vfloor.f32 %v600
      %v733 = vfloor.f32 %v601
      %v734 = vfloor.f32 %v602
      %v735 = vfloor.f32 %v603
      %v736 = vfloor.f32 %v604
      %v737 = vfloor.f32 %v605
      %v738 = vfloor.f32 %v606
      %v739 = vfloor.f32 %v607
      %v740 = vfloor.f32 %v608
      %v741 = vfloor.f32 %v609
      %v742 = vfloor.f32 %v610
      %v743 = vfloor.f32 %v611
      %v744 = vfloor.f32 %v612
      %v745 = vfloor.f32 %v613
      %v746 = vfloor.f32 %v614
      %v747 = vfloor.f32 %v615
      %v748 = vfloor.f32 %v616
      %v749 = vfloor.f32 %v617
      %v750 = vfloor.f32 %v618
      %v751 = vfloor.f32 %v619
      %v752 = vfloor.f32 %v620
      %v753 = vfloor.f32 %v621
      %v754 = vfloor.f32 %v622
      %v755 = vfloor.f32 %v623
      %v756 = vfloor.f32 %v624
      %v757 = vfloor.f32 %v625
      %v758 = vfloor.f32 %v626
      %v759 = vfloor.f32 %v627
      %v760 = vfloor.f32 %v628
      %v761 = vfloor.f32 %v629
      %v762 = vfloor.f32 %v630
      %v763 = vfloor.f32 %v631
      %v764 = vfloor.f32 %v632
      %v765 = vfloor.f32 %v633
      %v766 = vfloor.f32 %v634
      %v767 = vfloor.f32 %v635
      %v768 = vfloor.f32 %v636
      %v769 = vfloor.f32 %v637
      %v770 = vfloor.f32 %v638
      %v771 = vfloor.f32 %v639
      %v772 = vfloor.f32 %v640
      %v773 = vfloor.f32 %v641
      %v774 = vfloor.f32 %v642
      %v775 = vfloor.f32 %v643
      %v776 = vfloor.f32 %v644
      %v777 = vfloor.f32 %v645
      %v778 = vfloor.f32 %v646
      %v779 = vfloor.f32 %v647
      %v780 = vfloor.f32 %v648
      %v781 = vfloor.f32 %v649
      %v782 = vfloor.f32 %v650
      %v783 = vfloor.f32 %v651
      %v784 = vfloor.f32 %v652
      %v785 = vfloor.f32 %v653
      %v786 = vfloor.f32 %v654
      %v787 = vfloor.f32 %v655
      %v788 = vfloor.f32 %v656
      %v789 = vfloor.f32 %v657
      %v790 = vfloor.f32 %v658
      %v791 = vfloor.f32 %v659
      %v792 = vfloor.f32 %v660
      %v793 = vfloor.f32 %v661
      %v794 = vfloor.f32 %v662
      %v795 = vfloor.f32 %v663
      %v796 = vfloor.f32 %v664
      %v797 = vfloor.f32 %v665
      %v798 = vfloor.f32 %v666
      %v799 = vfloor.f32 %v667
      %v800 = vfloor.f32 %v668
      %v801 = vfloor.f32 %v669
      %v802 = vfloor.f32 %v670
      %v803 = vfloor.f32 %v671
      %v804 = vfloor.f32 %v672
      %v805 = vfloor.f32 %v673
      %v806 = vfloor.f32 %v674
      %v807 = vfloor.f32 %v675
      %v808 = vfloor.f32 %v676
      %v809 = vfloor.f32 %v677
      %v810 = vfloor.f32 %v678
      %v811 = vfloor.f32 %v679
      %v812 = vfloor.f32 %v680
      %v813 = vfloor.f32 %v681
      %v814 = vfloor.f32 %v682
      %v815 = vfloor.f32 %v683
      %v816 = vfloor.f32 %v684
      %v817 = vfloor.f32 %v685
      %v818 = vfloor.f32 %v686
      %v819 = vfloor.f32 %v687
      %v820 = vfloor.f32 %v688
      %v821 = vfloor.f32 %v689
      %v822 = vfloor.f32 %v690
      %v823 = vfloor.f32 %v691
      %v824 = vfloor.f32 %v692
      %v825 = vfloor.f32 %v693
      %v826 = vfloor.f32 %v694
      %v827 = vfloor.f32 %v695
      %v828 = vfloor.f32 %v696
      %v829 = vfloor.f32 %v697
      %v830 = vfloor.f32 %v698
      %v831 = vfloor.f32 %v699
      %v832 = vfloor.f32 %v700
      %v833 = vfloor.f32 %v701
      %v834 = vfloor.f32 %v702
      %v835 = vfloor.f32 %v703
      %v836 = vfloor.f32 %v704
      %v837 = vfloor.f32 %v705
      %v838 = vfloor.f32 %v706
      %v839 = vfloor.f32 %v707
      %v840 = vfloor.f32 %v708
      %v841 = vfloor.f32 %v709
      %v842 = vfloor.f32 %v710
      %v843 = vfloor.f32 %v711
      %v844 = vmul.f32 %v712, 33.0
      %v845 = vmul.f32 %v713, 33.0
      %v846 = vmul.f32 %v714, 33.0
      %v847 = vmul.f32 %v715, 33.0
      %v848 = vmul.f32 %v716, 33.0
      %v849 = vmul.f32 %v717, 33.0
      %v850 = vmul.f32 %v718, 33.0
      %v851 = vmul.f32 %v719, 33.0
      %v852 = vmul.f32 %v720, 33.0
      %v853 = vmul.f32 %v721, 33.0
      %v854 = vmul.f32 %v722, 33.0
      %v855 = vmul.f32 %v723, 33.0
      %v856 = vmul.f32 %v724, 33.0
      %v857 = vmul.f32 %v725, 33.0
      %v858 = vmul.f32 %v726, 33.0
      %v859 = vmul.f32 %v727, 33.0
      %v860 = vmul.f32 %v728, 33.0
      %v861 = vmul.f32 %v729, 33.0
      %v862 = vmul.f32 %v730, 33.0
      %v863 = vmul.f32 %v731, 33.0
      %v864 = vmul.f32 %v732, 33.0
      %v865 = vmul.f32 %v733, 33.0
      %v866 = vmul.f32 %v734, 33.0
      %v867 = vmul.f32 %v735, 33.0
      %v868 = vmul.f32 %v736, 33.0
      %v869 = vmul.f32 %v737, 33.0
      %v870 = vmul.f32 %v738, 33.0
      %v871 = vmul.f32 %v739, 33.0
      %v872 = vmul.f32 %v740, 33.0
      %v873 = vmul.f32 %v741, 33.0
      %v874 = vmul.f32 %v742, 33.0
      %v875 = vmul.f32 %v743, 33.0
      %v876 = vmul.f32 %v744, 33.0
      %v877 = vmul.f32 %v745, 33.0
      %v878 = vmul.f32 %v746, 33.0
      %v879 = vmul.f32 %v747, 33.0
      %v880 = vmul.f32 %v748, 33.0
      %v881 = vmul.f32 %v749, 33.0
      %v882 = vmul.f32 %v750, 33.0
      %v883 = vmul.f32 %v751, 33.0
      %v884 = vmul.f32 %v752, 33.0
      %v885 = vmul.f32 %v753, 33.0
      %v886 = vmul.f32 %v754, 33.0
      %v887 = vmul.f32 %v755, 33.0
      %v888 = vmul.f32 %v756, 33.0
      %v889 = vmul.f32 %v757, 33.0
      %v890 = vmul.f32 %v758, 33.0
      %v891 = vmul.f32 %v759, 33.0
      %v892 = vmul.f32 %v760, 33.0
      %v893 = vmul.f32 %v761, 33.0
      %v894 = vmul.f32 %v762, 33.0
      %v895 = vmul.f32 %v763, 33.0
      %v896 = vmul.f32 %v764, 33.0
      %v897 = vmul.f32 %v765, 33.0
      %v898 = vmul.f32 %v766, 33.0
      %v899 = vmul.f32 %v767, 33.0
      %v900 = vmul.f32 %v768, 33.0
      %v901 = vmul.f32 %v769, 33.0
      %v902 = vmul.f32 %v770, 33.0
      %v903 = vmul.f32 %v771, 33.0
      %v904 = vmul.f32 %v772, 33.0
      %v905 = vmul.f32 %v773, 33.0
      %v906 = vmul.f32 %v774, 33.0
      %v907 = vmul.f32 %v775, 33.0
      %v908 = vmul.f32 %v776, 33.0
      %v909 = vmul.f32 %v777, 33.0
      %v910 = vmul.f32 %v778, 33.0
      %v911 = vmul.f32 %v779, 33.0
      %v912 = vmul.f32 %v780, 33.0
      %v913 = vmul.f32 %v781, 33.0
      %v914 = vmul.f32 %v782, 33.0
      %v915 = vmul.f32 %v783, 33.0
      %v916 = vmul.f32 %v784, 33.0
      %v917 = vmul.f32 %v785, 33.0
      %v918 = vmul.f32 %v786, 33.0
      %v919 = vmul.f32 %v787, 33.0
      %v920 = vmul.f32 %v788, 33.0
      %v921 = vmul.f32 %v789, 33.0
      %v922 = vmul.f32 %v790, 33.0
      %v923 = vmul.f32 %v791, 33.0
      %v924 = vmul.f32 %v792, 33.0
      %v925 = vmul.f32 %v793, 33.0
      %v926 = vmul.f32 %v794, 33.0
      %v927 = vmul.f32 %v795, 33.0
      %v928 = vmul.f32 %v796, 33.0
      %v929 = vmul.f32 %v797, 33.0
      %v930 = vmul.f32 %v798, 33.0
      %v931 = vmul.f32 %v799, 33.0
      %v932 = vmul.f32 %v800, 33.0
      %v933 = vmul.f32 %v801, 33.0
      %v934 = vmul.f32 %v802, 33.0
      %v935 = vmul.f32 %v803, 33.0
      %v936 = vmul.f32 %v804, 33.0
      %v937 = vmul.f32 %v805, 33.0
      %v938 = vmul.f32 %v806, 33.0
      %v939 = vmul.f32 %v807, 33.0
      %v940 = vmul.f32 %v808, 33.0
      %v941 = vmul.f32 %v809, 33.0
      %v942 = vmul.f32 %v810, 33.0
      %v943 = vmul.f32 %v811, 33.0
      %v944 = vmul.f32 %v812, 33.0
      %v945 = vmul.f32 %v813, 33.0
      %v946 = vmul.f32 %v814, 33.0
      %v947 = vmul.f32 %v815, 33.0
      %v948 = vmul.f32 %v816, 33.0
      %v949 = vmul.f32 %v817, 33.0
      %v950 = vmul.f32 %v818, 33.0
      %v951 = vmul.f32 %v819, 33.0
      %v952 = vmul.f32 %v820, 33.0
      %v953 = vmul.f32 %v821, 33.0
      %v954 = vmul.f32 %v822, 33.0
      %v955 = vmul.f32 %v823, 33.0
      %v956 = vmul.f32 %v824, 33.0
      %v957 = vmul.f32 %v825, 33.0
      %v958 = vmul.f32 %v826, 33.0
      %v959 = vmul.f32 %v827, 33.0
      %v960 = vmul.f32 %v828, 33.0
      %v961 = vmul.f32 %v829, 33.0
      %v962 = vmul.f32 %v830, 33.0
      %v963 = vmul.f32 %v831, 33.0
      %v964 = vmul.f32 %v832, 33.0
      %v965 = vmul.f32 %v833, 33.0
      %v966 = vmul.f32 %v834, 33.0
      %v967 = vmul.f32 %v835, 33.0
      %v968 = vmul.f32 %v836, 33.0
      %v969 = vmul.f32 %v837, 33.0
      %v970 = vmul.f32 %v838, 33.0
      %v971 = vmul.f32 %v839, 33.0
      %v972 = vmul.f32 %v840, 33.0
      %v973 = vmul.f32 %v841, 33.0
      %v974 = vmul.f32 %v842, 33.0
      %v975 = vmul.f32 %v843, 33.0
      %v976 = vsub.f32 %v316, %v844
      %v977 = vsub.f32 %v317, %v845
      %v978 = vsub.f32 %v318, %v846
      %v979 = vsub.f32 %v319, %v847
      %v980 = vsub.f32 %v320, %v848
      %v981 = vsub.f32 %v321, %v849
      %v982 = vsub.f32 %v322, %v850
      %v983 = vsub.f32 %v323, %v851
      %v984 = vsub.f32 %v324, %v852
      %v985 = vsub.f32 %v325, %v853
      %v986 = vsub.f32 %v326, %v854
      %v987 = vsub.f32 %v327, %v855
      %v988 = vsub.f32 %v328, %v856
      %v989 = vsub.f32 %v329, %v857
      %v990 = vsub.f32 %v330, %v858
      %v991 = vsub.f32 %v331, %v859
      %v992 = vsub.f32 %v332, %v860
      %v993 = vsub.f32 %v333, %v861
      %v994 = vsub.f32 %v334, %v862
      %v995 = vsub.f32 %v335, %v863
      %v996 = vsub.f32 %v336, %v864
      %v997 = vsub.f32 %v337, %v865
      %v998 = vsub.f32 %v338, %v866
      %v999 = vsub.f32 %v339, %v867
      %v1000 = vsub.f32 %v340, %v868
      %v1001 = vsub.f32 %v341, %v869
      %v1002 = vsub.f32 %v342, %v870
      %v1003 = vsub.f32 %v343, %v871
      %v1004 = vsub.f32 %v344, %v872
      %v1005 = vsub.f32 %v345, %v873
      %v1006 = vsub.f32 %v346, %v874
      %v1007 = vsub.f32 %v347, %v875
      %v1008 = vsub.f32 %v348, %v876
      %v1009 = vsub.f32 %v349, %v877
      %v1010 = vsub.f32 %v350, %v878
      %v1011 = vsub.f32 %v351, %v879
      %v1012 = vsub.f32 %v352, %v880
      %v1013 = vsub.f32 %v353, %v881
      %v1014 = vsub.f32 %v354, %v882
      %v1015 = vsub.f32 %v355, %v883
      %v1016 = vsub.f32 %v356, %v884
      %v1017 = vsub.f32 %v357, %v885
      %v1018 = vsub.f32 %v358, %v886
      %v1019 = vsub.f32 %v359, %v887
      %v1020 = vsub.f32 %v360, %v888
      %v1021 = vsub.f32 %v361, %v889
      %v1022 = vsub.f32 %v362, %v890
      %v1023 = vsub.f32 %v363, %v891
      %v1024 = vsub.f32 %v364, %v892
      %v1025 = vsub.f32 %v365, %v893
      %v1026 = vsub.f32 %v366, %v894
      %v1027 = vsub.f32 %v367, %v895
      %v1028 = vsub.f32 %v368, %v896
      %v1029 = vsub.f32 %v369, %v897
      %v1030 = vsub.f32 %v370, %v898
      %v1031 = vsub.f32 %v371, %v899
      %v1032 = vsub.f32 %v372, %v900
      %v1033 = vsub.f32 %v373, %v901
      %v1034 = vsub.f32 %v374, %v902
      %v1035 = vsub.f32 %v375, %v903
      %v1036 = vsub.f32 %v376, %v904
      %v1037 = vsub.f32 %v377, %v905
      %v1038 = vsub.f32 %v378, %v906
      %v1039 = vsub.f32 %v379, %v907
      %v1040 = vsub.f32 %v380, %v908
      %v1041 = vsub.f32 %v381, %v909
      %v1042 = vsub.f32 %v382, %v910
      %v1043 = vsub.f32 %v383, %v911
      %v1044 = vsub.f32 %v384, %v912
      %v1045 = vsub.f32 %v385, %v913
      %v1046 = vsub.f32 %v386, %v914
      %v1047 = vsub.f32 %v387, %v915
      %v1048 = vsub.f32 %v388, %v916
      %v1049 = vsub.f32 %v389, %v917
      %v1050 = vsub.f32 %v390, %v918
      %v1051 = vsub.f32 %v391, %v919
      %v1052 = vsub.f32 %v392, %v920
      %v1053 = vsub.f32 %v393, %v921
      %v1054 = vsub.f32 %v394, %v922
      %v1055 = vsub.f32 %v395, %v923
      %v1056 = vsub.f32 %v396, %v924
      %v1057 = vsub.f32 %v397, %v925
      %v1058 = vsub.f32 %v398, %v926
      %v1059 = vsub.f32 %v399, %v927
      %v1060 = vsub.f32 %v400, %v928
      %v1061 = vsub.f32 %v401, %v929
      %v1062 = vsub.f32 %v402, %v930
      %v1063 = vsub.f32 %v403, %v931
      %v1064 = vsub.f32 %v404, %v932
      %v1065 = vsub.f32 %v405, %v933
      %v1066 = vsub.f32 %v406, %v934
      %v1067 = vsub.f32 %v407, %v935
      %v1068 = vsub.f32 %v408, %v936
      %v1069 = vsub.f32 %v409, %v937
      %v1070 = vsub.f32 %v410, %v938
      %v1071 = vsub.f32 %v411, %v939
      %v1072 = vsub.f32 %v412, %v940
      %v1073 = vsub.f32 %v413, %v941
      %v1074 = vsub.f32 %v414, %v942
      %v1075 = vsub.f32 %v415, %v943
      %v1076 = vsub.f32 %v416, %v944
      %v1077 = vsub.f32 %v417, %v945
      %v1078 = vsub.f32 %v418, %v946
      %v1079 = vsub.f32 %v419, %v947
      %v1080 = vsub.f32 %v420, %v948
      %v1081 = vsub.f32 %v421, %v949
      %v1082 = vsub.f32 %v422, %v950
      %v1083 = vsub.f32 %v423, %v951
      %v1084 = vsub.f32 %v424, %v952
      %v1085 = vsub.f32 %v425, %v953
      %v1086 = vsub.f32 %v426, %v954
      %v1087 = vsub.f32 %v427, %v955
      %v1088 = vsub.f32 %v428, %v956
      %v1089 = vsub.f32 %v429, %v957
      %v1090 = vsub.f32 %v430, %v958
      %v1091 = vsub.f32 %v431, %v959
      %v1092 = vsub.f32 %v432, %v960
      %v1093 = vsub.f32 %v433, %v961
      %v1094 = vsub.f32 %v434, %v962
      %v1095 = vsub.f32 %v435, %v963
      %v1096 = vsub.f32 %v436, %v964
      %v1097 = vsub.f32 %v437, %v965
      %v1098 = vsub.f32 %v438, %v966
      %v1099 = vsub.f32 %v439, %v967
      %v1100 = vsub.f32 %v440, %v968
      %v1101 = vsub.f32 %v441, %v969
      %v1102 = vsub.f32 %v442, %v970
      %v1103 = vsub.f32 %v443, %v971
      %v1104 = vsub.f32 %v444, %v972
      %v1105 = vsub.f32 %v445, %v973
      %v1106 = vsub.f32 %v446, %v974
      %v1107 = vsub.f32 %v447, %v975
      %vm1108 = vcmp.lt.f32.partialorder %v976, 31.5
      %vm1109 = vcmp.lt.f32.partialorder %v977, 31.5
      %vm1110 = vcmp.lt.f32.partialorder %v978, 31.5
      %vm1111 = vcmp.lt.f32.partialorder %v979, 31.5
      %vm1112 = vcmp.lt.f32.partialorder %v980, 31.5
      %vm1113 = vcmp.lt.f32.partialorder %v981, 31.5
      %vm1114 = vcmp.lt.f32.partialorder %v982, 31.5
      %vm1115 = vcmp.lt.f32.partialorder %v983, 31.5
      %vm1116 = vcmp.lt.f32.partialorder %v984, 31.5
      %vm1117 = vcmp.lt.f32.partialorder %v985, 31.5
      %vm1118 = vcmp.lt.f32.partialorder %v986, 31.5
      %vm1119 = vcmp.lt.f32.partialorder %v987, 31.5
      %vm1120 = vcmp.lt.f32.partialorder %v988, 31.5
      %vm1121 = vcmp.lt.f32.partialorder %v989, 31.5
      %vm1122 = vcmp.lt.f32.partialorder %v990, 31.5
      %vm1123 = vcmp.lt.f32.partialorder %v991, 31.5
      %vm1124 = vcmp.lt.f32.partialorder %v992, 31.5
      %vm1125 = vcmp.lt.f32.partialorder %v993, 31.5
      %vm1126 = vcmp.lt.f32.partialorder %v994, 31.5
      %vm1127 = vcmp.lt.f32.partialorder %v995, 31.5
      %vm1128 = vcmp.lt.f32.partialorder %v996, 31.5
      %vm1129 = vcmp.lt.f32.partialorder %v997, 31.5
      %vm1130 = vcmp.lt.f32.partialorder %v998, 31.5
      %vm1131 = vcmp.lt.f32.partialorder %v999, 31.5
      %vm1132 = vcmp.lt.f32.partialorder %v1000, 31.5
      %vm1133 = vcmp.lt.f32.partialorder %v1001, 31.5
      %vm1134 = vcmp.lt.f32.partialorder %v1002, 31.5
      %vm1135 = vcmp.lt.f32.partialorder %v1003, 31.5
      %vm1136 = vcmp.lt.f32.partialorder %v1004, 31.5
      %vm1137 = vcmp.lt.f32.partialorder %v1005, 31.5
      %vm1138 = vcmp.lt.f32.partialorder %v1006, 31.5
      %vm1139 = vcmp.lt.f32.partialorder %v1007, 31.5
      %vm1140 = vcmp.lt.f32.partialorder %v1008, 31.5
      %vm1141 = vcmp.lt.f32.partialorder %v1009, 31.5
      %vm1142 = vcmp.lt.f32.partialorder %v1010, 31.5
      %vm1143 = vcmp.lt.f32.partialorder %v1011, 31.5
      %vm1144 = vcmp.lt.f32.partialorder %v1012, 31.5
      %vm1145 = vcmp.lt.f32.partialorder %v1013, 31.5
      %vm1146 = vcmp.lt.f32.partialorder %v1014, 31.5
      %vm1147 = vcmp.lt.f32.partialorder %v1015, 31.5
      %vm1148 = vcmp.lt.f32.partialorder %v1016, 31.5
      %vm1149 = vcmp.lt.f32.partialorder %v1017, 31.5
      %vm1150 = vcmp.lt.f32.partialorder %v1018, 31.5
      %vm1151 = vcmp.lt.f32.partialorder %v1019, 31.5
      %vm1152 = vcmp.lt.f32.partialorder %v1020, 31.5
      %vm1153 = vcmp.lt.f32.partialorder %v1021, 31.5
      %vm1154 = vcmp.lt.f32.partialorder %v1022, 31.5
      %vm1155 = vcmp.lt.f32.partialorder %v1023, 31.5
      %vm1156 = vcmp.lt.f32.partialorder %v1024, 31.5
      %vm1157 = vcmp.lt.f32.partialorder %v1025, 31.5
      %vm1158 = vcmp.lt.f32.partialorder %v1026, 31.5
      %vm1159 = vcmp.lt.f32.partialorder %v1027, 31.5
      %vm1160 = vcmp.lt.f32.partialorder %v1028, 31.5
      %vm1161 = vcmp.lt.f32.partialorder %v1029, 31.5
      %vm1162 = vcmp.lt.f32.partialorder %v1030, 31.5
      %vm1163 = vcmp.lt.f32.partialorder %v1031, 31.5
      %vm1164 = vcmp.lt.f32.partialorder %v1032, 31.5
      %vm1165 = vcmp.lt.f32.partialorder %v1033, 31.5
      %vm1166 = vcmp.lt.f32.partialorder %v1034, 31.5
      %vm1167 = vcmp.lt.f32.partialorder %v1035, 31.5
      %vm1168 = vcmp.lt.f32.partialorder %v1036, 31.5
      %vm1169 = vcmp.lt.f32.partialorder %v1037, 31.5
      %vm1170 = vcmp.lt.f32.partialorder %v1038, 31.5
      %vm1171 = vcmp.lt.f32.partialorder %v1039, 31.5
      %vm1172 = vcmp.lt.f32.partialorder %v1040, 31.5
      %vm1173 = vcmp.lt.f32.partialorder %v1041, 31.5
      %vm1174 = vcmp.lt.f32.partialorder %v1042, 31.5
      %vm1175 = vcmp.lt.f32.partialorder %v1043, 31.5
      %vm1176 = vcmp.lt.f32.partialorder %v1044, 31.5
      %vm1177 = vcmp.lt.f32.partialorder %v1045, 31.5
      %vm1178 = vcmp.lt.f32.partialorder %v1046, 31.5
      %vm1179 = vcmp.lt.f32.partialorder %v1047, 31.5
      %vm1180 = vcmp.lt.f32.partialorder %v1048, 31.5
      %vm1181 = vcmp.lt.f32.partialorder %v1049, 31.5
      %vm1182 = vcmp.lt.f32.partialorder %v1050, 31.5
      %vm1183 = vcmp.lt.f32.partialorder %v1051, 31.5
      %vm1184 = vcmp.lt.f32.partialorder %v1052, 31.5
      %vm1185 = vcmp.lt.f32.partialorder %v1053, 31.5
      %vm1186 = vcmp.lt.f32.partialorder %v1054, 31.5
      %vm1187 = vcmp.lt.f32.partialorder %v1055, 31.5
      %vm1188 = vcmp.lt.f32.partialorder %v1056, 31.5
      %vm1189 = vcmp.lt.f32.partialorder %v1057, 31.5
      %vm1190 = vcmp.lt.f32.partialorder %v1058, 31.5
      %vm1191 = vcmp.lt.f32.partialorder %v1059, 31.5
      %vm1192 = vcmp.lt.f32.partialorder %v1060, 31.5
      %vm1193 = vcmp.lt.f32.partialorder %v1061, 31.5
      %vm1194 = vcmp.lt.f32.partialorder %v1062, 31.5
      %vm1195 = vcmp.lt.f32.partialorder %v1063, 31.5
      %vm1196 = vcmp.lt.f32.partialorder %v1064, 31.5
      %vm1197 = vcmp.lt.f32.partialorder %v1065, 31.5
      %vm1198 = vcmp.lt.f32.partialorder %v1066, 31.5
      %vm1199 = vcmp.lt.f32.partialorder %v1067, 31.5
      %vm1200 = vcmp.lt.f32.partialorder %v1068, 31.5
      %vm1201 = vcmp.lt.f32.partialorder %v1069, 31.5
      %vm1202 = vcmp.lt.f32.partialorder %v1070, 31.5
      %vm1203 = vcmp.lt.f32.partialorder %v1071, 31.5
      %vm1204 = vcmp.lt.f32.partialorder %v1072, 31.5
      %vm1205 = vcmp.lt.f32.partialorder %v1073, 31.5
      %vm1206 = vcmp.lt.f32.partialorder %v1074, 31.5
      %vm1207 = vcmp.lt.f32.partialorder %v1075, 31.5
      %vm1208 = vcmp.lt.f32.partialorder %v1076, 31.5
      %vm1209 = vcmp.lt.f32.partialorder %v1077, 31.5
      %vm1210 = vcmp.lt.f32.partialorder %v1078, 31.5
      %vm1211 = vcmp.lt.f32.partialorder %v1079, 31.5
      %vm1212 = vcmp.lt.f32.partialorder %v1080, 31.5
      %vm1213 = vcmp.lt.f32.partialorder %v1081, 31.5
      %vm1214 = vcmp.lt.f32.partialorder %v1082, 31.5
      %vm1215 = vcmp.lt.f32.partialorder %v1083, 31.5
      %vm1216 = vcmp.lt.f32.partialorder %v1084, 31.5
      %vm1217 = vcmp.lt.f32.partialorder %v1085, 31.5
      %vm1218 = vcmp.lt.f32.partialorder %v1086, 31.5
      %vm1219 = vcmp.lt.f32.partialorder %v1087, 31.5
      %vm1220 = vcmp.lt.f32.partialorder %v1088, 31.5
      %vm1221 = vcmp.lt.f32.partialorder %v1089, 31.5
      %vm1222 = vcmp.lt.f32.partialorder %v1090, 31.5
      %vm1223 = vcmp.lt.f32.partialorder %v1091, 31.5
      %vm1224 = vcmp.lt.f32.partialorder %v1092, 31.5
      %vm1225 = vcmp.lt.f32.partialorder %v1093, 31.5
      %vm1226 = vcmp.lt.f32.partialorder %v1094, 31.5
      %vm1227 = vcmp.lt.f32.partialorder %v1095, 31.5
      %vm1228 = vcmp.lt.f32.partialorder %v1096, 31.5
      %vm1229 = vcmp.lt.f32.partialorder %v1097, 31.5
      %vm1230 = vcmp.lt.f32.partialorder %v1098, 31.5
      %vm1231 = vcmp.lt.f32.partialorder %v1099, 31.5
      %vm1232 = vcmp.lt.f32.partialorder %v1100, 31.5
      %vm1233 = vcmp.lt.f32.partialorder %v1101, 31.5
      %vm1234 = vcmp.lt.f32.partialorder %v1102, 31.5
      %vm1235 = vcmp.lt.f32.partialorder %v1103, 31.5
      %vm1236 = vcmp.lt.f32.partialorder %v1104, 31.5
      %vm1237 = vcmp.lt.f32.partialorder %v1105, 31.5
      %vm1238 = vcmp.lt.f32.partialorder %v1106, 31.5
      %vm1239 = vcmp.lt.f32.partialorder %v1107, 31.5
      %v1240 = vld [vmem:[%s172] sm:$0xf]
      %v1241 = vld [vmem:[%s172 + $0x4] sm:$0xf]
      %v1242 = vld [vmem:[%s172 + $0x8] sm:$0xf]
      %v1243 = vld [vmem:[%s172 + $0xc] sm:$0xf]
      %v1244 = vld [vmem:[%s172 + $0x10] sm:$0xf]
      %v1245 = vld [vmem:[%s172 + $0x14] sm:$0xf]
      %v1246 = vld [vmem:[%s172 + $0x18] sm:$0xf]
      %v1247 = vld [vmem:[%s172 + $0x1c] sm:$0xf]
      %v1248 = vld [vmem:[%s172 + $0x20] sm:$0xf]
      %v1249 = vld [vmem:[%s172 + $0x24] sm:$0xf]
      %v1250 = vld [vmem:[%s172 + $0x28] sm:$0xf]
      %v1251 = vld [vmem:[%s172 + $0x2c] sm:$0xf]
      %v1252 = vld [vmem:[%s172 + $0x30] sm:$0xf]
      %v1253 = vld [vmem:[%s172 + $0x34] sm:$0xf]
      %v1254 = vld [vmem:[%s172 + $0x38] sm:$0xf]
      %v1255 = vld [vmem:[%s172 + $0x3c] sm:$0xf]
      %v1256 = vld [vmem:[%s172 + $0x40] sm:$0xf]
      %v1257 = vld [vmem:[%s172 + $0x44] sm:$0xf]
      %v1258 = vld [vmem:[%s172 + $0x48] sm:$0xf]
      %v1259 = vld [vmem:[%s172 + $0x4c] sm:$0xf]
      %v1260 = vld [vmem:[%s172 + $0x50] sm:$0xf]
      %v1261 = vld [vmem:[%s172 + $0x54] sm:$0xf]
      %v1262 = vld [vmem:[%s172 + $0x58] sm:$0xf]
      %v1263 = vld [vmem:[%s172 + $0x5c] sm:$0xf]
      %v1264 = vld [vmem:[%s172 + $0x60] sm:$0xf]
      %v1265 = vld [vmem:[%s172 + $0x64] sm:$0xf]
      %v1266 = vld [vmem:[%s172 + $0x68] sm:$0xf]
      %v1267 = vld [vmem:[%s172 + $0x6c] sm:$0xf]
      %v1268 = vld [vmem:[%s172 + $0x70] sm:$0xf]
      %v1269 = vld [vmem:[%s172 + $0x74] sm:$0xf]
      %v1270 = vld [vmem:[%s172 + $0x78] sm:$0xf]
      %v1271 = vld [vmem:[%s172 + $0x7c] sm:$0xf]
      %v1272 = vld [vmem:[%s172 + $0x80] sm:$0xf]
      %v1273 = vld [vmem:[%s172 + $0x84] sm:$0xf]
      %v1274 = vld [vmem:[%s172 + $0x88] sm:$0xf]
      %v1275 = vld [vmem:[%s172 + $0x8c] sm:$0xf]
      %v1276 = vld [vmem:[%s172 + $0x90] sm:$0xf]
      %v1277 = vld [vmem:[%s172 + $0x94] sm:$0xf]
      %v1278 = vld [vmem:[%s172 + $0x98] sm:$0xf]
      %v1279 = vld [vmem:[%s172 + $0x9c] sm:$0xf]
      %v1280 = vld [vmem:[%s172 + $0xa0] sm:$0xf]
      %v1281 = vld [vmem:[%s172 + $0xa4] sm:$0xf]
      %v1282 = vld [vmem:[%s172 + $0xa8] sm:$0xf]
      %v1283 = vld [vmem:[%s172 + $0xac] sm:$0xf]
      %v1284 = vld [vmem:[%s172 + $0xb0] sm:$0xf]
      %v1285 = vld [vmem:[%s172 + $0xb4] sm:$0xf]
      %v1286 = vld [vmem:[%s172 + $0xb8] sm:$0xf]
      %v1287 = vld [vmem:[%s172 + $0xbc] sm:$0xf]
      %v1288 = vld [vmem:[%s172 + $0xc0] sm:$0xf]
      %v1289 = vld [vmem:[%s172 + $0xc4] sm:$0xf]
      %v1290 = vld [vmem:[%s172 + $0xc8] sm:$0xf]
      %v1291 = vld [vmem:[%s172 + $0xcc] sm:$0xf]
      %v1292 = vld [vmem:[%s172 + $0xd0] sm:$0xf]
      %v1293 = vld [vmem:[%s172 + $0xd4] sm:$0xf]
      %v1294 = vld [vmem:[%s172 + $0xd8] sm:$0xf]
      %v1295 = vld [vmem:[%s172 + $0xdc] sm:$0xf]
      %v1296 = vld [vmem:[%s172 + $0xe0] sm:$0xf]
      %v1297 = vld [vmem:[%s172 + $0xe4] sm:$0xf]
      %v1298 = vld [vmem:[%s172 + $0xe8] sm:$0xf]
      %v1299 = vld [vmem:[%s172 + $0xec] sm:$0xf]
      %v1300 = vld [vmem:[%s172 + $0xf0] sm:$0xf]
      %v1301 = vld [vmem:[%s172 + $0xf4] sm:$0xf]
      %v1302 = vld [vmem:[%s172 + $0xf8] sm:$0xf]
      %v1303 = vld [vmem:[%s172 + $0xfc] sm:$0xf]
      %v1304 = vld [vmem:[%s172 + $0x100] sm:$0xf]
      %v1305 = vld [vmem:[%s172 + $0x104] sm:$0xf]
      %v1306 = vld [vmem:[%s172 + $0x108] sm:$0xf]
      %v1307 = vld [vmem:[%s172 + $0x10c] sm:$0xf]
      %v1308 = vld [vmem:[%s172 + $0x110] sm:$0xf]
      %v1309 = vld [vmem:[%s172 + $0x114] sm:$0xf]
      %v1310 = vld [vmem:[%s172 + $0x118] sm:$0xf]
      %v1311 = vld [vmem:[%s172 + $0x11c] sm:$0xf]
      %v1312 = vld [vmem:[%s172 + $0x120] sm:$0xf]
      %v1313 = vld [vmem:[%s172 + $0x124] sm:$0xf]
      %v1314 = vld [vmem:[%s172 + $0x128] sm:$0xf]
      %v1315 = vld [vmem:[%s172 + $0x12c] sm:$0xf]
      %v1316 = vld [vmem:[%s172 + $0x130] sm:$0xf]
      %v1317 = vld [vmem:[%s172 + $0x134] sm:$0xf]
      %v1318 = vld [vmem:[%s172 + $0x138] sm:$0xf]
      %v1319 = vld [vmem:[%s172 + $0x13c] sm:$0xf]
      %v1320 = vld [vmem:[%s172 + $0x140] sm:$0xf]
      %v1321 = vld [vmem:[%s172 + $0x144] sm:$0xf]
      %v1322 = vld [vmem:[%s172 + $0x148] sm:$0xf]
      %v1323 = vld [vmem:[%s172 + $0x14c] sm:$0xf]
      %v1324 = vld [vmem:[%s172 + $0x150] sm:$0xf]
      %v1325 = vld [vmem:[%s172 + $0x154] sm:$0xf]
      %v1326 = vld [vmem:[%s172 + $0x158] sm:$0xf]
      %v1327 = vld [vmem:[%s172 + $0x15c] sm:$0xf]
      %v1328 = vld [vmem:[%s172 + $0x160] sm:$0xf]
      %v1329 = vld [vmem:[%s172 + $0x164] sm:$0xf]
      %v1330 = vld [vmem:[%s172 + $0x168] sm:$0xf]
      %v1331 = vld [vmem:[%s172 + $0x16c] sm:$0xf]
      %v1332 = vld [vmem:[%s172 + $0x170] sm:$0xf]
      %v1333 = vld [vmem:[%s172 + $0x174] sm:$0xf]
      %v1334 = vld [vmem:[%s172 + $0x178] sm:$0xf]
      %v1335 = vld [vmem:[%s172 + $0x17c] sm:$0xf]
      %v1336 = vld [vmem:[%s172 + $0x180] sm:$0xf]
      %v1337 = vld [vmem:[%s172 + $0x184] sm:$0xf]
      %v1338 = vld [vmem:[%s172 + $0x188] sm:$0xf]
      %v1339 = vld [vmem:[%s172 + $0x18c] sm:$0xf]
      %v1340 = vld [vmem:[%s172 + $0x190] sm:$0xf]
      %v1341 = vld [vmem:[%s172 + $0x194] sm:$0xf]
      %v1342 = vld [vmem:[%s172 + $0x198] sm:$0xf]
      %v1343 = vld [vmem:[%s172 + $0x19c] sm:$0xf]
      %v1344 = vld [vmem:[%s172 + $0x1a0] sm:$0xf]
      %v1345 = vld [vmem:[%s172 + $0x1a4] sm:$0xf]
      %v1346 = vld [vmem:[%s172 + $0x1a8] sm:$0xf]
      %v1347 = vld [vmem:[%s172 + $0x1ac] sm:$0xf]
      %v1348 = vld [vmem:[%s172 + $0x1b0] sm:$0xf]
      %v1349 = vld [vmem:[%s172 + $0x1b4] sm:$0xf]
      %v1350 = vld [vmem:[%s172 + $0x1b8] sm:$0xf]
      %v1351 = vld [vmem:[%s172 + $0x1bc] sm:$0xf]
      %v1352 = vld [vmem:[%s172 + $0x1c0] sm:$0xf]
      %v1353 = vld [vmem:[%s172 + $0x1c4] sm:$0xf]
      %v1354 = vld [vmem:[%s172 + $0x1c8] sm:$0xf]
      %v1355 = vld [vmem:[%s172 + $0x1cc] sm:$0xf]
      %v1356 = vld [vmem:[%s172 + $0x1d0] sm:$0xf]
      %v1357 = vld [vmem:[%s172 + $0x1d4] sm:$0xf]
      %v1358 = vld [vmem:[%s172 + $0x1d8] sm:$0xf]
      %v1359 = vld [vmem:[%s172 + $0x1dc] sm:$0xf]
      %v1360 = vld [vmem:[%s172 + $0x1e0] sm:$0xf]
      %v1361 = vld [vmem:[%s172 + $0x1e4] sm:$0xf]
      %v1362 = vld [vmem:[%s172 + $0x1e8] sm:$0xf]
      %v1363 = vld [vmem:[%s172 + $0x1ec] sm:$0xf]
      %v1364 = vld [vmem:[%s172 + $0x1f0] sm:$0xf]
      %v1365 = vld [vmem:[%s172 + $0x1f4] sm:$0xf]
      %v1366 = vld [vmem:[%s172 + $0x1f8] sm:$0xf]
      %v1367 = vld [vmem:[%s172 + $0x1fc] sm:$0xf]
      %v1368 = vld [vmem:[%s172 + $0x200] sm:$0xf]
      %v1369 = vld [vmem:[%s172 + $0x204] sm:$0xf]
      %v1370 = vld [vmem:[%s172 + $0x208] sm:$0xf]
      %v1371 = vld [vmem:[%s172 + $0x20c] sm:$0xf]
      %v1372 = vld [vmem:[%s1] sm:$0xf]
      %v1373 = vld [vmem:[%s1 + $0x4] sm:$0xf]
      %v1374 = vld [vmem:[%s1 + $0x8] sm:$0xf]
      %v1375 = vld [vmem:[%s1 + $0xc] sm:$0xf]
      %v1376 = vld [vmem:[%s1 + $0x10] sm:$0xf]
      %v1377 = vld [vmem:[%s1 + $0x14] sm:$0xf]
      %v1510 = vunpack.c.l.b16 %v1240
      %v1511 = vunpack.c.l.b16 %v1241
      %v1512 = vunpack.c.l.b16 %v1242
      %v1513 = vunpack.c.l.b16 %v1243
      %v1514 = vunpack.c.l.b16 %v1244
      %v1515 = vunpack.c.l.b16 %v1245
      %v1516 = vunpack.c.l.b16 %v1246
      %v1517 = vunpack.c.l.b16 %v1247
      %v1518 = vunpack.c.l.b16 %v1248
      %v1519 = vunpack.c.l.b16 %v1249
      %v1520 = vunpack.c.l.b16 %v1250
      %v1521 = vunpack.c.l.b16 %v1251
      %v1522 = vunpack.c.l.b16 %v1252
      %v1523 = vunpack.c.l.b16 %v1253
      %v1524 = vunpack.c.l.b16 %v1254
      %v1525 = vunpack.c.l.b16 %v1255
      %v1526 = vunpack.c.l.b16 %v1256
      %v1527 = vunpack.c.l.b16 %v1257
      %v1528 = vunpack.c.l.b16 %v1258
      %v1529 = vunpack.c.l.b16 %v1259
      %v1530 = vunpack.c.l.b16 %v1260
      %v1531 = vunpack.c.l.b16 %v1261
      %v1532 = vunpack.c.l.b16 %v1262
      %v1533 = vunpack.c.l.b16 %v1263
      %v1534 = vunpack.c.l.b16 %v1264
      %v1535 = vunpack.c.l.b16 %v1265
      %v1536 = vunpack.c.l.b16 %v1266
      %v1537 = vunpack.c.l.b16 %v1267
      %v1538 = vunpack.c.l.b16 %v1268
      %v1539 = vunpack.c.l.b16 %v1269
      %v1540 = vunpack.c.l.b16 %v1270
      %v1541 = vunpack.c.l.b16 %v1271
      %v1542 = vunpack.c.l.b16 %v1272
      %v1543 = vunpack.c.l.b16 %v1273
      %v1544 = vunpack.c.l.b16 %v1274
      %v1545 = vunpack.c.l.b16 %v1275
      %v1546 = vunpack.c.l.b16 %v1276
      %v1547 = vunpack.c.l.b16 %v1277
      %v1548 = vunpack.c.l.b16 %v1278
      %v1549 = vunpack.c.l.b16 %v1279
      %v1550 = vunpack.c.l.b16 %v1280
      %v1551 = vunpack.c.l.b16 %v1281
      %v1552 = vunpack.c.l.b16 %v1282
      %v1553 = vunpack.c.l.b16 %v1283
      %v1554 = vunpack.c.l.b16 %v1284
      %v1555 = vunpack.c.l.b16 %v1285
      %v1556 = vunpack.c.l.b16 %v1286
      %v1557 = vunpack.c.l.b16 %v1287
      %v1558 = vunpack.c.l.b16 %v1288
      %v1559 = vunpack.c.l.b16 %v1289
      %v1560 = vunpack.c.l.b16 %v1290
      %v1561 = vunpack.c.l.b16 %v1291
      %v1562 = vunpack.c.l.b16 %v1292
      %v1563 = vunpack.c.l.b16 %v1293
      %v1564 = vunpack.c.l.b16 %v1294
      %v1565 = vunpack.c.l.b16 %v1295
      %v1566 = vunpack.c.l.b16 %v1296
      %v1567 = vunpack.c.l.b16 %v1297
      %v1568 = vunpack.c.l.b16 %v1298
      %v1569 = vunpack.c.l.b16 %v1299
      %v1570 = vunpack.c.l.b16 %v1300
      %v1571 = vunpack.c.l.b16 %v1301
      %v1572 = vunpack.c.l.b16 %v1302
      %v1573 = vunpack.c.l.b16 %v1303
      %v1574 = vunpack.c.l.b16 %v1304
      %v1575 = vunpack.c.l.b16 %v1305
      %v1576 = vunpack.c.l.b16 %v1306
      %v1577 = vunpack.c.l.b16 %v1307
      %v1578 = vunpack.c.l.b16 %v1308
      %v1579 = vunpack.c.l.b16 %v1309
      %v1580 = vunpack.c.l.b16 %v1310
      %v1581 = vunpack.c.l.b16 %v1311
      %v1582 = vunpack.c.l.b16 %v1312
      %v1583 = vunpack.c.l.b16 %v1313
      %v1584 = vunpack.c.l.b16 %v1314
      %v1585 = vunpack.c.l.b16 %v1315
      %v1586 = vunpack.c.l.b16 %v1316
      %v1587 = vunpack.c.l.b16 %v1317
      %v1588 = vunpack.c.l.b16 %v1318
      %v1589 = vunpack.c.l.b16 %v1319
      %v1590 = vunpack.c.l.b16 %v1320
      %v1591 = vunpack.c.l.b16 %v1321
      %v1592 = vunpack.c.l.b16 %v1322
      %v1593 = vunpack.c.l.b16 %v1323
      %v1594 = vunpack.c.l.b16 %v1324
      %v1595 = vunpack.c.l.b16 %v1325
      %v1596 = vunpack.c.l.b16 %v1326
      %v1597 = vunpack.c.l.b16 %v1327
      %v1598 = vunpack.c.l.b16 %v1328
      %v1599 = vunpack.c.l.b16 %v1329
      %v1600 = vunpack.c.l.b16 %v1330
      %v1601 = vunpack.c.l.b16 %v1331
      %v1602 = vunpack.c.l.b16 %v1332
      %v1603 = vunpack.c.l.b16 %v1333
      %v1604 = vunpack.c.l.b16 %v1334
      %v1605 = vunpack.c.l.b16 %v1335
      %v1606 = vunpack.c.l.b16 %v1336
      %v1607 = vunpack.c.l.b16 %v1337
      %v1608 = vunpack.c.l.b16 %v1338
      %v1609 = vunpack.c.l.b16 %v1339
      %v1610 = vunpack.c.l.b16 %v1340
      %v1611 = vunpack.c.l.b16 %v1341
      %v1612 = vunpack.c.l.b16 %v1342
      %v1613 = vunpack.c.l.b16 %v1343
      %v1614 = vunpack.c.l.b16 %v1344
      %v1615 = vunpack.c.l.b16 %v1345
      %v1616 = vunpack.c.l.b16 %v1346
      %v1617 = vunpack.c.l.b16 %v1347
      %v1618 = vunpack.c.l.b16 %v1348
      %v1619 = vunpack.c.l.b16 %v1349
      %v1620 = vunpack.c.l.b16 %v1350
      %v1621 = vunpack.c.l.b16 %v1351
      %v1622 = vunpack.c.l.b16 %v1352
      %v1623 = vunpack.c.l.b16 %v1353
      %v1624 = vunpack.c.l.b16 %v1354
      %v1625 = vunpack.c.l.b16 %v1355
      %v1626 = vunpack.c.l.b16 %v1356
      %v1627 = vunpack.c.l.b16 %v1357
      %v1628 = vunpack.c.l.b16 %v1358
      %v1629 = vunpack.c.l.b16 %v1359
      %v1630 = vunpack.c.l.b16 %v1360
      %v1631 = vunpack.c.l.b16 %v1361
      %v1632 = vunpack.c.l.b16 %v1362
      %v1633 = vunpack.c.l.b16 %v1363
      %v1634 = vunpack.c.l.b16 %v1364
      %v1635 = vunpack.c.l.b16 %v1365
      %v1636 = vunpack.c.l.b16 %v1366
      %v1637 = vunpack.c.l.b16 %v1367
      %v1638 = vunpack.c.l.b16 %v1368
      %v1639 = vunpack.c.l.b16 %v1369
      %v1640 = vunpack.c.l.b16 %v1370
      %v1641 = vunpack.c.l.b16 %v1371
      %v1642 = vpack.c.b16 %v1511, %v1510
      %v1643 = vpack.c.b16 %v1513, %v1512
      %v1644 = vpack.c.b16 %v1515, %v1514
      %v1645 = vpack.c.b16 %v1517, %v1516
      %v1646 = vpack.c.b16 %v1519, %v1518
      %v1647 = vpack.c.b16 %v1521, %v1520
      %v1648 = vpack.c.b16 %v1523, %v1522
      %v1649 = vpack.c.b16 %v1525, %v1524
      %v1650 = vpack.c.b16 %v1527, %v1526
      %v1651 = vpack.c.b16 %v1529, %v1528
      %v1652 = vpack.c.b16 %v1531, %v1530
      %v1653 = vpack.c.b16 %v1533, %v1532
      %v1654 = vpack.c.b16 %v1535, %v1534
      %v1655 = vpack.c.b16 %v1537, %v1536
      %v1656 = vpack.c.b16 %v1539, %v1538
      %v1657 = vpack.c.b16 %v1541, %v1540
      %v1658 = vpack.c.b16 %v1543, %v1542
      %v1659 = vpack.c.b16 %v1545, %v1544
      %v1660 = vpack.c.b16 %v1547, %v1546
      %v1661 = vpack.c.b16 %v1549, %v1548
      %v1662 = vpack.c.b16 %v1551, %v1550
      %v1663 = vpack.c.b16 %v1553, %v1552
      %v1664 = vpack.c.b16 %v1555, %v1554
      %v1665 = vpack.c.b16 %v1557, %v1556
      %v1666 = vpack.c.b16 %v1559, %v1558
      %v1667 = vpack.c.b16 %v1561, %v1560
      %v1668 = vpack.c.b16 %v1563, %v1562
      %v1669 = vpack.c.b16 %v1565, %v1564
      %v1670 = vpack.c.b16 %v1567, %v1566
      %v1671 = vpack.c.b16 %v1569, %v1568
      %v1672 = vpack.c.b16 %v1571, %v1570
      %v1673 = vpack.c.b16 %v1573, %v1572
      %v1674 = vpack.c.b16 %v1575, %v1574
      %v1675 = vpack.c.b16 %v1577, %v1576
      %v1676 = vpack.c.b16 %v1579, %v1578
      %v1677 = vpack.c.b16 %v1581, %v1580
      %v1678 = vpack.c.b16 %v1583, %v1582
      %v1679 = vpack.c.b16 %v1585, %v1584
      %v1680 = vpack.c.b16 %v1587, %v1586
      %v1681 = vpack.c.b16 %v1589, %v1588
      %v1682 = vpack.c.b16 %v1591, %v1590
      %v1683 = vpack.c.b16 %v1593, %v1592
      %v1684 = vpack.c.b16 %v1595, %v1594
      %v1685 = vpack.c.b16 %v1597, %v1596
      %v1686 = vpack.c.b16 %v1599, %v1598
      %v1687 = vpack.c.b16 %v1601, %v1600
      %v1688 = vpack.c.b16 %v1603, %v1602
      %v1689 = vpack.c.b16 %v1605, %v1604
      %v1690 = vpack.c.b16 %v1607, %v1606
      %v1691 = vpack.c.b16 %v1609, %v1608
      %v1692 = vpack.c.b16 %v1611, %v1610
      %v1693 = vpack.c.b16 %v1613, %v1612
      %v1694 = vpack.c.b16 %v1615, %v1614
      %v1695 = vpack.c.b16 %v1617, %v1616
      %v1696 = vpack.c.b16 %v1619, %v1618
      %v1697 = vpack.c.b16 %v1621, %v1620
      %v1698 = vpack.c.b16 %v1623, %v1622
      %v1699 = vpack.c.b16 %v1625, %v1624
      %v1700 = vpack.c.b16 %v1627, %v1626
      %v1701 = vpack.c.b16 %v1629, %v1628
      %v1702 = vpack.c.b16 %v1631, %v1630
      %v1703 = vpack.c.b16 %v1633, %v1632
      %v1704 = vpack.c.b16 %v1635, %v1634
      %v1705 = vpack.c.b16 %v1637, %v1636
      %v1706 = vpack.c.b16 %v1639, %v1638
      %v1707 = vpack.c.b16 %v1641, %v1640
      %v1714 = vunpack.c.l.b16 %v1372
      %v1715 = vunpack.c.l.b16 %v1373
      %v1716 = vunpack.c.l.b16 %v1374
      %v1717 = vunpack.c.l.b16 %v1375
      %v1718 = vunpack.c.l.b16 %v1376
      %v1719 = vunpack.c.l.b16 %v1377
      %v1720 = vpack.c.b16 %v1715, %v1714
      %v1721 = vpack.c.b16 %v1717, %v1716
      %v1722 = vpack.c.b16 %v1719, %v1718
      %vm1726 = vcmask 392192
      %v1728 = vsel %vm1726, %v1642, 0
      %v1731 = vsel %vm1726, %v1643, 0
      %v1734 = vsel %vm1726, %v1644, 0
      %v1737 = vsel %vm1726, %v1645, 0
      %v1740 = vsel %vm1726, %v1646, 0
      %v1743 = vsel %vm1726, %v1647, 0
      %v1746 = vsel %vm1726, %v1648, 0
      %v1749 = vsel %vm1726, %v1649, 0
      %v1752 = vsel %vm1726, %v1650, 0
      %v1755 = vsel %vm1726, %v1651, 0
      %v1758 = vsel %vm1726, %v1652, 0
      %v1761 = vsel %vm1726, %v1653, 0
      %v1764 = vsel %vm1726, %v1654, 0
      %v1767 = vsel %vm1726, %v1655, 0
      %v1770 = vsel %vm1726, %v1656, 0
      %v1773 = vsel %vm1726, %v1657, 0
      %v1776 = vsel %vm1726, %v1658, 0
      %v1779 = vsel %vm1726, %v1659, 0
      %v1782 = vsel %vm1726, %v1660, 0
      %v1785 = vsel %vm1726, %v1661, 0
      %v1788 = vsel %vm1726, %v1662, 0
      %v1791 = vsel %vm1726, %v1663, 0
      %v1794 = vsel %vm1726, %v1664, 0
      %v1797 = vsel %vm1726, %v1665, 0
      %v1800 = vsel %vm1726, %v1666, 0
      %v1803 = vsel %vm1726, %v1667, 0
      %v1806 = vsel %vm1726, %v1668, 0
      %v1809 = vsel %vm1726, %v1669, 0
      %v1812 = vsel %vm1726, %v1670, 0
      %v1815 = vsel %vm1726, %v1671, 0
      %v1818 = vsel %vm1726, %v1672, 0
      %v1821 = vsel %vm1726, %v1673, 0
      %v1824 = vsel %vm1726, %v1674, 0
      %v1827 = vsel %vm1726, %v1675, 0
      %v1830 = vsel %vm1726, %v1676, 0
      %v1833 = vsel %vm1726, %v1677, 0
      %v1836 = vsel %vm1726, %v1678, 0
      %v1839 = vsel %vm1726, %v1679, 0
      %v1842 = vsel %vm1726, %v1680, 0
      %v1845 = vsel %vm1726, %v1681, 0
      %v1848 = vsel %vm1726, %v1682, 0
      %v1851 = vsel %vm1726, %v1683, 0
      %v1854 = vsel %vm1726, %v1684, 0
      %v1857 = vsel %vm1726, %v1685, 0
      %v1860 = vsel %vm1726, %v1686, 0
      %v1863 = vsel %vm1726, %v1687, 0
      %v1866 = vsel %vm1726, %v1688, 0
      %v1869 = vsel %vm1726, %v1689, 0
      %v1872 = vsel %vm1726, %v1690, 0
      %v1875 = vsel %vm1726, %v1691, 0
      %v1878 = vsel %vm1726, %v1692, 0
      %v1881 = vsel %vm1726, %v1693, 0
      %v1884 = vsel %vm1726, %v1694, 0
      %v1887 = vsel %vm1726, %v1695, 0
      %v1890 = vsel %vm1726, %v1696, 0
      %v1893 = vsel %vm1726, %v1697, 0
      %v1896 = vsel %vm1726, %v1698, 0
      %v1899 = vsel %vm1726, %v1699, 0
      %v1902 = vsel %vm1726, %v1700, 0
      %v1905 = vsel %vm1726, %v1701, 0
      %v1908 = vsel %vm1726, %v1702, 0
      %v1911 = vsel %vm1726, %v1703, 0
      %v1914 = vsel %vm1726, %v1704, 0
      %v1917 = vsel %vm1726, %v1705, 0
      %v1920 = vsel %vm1726, %v1706, 0
      %v1923 = vsel %vm1726, %v1707, 0
      %1925 = vmatprep.subr.bf16.mxu0 0
      %1926 = vmatpush1.bf16.msra.mxu0 %v1720
      %1927 = vmatprep.subr.bf16.mxu0 0
      %1928 = vmatpush1.bf16.msra.mxu0 %v1721
      %1929 = vmatprep.subr.bf16.mxu0 0
      %1930 = vmatpush1.bf16.msra.mxu0 %v1722
      %1931 = vmatprep.subr.bf16.mxu0 0
      %1932 = vmatpush1.bf16.msra.mxu0 0
      %1933 = vmatprep.subr.bf16.mxu0 0
      %1934 = vmatpush1.bf16.msra.mxu0 0
      %1935 = vmatprep.subr.bf16.mxu0 0
      %1936 = vmatpush1.bf16.msra.mxu0 0
      %1937 = vmatprep.subr.bf16.mxu0 0
      %1938 = vmatpush1.bf16.msra.mxu0 0
      %1939 = vmatprep.subr.bf16.mxu0 0
      %1940 = vmatpush1.bf16.msra.mxu0 0
      %1941 = vmatprep.subr.bf16.mxu0 0
      %1942 = vmatpush1.bf16.msra.mxu0 0
      %1943 = vmatprep.subr.bf16.mxu0 0
      %1944 = vmatpush1.bf16.msra.mxu0 0
      %1945 = vmatprep.subr.bf16.mxu0 0
      %1946 = vmatpush1.bf16.msra.mxu0 0
      %1947 = vmatprep.subr.bf16.mxu0 0
      %1948 = vmatpush1.bf16.msra.mxu0 0
      %1949 = vmatprep.subr.bf16.mxu0 0
      %1950 = vmatpush1.bf16.msra.mxu0 0
      %1951 = vmatprep.subr.bf16.mxu0 0
      %1952 = vmatpush1.bf16.msra.mxu0 0
      %1953 = vmatprep.subr.bf16.mxu0 0
      %1954 = vmatpush1.bf16.msra.mxu0 0
      %1955 = vmatprep.subr.bf16.mxu0 0
      %1956 = vmatpush1.bf16.msra.mxu0 0
      %1957 = vmatprep.mubr.bf16.mxu0 0
      %1958 = vmatmul.mubr.bf16.gmra.mrb[0].mxu0 %v1728
      %v1959 = vpop.f32.mrb[0].mxu0
      %v1960 = vadd.f32 0.0, %v1959
      %v1961 = vpop.f32.mrb[0].mxu0
      %v1962 = vpop.f32.mrb[0].mxu0
      %v1963 = vadd.f32 0.0, %v1962
      %v1964 = vpop.f32.mrb[0].mxu0
      %1965 = vmatprep.mubr.bf16.mxu0 0
      %1966 = vmatmul.mubr.bf16.gmra.mrb[0].mxu0 %v1731
      %v1967 = vpop.f32.mrb[0].mxu0
      %v1968 = vadd.f32 0.0, %v1967
      %v1969 = vpop.f32.mrb[0].mxu0
      %v1970 = vpop.f32.mrb[0].mxu0
      %v1971 = vadd.f32 0.0, %v1970
      %v1972 = vpop.f32.mrb[0].mxu0
      %1973 = vmatprep.mubr.bf16.mxu0 0
      %1974 = vmatmul.mubr.bf16.gmra.mrb[0].mxu0 %v1734
      %v1975 = vpop.f32.mrb[0].mxu0
      %v1976 = vadd.f32 0.0, %v1975
      %v1977 = vpop.f32.mrb[0].mxu0
      %v1978 = vpop.f32.mrb[0].mxu0
      %v1979 = vadd.f32 0.0, %v1978
      %v1980 = vpop.f32.mrb[0].mxu0
      %1981 = vmatprep.mubr.bf16.mxu0 0
      %1982 = vmatmul.mubr.bf16.gmra.mrb[0].mxu0 %v1737
      %v1983 = vpop.f32.mrb[0].mxu0
      %v1984 = vadd.f32 0.0, %v1983
      %v1985 = vpop.f32.mrb[0].mxu0
      %v1986 = vpop.f32.mrb[0].mxu0
      %v1987 = vadd.f32 0.0, %v1986
      %v1988 = vpop.f32.mrb[0].mxu0
      %1989 = vmatprep.mubr.bf16.mxu0 0
      %1990 = vmatmul.mubr.bf16.gmra.mrb[0].mxu0 %v1740
      %v1991 = vpop.f32.mrb[0].mxu0
      %v1992 = vadd.f32 0.0, %v1991
      %v1993 = vpop.f32.mrb[0].mxu0
      %v1994 = vpop.f32.mrb[0].mxu0
      %v1995 = vadd.f32 0.0, %v1994
      %v1996 = vpop.f32.mrb[0].mxu0
      %1997 = vmatprep.mubr.bf16.mxu0 0
      %1998 = vmatmul.mubr.bf16.gmra.mrb[0].mxu0 %v1743
      %v1999 = vpop.f32.mrb[0].mxu0
      %v2000 = vadd.f32 0.0, %v1999
      %v2001 = vpop.f32.mrb[0].mxu0
      %v2002 = vpop.f32.mrb[0].mxu0
      %v2003 = vadd.f32 0.0, %v2002
      %v2004 = vpop.f32.mrb[0].mxu0
      %2005 = vmatprep.mubr.bf16.mxu0 0
      %2006 = vmatmul.mubr.bf16.gmra.mrb[0].mxu0 %v1746
      %v2007 = vpop.f32.mrb[0].mxu0
      %v2008 = vadd.f32 0.0, %v2007
      %v2009 = vpop.f32.mrb[0].mxu0
      %v2010 = vpop.f32.mrb[0].mxu0
      %v2011 = vadd.f32 0.0, %v2010
      %v2012 = vpop.f32.mrb[0].mxu0
      %2013 = vmatprep.mubr.bf16.mxu0 0
      %2014 = vmatmul.mubr.bf16.gmra.mrb[0].mxu0 %v1749
      %v2015 = vpop.f32.mrb[0].mxu0
      %v2016 = vadd.f32 0.0, %v2015
      %v2017 = vpop.f32.mrb[0].mxu0
      %v2018 = vpop.f32.mrb[0].mxu0
      %v2019 = vadd.f32 0.0, %v2018
      %v2020 = vpop.f32.mrb[0].mxu0
      %2021 = vmatprep.mubr.bf16.mxu0 0
      %2022 = vmatmul.mubr.bf16.gmra.mrb[0].mxu0 %v1752
      %v2023 = vpop.f32.mrb[0].mxu0
      %v2024 = vadd.f32 0.0, %v2023
      %v2025 = vpop.f32.mrb[0].mxu0
      %v2026 = vpop.f32.mrb[0].mxu0
      %v2027 = vadd.f32 0.0, %v2026
      %v2028 = vpop.f32.mrb[0].mxu0
      %2029 = vmatprep.mubr.bf16.mxu0 0
      %2030 = vmatmul.mubr.bf16.gmra.mrb[0].mxu0 %v1755
      %v2031 = vpop.f32.mrb[0].mxu0
      %v2032 = vadd.f32 0.0, %v2031
      %v2033 = vpop.f32.mrb[0].mxu0
      %v2034 = vpop.f32.mrb[0].mxu0
      %v2035 = vadd.f32 0.0, %v2034
      %v2036 = vpop.f32.mrb[0].mxu0
      %2037 = vmatprep.mubr.bf16.mxu0 0
      %2038 = vmatmul.mubr.bf16.gmra.mrb[0].mxu0 %v1758
      %v2039 = vpop.f32.mrb[0].mxu0
      %v2040 = vadd.f32 0.0, %v2039
      %v2041 = vpop.f32.mrb[0].mxu0
      %v2042 = vpop.f32.mrb[0].mxu0
      %v2043 = vadd.f32 0.0, %v2042
      %v2044 = vpop.f32.mrb[0].mxu0
      %2045 = vmatprep.mubr.bf16.mxu0 0
      %2046 = vmatmul.mubr.bf16.gmra.mrb[0].mxu0 %v1761
      %v2047 = vpop.f32.mrb[0].mxu0
      %v2048 = vadd.f32 0.0, %v2047
      %v2049 = vpop.f32.mrb[0].mxu0
      %v2050 = vpop.f32.mrb[0].mxu0
      %v2051 = vadd.f32 0.0, %v2050
      %v2052 = vpop.f32.mrb[0].mxu0
      %2053 = vmatprep.mubr.bf16.mxu0 0
      %2054 = vmatmul.mubr.bf16.gmra.mrb[0].mxu0 %v1764
      %v2055 = vpop.f32.mrb[0].mxu0
      %v2056 = vadd.f32 0.0, %v2055
      %v2057 = vpop.f32.mrb[0].mxu0
      %v2058 = vpop.f32.mrb[0].mxu0
      %v2059 = vadd.f32 0.0, %v2058
      %v2060 = vpop.f32.mrb[0].mxu0
      %2061 = vmatprep.mubr.bf16.mxu0 0
      %2062 = vmatmul.mubr.bf16.gmra.mrb[0].mxu0 %v1767
      %v2063 = vpop.f32.mrb[0].mxu0
      %v2064 = vadd.f32 0.0, %v2063
      %v2065 = vpop.f32.mrb[0].mxu0
      %v2066 = vpop.f32.mrb[0].mxu0
      %v2067 = vadd.f32 0.0, %v2066
      %v2068 = vpop.f32.mrb[0].mxu0
      %2069 = vmatprep.mubr.bf16.mxu0 0
      %2070 = vmatmul.mubr.bf16.gmra.mrb[0].mxu0 %v1770
      %v2071 = vpop.f32.mrb[0].mxu0
      %v2072 = vadd.f32 0.0, %v2071
      %v2073 = vpop.f32.mrb[0].mxu0
      %v2074 = vpop.f32.mrb[0].mxu0
      %v2075 = vadd.f32 0.0, %v2074
      %v2076 = vpop.f32.mrb[0].mxu0
      %2077 = vmatprep.mubr.bf16.mxu0 0
      %2078 = vmatmul.mubr.bf16.gmra.mrb[0].mxu0 %v1773
      %v2079 = vpop.f32.mrb[0].mxu0
      %v2080 = vadd.f32 0.0, %v2079
      %v2081 = vpop.f32.mrb[0].mxu0
      %v2082 = vpop.f32.mrb[0].mxu0
      %v2083 = vadd.f32 0.0, %v2082
      %v2084 = vpop.f32.mrb[0].mxu0
      %2085 = vmatprep.mubr.bf16.mxu0 0
      %2086 = vmatmul.mubr.bf16.gmra.mrb[0].mxu0 %v1776
      %v2087 = vpop.f32.mrb[0].mxu0
      %v2088 = vadd.f32 0.0, %v2087
      %v2089 = vpop.f32.mrb[0].mxu0
      %v2090 = vpop.f32.mrb[0].mxu0
      %v2091 = vadd.f32 0.0, %v2090
      %v2092 = vpop.f32.mrb[0].mxu0
      %2093 = vmatprep.mubr.bf16.mxu0 0
      %2094 = vmatmul.mubr.bf16.gmra.mrb[0].mxu0 %v1779
      %v2095 = vpop.f32.mrb[0].mxu0
      %v2096 = vadd.f32 0.0, %v2095
      %v2097 = vpop.f32.mrb[0].mxu0
      %v2098 = vpop.f32.mrb[0].mxu0
      %v2099 = vadd.f32 0.0, %v2098
      %v2100 = vpop.f32.mrb[0].mxu0
      %2101 = vmatprep.mubr.bf16.mxu0 0
      %2102 = vmatmul.mubr.bf16.gmra.mrb[0].mxu0 %v1782
      %v2103 = vpop.f32.mrb[0].mxu0
      %v2104 = vadd.f32 0.0, %v2103
      %v2105 = vpop.f32.mrb[0].mxu0
      %v2106 = vpop.f32.mrb[0].mxu0
      %v2107 = vadd.f32 0.0, %v2106
      %v2108 = vpop.f32.mrb[0].mxu0
      %2109 = vmatprep.mubr.bf16.mxu0 0
      %2110 = vmatmul.mubr.bf16.gmra.mrb[0].mxu0 %v1785
      %v2111 = vpop.f32.mrb[0].mxu0
      %v2112 = vadd.f32 0.0, %v2111
      %v2113 = vpop.f32.mrb[0].mxu0
      %v2114 = vpop.f32.mrb[0].mxu0
      %v2115 = vadd.f32 0.0, %v2114
      %v2116 = vpop.f32.mrb[0].mxu0
      %2117 = vmatprep.mubr.bf16.mxu0 0
      %2118 = vmatmul.mubr.bf16.gmra.mrb[0].mxu0 %v1788
      %v2119 = vpop.f32.mrb[0].mxu0
      %v2120 = vadd.f32 0.0, %v2119
      %v2121 = vpop.f32.mrb[0].mxu0
      %v2122 = vpop.f32.mrb[0].mxu0
      %v2123 = vadd.f32 0.0, %v2122
      %v2124 = vpop.f32.mrb[0].mxu0
      %2125 = vmatprep.mubr.bf16.mxu0 0
      %2126 = vmatmul.mubr.bf16.gmra.mrb[0].mxu0 %v1791
      %v2127 = vpop.f32.mrb[0].mxu0
      %v2128 = vadd.f32 0.0, %v2127
      %v2129 = vpop.f32.mrb[0].mxu0
      %v2130 = vpop.f32.mrb[0].mxu0
      %v2131 = vadd.f32 0.0, %v2130
      %v2132 = vpop.f32.mrb[0].mxu0
      %2133 = vmatprep.mubr.bf16.mxu0 0
      %2134 = vmatmul.mubr.bf16.gmra.mrb[0].mxu0 %v1794
      %v2135 = vpop.f32.mrb[0].mxu0
      %v2136 = vadd.f32 0.0, %v2135
      %v2137 = vpop.f32.mrb[0].mxu0
      %v2138 = vpop.f32.mrb[0].mxu0
      %v2139 = vadd.f32 0.0, %v2138
      %v2140 = vpop.f32.mrb[0].mxu0
      %2141 = vmatprep.mubr.bf16.mxu0 0
      %2142 = vmatmul.mubr.bf16.gmra.mrb[0].mxu0 %v1797
      %v2143 = vpop.f32.mrb[0].mxu0
      %v2144 = vadd.f32 0.0, %v2143
      %v2145 = vpop.f32.mrb[0].mxu0
      %v2146 = vpop.f32.mrb[0].mxu0
      %v2147 = vadd.f32 0.0, %v2146
      %v2148 = vpop.f32.mrb[0].mxu0
      %2149 = vmatprep.mubr.bf16.mxu0 0
      %2150 = vmatmul.mubr.bf16.gmra.mrb[0].mxu0 %v1800
      %v2151 = vpop.f32.mrb[0].mxu0
      %v2152 = vadd.f32 0.0, %v2151
      %v2153 = vpop.f32.mrb[0].mxu0
      %v2154 = vpop.f32.mrb[0].mxu0
      %v2155 = vadd.f32 0.0, %v2154
      %v2156 = vpop.f32.mrb[0].mxu0
      %2157 = vmatprep.mubr.bf16.mxu0 0
      %2158 = vmatmul.mubr.bf16.gmra.mrb[0].mxu0 %v1803
      %v2159 = vpop.f32.mrb[0].mxu0
      %v2160 = vadd.f32 0.0, %v2159
      %v2161 = vpop.f32.mrb[0].mxu0
      %v2162 = vpop.f32.mrb[0].mxu0
      %v2163 = vadd.f32 0.0, %v2162
      %v2164 = vpop.f32.mrb[0].mxu0
      %2165 = vmatprep.mubr.bf16.mxu0 0
      %2166 = vmatmul.mubr.bf16.gmra.mrb[0].mxu0 %v1806
      %v2167 = vpop.f32.mrb[0].mxu0
      %v2168 = vadd.f32 0.0, %v2167
      %v2169 = vpop.f32.mrb[0].mxu0
      %v2170 = vpop.f32.mrb[0].mxu0
      %v2171 = vadd.f32 0.0, %v2170
      %v2172 = vpop.f32.mrb[0].mxu0
      %2173 = vmatprep.mubr.bf16.mxu0 0
      %2174 = vmatmul.mubr.bf16.gmra.mrb[0].mxu0 %v1809
      %v2175 = vpop.f32.mrb[0].mxu0
      %v2176 = vadd.f32 0.0, %v2175
      %v2177 = vpop.f32.mrb[0].mxu0
      %v2178 = vpop.f32.mrb[0].mxu0
      %v2179 = vadd.f32 0.0, %v2178
      %v2180 = vpop.f32.mrb[0].mxu0
      %2181 = vmatprep.mubr.bf16.mxu0 0
      %2182 = vmatmul.mubr.bf16.gmra.mrb[0].mxu0 %v1812
      %v2183 = vpop.f32.mrb[0].mxu0
      %v2184 = vadd.f32 0.0, %v2183
      %v2185 = vpop.f32.mrb[0].mxu0
      %v2186 = vpop.f32.mrb[0].mxu0
      %v2187 = vadd.f32 0.0, %v2186
      %v2188 = vpop.f32.mrb[0].mxu0
      %2189 = vmatprep.mubr.bf16.mxu0 0
      %2190 = vmatmul.mubr.bf16.gmra.mrb[0].mxu0 %v1815
      %v2191 = vpop.f32.mrb[0].mxu0
      %v2192 = vadd.f32 0.0, %v2191
      %v2193 = vpop.f32.mrb[0].mxu0
      %v2194 = vpop.f32.mrb[0].mxu0
      %v2195 = vadd.f32 0.0, %v2194
      %v2196 = vpop.f32.mrb[0].mxu0
      %2197 = vmatprep.mubr.bf16.mxu0 0
      %2198 = vmatmul.mubr.bf16.gmra.mrb[0].mxu0 %v1818
      %v2199 = vpop.f32.mrb[0].mxu0
      %v2200 = vadd.f32 0.0, %v2199
      %v2201 = vpop.f32.mrb[0].mxu0
      %v2202 = vpop.f32.mrb[0].mxu0
      %v2203 = vadd.f32 0.0, %v2202
      %v2204 = vpop.f32.mrb[0].mxu0
      %2205 = vmatprep.mubr.bf16.mxu0 0
      %2206 = vmatmul.mubr.bf16.gmra.mrb[0].mxu0 %v1821
      %v2207 = vpop.f32.mrb[0].mxu0
      %v2208 = vadd.f32 0.0, %v2207
      %v2209 = vpop.f32.mrb[0].mxu0
      %v2210 = vpop.f32.mrb[0].mxu0
      %v2211 = vadd.f32 0.0, %v2210
      %v2212 = vpop.f32.mrb[0].mxu0
      %2213 = vmatprep.mubr.bf16.mxu0 0
      %2214 = vmatmul.mubr.bf16.gmra.mrb[0].mxu0 %v1824
      %v2215 = vpop.f32.mrb[0].mxu0
      %v2216 = vadd.f32 0.0, %v2215
      %v2217 = vpop.f32.mrb[0].mxu0
      %v2218 = vpop.f32.mrb[0].mxu0
      %v2219 = vadd.f32 0.0, %v2218
      %v2220 = vpop.f32.mrb[0].mxu0
      %2221 = vmatprep.mubr.bf16.mxu0 0
      %2222 = vmatmul.mubr.bf16.gmra.mrb[0].mxu0 %v1827
      %v2223 = vpop.f32.mrb[0].mxu0
      %v2224 = vadd.f32 0.0, %v2223
      %v2225 = vpop.f32.mrb[0].mxu0
      %v2226 = vpop.f32.mrb[0].mxu0
      %v2227 = vadd.f32 0.0, %v2226
      %v2228 = vpop.f32.mrb[0].mxu0
      %2229 = vmatprep.mubr.bf16.mxu0 0
      %2230 = vmatmul.mubr.bf16.gmra.mrb[0].mxu0 %v1830
      %v2231 = vpop.f32.mrb[0].mxu0
      %v2232 = vadd.f32 0.0, %v2231
      %v2233 = vpop.f32.mrb[0].mxu0
      %v2234 = vpop.f32.mrb[0].mxu0
      %v2235 = vadd.f32 0.0, %v2234
      %v2236 = vpop.f32.mrb[0].mxu0
      %2237 = vmatprep.mubr.bf16.mxu0 0
      %2238 = vmatmul.mubr.bf16.gmra.mrb[0].mxu0 %v1833
      %v2239 = vpop.f32.mrb[0].mxu0
      %v2240 = vadd.f32 0.0, %v2239
      %v2241 = vpop.f32.mrb[0].mxu0
      %v2242 = vpop.f32.mrb[0].mxu0
      %v2243 = vadd.f32 0.0, %v2242
      %v2244 = vpop.f32.mrb[0].mxu0
      %2245 = vmatprep.mubr.bf16.mxu0 0
      %2246 = vmatmul.mubr.bf16.gmra.mrb[0].mxu0 %v1836
      %v2247 = vpop.f32.mrb[0].mxu0
      %v2248 = vadd.f32 0.0, %v2247
      %v2249 = vpop.f32.mrb[0].mxu0
      %v2250 = vpop.f32.mrb[0].mxu0
      %v2251 = vadd.f32 0.0, %v2250
      %v2252 = vpop.f32.mrb[0].mxu0
      %2253 = vmatprep.mubr.bf16.mxu0 0
      %2254 = vmatmul.mubr.bf16.gmra.mrb[0].mxu0 %v1839
      %v2255 = vpop.f32.mrb[0].mxu0
      %v2256 = vadd.f32 0.0, %v2255
      %v2257 = vpop.f32.mrb[0].mxu0
      %v2258 = vpop.f32.mrb[0].mxu0
      %v2259 = vadd.f32 0.0, %v2258
      %v2260 = vpop.f32.mrb[0].mxu0
      %2261 = vmatprep.mubr.bf16.mxu0 0
      %2262 = vmatmul.mubr.bf16.gmra.mrb[0].mxu0 %v1842
      %v2263 = vpop.f32.mrb[0].mxu0
      %v2264 = vadd.f32 0.0, %v2263
      %v2265 = vpop.f32.mrb[0].mxu0
      %v2266 = vpop.f32.mrb[0].mxu0
      %v2267 = vadd.f32 0.0, %v2266
      %v2268 = vpop.f32.mrb[0].mxu0
      %2269 = vmatprep.mubr.bf16.mxu0 0
      %2270 = vmatmul.mubr.bf16.gmra.mrb[0].mxu0 %v1845
      %v2271 = vpop.f32.mrb[0].mxu0
      %v2272 = vadd.f32 0.0, %v2271
      %v2273 = vpop.f32.mrb[0].mxu0
      %v2274 = vpop.f32.mrb[0].mxu0
      %v2275 = vadd.f32 0.0, %v2274
      %v2276 = vpop.f32.mrb[0].mxu0
      %2277 = vmatprep.mubr.bf16.mxu0 0
      %2278 = vmatmul.mubr.bf16.gmra.mrb[0].mxu0 %v1848
      %v2279 = vpop.f32.mrb[0].mxu0
      %v2280 = vadd.f32 0.0, %v2279
      %v2281 = vpop.f32.mrb[0].mxu0
      %v2282 = vpop.f32.mrb[0].mxu0
      %v2283 = vadd.f32 0.0, %v2282
      %v2284 = vpop.f32.mrb[0].mxu0
      %2285 = vmatprep.mubr.bf16.mxu0 0
      %2286 = vmatmul.mubr.bf16.gmra.mrb[0].mxu0 %v1851
      %v2287 = vpop.f32.mrb[0].mxu0
      %v2288 = vadd.f32 0.0, %v2287
      %v2289 = vpop.f32.mrb[0].mxu0
      %v2290 = vpop.f32.mrb[0].mxu0
      %v2291 = vadd.f32 0.0, %v2290
      %v2292 = vpop.f32.mrb[0].mxu0
      %2293 = vmatprep.mubr.bf16.mxu0 0
      %2294 = vmatmul.mubr.bf16.gmra.mrb[0].mxu0 %v1854
      %v2295 = vpop.f32.mrb[0].mxu0
      %v2296 = vadd.f32 0.0, %v2295
      %v2297 = vpop.f32.mrb[0].mxu0
      %v2298 = vpop.f32.mrb[0].mxu0
      %v2299 = vadd.f32 0.0, %v2298
      %v2300 = vpop.f32.mrb[0].mxu0
      %2301 = vmatprep.mubr.bf16.mxu0 0
      %2302 = vmatmul.mubr.bf16.gmra.mrb[0].mxu0 %v1857
      %v2303 = vpop.f32.mrb[0].mxu0
      %v2304 = vadd.f32 0.0, %v2303
      %v2305 = vpop.f32.mrb[0].mxu0
      %v2306 = vpop.f32.mrb[0].mxu0
      %v2307 = vadd.f32 0.0, %v2306
      %v2308 = vpop.f32.mrb[0].mxu0
      %2309 = vmatprep.mubr.bf16.mxu0 0
      %2310 = vmatmul.mubr.bf16.gmra.mrb[0].mxu0 %v1860
      %v2311 = vpop.f32.mrb[0].mxu0
      %v2312 = vadd.f32 0.0, %v2311
      %v2313 = vpop.f32.mrb[0].mxu0
      %v2314 = vpop.f32.mrb[0].mxu0
      %v2315 = vadd.f32 0.0, %v2314
      %v2316 = vpop.f32.mrb[0].mxu0
      %2317 = vmatprep.mubr.bf16.mxu0 0
      %2318 = vmatmul.mubr.bf16.gmra.mrb[0].mxu0 %v1863
      %v2319 = vpop.f32.mrb[0].mxu0
      %v2320 = vadd.f32 0.0, %v2319
      %v2321 = vpop.f32.mrb[0].mxu0
      %v2322 = vpop.f32.mrb[0].mxu0
      %v2323 = vadd.f32 0.0, %v2322
      %v2324 = vpop.f32.mrb[0].mxu0
      %2325 = vmatprep.mubr.bf16.mxu0 0
      %2326 = vmatmul.mubr.bf16.gmra.mrb[0].mxu0 %v1866
      %v2327 = vpop.f32.mrb[0].mxu0
      %v2328 = vadd.f32 0.0, %v2327
      %v2329 = vpop.f32.mrb[0].mxu0
      %v2330 = vpop.f32.mrb[0].mxu0
      %v2331 = vadd.f32 0.0, %v2330
      %v2332 = vpop.f32.mrb[0].mxu0
      %2333 = vmatprep.mubr.bf16.mxu0 0
      %2334 = vmatmul.mubr.bf16.gmra.mrb[0].mxu0 %v1869
      %v2335 = vpop.f32.mrb[0].mxu0
      %v2336 = vadd.f32 0.0, %v2335
      %v2337 = vpop.f32.mrb[0].mxu0
      %v2338 = vpop.f32.mrb[0].mxu0
      %v2339 = vadd.f32 0.0, %v2338
      %v2340 = vpop.f32.mrb[0].mxu0
      %2341 = vmatprep.mubr.bf16.mxu0 0
      %2342 = vmatmul.mubr.bf16.gmra.mrb[0].mxu0 %v1872
      %v2343 = vpop.f32.mrb[0].mxu0
      %v2344 = vadd.f32 0.0, %v2343
      %v2345 = vpop.f32.mrb[0].mxu0
      %v2346 = vpop.f32.mrb[0].mxu0
      %v2347 = vadd.f32 0.0, %v2346
      %v2348 = vpop.f32.mrb[0].mxu0
      %2349 = vmatprep.mubr.bf16.mxu0 0
      %2350 = vmatmul.mubr.bf16.gmra.mrb[0].mxu0 %v1875
      %v2351 = vpop.f32.mrb[0].mxu0
      %v2352 = vadd.f32 0.0, %v2351
      %v2353 = vpop.f32.mrb[0].mxu0
      %v2354 = vpop.f32.mrb[0].mxu0
      %v2355 = vadd.f32 0.0, %v2354
      %v2356 = vpop.f32.mrb[0].mxu0
      %2357 = vmatprep.mubr.bf16.mxu0 0
      %2358 = vmatmul.mubr.bf16.gmra.mrb[0].mxu0 %v1878
      %v2359 = vpop.f32.mrb[0].mxu0
      %v2360 = vadd.f32 0.0, %v2359
      %v2361 = vpop.f32.mrb[0].mxu0
      %v2362 = vpop.f32.mrb[0].mxu0
      %v2363 = vadd.f32 0.0, %v2362
      %v2364 = vpop.f32.mrb[0].mxu0
      %2365 = vmatprep.mubr.bf16.mxu0 0
      %2366 = vmatmul.mubr.bf16.gmra.mrb[0].mxu0 %v1881
      %v2367 = vpop.f32.mrb[0].mxu0
      %v2368 = vadd.f32 0.0, %v2367
      %v2369 = vpop.f32.mrb[0].mxu0
      %v2370 = vpop.f32.mrb[0].mxu0
      %v2371 = vadd.f32 0.0, %v2370
      %v2372 = vpop.f32.mrb[0].mxu0
      %2373 = vmatprep.mubr.bf16.mxu0 0
      %2374 = vmatmul.mubr.bf16.gmra.mrb[0].mxu0 %v1884
      %v2375 = vpop.f32.mrb[0].mxu0
      %v2376 = vadd.f32 0.0, %v2375
      %v2377 = vpop.f32.mrb[0].mxu0
      %v2378 = vpop.f32.mrb[0].mxu0
      %v2379 = vadd.f32 0.0, %v2378
      %v2380 = vpop.f32.mrb[0].mxu0
      %2381 = vmatprep.mubr.bf16.mxu0 0
      %2382 = vmatmul.mubr.bf16.gmra.mrb[0].mxu0 %v1887
      %v2383 = vpop.f32.mrb[0].mxu0
      %v2384 = vadd.f32 0.0, %v2383
      %v2385 = vpop.f32.mrb[0].mxu0
      %v2386 = vpop.f32.mrb[0].mxu0
      %v2387 = vadd.f32 0.0, %v2386
      %v2388 = vpop.f32.mrb[0].mxu0
      %2389 = vmatprep.mubr.bf16.mxu0 0
      %2390 = vmatmul.mubr.bf16.gmra.mrb[0].mxu0 %v1890
      %v2391 = vpop.f32.mrb[0].mxu0
      %v2392 = vadd.f32 0.0, %v2391
      %v2393 = vpop.f32.mrb[0].mxu0
      %v2394 = vpop.f32.mrb[0].mxu0
      %v2395 = vadd.f32 0.0, %v2394
      %v2396 = vpop.f32.mrb[0].mxu0
      %2397 = vmatprep.mubr.bf16.mxu0 0
      %2398 = vmatmul.mubr.bf16.gmra.mrb[0].mxu0 %v1893
      %v2399 = vpop.f32.mrb[0].mxu0
      %v2400 = vadd.f32 0.0, %v2399
      %v2401 = vpop.f32.mrb[0].mxu0
      %v2402 = vpop.f32.mrb[0].mxu0
      %v2403 = vadd.f32 0.0, %v2402
      %v2404 = vpop.f32.mrb[0].mxu0
      %2405 = vmatprep.mubr.bf16.mxu0 0
      %2406 = vmatmul.mubr.bf16.gmra.mrb[0].mxu0 %v1896
      %v2407 = vpop.f32.mrb[0].mxu0
      %v2408 = vadd.f32 0.0, %v2407
      %v2409 = vpop.f32.mrb[0].mxu0
      %v2410 = vpop.f32.mrb[0].mxu0
      %v2411 = vadd.f32 0.0, %v2410
      %v2412 = vpop.f32.mrb[0].mxu0
      %2413 = vmatprep.mubr.bf16.mxu0 0
      %2414 = vmatmul.mubr.bf16.gmra.mrb[0].mxu0 %v1899
      %v2415 = vpop.f32.mrb[0].mxu0
      %v2416 = vadd.f32 0.0, %v2415
      %v2417 = vpop.f32.mrb[0].mxu0
      %v2418 = vpop.f32.mrb[0].mxu0
      %v2419 = vadd.f32 0.0, %v2418
      %v2420 = vpop.f32.mrb[0].mxu0
      %2421 = vmatprep.mubr.bf16.mxu0 0
      %2422 = vmatmul.mubr.bf16.gmra.mrb[0].mxu0 %v1902
      %v2423 = vpop.f32.mrb[0].mxu0
      %v2424 = vadd.f32 0.0, %v2423
      %v2425 = vpop.f32.mrb[0].mxu0
      %v2426 = vpop.f32.mrb[0].mxu0
      %v2427 = vadd.f32 0.0, %v2426
      %v2428 = vpop.f32.mrb[0].mxu0
      %2429 = vmatprep.mubr.bf16.mxu0 0
      %2430 = vmatmul.mubr.bf16.gmra.mrb[0].mxu0 %v1905
      %v2431 = vpop.f32.mrb[0].mxu0
      %v2432 = vadd.f32 0.0, %v2431
      %v2433 = vpop.f32.mrb[0].mxu0
      %v2434 = vpop.f32.mrb[0].mxu0
      %v2435 = vadd.f32 0.0, %v2434
      %v2436 = vpop.f32.mrb[0].mxu0
      %2437 = vmatprep.mubr.bf16.mxu0 0
      %2438 = vmatmul.mubr.bf16.gmra.mrb[0].mxu0 %v1908
      %v2439 = vpop.f32.mrb[0].mxu0
      %v2440 = vadd.f32 0.0, %v2439
      %v2441 = vpop.f32.mrb[0].mxu0
      %v2442 = vpop.f32.mrb[0].mxu0
      %v2443 = vadd.f32 0.0, %v2442
      %v2444 = vpop.f32.mrb[0].mxu0
      %2445 = vmatprep.mubr.bf16.mxu0 0
      %2446 = vmatmul.mubr.bf16.gmra.mrb[0].mxu0 %v1911
      %v2447 = vpop.f32.mrb[0].mxu0
      %v2448 = vadd.f32 0.0, %v2447
      %v2449 = vpop.f32.mrb[0].mxu0
      %v2450 = vpop.f32.mrb[0].mxu0
      %v2451 = vadd.f32 0.0, %v2450
      %v2452 = vpop.f32.mrb[0].mxu0
      %2453 = vmatprep.mubr.bf16.mxu0 0
      %2454 = vmatmul.mubr.bf16.gmra.mrb[0].mxu0 %v1914
      %v2455 = vpop.f32.mrb[0].mxu0
      %v2456 = vadd.f32 0.0, %v2455
      %v2457 = vpop.f32.mrb[0].mxu0
      %v2458 = vpop.f32.mrb[0].mxu0
      %v2459 = vadd.f32 0.0, %v2458
      %v2460 = vpop.f32.mrb[0].mxu0
      %2461 = vmatprep.mubr.bf16.mxu0 0
      %2462 = vmatmul.mubr.bf16.gmra.mrb[0].mxu0 %v1917
      %v2463 = vpop.f32.mrb[0].mxu0
      %v2464 = vadd.f32 0.0, %v2463
      %v2465 = vpop.f32.mrb[0].mxu0
      %v2466 = vpop.f32.mrb[0].mxu0
      %v2467 = vadd.f32 0.0, %v2466
      %v2468 = vpop.f32.mrb[0].mxu0
      %2469 = vmatprep.mubr.bf16.mxu0 0
      %2470 = vmatmul.mubr.bf16.gmra.mrb[0].mxu0 %v1920
      %v2471 = vpop.f32.mrb[0].mxu0
      %v2472 = vadd.f32 0.0, %v2471
      %v2473 = vpop.f32.mrb[0].mxu0
      %v2474 = vpop.f32.mrb[0].mxu0
      %v2475 = vadd.f32 0.0, %v2474
      %v2476 = vpop.f32.mrb[0].mxu0
      %2477 = vmatprep.mubr.bf16.mxu0 0
      %2478 = vmatmul.mubr.bf16.gmra.mrb[0].mxu0 %v1923
      %v2479 = vpop.f32.mrb[0].mxu0
      %v2480 = vadd.f32 0.0, %v2479
      %v2481 = vpop.f32.mrb[0].mxu0
      %v2482 = vpop.f32.mrb[0].mxu0
      %v2483 = vadd.f32 0.0, %v2482
      %v2484 = vpop.f32.mrb[0].mxu0
      %2485 = vdwg.mxu0
      %vm2486 = vcmask 64512
      %2487 = vst.msk [vmem:[#allocation2] sm:$0xff] %vm2486, %v1960
      %2488 = vst.msk [vmem:[#allocation2 + $0x8] sm:$0xff] %vm2486, %v1963
      %2489 = vst.msk [vmem:[#allocation2 + $0x10] sm:$0xff] %vm2486, %v1968
      %2490 = vst.msk [vmem:[#allocation2 + $0x18] sm:$0xff] %vm2486, %v1971
      %2491 = vst.msk [vmem:[#allocation2 + $0x20] sm:$0xff] %vm2486, %v1976
      %2492 = vst.msk [vmem:[#allocation2 + $0x28] sm:$0xff] %vm2486, %v1979
      %2493 = vst.msk [vmem:[#allocation2 + $0x30] sm:$0xff] %vm2486, %v1984
      %2494 = vst.msk [vmem:[#allocation2 + $0x38] sm:$0xff] %vm2486, %v1987
      %2495 = vst.msk [vmem:[#allocation2 + $0x40] sm:$0xff] %vm2486, %v1992
      %2496 = vst.msk [vmem:[#allocation2 + $0x48] sm:$0xff] %vm2486, %v1995
      %2497 = vst.msk [vmem:[#allocation2 + $0x50] sm:$0xff] %vm2486, %v2000
      %2498 = vst.msk [vmem:[#allocation2 + $0x58] sm:$0xff] %vm2486, %v2003
      %2499 = vst.msk [vmem:[#allocation2 + $0x60] sm:$0xff] %vm2486, %v2008
      %2500 = vst.msk [vmem:[#allocation2 + $0x68] sm:$0xff] %vm2486, %v2011
      %2501 = vst.msk [vmem:[#allocation2 + $0x70] sm:$0xff] %vm2486, %v2016
      %2502 = vst.msk [vmem:[#allocation2 + $0x78] sm:$0xff] %vm2486, %v2019
      %2503 = vst.msk [vmem:[#allocation2 + $0x80] sm:$0xff] %vm2486, %v2024
      %2504 = vst.msk [vmem:[#allocation2 + $0x88] sm:$0xff] %vm2486, %v2027
      %2505 = vst.msk [vmem:[#allocation2 + $0x90] sm:$0xff] %vm2486, %v2032
      %2506 = vst.msk [vmem:[#allocation2 + $0x98] sm:$0xff] %vm2486, %v2035
      %2507 = vst.msk [vmem:[#allocation2 + $0xa0] sm:$0xff] %vm2486, %v2040
      %2508 = vst.msk [vmem:[#allocation2 + $0xa8] sm:$0xff] %vm2486, %v2043
      %2509 = vst.msk [vmem:[#allocation2 + $0xb0] sm:$0xff] %vm2486, %v2048
      %2510 = vst.msk [vmem:[#allocation2 + $0xb8] sm:$0xff] %vm2486, %v2051
      %2511 = vst.msk [vmem:[#allocation2 + $0xc0] sm:$0xff] %vm2486, %v2056
      %2512 = vst.msk [vmem:[#allocation2 + $0xc8] sm:$0xff] %vm2486, %v2059
      %2513 = vst.msk [vmem:[#allocation2 + $0xd0] sm:$0xff] %vm2486, %v2064
      %2514 = vst.msk [vmem:[#allocation2 + $0xd8] sm:$0xff] %vm2486, %v2067
      %2515 = vst.msk [vmem:[#allocation2 + $0xe0] sm:$0xff] %vm2486, %v2072
      %2516 = vst.msk [vmem:[#allocation2 + $0xe8] sm:$0xff] %vm2486, %v2075
      %2517 = vst.msk [vmem:[#allocation2 + $0xf0] sm:$0xff] %vm2486, %v2080
      %2518 = vst.msk [vmem:[#allocation2 + $0xf8] sm:$0xff] %vm2486, %v2083
      %2519 = vst.msk [vmem:[#allocation2 + $0x100] sm:$0xff] %vm2486, %v2088
      %2520 = vst.msk [vmem:[#allocation2 + $0x108] sm:$0xff] %vm2486, %v2091
      %2521 = vst.msk [vmem:[#allocation2 + $0x110] sm:$0xff] %vm2486, %v2096
      %2522 = vst.msk [vmem:[#allocation2 + $0x118] sm:$0xff] %vm2486, %v2099
      %2523 = vst.msk [vmem:[#allocation2 + $0x120] sm:$0xff] %vm2486, %v2104
      %2524 = vst.msk [vmem:[#allocation2 + $0x128] sm:$0xff] %vm2486, %v2107
      %2525 = vst.msk [vmem:[#allocation2 + $0x130] sm:$0xff] %vm2486, %v2112
      %2526 = vst.msk [vmem:[#allocation2 + $0x138] sm:$0xff] %vm2486, %v2115
      %2527 = vst.msk [vmem:[#allocation2 + $0x140] sm:$0xff] %vm2486, %v2120
      %2528 = vst.msk [vmem:[#allocation2 + $0x148] sm:$0xff] %vm2486, %v2123
      %2529 = vst.msk [vmem:[#allocation2 + $0x150] sm:$0xff] %vm2486, %v2128
      %2530 = vst.msk [vmem:[#allocation2 + $0x158] sm:$0xff] %vm2486, %v2131
      %2531 = vst.msk [vmem:[#allocation2 + $0x160] sm:$0xff] %vm2486, %v2136
      %2532 = vst.msk [vmem:[#allocation2 + $0x168] sm:$0xff] %vm2486, %v2139
      %2533 = vst.msk [vmem:[#allocation2 + $0x170] sm:$0xff] %vm2486, %v2144
      %2534 = vst.msk [vmem:[#allocation2 + $0x178] sm:$0xff] %vm2486, %v2147
      %2535 = vst.msk [vmem:[#allocation2 + $0x180] sm:$0xff] %vm2486, %v2152
      %2536 = vst.msk [vmem:[#allocation2 + $0x188] sm:$0xff] %vm2486, %v2155
      %2537 = vst.msk [vmem:[#allocation2 + $0x190] sm:$0xff] %vm2486, %v2160
      %2538 = vst.msk [vmem:[#allocation2 + $0x198] sm:$0xff] %vm2486, %v2163
      %2539 = vst.msk [vmem:[#allocation2 + $0x1a0] sm:$0xff] %vm2486, %v2168
      %2540 = vst.msk [vmem:[#allocation2 + $0x1a8] sm:$0xff] %vm2486, %v2171
      %2541 = vst.msk [vmem:[#allocation2 + $0x1b0] sm:$0xff] %vm2486, %v2176
      %2542 = vst.msk [vmem:[#allocation2 + $0x1b8] sm:$0xff] %vm2486, %v2179
      %2543 = vst.msk [vmem:[#allocation2 + $0x1c0] sm:$0xff] %vm2486, %v2184
      %2544 = vst.msk [vmem:[#allocation2 + $0x1c8] sm:$0xff] %vm2486, %v2187
      %2545 = vst.msk [vmem:[#allocation2 + $0x1d0] sm:$0xff] %vm2486, %v2192
      %2546 = vst.msk [vmem:[#allocation2 + $0x1d8] sm:$0xff] %vm2486, %v2195
      %2547 = vst.msk [vmem:[#allocation2 + $0x1e0] sm:$0xff] %vm2486, %v2200
      %2548 = vst.msk [vmem:[#allocation2 + $0x1e8] sm:$0xff] %vm2486, %v2203
      %2549 = vst.msk [vmem:[#allocation2 + $0x1f0] sm:$0xff] %vm2486, %v2208
      %2550 = vst.msk [vmem:[#allocation2 + $0x1f8] sm:$0xff] %vm2486, %v2211
      %2551 = vst.msk [vmem:[#allocation2 + $0x200] sm:$0xff] %vm2486, %v2216
      %2552 = vst.msk [vmem:[#allocation2 + $0x208] sm:$0xff] %vm2486, %v2219
      %2553 = vst.msk [vmem:[#allocation2 + $0x210] sm:$0xff] %vm2486, %v2224
      %2554 = vst.msk [vmem:[#allocation2 + $0x218] sm:$0xff] %vm2486, %v2227
      %2555 = vst.msk [vmem:[#allocation2 + $0x220] sm:$0xff] %vm2486, %v2232
      %2556 = vst.msk [vmem:[#allocation2 + $0x228] sm:$0xff] %vm2486, %v2235
      %2557 = vst.msk [vmem:[#allocation2 + $0x230] sm:$0xff] %vm2486, %v2240
      %2558 = vst.msk [vmem:[#allocation2 + $0x238] sm:$0xff] %vm2486, %v2243
      %2559 = vst.msk [vmem:[#allocation2 + $0x240] sm:$0xff] %vm2486, %v2248
      %2560 = vst.msk [vmem:[#allocation2 + $0x248] sm:$0xff] %vm2486, %v2251
      %2561 = vst.msk [vmem:[#allocation2 + $0x250] sm:$0xff] %vm2486, %v2256
      %2562 = vst.msk [vmem:[#allocation2 + $0x258] sm:$0xff] %vm2486, %v2259
      %2563 = vst.msk [vmem:[#allocation2 + $0x260] sm:$0xff] %vm2486, %v2264
      %2564 = vst.msk [vmem:[#allocation2 + $0x268] sm:$0xff] %vm2486, %v2267
      %2565 = vst.msk [vmem:[#allocation2 + $0x270] sm:$0xff] %vm2486, %v2272
      %2566 = vst.msk [vmem:[#allocation2 + $0x278] sm:$0xff] %vm2486, %v2275
      %2567 = vst.msk [vmem:[#allocation2 + $0x280] sm:$0xff] %vm2486, %v2280
      %2568 = vst.msk [vmem:[#allocation2 + $0x288] sm:$0xff] %vm2486, %v2283
      %2569 = vst.msk [vmem:[#allocation2 + $0x290] sm:$0xff] %vm2486, %v2288
      %2570 = vst.msk [vmem:[#allocation2 + $0x298] sm:$0xff] %vm2486, %v2291
      %2571 = vst.msk [vmem:[#allocation2 + $0x2a0] sm:$0xff] %vm2486, %v2296
      %2572 = vst.msk [vmem:[#allocation2 + $0x2a8] sm:$0xff] %vm2486, %v2299
      %2573 = vst.msk [vmem:[#allocation2 + $0x2b0] sm:$0xff] %vm2486, %v2304
      %2574 = vst.msk [vmem:[#allocation2 + $0x2b8] sm:$0xff] %vm2486, %v2307
      %2575 = vst.msk [vmem:[#allocation2 + $0x2c0] sm:$0xff] %vm2486, %v2312
      %2576 = vst.msk [vmem:[#allocation2 + $0x2c8] sm:$0xff] %vm2486, %v2315
      %2577 = vst.msk [vmem:[#allocation2 + $0x2d0] sm:$0xff] %vm2486, %v2320
      %2578 = vst.msk [vmem:[#allocation2 + $0x2d8] sm:$0xff] %vm2486, %v2323
      %2579 = vst.msk [vmem:[#allocation2 + $0x2e0] sm:$0xff] %vm2486, %v2328
      %2580 = vst.msk [vmem:[#allocation2 + $0x2e8] sm:$0xff] %vm2486, %v2331
      %2581 = vst.msk [vmem:[#allocation2 + $0x2f0] sm:$0xff] %vm2486, %v2336
      %2582 = vst.msk [vmem:[#allocation2 + $0x2f8] sm:$0xff] %vm2486, %v2339
      %2583 = vst.msk [vmem:[#allocation2 + $0x300] sm:$0xff] %vm2486, %v2344
      %2584 = vst.msk [vmem:[#allocation2 + $0x308] sm:$0xff] %vm2486, %v2347
      %2585 = vst.msk [vmem:[#allocation2 + $0x310] sm:$0xff] %vm2486, %v2352
      %2586 = vst.msk [vmem:[#allocation2 + $0x318] sm:$0xff] %vm2486, %v2355
      %2587 = vst.msk [vmem:[#allocation2 + $0x320] sm:$0xff] %vm2486, %v2360
      %2588 = vst.msk [vmem:[#allocation2 + $0x328] sm:$0xff] %vm2486, %v2363
      %2589 = vst.msk [vmem:[#allocation2 + $0x330] sm:$0xff] %vm2486, %v2368
      %2590 = vst.msk [vmem:[#allocation2 + $0x338] sm:$0xff] %vm2486, %v2371
      %2591 = vst.msk [vmem:[#allocation2 + $0x340] sm:$0xff] %vm2486, %v2376
      %2592 = vst.msk [vmem:[#allocation2 + $0x348] sm:$0xff] %vm2486, %v2379
      %2593 = vst.msk [vmem:[#allocation2 + $0x350] sm:$0xff] %vm2486, %v2384
      %2594 = vst.msk [vmem:[#allocation2 + $0x358] sm:$0xff] %vm2486, %v2387
      %2595 = vst.msk [vmem:[#allocation2 + $0x360] sm:$0xff] %vm2486, %v2392
      %2596 = vst.msk [vmem:[#allocation2 + $0x368] sm:$0xff] %vm2486, %v2395
      %2597 = vst.msk [vmem:[#allocation2 + $0x370] sm:$0xff] %vm2486, %v2400
      %2598 = vst.msk [vmem:[#allocation2 + $0x378] sm:$0xff] %vm2486, %v2403
      %2599 = vst.msk [vmem:[#allocation2 + $0x380] sm:$0xff] %vm2486, %v2408
      %2600 = vst.msk [vmem:[#allocation2 + $0x388] sm:$0xff] %vm2486, %v2411
      %2601 = vst.msk [vmem:[#allocation2 + $0x390] sm:$0xff] %vm2486, %v2416
      %2602 = vst.msk [vmem:[#allocation2 + $0x398] sm:$0xff] %vm2486, %v2419
      %2603 = vst.msk [vmem:[#allocation2 + $0x3a0] sm:$0xff] %vm2486, %v2424
      %2604 = vst.msk [vmem:[#allocation2 + $0x3a8] sm:$0xff] %vm2486, %v2427
      %2605 = vst.msk [vmem:[#allocation2 + $0x3b0] sm:$0xff] %vm2486, %v2432
      %2606 = vst.msk [vmem:[#allocation2 + $0x3b8] sm:$0xff] %vm2486, %v2435
      %2607 = vst.msk [vmem:[#allocation2 + $0x3c0] sm:$0xff] %vm2486, %v2440
      %2608 = vst.msk [vmem:[#allocation2 + $0x3c8] sm:$0xff] %vm2486, %v2443
      %2609 = vst.msk [vmem:[#allocation2 + $0x3d0] sm:$0xff] %vm2486, %v2448
      %2610 = vst.msk [vmem:[#allocation2 + $0x3d8] sm:$0xff] %vm2486, %v2451
      %2611 = vst.msk [vmem:[#allocation2 + $0x3e0] sm:$0xff] %vm2486, %v2456
      %2612 = vst.msk [vmem:[#allocation2 + $0x3e8] sm:$0xff] %vm2486, %v2459
      %2613 = vst.msk [vmem:[#allocation2 + $0x3f0] sm:$0xff] %vm2486, %v2464
      %2614 = vst.msk [vmem:[#allocation2 + $0x3f8] sm:$0xff] %vm2486, %v2467
      %2615 = vst.msk [vmem:[#allocation2 + $0x400] sm:$0xff] %vm2486, %v2472
      %2616 = vst.msk [vmem:[#allocation2 + $0x408] sm:$0xff] %vm2486, %v2475
      %2617 = vst.msk [vmem:[#allocation2 + $0x410] sm:$0xff] %vm2486, %v2480
      %2618 = vst.msk [vmem:[#allocation2 + $0x418] sm:$0xff] %vm2486, %v2483
      %v2619 = vld [vmem:[#allocation2] sm:$0xff]
      %v2620 = vld [vmem:[#allocation2 + $0x8] sm:$0xff]
      %v2621 = vld [vmem:[#allocation2 + $0x10] sm:$0xff]
      %v2622 = vld [vmem:[#allocation2 + $0x18] sm:$0xff]
      %v2623 = vld [vmem:[#allocation2 + $0x20] sm:$0xff]
      %v2624 = vld [vmem:[#allocation2 + $0x28] sm:$0xff]
      %v2625 = vld [vmem:[#allocation2 + $0x30] sm:$0xff]
      %v2626 = vld [vmem:[#allocation2 + $0x38] sm:$0xff]
      %v2627 = vld [vmem:[#allocation2 + $0x40] sm:$0xff]
      %v2628 = vld [vmem:[#allocation2 + $0x48] sm:$0xff]
      %v2629 = vld [vmem:[#allocation2 + $0x50] sm:$0xff]
      %v2630 = vld [vmem:[#allocation2 + $0x58] sm:$0xff]
      %v2631 = vld [vmem:[#allocation2 + $0x60] sm:$0xff]
      %v2632 = vld [vmem:[#allocation2 + $0x68] sm:$0xff]
      %v2633 = vld [vmem:[#allocation2 + $0x70] sm:$0xff]
      %v2634 = vld [vmem:[#allocation2 + $0x78] sm:$0xff]
      %v2635 = vld [vmem:[#allocation2 + $0x80] sm:$0xff]
      %v2636 = vld [vmem:[#allocation2 + $0x88] sm:$0xff]
      %v2637 = vld [vmem:[#allocation2 + $0x90] sm:$0xff]
      %v2638 = vld [vmem:[#allocation2 + $0x98] sm:$0xff]
      %v2639 = vld [vmem:[#allocation2 + $0xa0] sm:$0xff]
      %v2640 = vld [vmem:[#allocation2 + $0xa8] sm:$0xff]
      %v2641 = vld [vmem:[#allocation2 + $0xb0] sm:$0xff]
      %v2642 = vld [vmem:[#allocation2 + $0xb8] sm:$0xff]
      %v2643 = vld [vmem:[#allocation2 + $0xc0] sm:$0xff]
      %v2644 = vld [vmem:[#allocation2 + $0xc8] sm:$0xff]
      %v2645 = vld [vmem:[#allocation2 + $0xd0] sm:$0xff]
      %v2646 = vld [vmem:[#allocation2 + $0xd8] sm:$0xff]
      %v2647 = vld [vmem:[#allocation2 + $0xe0] sm:$0xff]
      %v2648 = vld [vmem:[#allocation2 + $0xe8] sm:$0xff]
      %v2649 = vld [vmem:[#allocation2 + $0xf0] sm:$0xff]
      %v2650 = vld [vmem:[#allocation2 + $0xf8] sm:$0xff]
      %v2651 = vld [vmem:[#allocation2 + $0x100] sm:$0xff]
      %v2652 = vld [vmem:[#allocation2 + $0x108] sm:$0xff]
      %v2653 = vld [vmem:[#allocation2 + $0x110] sm:$0xff]
      %v2654 = vld [vmem:[#allocation2 + $0x118] sm:$0xff]
      %v2655 = vld [vmem:[#allocation2 + $0x120] sm:$0xff]
      %v2656 = vld [vmem:[#allocation2 + $0x128] sm:$0xff]
      %v2657 = vld [vmem:[#allocation2 + $0x130] sm:$0xff]
      %v2658 = vld [vmem:[#allocation2 + $0x138] sm:$0xff]
      %v2659 = vld [vmem:[#allocation2 + $0x140] sm:$0xff]
      %v2660 = vld [vmem:[#allocation2 + $0x148] sm:$0xff]
      %v2661 = vld [vmem:[#allocation2 + $0x150] sm:$0xff]
      %v2662 = vld [vmem:[#allocation2 + $0x158] sm:$0xff]
      %v2663 = vld [vmem:[#allocation2 + $0x160] sm:$0xff]
      %v2664 = vld [vmem:[#allocation2 + $0x168] sm:$0xff]
      %v2665 = vld [vmem:[#allocation2 + $0x170] sm:$0xff]
      %v2666 = vld [vmem:[#allocation2 + $0x178] sm:$0xff]
      %v2667 = vld [vmem:[#allocation2 + $0x180] sm:$0xff]
      %v2668 = vld [vmem:[#allocation2 + $0x188] sm:$0xff]
      %v2669 = vld [vmem:[#allocation2 + $0x190] sm:$0xff]
      %v2670 = vld [vmem:[#allocation2 + $0x198] sm:$0xff]
      %v2671 = vld [vmem:[#allocation2 + $0x1a0] sm:$0xff]
      %v2672 = vld [vmem:[#allocation2 + $0x1a8] sm:$0xff]
      %v2673 = vld [vmem:[#allocation2 + $0x1b0] sm:$0xff]
      %v2674 = vld [vmem:[#allocation2 + $0x1b8] sm:$0xff]
      %v2675 = vld [vmem:[#allocation2 + $0x1c0] sm:$0xff]
      %v2676 = vld [vmem:[#allocation2 + $0x1c8] sm:$0xff]
      %v2677 = vld [vmem:[#allocation2 + $0x1d0] sm:$0xff]
      %v2678 = vld [vmem:[#allocation2 + $0x1d8] sm:$0xff]
      %v2679 = vld [vmem:[#allocation2 + $0x1e0] sm:$0xff]
      %v2680 = vld [vmem:[#allocation2 + $0x1e8] sm:$0xff]
      %v2681 = vld [vmem:[#allocation2 + $0x1f0] sm:$0xff]
      %v2682 = vld [vmem:[#allocation2 + $0x1f8] sm:$0xff]
      %v2683 = vld [vmem:[#allocation2 + $0x200] sm:$0xff]
      %v2684 = vld [vmem:[#allocation2 + $0x208] sm:$0xff]
      %v2685 = vld [vmem:[#allocation2 + $0x210] sm:$0xff]
      %v2686 = vld [vmem:[#allocation2 + $0x218] sm:$0xff]
      %v2687 = vld [vmem:[#allocation2 + $0x220] sm:$0xff]
      %v2688 = vld [vmem:[#allocation2 + $0x228] sm:$0xff]
      %v2689 = vld [vmem:[#allocation2 + $0x230] sm:$0xff]
      %v2690 = vld [vmem:[#allocation2 + $0x238] sm:$0xff]
      %v2691 = vld [vmem:[#allocation2 + $0x240] sm:$0xff]
      %v2692 = vld [vmem:[#allocation2 + $0x248] sm:$0xff]
      %v2693 = vld [vmem:[#allocation2 + $0x250] sm:$0xff]
      %v2694 = vld [vmem:[#allocation2 + $0x258] sm:$0xff]
      %v2695 = vld [vmem:[#allocation2 + $0x260] sm:$0xff]
      %v2696 = vld [vmem:[#allocation2 + $0x268] sm:$0xff]
      %v2697 = vld [vmem:[#allocation2 + $0x270] sm:$0xff]
      %v2698 = vld [vmem:[#allocation2 + $0x278] sm:$0xff]
      %v2699 = vld [vmem:[#allocation2 + $0x280] sm:$0xff]
      %v2700 = vld [vmem:[#allocation2 + $0x288] sm:$0xff]
      %v2701 = vld [vmem:[#allocation2 + $0x290] sm:$0xff]
      %v2702 = vld [vmem:[#allocation2 + $0x298] sm:$0xff]
      %v2703 = vld [vmem:[#allocation2 + $0x2a0] sm:$0xff]
      %v2704 = vld [vmem:[#allocation2 + $0x2a8] sm:$0xff]
      %v2705 = vld [vmem:[#allocation2 + $0x2b0] sm:$0xff]
      %v2706 = vld [vmem:[#allocation2 + $0x2b8] sm:$0xff]
      %v2707 = vld [vmem:[#allocation2 + $0x2c0] sm:$0xff]
      %v2708 = vld [vmem:[#allocation2 + $0x2c8] sm:$0xff]
      %v2709 = vld [vmem:[#allocation2 + $0x2d0] sm:$0xff]
      %v2710 = vld [vmem:[#allocation2 + $0x2d8] sm:$0xff]
      %v2711 = vld [vmem:[#allocation2 + $0x2e0] sm:$0xff]
      %v2712 = vld [vmem:[#allocation2 + $0x2e8] sm:$0xff]
      %v2713 = vld [vmem:[#allocation2 + $0x2f0] sm:$0xff]
      %v2714 = vld [vmem:[#allocation2 + $0x2f8] sm:$0xff]
      %v2715 = vld [vmem:[#allocation2 + $0x300] sm:$0xff]
      %v2716 = vld [vmem:[#allocation2 + $0x308] sm:$0xff]
      %v2717 = vld [vmem:[#allocation2 + $0x310] sm:$0xff]
      %v2718 = vld [vmem:[#allocation2 + $0x318] sm:$0xff]
      %v2719 = vld [vmem:[#allocation2 + $0x320] sm:$0xff]
      %v2720 = vld [vmem:[#allocation2 + $0x328] sm:$0xff]
      %v2721 = vld [vmem:[#allocation2 + $0x330] sm:$0xff]
      %v2722 = vld [vmem:[#allocation2 + $0x338] sm:$0xff]
      %v2723 = vld [vmem:[#allocation2 + $0x340] sm:$0xff]
      %v2724 = vld [vmem:[#allocation2 + $0x348] sm:$0xff]
      %v2725 = vld [vmem:[#allocation2 + $0x350] sm:$0xff]
      %v2726 = vld [vmem:[#allocation2 + $0x358] sm:$0xff]
      %v2727 = vld [vmem:[#allocation2 + $0x360] sm:$0xff]
      %v2728 = vld [vmem:[#allocation2 + $0x368] sm:$0xff]
      %v2729 = vld [vmem:[#allocation2 + $0x370] sm:$0xff]
      %v2730 = vld [vmem:[#allocation2 + $0x378] sm:$0xff]
      %v2731 = vld [vmem:[#allocation2 + $0x380] sm:$0xff]
      %v2732 = vld [vmem:[#allocation2 + $0x388] sm:$0xff]
      %v2733 = vld [vmem:[#allocation2 + $0x390] sm:$0xff]
      %v2734 = vld [vmem:[#allocation2 + $0x398] sm:$0xff]
      %v2735 = vld [vmem:[#allocation2 + $0x3a0] sm:$0xff]
      %v2736 = vld [vmem:[#allocation2 + $0x3a8] sm:$0xff]
      %v2737 = vld [vmem:[#allocation2 + $0x3b0] sm:$0xff]
      %v2738 = vld [vmem:[#allocation2 + $0x3b8] sm:$0xff]
      %v2739 = vld [vmem:[#allocation2 + $0x3c0] sm:$0xff]
      %v2740 = vld [vmem:[#allocation2 + $0x3c8] sm:$0xff]
      %v2741 = vld [vmem:[#allocation2 + $0x3d0] sm:$0xff]
      %v2742 = vld [vmem:[#allocation2 + $0x3d8] sm:$0xff]
      %v2743 = vld [vmem:[#allocation2 + $0x3e0] sm:$0xff]
      %v2744 = vld [vmem:[#allocation2 + $0x3e8] sm:$0xff]
      %v2745 = vld [vmem:[#allocation2 + $0x3f0] sm:$0xff]
      %v2746 = vld [vmem:[#allocation2 + $0x3f8] sm:$0xff]
      %v2747 = vld [vmem:[#allocation2 + $0x400] sm:$0xff]
      %v2748 = vld [vmem:[#allocation2 + $0x408] sm:$0xff]
      %v2749 = vld [vmem:[#allocation2 + $0x410] sm:$0xff]
      %v2750 = vld [vmem:[#allocation2 + $0x418] sm:$0xff]
      %v2751 = vsel %vm1108, 1, 0
      %v2752 = vsel %vm1109, 1, 0
      %v2753 = vsel %vm1110, 1, 0
      %v2754 = vsel %vm1111, 1, 0
      %v2755 = vsel %vm1112, 1, 0
      %v2756 = vsel %vm1113, 1, 0
      %v2757 = vsel %vm1114, 1, 0
      %v2758 = vsel %vm1115, 1, 0
      %v2759 = vsel %vm1116, 1, 0
      %v2760 = vsel %vm1117, 1, 0
      %v2761 = vsel %vm1118, 1, 0
      %v2762 = vsel %vm1119, 1, 0
      %v2763 = vsel %vm1120, 1, 0
      %v2764 = vsel %vm1121, 1, 0
      %v2765 = vsel %vm1122, 1, 0
      %v2766 = vsel %vm1123, 1, 0
      %v2767 = vsel %vm1124, 1, 0
      %v2768 = vsel %vm1125, 1, 0
      %v2769 = vsel %vm1126, 1, 0
      %v2770 = vsel %vm1127, 1, 0
      %v2771 = vsel %vm1128, 1, 0
      %v2772 = vsel %vm1129, 1, 0
      %v2773 = vsel %vm1130, 1, 0
      %v2774 = vsel %vm1131, 1, 0
      %v2775 = vsel %vm1132, 1, 0
      %v2776 = vsel %vm1133, 1, 0
      %v2777 = vsel %vm1134, 1, 0
      %v2778 = vsel %vm1135, 1, 0
      %v2779 = vsel %vm1136, 1, 0
      %v2780 = vsel %vm1137, 1, 0
      %v2781 = vsel %vm1138, 1, 0
      %v2782 = vsel %vm1139, 1, 0
      %v2783 = vsel %vm1140, 1, 0
      %v2784 = vsel %vm1141, 1, 0
      %v2785 = vsel %vm1142, 1, 0
      %v2786 = vsel %vm1143, 1, 0
      %v2787 = vsel %vm1144, 1, 0
      %v2788 = vsel %vm1145, 1, 0
      %v2789 = vsel %vm1146, 1, 0
      %v2790 = vsel %vm1147, 1, 0
      %v2791 = vsel %vm1148, 1, 0
      %v2792 = vsel %vm1149, 1, 0
      %v2793 = vsel %vm1150, 1, 0
      %v2794 = vsel %vm1151, 1, 0
      %v2795 = vsel %vm1152, 1, 0
      %v2796 = vsel %vm1153, 1, 0
      %v2797 = vsel %vm1154, 1, 0
      %v2798 = vsel %vm1155, 1, 0
      %v2799 = vsel %vm1156, 1, 0
      %v2800 = vsel %vm1157, 1, 0
      %v2801 = vsel %vm1158, 1, 0
      %v2802 = vsel %vm1159, 1, 0
      %v2803 = vsel %vm1160, 1, 0
      %v2804 = vsel %vm1161, 1, 0
      %v2805 = vsel %vm1162, 1, 0
      %v2806 = vsel %vm1163, 1, 0
      %v2807 = vsel %vm1164, 1, 0
      %v2808 = vsel %vm1165, 1, 0
      %v2809 = vsel %vm1166, 1, 0
      %v2810 = vsel %vm1167, 1, 0
      %v2811 = vsel %vm1168, 1, 0
      %v2812 = vsel %vm1169, 1, 0
      %v2813 = vsel %vm1170, 1, 0
      %v2814 = vsel %vm1171, 1, 0
      %v2815 = vsel %vm1172, 1, 0
      %v2816 = vsel %vm1173, 1, 0
      %v2817 = vsel %vm1174, 1, 0
      %v2818 = vsel %vm1175, 1, 0
      %v2819 = vsel %vm1176, 1, 0
      %v2820 = vsel %vm1177, 1, 0
      %v2821 = vsel %vm1178, 1, 0
      %v2822 = vsel %vm1179, 1, 0
      %v2823 = vsel %vm1180, 1, 0
      %v2824 = vsel %vm1181, 1, 0
      %v2825 = vsel %vm1182, 1, 0
      %v2826 = vsel %vm1183, 1, 0
      %v2827 = vsel %vm1184, 1, 0
      %v2828 = vsel %vm1185, 1, 0
      %v2829 = vsel %vm1186, 1, 0
      %v2830 = vsel %vm1187, 1, 0
      %v2831 = vsel %vm1188, 1, 0
      %v2832 = vsel %vm1189, 1, 0
      %v2833 = vsel %vm1190, 1, 0
      %v2834 = vsel %vm1191, 1, 0
      %v2835 = vsel %vm1192, 1, 0
      %v2836 = vsel %vm1193, 1, 0
      %v2837 = vsel %vm1194, 1, 0
      %v2838 = vsel %vm1195, 1, 0
      %v2839 = vsel %vm1196, 1, 0
      %v2840 = vsel %vm1197, 1, 0
      %v2841 = vsel %vm1198, 1, 0
      %v2842 = vsel %vm1199, 1, 0
      %v2843 = vsel %vm1200, 1, 0
      %v2844 = vsel %vm1201, 1, 0
      %v2845 = vsel %vm1202, 1, 0
      %v2846 = vsel %vm1203, 1, 0
      %v2847 = vsel %vm1204, 1, 0
      %v2848 = vsel %vm1205, 1, 0
      %v2849 = vsel %vm1206, 1, 0
      %v2850 = vsel %vm1207, 1, 0
      %v2851 = vsel %vm1208, 1, 0
      %v2852 = vsel %vm1209, 1, 0
      %v2853 = vsel %vm1210, 1, 0
      %v2854 = vsel %vm1211, 1, 0
      %v2855 = vsel %vm1212, 1, 0
      %v2856 = vsel %vm1213, 1, 0
      %v2857 = vsel %vm1214, 1, 0
      %v2858 = vsel %vm1215, 1, 0
      %v2859 = vsel %vm1216, 1, 0
      %v2860 = vsel %vm1217, 1, 0
      %v2861 = vsel %vm1218, 1, 0
      %v2862 = vsel %vm1219, 1, 0
      %v2863 = vsel %vm1220, 1, 0
      %v2864 = vsel %vm1221, 1, 0
      %v2865 = vsel %vm1222, 1, 0
      %v2866 = vsel %vm1223, 1, 0
      %v2867 = vsel %vm1224, 1, 0
      %v2868 = vsel %vm1225, 1, 0
      %v2869 = vsel %vm1226, 1, 0
      %v2870 = vsel %vm1227, 1, 0
      %v2871 = vsel %vm1228, 1, 0
      %v2872 = vsel %vm1229, 1, 0
      %v2873 = vsel %vm1230, 1, 0
      %v2874 = vsel %vm1231, 1, 0
      %v2875 = vsel %vm1232, 1, 0
      %v2876 = vsel %vm1233, 1, 0
      %v2877 = vsel %vm1234, 1, 0
      %v2878 = vsel %vm1235, 1, 0
      %v2879 = vsel %vm1236, 1, 0
      %v2880 = vsel %vm1237, 1, 0
      %v2881 = vsel %vm1238, 1, 0
      %v2882 = vsel %vm1239, 1, 0
      %vm2883 = vcmp.eq.s32.totalorder %v2751, 1
      %vm2884 = vcmp.eq.s32.totalorder %v2752, 1
      %vm2885 = vcmp.eq.s32.totalorder %v2753, 1
      %vm2886 = vcmp.eq.s32.totalorder %v2754, 1
      %vm2887 = vcmp.eq.s32.totalorder %v2755, 1
      %vm2888 = vcmp.eq.s32.totalorder %v2756, 1
      %vm2889 = vcmp.eq.s32.totalorder %v2757, 1
      %vm2890 = vcmp.eq.s32.totalorder %v2758, 1
      %vm2891 = vcmp.eq.s32.totalorder %v2759, 1
      %vm2892 = vcmp.eq.s32.totalorder %v2760, 1
      %vm2893 = vcmp.eq.s32.totalorder %v2761, 1
      %vm2894 = vcmp.eq.s32.totalorder %v2762, 1
      %vm2895 = vcmp.eq.s32.totalorder %v2763, 1
      %vm2896 = vcmp.eq.s32.totalorder %v2764, 1
      %vm2897 = vcmp.eq.s32.totalorder %v2765, 1
      %vm2898 = vcmp.eq.s32.totalorder %v2766, 1
      %vm2899 = vcmp.eq.s32.totalorder %v2767, 1
      %vm2900 = vcmp.eq.s32.totalorder %v2768, 1
      %vm2901 = vcmp.eq.s32.totalorder %v2769, 1
      %vm2902 = vcmp.eq.s32.totalorder %v2770, 1
      %vm2903 = vcmp.eq.s32.totalorder %v2771, 1
      %vm2904 = vcmp.eq.s32.totalorder %v2772, 1
      %vm2905 = vcmp.eq.s32.totalorder %v2773, 1
      %vm2906 = vcmp.eq.s32.totalorder %v2774, 1
      %vm2907 = vcmp.eq.s32.totalorder %v2775, 1
      %vm2908 = vcmp.eq.s32.totalorder %v2776, 1
      %vm2909 = vcmp.eq.s32.totalorder %v2777, 1
      %vm2910 = vcmp.eq.s32.totalorder %v2778, 1
      %vm2911 = vcmp.eq.s32.totalorder %v2779, 1
      %vm2912 = vcmp.eq.s32.totalorder %v2780, 1
      %vm2913 = vcmp.eq.s32.totalorder %v2781, 1
      %vm2914 = vcmp.eq.s32.totalorder %v2782, 1
      %vm2915 = vcmp.eq.s32.totalorder %v2783, 1
      %vm2916 = vcmp.eq.s32.totalorder %v2784, 1
      %vm2917 = vcmp.eq.s32.totalorder %v2785, 1
      %vm2918 = vcmp.eq.s32.totalorder %v2786, 1
      %vm2919 = vcmp.eq.s32.totalorder %v2787, 1
      %vm2920 = vcmp.eq.s32.totalorder %v2788, 1
      %vm2921 = vcmp.eq.s32.totalorder %v2789, 1
      %vm2922 = vcmp.eq.s32.totalorder %v2790, 1
      %vm2923 = vcmp.eq.s32.totalorder %v2791, 1
      %vm2924 = vcmp.eq.s32.totalorder %v2792, 1
      %vm2925 = vcmp.eq.s32.totalorder %v2793, 1
      %vm2926 = vcmp.eq.s32.totalorder %v2794, 1
      %vm2927 = vcmp.eq.s32.totalorder %v2795, 1
      %vm2928 = vcmp.eq.s32.totalorder %v2796, 1
      %vm2929 = vcmp.eq.s32.totalorder %v2797, 1
      %vm2930 = vcmp.eq.s32.totalorder %v2798, 1
      %vm2931 = vcmp.eq.s32.totalorder %v2799, 1
      %vm2932 = vcmp.eq.s32.totalorder %v2800, 1
      %vm2933 = vcmp.eq.s32.totalorder %v2801, 1
      %vm2934 = vcmp.eq.s32.totalorder %v2802, 1
      %vm2935 = vcmp.eq.s32.totalorder %v2803, 1
      %vm2936 = vcmp.eq.s32.totalorder %v2804, 1
      %vm2937 = vcmp.eq.s32.totalorder %v2805, 1
      %vm2938 = vcmp.eq.s32.totalorder %v2806, 1
      %vm2939 = vcmp.eq.s32.totalorder %v2807, 1
      %vm2940 = vcmp.eq.s32.totalorder %v2808, 1
      %vm2941 = vcmp.eq.s32.totalorder %v2809, 1
      %vm2942 = vcmp.eq.s32.totalorder %v2810, 1
      %vm2943 = vcmp.eq.s32.totalorder %v2811, 1
      %vm2944 = vcmp.eq.s32.totalorder %v2812, 1
      %vm2945 = vcmp.eq.s32.totalorder %v2813, 1
      %vm2946 = vcmp.eq.s32.totalorder %v2814, 1
      %vm2947 = vcmp.eq.s32.totalorder %v2815, 1
      %vm2948 = vcmp.eq.s32.totalorder %v2816, 1
      %vm2949 = vcmp.eq.s32.totalorder %v2817, 1
      %vm2950 = vcmp.eq.s32.totalorder %v2818, 1
      %vm2951 = vcmp.eq.s32.totalorder %v2819, 1
      %vm2952 = vcmp.eq.s32.totalorder %v2820, 1
      %vm2953 = vcmp.eq.s32.totalorder %v2821, 1
      %vm2954 = vcmp.eq.s32.totalorder %v2822, 1
      %vm2955 = vcmp.eq.s32.totalorder %v2823, 1
      %vm2956 = vcmp.eq.s32.totalorder %v2824, 1
      %vm2957 = vcmp.eq.s32.totalorder %v2825, 1
      %vm2958 = vcmp.eq.s32.totalorder %v2826, 1
      %vm2959 = vcmp.eq.s32.totalorder %v2827, 1
      %vm2960 = vcmp.eq.s32.totalorder %v2828, 1
      %vm2961 = vcmp.eq.s32.totalorder %v2829, 1
      %vm2962 = vcmp.eq.s32.totalorder %v2830, 1
      %vm2963 = vcmp.eq.s32.totalorder %v2831, 1
      %vm2964 = vcmp.eq.s32.totalorder %v2832, 1
      %vm2965 = vcmp.eq.s32.totalorder %v2833, 1
      %vm2966 = vcmp.eq.s32.totalorder %v2834, 1
      %vm2967 = vcmp.eq.s32.totalorder %v2835, 1
      %vm2968 = vcmp.eq.s32.totalorder %v2836, 1
      %vm2969 = vcmp.eq.s32.totalorder %v2837, 1
      %vm2970 = vcmp.eq.s32.totalorder %v2838, 1
      %vm2971 = vcmp.eq.s32.totalorder %v2839, 1
      %vm2972 = vcmp.eq.s32.totalorder %v2840, 1
      %vm2973 = vcmp.eq.s32.totalorder %v2841, 1
      %vm2974 = vcmp.eq.s32.totalorder %v2842, 1
      %vm2975 = vcmp.eq.s32.totalorder %v2843, 1
      %vm2976 = vcmp.eq.s32.totalorder %v2844, 1
      %vm2977 = vcmp.eq.s32.totalorder %v2845, 1
      %vm2978 = vcmp.eq.s32.totalorder %v2846, 1
      %vm2979 = vcmp.eq.s32.totalorder %v2847, 1
      %vm2980 = vcmp.eq.s32.totalorder %v2848, 1
      %vm2981 = vcmp.eq.s32.totalorder %v2849, 1
      %vm2982 = vcmp.eq.s32.totalorder %v2850, 1
      %vm2983 = vcmp.eq.s32.totalorder %v2851, 1
      %vm2984 = vcmp.eq.s32.totalorder %v2852, 1
      %vm2985 = vcmp.eq.s32.totalorder %v2853, 1
      %vm2986 = vcmp.eq.s32.totalorder %v2854, 1
      %vm2987 = vcmp.eq.s32.totalorder %v2855, 1
      %vm2988 = vcmp.eq.s32.totalorder %v2856, 1
      %vm2989 = vcmp.eq.s32.totalorder %v2857, 1
      %vm2990 = vcmp.eq.s32.totalorder %v2858, 1
      %vm2991 = vcmp.eq.s32.totalorder %v2859, 1
      %vm2992 = vcmp.eq.s32.totalorder %v2860, 1
      %vm2993 = vcmp.eq.s32.totalorder %v2861, 1
      %vm2994 = vcmp.eq.s32.totalorder %v2862, 1
      %vm2995 = vcmp.eq.s32.totalorder %v2863, 1
      %vm2996 = vcmp.eq.s32.totalorder %v2864, 1
      %vm2997 = vcmp.eq.s32.totalorder %v2865, 1
      %vm2998 = vcmp.eq.s32.totalorder %v2866, 1
      %vm2999 = vcmp.eq.s32.totalorder %v2867, 1
      %vm3000 = vcmp.eq.s32.totalorder %v2868, 1
      %vm3001 = vcmp.eq.s32.totalorder %v2869, 1
      %vm3002 = vcmp.eq.s32.totalorder %v2870, 1
      %vm3003 = vcmp.eq.s32.totalorder %v2871, 1
      %vm3004 = vcmp.eq.s32.totalorder %v2872, 1
      %vm3005 = vcmp.eq.s32.totalorder %v2873, 1
      %vm3006 = vcmp.eq.s32.totalorder %v2874, 1
      %vm3007 = vcmp.eq.s32.totalorder %v2875, 1
      %vm3008 = vcmp.eq.s32.totalorder %v2876, 1
      %vm3009 = vcmp.eq.s32.totalorder %v2877, 1
      %vm3010 = vcmp.eq.s32.totalorder %v2878, 1
      %vm3011 = vcmp.eq.s32.totalorder %v2879, 1
      %vm3012 = vcmp.eq.s32.totalorder %v2880, 1
      %vm3013 = vcmp.eq.s32.totalorder %v2881, 1
      %vm3014 = vcmp.eq.s32.totalorder %v2882, 1
      %v3015 = vsel %vm2883, %v2619, 0.0
      %v3016 = vsel %vm2884, %v2620, 0.0
      %v3017 = vsel %vm2885, %v2621, 0.0
      %v3018 = vsel %vm2886, %v2622, 0.0
      %v3019 = vsel %vm2887, %v2623, 0.0
      %v3020 = vsel %vm2888, %v2624, 0.0
      %v3021 = vsel %vm2889, %v2625, 0.0
      %v3022 = vsel %vm2890, %v2626, 0.0
      %v3023 = vsel %vm2891, %v2627, 0.0
      %v3024 = vsel %vm2892, %v2628, 0.0
      %v3025 = vsel %vm2893, %v2629, 0.0
      %v3026 = vsel %vm2894, %v2630, 0.0
      %v3027 = vsel %vm2895, %v2631, 0.0
      %v3028 = vsel %vm2896, %v2632, 0.0
      %v3029 = vsel %vm2897, %v2633, 0.0
      %v3030 = vsel %vm2898, %v2634, 0.0
      %v3031 = vsel %vm2899, %v2635, 0.0
      %v3032 = vsel %vm2900, %v2636, 0.0
      %v3033 = vsel %vm2901, %v2637, 0.0
      %v3034 = vsel %vm2902, %v2638, 0.0
      %v3035 = vsel %vm2903, %v2639, 0.0
      %v3036 = vsel %vm2904, %v2640, 0.0
      %v3037 = vsel %vm2905, %v2641, 0.0
      %v3038 = vsel %vm2906, %v2642, 0.0
      %v3039 = vsel %vm2907, %v2643, 0.0
      %v3040 = vsel %vm2908, %v2644, 0.0
      %v3041 = vsel %vm2909, %v2645, 0.0
      %v3042 = vsel %vm2910, %v2646, 0.0
      %v3043 = vsel %vm2911, %v2647, 0.0
      %v3044 = vsel %vm2912, %v2648, 0.0
      %v3045 = vsel %vm2913, %v2649, 0.0
      %v3046 = vsel %vm2914, %v2650, 0.0
      %v3047 = vsel %vm2915, %v2651, 0.0
      %v3048 = vsel %vm2916, %v2652, 0.0
      %v3049 = vsel %vm2917, %v2653, 0.0
      %v3050 = vsel %vm2918, %v2654, 0.0
      %v3051 = vsel %vm2919, %v2655, 0.0
      %v3052 = vsel %vm2920, %v2656, 0.0
      %v3053 = vsel %vm2921, %v2657, 0.0
      %v3054 = vsel %vm2922, %v2658, 0.0
      %v3055 = vsel %vm2923, %v2659, 0.0
      %v3056 = vsel %vm2924, %v2660, 0.0
      %v3057 = vsel %vm2925, %v2661, 0.0
      %v3058 = vsel %vm2926, %v2662, 0.0
      %v3059 = vsel %vm2927, %v2663, 0.0
      %v3060 = vsel %vm2928, %v2664, 0.0
      %v3061 = vsel %vm2929, %v2665, 0.0
      %v3062 = vsel %vm2930, %v2666, 0.0
      %v3063 = vsel %vm2931, %v2667, 0.0
      %v3064 = vsel %vm2932, %v2668, 0.0
      %v3065 = vsel %vm2933, %v2669, 0.0
      %v3066 = vsel %vm2934, %v2670, 0.0
      %v3067 = vsel %vm2935, %v2671, 0.0
      %v3068 = vsel %vm2936, %v2672, 0.0
      %v3069 = vsel %vm2937, %v2673, 0.0
      %v3070 = vsel %vm2938, %v2674, 0.0
      %v3071 = vsel %vm2939, %v2675, 0.0
      %v3072 = vsel %vm2940, %v2676, 0.0
      %v3073 = vsel %vm2941, %v2677, 0.0
      %v3074 = vsel %vm2942, %v2678, 0.0
      %v3075 = vsel %vm2943, %v2679, 0.0
      %v3076 = vsel %vm2944, %v2680, 0.0
      %v3077 = vsel %vm2945, %v2681, 0.0
      %v3078 = vsel %vm2946, %v2682, 0.0
      %v3079 = vsel %vm2947, %v2683, 0.0
      %v3080 = vsel %vm2948, %v2684, 0.0
      %v3081 = vsel %vm2949, %v2685, 0.0
      %v3082 = vsel %vm2950, %v2686, 0.0
      %v3083 = vsel %vm2951, %v2687, 0.0
      %v3084 = vsel %vm2952, %v2688, 0.0
      %v3085 = vsel %vm2953, %v2689, 0.0
      %v3086 = vsel %vm2954, %v2690, 0.0
      %v3087 = vsel %vm2955, %v2691, 0.0
      %v3088 = vsel %vm2956, %v2692, 0.0
      %v3089 = vsel %vm2957, %v2693, 0.0
      %v3090 = vsel %vm2958, %v2694, 0.0
      %v3091 = vsel %vm2959, %v2695, 0.0
      %v3092 = vsel %vm2960, %v2696, 0.0
      %v3093 = vsel %vm2961, %v2697, 0.0
      %v3094 = vsel %vm2962, %v2698, 0.0
      %v3095 = vsel %vm2963, %v2699, 0.0
      %v3096 = vsel %vm2964, %v2700, 0.0
      %v3097 = vsel %vm2965, %v2701, 0.0
      %v3098 = vsel %vm2966, %v2702, 0.0
      %v3099 = vsel %vm2967, %v2703, 0.0
      %v3100 = vsel %vm2968, %v2704, 0.0
      %v3101 = vsel %vm2969, %v2705, 0.0
      %v3102 = vsel %vm2970, %v2706, 0.0
      %v3103 = vsel %vm2971, %v2707, 0.0
      %v3104 = vsel %vm2972, %v2708, 0.0
      %v3105 = vsel %vm2973, %v2709, 0.0
      %v3106 = vsel %vm2974, %v2710, 0.0
      %v3107 = vsel %vm2975, %v2711, 0.0
      %v3108 = vsel %vm2976, %v2712, 0.0
      %v3109 = vsel %vm2977, %v2713, 0.0
      %v3110 = vsel %vm2978, %v2714, 0.0
      %v3111 = vsel %vm2979, %v2715, 0.0
      %v3112 = vsel %vm2980, %v2716, 0.0
      %v3113 = vsel %vm2981, %v2717, 0.0
      %v3114 = vsel %vm2982, %v2718, 0.0
      %v3115 = vsel %vm2983, %v2719, 0.0
      %v3116 = vsel %vm2984, %v2720, 0.0
      %v3117 = vsel %vm2985, %v2721, 0.0
      %v3118 = vsel %vm2986, %v2722, 0.0
      %v3119 = vsel %vm2987, %v2723, 0.0
      %v3120 = vsel %vm2988, %v2724, 0.0
      %v3121 = vsel %vm2989, %v2725, 0.0
      %v3122 = vsel %vm2990, %v2726, 0.0
      %v3123 = vsel %vm2991, %v2727, 0.0
      %v3124 = vsel %vm2992, %v2728, 0.0
      %v3125 = vsel %vm2993, %v2729, 0.0
      %v3126 = vsel %vm2994, %v2730, 0.0
      %v3127 = vsel %vm2995, %v2731, 0.0
      %v3128 = vsel %vm2996, %v2732, 0.0
      %v3129 = vsel %vm2997, %v2733, 0.0
      %v3130 = vsel %vm2998, %v2734, 0.0
      %v3131 = vsel %vm2999, %v2735, 0.0
      %v3132 = vsel %vm3000, %v2736, 0.0
      %v3133 = vsel %vm3001, %v2737, 0.0
      %v3134 = vsel %vm3002, %v2738, 0.0
      %v3135 = vsel %vm3003, %v2739, 0.0
      %v3136 = vsel %vm3004, %v2740, 0.0
      %v3137 = vsel %vm3005, %v2741, 0.0
      %v3138 = vsel %vm3006, %v2742, 0.0
      %v3139 = vsel %vm3007, %v2743, 0.0
      %v3140 = vsel %vm3008, %v2744, 0.0
      %v3141 = vsel %vm3009, %v2745, 0.0
      %v3142 = vsel %vm3010, %v2746, 0.0
      %v3143 = vsel %vm3011, %v2747, 0.0
      %v3144 = vsel %vm3012, %v2748, 0.0
      %v3145 = vsel %vm3013, %v2749, 0.0
      %v3146 = vsel %vm3014, %v2750, 0.0
      %v3147 = vsel %vm2486, %v3015, 0.0
      %v3148 = vsel %vm2486, %v3016, 0.0
      %v3149 = vadd.f32 %v3147, %v3148
      %v3150 = vsel %vm2486, %v3017, 0.0
      %v3151 = vadd.f32 %v3149, %v3150
      %v3152 = vsel %vm2486, %v3018, 0.0
      %v3153 = vadd.f32 %v3151, %v3152
      %v3154 = vsel %vm2486, %v3019, 0.0
      %v3155 = vadd.f32 %v3153, %v3154
      %v3156 = vsel %vm2486, %v3020, 0.0
      %v3157 = vadd.f32 %v3155, %v3156
      %v3158 = vsel %vm2486, %v3021, 0.0
      %v3159 = vadd.f32 %v3157, %v3158
      %v3160 = vsel %vm2486, %v3022, 0.0
      %v3161 = vadd.f32 %v3159, %v3160
      %v3162 = vsel %vm2486, %v3023, 0.0
      %v3163 = vadd.f32 %v3161, %v3162
      %v3164 = vsel %vm2486, %v3024, 0.0
      %v3165 = vadd.f32 %v3163, %v3164
      %v3166 = vsel %vm2486, %v3025, 0.0
      %v3167 = vadd.f32 %v3165, %v3166
      %v3168 = vsel %vm2486, %v3026, 0.0
      %v3169 = vadd.f32 %v3167, %v3168
      %v3170 = vsel %vm2486, %v3027, 0.0
      %v3171 = vadd.f32 %v3169, %v3170
      %v3172 = vsel %vm2486, %v3028, 0.0
      %v3173 = vadd.f32 %v3171, %v3172
      %v3174 = vsel %vm2486, %v3029, 0.0
      %v3175 = vadd.f32 %v3173, %v3174
      %v3176 = vsel %vm2486, %v3030, 0.0
      %v3177 = vadd.f32 %v3175, %v3176
      %v3178 = vsel %vm2486, %v3031, 0.0
      %v3179 = vadd.f32 %v3177, %v3178
      %v3180 = vsel %vm2486, %v3032, 0.0
      %v3181 = vadd.f32 %v3179, %v3180
      %v3182 = vsel %vm2486, %v3033, 0.0
      %v3183 = vadd.f32 %v3181, %v3182
      %v3184 = vsel %vm2486, %v3034, 0.0
      %v3185 = vadd.f32 %v3183, %v3184
      %v3186 = vsel %vm2486, %v3035, 0.0
      %v3187 = vadd.f32 %v3185, %v3186
      %v3188 = vsel %vm2486, %v3036, 0.0
      %v3189 = vadd.f32 %v3187, %v3188
      %v3190 = vsel %vm2486, %v3037, 0.0
      %v3191 = vadd.f32 %v3189, %v3190
      %v3192 = vsel %vm2486, %v3038, 0.0
      %v3193 = vadd.f32 %v3191, %v3192
      %v3194 = vsel %vm2486, %v3039, 0.0
      %v3195 = vadd.f32 %v3193, %v3194
      %v3196 = vsel %vm2486, %v3040, 0.0
      %v3197 = vadd.f32 %v3195, %v3196
      %v3198 = vsel %vm2486, %v3041, 0.0
      %v3199 = vadd.f32 %v3197, %v3198
      %v3200 = vsel %vm2486, %v3042, 0.0
      %v3201 = vadd.f32 %v3199, %v3200
      %v3202 = vsel %vm2486, %v3043, 0.0
      %v3203 = vadd.f32 %v3201, %v3202
      %v3204 = vsel %vm2486, %v3044, 0.0
      %v3205 = vadd.f32 %v3203, %v3204
      %v3206 = vsel %vm2486, %v3045, 0.0
      %v3207 = vadd.f32 %v3205, %v3206
      %v3208 = vsel %vm2486, %v3046, 0.0
      %v3209 = vadd.f32 %v3207, %v3208
      %v3210 = vsel %vm2486, %v3047, 0.0
      %v3211 = vadd.f32 %v3209, %v3210
      %v3212 = vsel %vm2486, %v3048, 0.0
      %v3213 = vadd.f32 %v3211, %v3212
      %v3214 = vsel %vm2486, %v3049, 0.0
      %v3215 = vadd.f32 %v3213, %v3214
      %v3216 = vsel %vm2486, %v3050, 0.0
      %v3217 = vadd.f32 %v3215, %v3216
      %v3218 = vsel %vm2486, %v3051, 0.0
      %v3219 = vadd.f32 %v3217, %v3218
      %v3220 = vsel %vm2486, %v3052, 0.0
      %v3221 = vadd.f32 %v3219, %v3220
      %v3222 = vsel %vm2486, %v3053, 0.0
      %v3223 = vadd.f32 %v3221, %v3222
      %v3224 = vsel %vm2486, %v3054, 0.0
      %v3225 = vadd.f32 %v3223, %v3224
      %v3226 = vsel %vm2486, %v3055, 0.0
      %v3227 = vadd.f32 %v3225, %v3226
      %v3228 = vsel %vm2486, %v3056, 0.0
      %v3229 = vadd.f32 %v3227, %v3228
      %v3230 = vsel %vm2486, %v3057, 0.0
      %v3231 = vadd.f32 %v3229, %v3230
      %v3232 = vsel %vm2486, %v3058, 0.0
      %v3233 = vadd.f32 %v3231, %v3232
      %v3234 = vsel %vm2486, %v3059, 0.0
      %v3235 = vadd.f32 %v3233, %v3234
      %v3236 = vsel %vm2486, %v3060, 0.0
      %v3237 = vadd.f32 %v3235, %v3236
      %v3238 = vsel %vm2486, %v3061, 0.0
      %v3239 = vadd.f32 %v3237, %v3238
      %v3240 = vsel %vm2486, %v3062, 0.0
      %v3241 = vadd.f32 %v3239, %v3240
      %v3242 = vsel %vm2486, %v3063, 0.0
      %v3243 = vadd.f32 %v3241, %v3242
      %v3244 = vsel %vm2486, %v3064, 0.0
      %v3245 = vadd.f32 %v3243, %v3244
      %v3246 = vsel %vm2486, %v3065, 0.0
      %v3247 = vadd.f32 %v3245, %v3246
      %v3248 = vsel %vm2486, %v3066, 0.0
      %v3249 = vadd.f32 %v3247, %v3248
      %v3250 = vsel %vm2486, %v3067, 0.0
      %v3251 = vadd.f32 %v3249, %v3250
      %v3252 = vsel %vm2486, %v3068, 0.0
      %v3253 = vadd.f32 %v3251, %v3252
      %v3254 = vsel %vm2486, %v3069, 0.0
      %v3255 = vadd.f32 %v3253, %v3254
      %v3256 = vsel %vm2486, %v3070, 0.0
      %v3257 = vadd.f32 %v3255, %v3256
      %v3258 = vsel %vm2486, %v3071, 0.0
      %v3259 = vadd.f32 %v3257, %v3258
      %v3260 = vsel %vm2486, %v3072, 0.0
      %v3261 = vadd.f32 %v3259, %v3260
      %v3262 = vsel %vm2486, %v3073, 0.0
      %v3263 = vadd.f32 %v3261, %v3262
      %v3264 = vsel %vm2486, %v3074, 0.0
      %v3265 = vadd.f32 %v3263, %v3264
      %v3266 = vsel %vm2486, %v3075, 0.0
      %v3267 = vadd.f32 %v3265, %v3266
      %v3268 = vsel %vm2486, %v3076, 0.0
      %v3269 = vadd.f32 %v3267, %v3268
      %v3270 = vsel %vm2486, %v3077, 0.0
      %v3271 = vadd.f32 %v3269, %v3270
      %v3272 = vsel %vm2486, %v3078, 0.0
      %v3273 = vadd.f32 %v3271, %v3272
      %v3274 = vsel %vm2486, %v3079, 0.0
      %v3275 = vadd.f32 %v3273, %v3274
      %v3276 = vsel %vm2486, %v3080, 0.0
      %v3277 = vadd.f32 %v3275, %v3276
      %v3278 = vsel %vm2486, %v3081, 0.0
      %v3279 = vadd.f32 %v3277, %v3278
      %v3280 = vsel %vm2486, %v3082, 0.0
      %v3281 = vadd.f32 %v3279, %v3280
      %v3282 = vsel %vm2486, %v3083, 0.0
      %v3283 = vadd.f32 %v3281, %v3282
      %v3284 = vsel %vm2486, %v3084, 0.0
      %v3285 = vadd.f32 %v3283, %v3284
      %v3286 = vsel %vm2486, %v3085, 0.0
      %v3287 = vadd.f32 %v3285, %v3286
      %v3288 = vsel %vm2486, %v3086, 0.0
      %v3289 = vadd.f32 %v3287, %v3288
      %v3290 = vsel %vm2486, %v3087, 0.0
      %v3291 = vadd.f32 %v3289, %v3290
      %v3292 = vsel %vm2486, %v3088, 0.0
      %v3293 = vadd.f32 %v3291, %v3292
      %v3294 = vsel %vm2486, %v3089, 0.0
      %v3295 = vadd.f32 %v3293, %v3294
      %v3296 = vsel %vm2486, %v3090, 0.0
      %v3297 = vadd.f32 %v3295, %v3296
      %v3298 = vsel %vm2486, %v3091, 0.0
      %v3299 = vadd.f32 %v3297, %v3298
      %v3300 = vsel %vm2486, %v3092, 0.0
      %v3301 = vadd.f32 %v3299, %v3300
      %v3302 = vsel %vm2486, %v3093, 0.0
      %v3303 = vadd.f32 %v3301, %v3302
      %v3304 = vsel %vm2486, %v3094, 0.0
      %v3305 = vadd.f32 %v3303, %v3304
      %v3306 = vsel %vm2486, %v3095, 0.0
      %v3307 = vadd.f32 %v3305, %v3306
      %v3308 = vsel %vm2486, %v3096, 0.0
      %v3309 = vadd.f32 %v3307, %v3308
      %v3310 = vsel %vm2486, %v3097, 0.0
      %v3311 = vadd.f32 %v3309, %v3310
      %v3312 = vsel %vm2486, %v3098, 0.0
      %v3313 = vadd.f32 %v3311, %v3312
      %v3314 = vsel %vm2486, %v3099, 0.0
      %v3315 = vadd.f32 %v3313, %v3314
      %v3316 = vsel %vm2486, %v3100, 0.0
      %v3317 = vadd.f32 %v3315, %v3316
      %v3318 = vsel %vm2486, %v3101, 0.0
      %v3319 = vadd.f32 %v3317, %v3318
      %v3320 = vsel %vm2486, %v3102, 0.0
      %v3321 = vadd.f32 %v3319, %v3320
      %v3322 = vsel %vm2486, %v3103, 0.0
      %v3323 = vadd.f32 %v3321, %v3322
      %v3324 = vsel %vm2486, %v3104, 0.0
      %v3325 = vadd.f32 %v3323, %v3324
      %v3326 = vsel %vm2486, %v3105, 0.0
      %v3327 = vadd.f32 %v3325, %v3326
      %v3328 = vsel %vm2486, %v3106, 0.0
      %v3329 = vadd.f32 %v3327, %v3328
      %v3330 = vsel %vm2486, %v3107, 0.0
      %v3331 = vadd.f32 %v3329, %v3330
      %v3332 = vsel %vm2486, %v3108, 0.0
      %v3333 = vadd.f32 %v3331, %v3332
      %v3334 = vsel %vm2486, %v3109, 0.0
      %v3335 = vadd.f32 %v3333, %v3334
      %v3336 = vsel %vm2486, %v3110, 0.0
      %v3337 = vadd.f32 %v3335, %v3336
      %v3338 = vsel %vm2486, %v3111, 0.0
      %v3339 = vadd.f32 %v3337, %v3338
      %v3340 = vsel %vm2486, %v3112, 0.0
      %v3341 = vadd.f32 %v3339, %v3340
      %v3342 = vsel %vm2486, %v3113, 0.0
      %v3343 = vadd.f32 %v3341, %v3342
      %v3344 = vsel %vm2486, %v3114, 0.0
      %v3345 = vadd.f32 %v3343, %v3344
      %v3346 = vsel %vm2486, %v3115, 0.0
      %v3347 = vadd.f32 %v3345, %v3346
      %v3348 = vsel %vm2486, %v3116, 0.0
      %v3349 = vadd.f32 %v3347, %v3348
      %v3350 = vsel %vm2486, %v3117, 0.0
      %v3351 = vadd.f32 %v3349, %v3350
      %v3352 = vsel %vm2486, %v3118, 0.0
      %v3353 = vadd.f32 %v3351, %v3352
      %v3354 = vsel %vm2486, %v3119, 0.0
      %v3355 = vadd.f32 %v3353, %v3354
      %v3356 = vsel %vm2486, %v3120, 0.0
      %v3357 = vadd.f32 %v3355, %v3356
      %v3358 = vsel %vm2486, %v3121, 0.0
      %v3359 = vadd.f32 %v3357, %v3358
      %v3360 = vsel %vm2486, %v3122, 0.0
      %v3361 = vadd.f32 %v3359, %v3360
      %v3362 = vsel %vm2486, %v3123, 0.0
      %v3363 = vadd.f32 %v3361, %v3362
      %v3364 = vsel %vm2486, %v3124, 0.0
      %v3365 = vadd.f32 %v3363, %v3364
      %v3366 = vsel %vm2486, %v3125, 0.0
      %v3367 = vadd.f32 %v3365, %v3366
      %v3368 = vsel %vm2486, %v3126, 0.0
      %v3369 = vadd.f32 %v3367, %v3368
      %v3370 = vsel %vm2486, %v3127, 0.0
      %v3371 = vadd.f32 %v3369, %v3370
      %v3372 = vsel %vm2486, %v3128, 0.0
      %v3373 = vadd.f32 %v3371, %v3372
      %v3374 = vsel %vm2486, %v3129, 0.0
      %v3375 = vadd.f32 %v3373, %v3374
      %v3376 = vsel %vm2486, %v3130, 0.0
      %v3377 = vadd.f32 %v3375, %v3376
      %v3378 = vsel %vm2486, %v3131, 0.0
      %v3379 = vadd.f32 %v3377, %v3378
      %v3380 = vsel %vm2486, %v3132, 0.0
      %v3381 = vadd.f32 %v3379, %v3380
      %v3382 = vsel %vm2486, %v3133, 0.0
      %v3383 = vadd.f32 %v3381, %v3382
      %v3384 = vsel %vm2486, %v3134, 0.0
      %v3385 = vadd.f32 %v3383, %v3384
      %v3386 = vsel %vm2486, %v3135, 0.0
      %v3387 = vadd.f32 %v3385, %v3386
      %v3388 = vsel %vm2486, %v3136, 0.0
      %v3389 = vadd.f32 %v3387, %v3388
      %v3390 = vsel %vm2486, %v3137, 0.0
      %v3391 = vadd.f32 %v3389, %v3390
      %v3392 = vsel %vm2486, %v3138, 0.0
      %v3393 = vadd.f32 %v3391, %v3392
      %v3394 = vsel %vm2486, %v3139, 0.0
      %v3395 = vadd.f32 %v3393, %v3394
      %v3396 = vsel %vm2486, %v3140, 0.0
      %v3397 = vadd.f32 %v3395, %v3396
      %v3398 = vsel %vm2486, %v3141, 0.0
      %v3399 = vadd.f32 %v3397, %v3398
      %v3400 = vsel %vm2486, %v3142, 0.0
      %v3401 = vadd.f32 %v3399, %v3400
      %v3402 = vsel %vm2486, %v3143, 0.0
      %v3403 = vadd.f32 %v3401, %v3402
      %v3404 = vsel %vm2486, %v3144, 0.0
      %v3405 = vadd.f32 %v3403, %v3404
      %v3406 = vsel %vm2486, %v3145, 0.0
      %v3407 = vadd.f32 %v3405, %v3406
      %v3408 = vsel %vm2486, %v3146, 0.0
      %v3409 = vadd.f32 %v3407, %v3408
      %v3410 = vrot.slane %v3409, 4
      %v3411 = vadd.f32 %v3409, %v3410
      %v3412 = vrot.slane %v3411, 2
      %v3413 = vadd.f32 %v3411, %v3412
      %v3414 = vrot.slane %v3413, 1
      %v3415 = vadd.f32 %v3413, %v3414
      %v3416 = vmul.f32 %v2619, %v2619
      %v3417 = vmul.f32 %v2620, %v2620
      %v3418 = vmul.f32 %v2621, %v2621
      %v3419 = vmul.f32 %v2622, %v2622
      %v3420 = vmul.f32 %v2623, %v2623
      %v3421 = vmul.f32 %v2624, %v2624
      %v3422 = vmul.f32 %v2625, %v2625
      %v3423 = vmul.f32 %v2626, %v2626
      %v3424 = vmul.f32 %v2627, %v2627
      %v3425 = vmul.f32 %v2628, %v2628
      %v3426 = vmul.f32 %v2629, %v2629
      %v3427 = vmul.f32 %v2630, %v2630
      %v3428 = vmul.f32 %v2631, %v2631
      %v3429 = vmul.f32 %v2632, %v2632
      %v3430 = vmul.f32 %v2633, %v2633
      %v3431 = vmul.f32 %v2634, %v2634
      %v3432 = vmul.f32 %v2635, %v2635
      %v3433 = vmul.f32 %v2636, %v2636
      %v3434 = vmul.f32 %v2637, %v2637
      %v3435 = vmul.f32 %v2638, %v2638
      %v3436 = vmul.f32 %v2639, %v2639
      %v3437 = vmul.f32 %v2640, %v2640
      %v3438 = vmul.f32 %v2641, %v2641
      %v3439 = vmul.f32 %v2642, %v2642
      %v3440 = vmul.f32 %v2643, %v2643
      %v3441 = vmul.f32 %v2644, %v2644
      %v3442 = vmul.f32 %v2645, %v2645
      %v3443 = vmul.f32 %v2646, %v2646
      %v3444 = vmul.f32 %v2647, %v2647
      %v3445 = vmul.f32 %v2648, %v2648
      %v3446 = vmul.f32 %v2649, %v2649
      %v3447 = vmul.f32 %v2650, %v2650
      %v3448 = vmul.f32 %v2651, %v2651
      %v3449 = vmul.f32 %v2652, %v2652
      %v3450 = vmul.f32 %v2653, %v2653
      %v3451 = vmul.f32 %v2654, %v2654
      %v3452 = vmul.f32 %v2655, %v2655
      %v3453 = vmul.f32 %v2656, %v2656
      %v3454 = vmul.f32 %v2657, %v2657
      %v3455 = vmul.f32 %v2658, %v2658
      %v3456 = vmul.f32 %v2659, %v2659
      %v3457 = vmul.f32 %v2660, %v2660
      %v3458 = vmul.f32 %v2661, %v2661
      %v3459 = vmul.f32 %v2662, %v2662
      %v3460 = vmul.f32 %v2663, %v2663
      %v3461 = vmul.f32 %v2664, %v2664
      %v3462 = vmul.f32 %v2665, %v2665
      %v3463 = vmul.f32 %v2666, %v2666
      %v3464 = vmul.f32 %v2667, %v2667
      %v3465 = vmul.f32 %v2668, %v2668
      %v3466 = vmul.f32 %v2669, %v2669
      %v3467 = vmul.f32 %v2670, %v2670
      %v3468 = vmul.f32 %v2671, %v2671
      %v3469 = vmul.f32 %v2672, %v2672
      %v3470 = vmul.f32 %v2673, %v2673
      %v3471 = vmul.f32 %v2674, %v2674
      %v3472 = vmul.f32 %v2675, %v2675
      %v3473 = vmul.f32 %v2676, %v2676
      %v3474 = vmul.f32 %v2677, %v2677
      %v3475 = vmul.f32 %v2678, %v2678
      %v3476 = vmul.f32 %v2679, %v2679
      %v3477 = vmul.f32 %v2680, %v2680
      %v3478 = vmul.f32 %v2681, %v2681
      %v3479 = vmul.f32 %v2682, %v2682
      %v3480 = vmul.f32 %v2683, %v2683
      %v3481 = vmul.f32 %v2684, %v2684
      %v3482 = vmul.f32 %v2685, %v2685
      %v3483 = vmul.f32 %v2686, %v2686
      %v3484 = vmul.f32 %v2687, %v2687
      %v3485 = vmul.f32 %v2688, %v2688
      %v3486 = vmul.f32 %v2689, %v2689
      %v3487 = vmul.f32 %v2690, %v2690
      %v3488 = vmul.f32 %v2691, %v2691
      %v3489 = vmul.f32 %v2692, %v2692
      %v3490 = vmul.f32 %v2693, %v2693
      %v3491 = vmul.f32 %v2694, %v2694
      %v3492 = vmul.f32 %v2695, %v2695
      %v3493 = vmul.f32 %v2696, %v2696
      %v3494 = vmul.f32 %v2697, %v2697
      %v3495 = vmul.f32 %v2698, %v2698
      %v3496 = vmul.f32 %v2699, %v2699
      %v3497 = vmul.f32 %v2700, %v2700
      %v3498 = vmul.f32 %v2701, %v2701
      %v3499 = vmul.f32 %v2702, %v2702
      %v3500 = vmul.f32 %v2703, %v2703
      %v3501 = vmul.f32 %v2704, %v2704
      %v3502 = vmul.f32 %v2705, %v2705
      %v3503 = vmul.f32 %v2706, %v2706
      %v3504 = vmul.f32 %v2707, %v2707
      %v3505 = vmul.f32 %v2708, %v2708
      %v3506 = vmul.f32 %v2709, %v2709
      %v3507 = vmul.f32 %v2710, %v2710
      %v3508 = vmul.f32 %v2711, %v2711
      %v3509 = vmul.f32 %v2712, %v2712
      %v3510 = vmul.f32 %v2713, %v2713
      %v3511 = vmul.f32 %v2714, %v2714
      %v3512 = vmul.f32 %v2715, %v2715
      %v3513 = vmul.f32 %v2716, %v2716
      %v3514 = vmul.f32 %v2717, %v2717
      %v3515 = vmul.f32 %v2718, %v2718
      %v3516 = vmul.f32 %v2719, %v2719
      %v3517 = vmul.f32 %v2720, %v2720
      %v3518 = vmul.f32 %v2721, %v2721
      %v3519 = vmul.f32 %v2722, %v2722
      %v3520 = vmul.f32 %v2723, %v2723
      %v3521 = vmul.f32 %v2724, %v2724
      %v3522 = vmul.f32 %v2725, %v2725
      %v3523 = vmul.f32 %v2726, %v2726
      %v3524 = vmul.f32 %v2727, %v2727
      %v3525 = vmul.f32 %v2728, %v2728
      %v3526 = vmul.f32 %v2729, %v2729
      %v3527 = vmul.f32 %v2730, %v2730
      %v3528 = vmul.f32 %v2731, %v2731
      %v3529 = vmul.f32 %v2732, %v2732
      %v3530 = vmul.f32 %v2733, %v2733
      %v3531 = vmul.f32 %v2734, %v2734
      %v3532 = vmul.f32 %v2735, %v2735
      %v3533 = vmul.f32 %v2736, %v2736
      %v3534 = vmul.f32 %v2737, %v2737
      %v3535 = vmul.f32 %v2738, %v2738
      %v3536 = vmul.f32 %v2739, %v2739
      %v3537 = vmul.f32 %v2740, %v2740
      %v3538 = vmul.f32 %v2741, %v2741
      %v3539 = vmul.f32 %v2742, %v2742
      %v3540 = vmul.f32 %v2743, %v2743
      %v3541 = vmul.f32 %v2744, %v2744
      %v3542 = vmul.f32 %v2745, %v2745
      %v3543 = vmul.f32 %v2746, %v2746
      %v3544 = vmul.f32 %v2747, %v2747
      %v3545 = vmul.f32 %v2748, %v2748
      %v3546 = vmul.f32 %v2749, %v2749
      %v3547 = vmul.f32 %v2750, %v2750
      %v3548 = vsel %vm2883, %v3416, 0.0
      %v3549 = vsel %vm2884, %v3417, 0.0
      %v3550 = vsel %vm2885, %v3418, 0.0
      %v3551 = vsel %vm2886, %v3419, 0.0
      %v3552 = vsel %vm2887, %v3420, 0.0
      %v3553 = vsel %vm2888, %v3421, 0.0
      %v3554 = vsel %vm2889, %v3422, 0.0
      %v3555 = vsel %vm2890, %v3423, 0.0
      %v3556 = vsel %vm2891, %v3424, 0.0
      %v3557 = vsel %vm2892, %v3425, 0.0
      %v3558 = vsel %vm2893, %v3426, 0.0
      %v3559 = vsel %vm2894, %v3427, 0.0
      %v3560 = vsel %vm2895, %v3428, 0.0
      %v3561 = vsel %vm2896, %v3429, 0.0
      %v3562 = vsel %vm2897, %v3430, 0.0
      %v3563 = vsel %vm2898, %v3431, 0.0
      %v3564 = vsel %vm2899, %v3432, 0.0
      %v3565 = vsel %vm2900, %v3433, 0.0
      %v3566 = vsel %vm2901, %v3434, 0.0
      %v3567 = vsel %vm2902, %v3435, 0.0
      %v3568 = vsel %vm2903, %v3436, 0.0
      %v3569 = vsel %vm2904, %v3437, 0.0
      %v3570 = vsel %vm2905, %v3438, 0.0
      %v3571 = vsel %vm2906, %v3439, 0.0
      %v3572 = vsel %vm2907, %v3440, 0.0
      %v3573 = vsel %vm2908, %v3441, 0.0
      %v3574 = vsel %vm2909, %v3442, 0.0
      %v3575 = vsel %vm2910, %v3443, 0.0
      %v3576 = vsel %vm2911, %v3444, 0.0
      %v3577 = vsel %vm2912, %v3445, 0.0
      %v3578 = vsel %vm2913, %v3446, 0.0
      %v3579 = vsel %vm2914, %v3447, 0.0
      %v3580 = vsel %vm2915, %v3448, 0.0
      %v3581 = vsel %vm2916, %v3449, 0.0
      %v3582 = vsel %vm2917, %v3450, 0.0
      %v3583 = vsel %vm2918, %v3451, 0.0
      %v3584 = vsel %vm2919, %v3452, 0.0
      %v3585 = vsel %vm2920, %v3453, 0.0
      %v3586 = vsel %vm2921, %v3454, 0.0
      %v3587 = vsel %vm2922, %v3455, 0.0
      %v3588 = vsel %vm2923, %v3456, 0.0
      %v3589 = vsel %vm2924, %v3457, 0.0
      %v3590 = vsel %vm2925, %v3458, 0.0
      %v3591 = vsel %vm2926, %v3459, 0.0
      %v3592 = vsel %vm2927, %v3460, 0.0
      %v3593 = vsel %vm2928, %v3461, 0.0
      %v3594 = vsel %vm2929, %v3462, 0.0
      %v3595 = vsel %vm2930, %v3463, 0.0
      %v3596 = vsel %vm2931, %v3464, 0.0
      %v3597 = vsel %vm2932, %v3465, 0.0
      %v3598 = vsel %vm2933, %v3466, 0.0
      %v3599 = vsel %vm2934, %v3467, 0.0
      %v3600 = vsel %vm2935, %v3468, 0.0
      %v3601 = vsel %vm2936, %v3469, 0.0
      %v3602 = vsel %vm2937, %v3470, 0.0
      %v3603 = vsel %vm2938, %v3471, 0.0
      %v3604 = vsel %vm2939, %v3472, 0.0
      %v3605 = vsel %vm2940, %v3473, 0.0
      %v3606 = vsel %vm2941, %v3474, 0.0
      %v3607 = vsel %vm2942, %v3475, 0.0
      %v3608 = vsel %vm2943, %v3476, 0.0
      %v3609 = vsel %vm2944, %v3477, 0.0
      %v3610 = vsel %vm2945, %v3478, 0.0
      %v3611 = vsel %vm2946, %v3479, 0.0
      %v3612 = vsel %vm2947, %v3480, 0.0
      %v3613 = vsel %vm2948, %v3481, 0.0
      %v3614 = vsel %vm2949, %v3482, 0.0
      %v3615 = vsel %vm2950, %v3483, 0.0
      %v3616 = vsel %vm2951, %v3484, 0.0
      %v3617 = vsel %vm2952, %v3485, 0.0
      %v3618 = vsel %vm2953, %v3486, 0.0
      %v3619 = vsel %vm2954, %v3487, 0.0
      %v3620 = vsel %vm2955, %v3488, 0.0
      %v3621 = vsel %vm2956, %v3489, 0.0
      %v3622 = vsel %vm2957, %v3490, 0.0
      %v3623 = vsel %vm2958, %v3491, 0.0
      %v3624 = vsel %vm2959, %v3492, 0.0
      %v3625 = vsel %vm2960, %v3493, 0.0
      %v3626 = vsel %vm2961, %v3494, 0.0
      %v3627 = vsel %vm2962, %v3495, 0.0
      %v3628 = vsel %vm2963, %v3496, 0.0
      %v3629 = vsel %vm2964, %v3497, 0.0
      %v3630 = vsel %vm2965, %v3498, 0.0
      %v3631 = vsel %vm2966, %v3499, 0.0
      %v3632 = vsel %vm2967, %v3500, 0.0
      %v3633 = vsel %vm2968, %v3501, 0.0
      %v3634 = vsel %vm2969, %v3502, 0.0
      %v3635 = vsel %vm2970, %v3503, 0.0
      %v3636 = vsel %vm2971, %v3504, 0.0
      %v3637 = vsel %vm2972, %v3505, 0.0
      %v3638 = vsel %vm2973, %v3506, 0.0
      %v3639 = vsel %vm2974, %v3507, 0.0
      %v3640 = vsel %vm2975, %v3508, 0.0
      %v3641 = vsel %vm2976, %v3509, 0.0
      %v3642 = vsel %vm2977, %v3510, 0.0
      %v3643 = vsel %vm2978, %v3511, 0.0
      %v3644 = vsel %vm2979, %v3512, 0.0
      %v3645 = vsel %vm2980, %v3513, 0.0
      %v3646 = vsel %vm2981, %v3514, 0.0
      %v3647 = vsel %vm2982, %v3515, 0.0
      %v3648 = vsel %vm2983, %v3516, 0.0
      %v3649 = vsel %vm2984, %v3517, 0.0
      %v3650 = vsel %vm2985, %v3518, 0.0
      %v3651 = vsel %vm2986, %v3519, 0.0
      %v3652 = vsel %vm2987, %v3520, 0.0
      %v3653 = vsel %vm2988, %v3521, 0.0
      %v3654 = vsel %vm2989, %v3522, 0.0
      %v3655 = vsel %vm2990, %v3523, 0.0
      %v3656 = vsel %vm2991, %v3524, 0.0
      %v3657 = vsel %vm2992, %v3525, 0.0
      %v3658 = vsel %vm2993, %v3526, 0.0
      %v3659 = vsel %vm2994, %v3527, 0.0
      %v3660 = vsel %vm2995, %v3528, 0.0
      %v3661 = vsel %vm2996, %v3529, 0.0
      %v3662 = vsel %vm2997, %v3530, 0.0
      %v3663 = vsel %vm2998, %v3531, 0.0
      %v3664 = vsel %vm2999, %v3532, 0.0
      %v3665 = vsel %vm3000, %v3533, 0.0
      %v3666 = vsel %vm3001, %v3534, 0.0
      %v3667 = vsel %vm3002, %v3535, 0.0
      %v3668 = vsel %vm3003, %v3536, 0.0
      %v3669 = vsel %vm3004, %v3537, 0.0
      %v3670 = vsel %vm3005, %v3538, 0.0
      %v3671 = vsel %vm3006, %v3539, 0.0
      %v3672 = vsel %vm3007, %v3540, 0.0
      %v3673 = vsel %vm3008, %v3541, 0.0
      %v3674 = vsel %vm3009, %v3542, 0.0
      %v3675 = vsel %vm3010, %v3543, 0.0
      %v3676 = vsel %vm3011, %v3544, 0.0
      %v3677 = vsel %vm3012, %v3545, 0.0
      %v3678 = vsel %vm3013, %v3546, 0.0
      %v3679 = vsel %vm3014, %v3547, 0.0
      %v3680 = vsel %vm2486, %v3548, 0.0
      %v3681 = vsel %vm2486, %v3549, 0.0
      %v3682 = vadd.f32 %v3680, %v3681
      %v3683 = vsel %vm2486, %v3550, 0.0
      %v3684 = vadd.f32 %v3682, %v3683
      %v3685 = vsel %vm2486, %v3551, 0.0
      %v3686 = vadd.f32 %v3684, %v3685
      %v3687 = vsel %vm2486, %v3552, 0.0
      %v3688 = vadd.f32 %v3686, %v3687
      %v3689 = vsel %vm2486, %v3553, 0.0
      %v3690 = vadd.f32 %v3688, %v3689
      %v3691 = vsel %vm2486, %v3554, 0.0
      %v3692 = vadd.f32 %v3690, %v3691
      %v3693 = vsel %vm2486, %v3555, 0.0
      %v3694 = vadd.f32 %v3692, %v3693
      %v3695 = vsel %vm2486, %v3556, 0.0
      %v3696 = vadd.f32 %v3694, %v3695
      %v3697 = vsel %vm2486, %v3557, 0.0
      %v3698 = vadd.f32 %v3696, %v3697
      %v3699 = vsel %vm2486, %v3558, 0.0
      %v3700 = vadd.f32 %v3698, %v3699
      %v3701 = vsel %vm2486, %v3559, 0.0
      %v3702 = vadd.f32 %v3700, %v3701
      %v3703 = vsel %vm2486, %v3560, 0.0
      %v3704 = vadd.f32 %v3702, %v3703
      %v3705 = vsel %vm2486, %v3561, 0.0
      %v3706 = vadd.f32 %v3704, %v3705
      %v3707 = vsel %vm2486, %v3562, 0.0
      %v3708 = vadd.f32 %v3706, %v3707
      %v3709 = vsel %vm2486, %v3563, 0.0
      %v3710 = vadd.f32 %v3708, %v3709
      %v3711 = vsel %vm2486, %v3564, 0.0
      %v3712 = vadd.f32 %v3710, %v3711
      %v3713 = vsel %vm2486, %v3565, 0.0
      %v3714 = vadd.f32 %v3712, %v3713
      %v3715 = vsel %vm2486, %v3566, 0.0
      %v3716 = vadd.f32 %v3714, %v3715
      %v3717 = vsel %vm2486, %v3567, 0.0
      %v3718 = vadd.f32 %v3716, %v3717
      %v3719 = vsel %vm2486, %v3568, 0.0
      %v3720 = vadd.f32 %v3718, %v3719
      %v3721 = vsel %vm2486, %v3569, 0.0
      %v3722 = vadd.f32 %v3720, %v3721
      %v3723 = vsel %vm2486, %v3570, 0.0
      %v3724 = vadd.f32 %v3722, %v3723
      %v3725 = vsel %vm2486, %v3571, 0.0
      %v3726 = vadd.f32 %v3724, %v3725
      %v3727 = vsel %vm2486, %v3572, 0.0
      %v3728 = vadd.f32 %v3726, %v3727
      %v3729 = vsel %vm2486, %v3573, 0.0
      %v3730 = vadd.f32 %v3728, %v3729
      %v3731 = vsel %vm2486, %v3574, 0.0
      %v3732 = vadd.f32 %v3730, %v3731
      %v3733 = vsel %vm2486, %v3575, 0.0
      %v3734 = vadd.f32 %v3732, %v3733
      %v3735 = vsel %vm2486, %v3576, 0.0
      %v3736 = vadd.f32 %v3734, %v3735
      %v3737 = vsel %vm2486, %v3577, 0.0
      %v3738 = vadd.f32 %v3736, %v3737
      %v3739 = vsel %vm2486, %v3578, 0.0
      %v3740 = vadd.f32 %v3738, %v3739
      %v3741 = vsel %vm2486, %v3579, 0.0
      %v3742 = vadd.f32 %v3740, %v3741
      %v3743 = vsel %vm2486, %v3580, 0.0
      %v3744 = vadd.f32 %v3742, %v3743
      %v3745 = vsel %vm2486, %v3581, 0.0
      %v3746 = vadd.f32 %v3744, %v3745
      %v3747 = vsel %vm2486, %v3582, 0.0
      %v3748 = vadd.f32 %v3746, %v3747
      %v3749 = vsel %vm2486, %v3583, 0.0
      %v3750 = vadd.f32 %v3748, %v3749
      %v3751 = vsel %vm2486, %v3584, 0.0
      %v3752 = vadd.f32 %v3750, %v3751
      %v3753 = vsel %vm2486, %v3585, 0.0
      %v3754 = vadd.f32 %v3752, %v3753
      %v3755 = vsel %vm2486, %v3586, 0.0
      %v3756 = vadd.f32 %v3754, %v3755
      %v3757 = vsel %vm2486, %v3587, 0.0
      %v3758 = vadd.f32 %v3756, %v3757
      %v3759 = vsel %vm2486, %v3588, 0.0
      %v3760 = vadd.f32 %v3758, %v3759
      %v3761 = vsel %vm2486, %v3589, 0.0
      %v3762 = vadd.f32 %v3760, %v3761
      %v3763 = vsel %vm2486, %v3590, 0.0
      %v3764 = vadd.f32 %v3762, %v3763
      %v3765 = vsel %vm2486, %v3591, 0.0
      %v3766 = vadd.f32 %v3764, %v3765
      %v3767 = vsel %vm2486, %v3592, 0.0
      %v3768 = vadd.f32 %v3766, %v3767
      %v3769 = vsel %vm2486, %v3593, 0.0
      %v3770 = vadd.f32 %v3768, %v3769
      %v3771 = vsel %vm2486, %v3594, 0.0
      %v3772 = vadd.f32 %v3770, %v3771
      %v3773 = vsel %vm2486, %v3595, 0.0
      %v3774 = vadd.f32 %v3772, %v3773
      %v3775 = vsel %vm2486, %v3596, 0.0
      %v3776 = vadd.f32 %v3774, %v3775
      %v3777 = vsel %vm2486, %v3597, 0.0
      %v3778 = vadd.f32 %v3776, %v3777
      %v3779 = vsel %vm2486, %v3598, 0.0
      %v3780 = vadd.f32 %v3778, %v3779
      %v3781 = vsel %vm2486, %v3599, 0.0
      %v3782 = vadd.f32 %v3780, %v3781
      %v3783 = vsel %vm2486, %v3600, 0.0
      %v3784 = vadd.f32 %v3782, %v3783
      %v3785 = vsel %vm2486, %v3601, 0.0
      %v3786 = vadd.f32 %v3784, %v3785
      %v3787 = vsel %vm2486, %v3602, 0.0
      %v3788 = vadd.f32 %v3786, %v3787
      %v3789 = vsel %vm2486, %v3603, 0.0
      %v3790 = vadd.f32 %v3788, %v3789
      %v3791 = vsel %vm2486, %v3604, 0.0
      %v3792 = vadd.f32 %v3790, %v3791
      %v3793 = vsel %vm2486, %v3605, 0.0
      %v3794 = vadd.f32 %v3792, %v3793
      %v3795 = vsel %vm2486, %v3606, 0.0
      %v3796 = vadd.f32 %v3794, %v3795
      %v3797 = vsel %vm2486, %v3607, 0.0
      %v3798 = vadd.f32 %v3796, %v3797
      %v3799 = vsel %vm2486, %v3608, 0.0
      %v3800 = vadd.f32 %v3798, %v3799
      %v3801 = vsel %vm2486, %v3609, 0.0
      %v3802 = vadd.f32 %v3800, %v3801
      %v3803 = vsel %vm2486, %v3610, 0.0
      %v3804 = vadd.f32 %v3802, %v3803
      %v3805 = vsel %vm2486, %v3611, 0.0
      %v3806 = vadd.f32 %v3804, %v3805
      %v3807 = vsel %vm2486, %v3612, 0.0
      %v3808 = vadd.f32 %v3806, %v3807
      %v3809 = vsel %vm2486, %v3613, 0.0
      %v3810 = vadd.f32 %v3808, %v3809
      %v3811 = vsel %vm2486, %v3614, 0.0
      %v3812 = vadd.f32 %v3810, %v3811
      %v3813 = vsel %vm2486, %v3615, 0.0
      %v3814 = vadd.f32 %v3812, %v3813
      %v3815 = vsel %vm2486, %v3616, 0.0
      %v3816 = vadd.f32 %v3814, %v3815
      %v3817 = vsel %vm2486, %v3617, 0.0
      %v3818 = vadd.f32 %v3816, %v3817
      %v3819 = vsel %vm2486, %v3618, 0.0
      %v3820 = vadd.f32 %v3818, %v3819
      %v3821 = vsel %vm2486, %v3619, 0.0
      %v3822 = vadd.f32 %v3820, %v3821
      %v3823 = vsel %vm2486, %v3620, 0.0
      %v3824 = vadd.f32 %v3822, %v3823
      %v3825 = vsel %vm2486, %v3621, 0.0
      %v3826 = vadd.f32 %v3824, %v3825
      %v3827 = vsel %vm2486, %v3622, 0.0
      %v3828 = vadd.f32 %v3826, %v3827
      %v3829 = vsel %vm2486, %v3623, 0.0
      %v3830 = vadd.f32 %v3828, %v3829
      %v3831 = vsel %vm2486, %v3624, 0.0
      %v3832 = vadd.f32 %v3830, %v3831
      %v3833 = vsel %vm2486, %v3625, 0.0
      %v3834 = vadd.f32 %v3832, %v3833
      %v3835 = vsel %vm2486, %v3626, 0.0
      %v3836 = vadd.f32 %v3834, %v3835
      %v3837 = vsel %vm2486, %v3627, 0.0
      %v3838 = vadd.f32 %v3836, %v3837
      %v3839 = vsel %vm2486, %v3628, 0.0
      %v3840 = vadd.f32 %v3838, %v3839
      %v3841 = vsel %vm2486, %v3629, 0.0
      %v3842 = vadd.f32 %v3840, %v3841
      %v3843 = vsel %vm2486, %v3630, 0.0
      %v3844 = vadd.f32 %v3842, %v3843
      %v3845 = vsel %vm2486, %v3631, 0.0
      %v3846 = vadd.f32 %v3844, %v3845
      %v3847 = vsel %vm2486, %v3632, 0.0
      %v3848 = vadd.f32 %v3846, %v3847
      %v3849 = vsel %vm2486, %v3633, 0.0
      %v3850 = vadd.f32 %v3848, %v3849
      %v3851 = vsel %vm2486, %v3634, 0.0
      %v3852 = vadd.f32 %v3850, %v3851
      %v3853 = vsel %vm2486, %v3635, 0.0
      %v3854 = vadd.f32 %v3852, %v3853
      %v3855 = vsel %vm2486, %v3636, 0.0
      %v3856 = vadd.f32 %v3854, %v3855
      %v3857 = vsel %vm2486, %v3637, 0.0
      %v3858 = vadd.f32 %v3856, %v3857
      %v3859 = vsel %vm2486, %v3638, 0.0
      %v3860 = vadd.f32 %v3858, %v3859
      %v3861 = vsel %vm2486, %v3639, 0.0
      %v3862 = vadd.f32 %v3860, %v3861
      %v3863 = vsel %vm2486, %v3640, 0.0
      %v3864 = vadd.f32 %v3862, %v3863
      %v3865 = vsel %vm2486, %v3641, 0.0
      %v3866 = vadd.f32 %v3864, %v3865
      %v3867 = vsel %vm2486, %v3642, 0.0
      %v3868 = vadd.f32 %v3866, %v3867
      %v3869 = vsel %vm2486, %v3643, 0.0
      %v3870 = vadd.f32 %v3868, %v3869
      %v3871 = vsel %vm2486, %v3644, 0.0
      %v3872 = vadd.f32 %v3870, %v3871
      %v3873 = vsel %vm2486, %v3645, 0.0
      %v3874 = vadd.f32 %v3872, %v3873
      %v3875 = vsel %vm2486, %v3646, 0.0
      %v3876 = vadd.f32 %v3874, %v3875
      %v3877 = vsel %vm2486, %v3647, 0.0
      %v3878 = vadd.f32 %v3876, %v3877
      %v3879 = vsel %vm2486, %v3648, 0.0
      %v3880 = vadd.f32 %v3878, %v3879
      %v3881 = vsel %vm2486, %v3649, 0.0
      %v3882 = vadd.f32 %v3880, %v3881
      %v3883 = vsel %vm2486, %v3650, 0.0
      %v3884 = vadd.f32 %v3882, %v3883
      %v3885 = vsel %vm2486, %v3651, 0.0
      %v3886 = vadd.f32 %v3884, %v3885
      %v3887 = vsel %vm2486, %v3652, 0.0
      %v3888 = vadd.f32 %v3886, %v3887
      %v3889 = vsel %vm2486, %v3653, 0.0
      %v3890 = vadd.f32 %v3888, %v3889
      %v3891 = vsel %vm2486, %v3654, 0.0
      %v3892 = vadd.f32 %v3890, %v3891
      %v3893 = vsel %vm2486, %v3655, 0.0
      %v3894 = vadd.f32 %v3892, %v3893
      %v3895 = vsel %vm2486, %v3656, 0.0
      %v3896 = vadd.f32 %v3894, %v3895
      %v3897 = vsel %vm2486, %v3657, 0.0
      %v3898 = vadd.f32 %v3896, %v3897
      %v3899 = vsel %vm2486, %v3658, 0.0
      %v3900 = vadd.f32 %v3898, %v3899
      %v3901 = vsel %vm2486, %v3659, 0.0
      %v3902 = vadd.f32 %v3900, %v3901
      %v3903 = vsel %vm2486, %v3660, 0.0
      %v3904 = vadd.f32 %v3902, %v3903
      %v3905 = vsel %vm2486, %v3661, 0.0
      %v3906 = vadd.f32 %v3904, %v3905
      %v3907 = vsel %vm2486, %v3662, 0.0
      %v3908 = vadd.f32 %v3906, %v3907
      %v3909 = vsel %vm2486, %v3663, 0.0
      %v3910 = vadd.f32 %v3908, %v3909
      %v3911 = vsel %vm2486, %v3664, 0.0
      %v3912 = vadd.f32 %v3910, %v3911
      %v3913 = vsel %vm2486, %v3665, 0.0
      %v3914 = vadd.f32 %v3912, %v3913
      %v3915 = vsel %vm2486, %v3666, 0.0
      %v3916 = vadd.f32 %v3914, %v3915
      %v3917 = vsel %vm2486, %v3667, 0.0
      %v3918 = vadd.f32 %v3916, %v3917
      %v3919 = vsel %vm2486, %v3668, 0.0
      %v3920 = vadd.f32 %v3918, %v3919
      %v3921 = vsel %vm2486, %v3669, 0.0
      %v3922 = vadd.f32 %v3920, %v3921
      %v3923 = vsel %vm2486, %v3670, 0.0
      %v3924 = vadd.f32 %v3922, %v3923
      %v3925 = vsel %vm2486, %v3671, 0.0
      %v3926 = vadd.f32 %v3924, %v3925
      %v3927 = vsel %vm2486, %v3672, 0.0
      %v3928 = vadd.f32 %v3926, %v3927
      %v3929 = vsel %vm2486, %v3673, 0.0
      %v3930 = vadd.f32 %v3928, %v3929
      %v3931 = vsel %vm2486, %v3674, 0.0
      %v3932 = vadd.f32 %v3930, %v3931
      %v3933 = vsel %vm2486, %v3675, 0.0
      %v3934 = vadd.f32 %v3932, %v3933
      %v3935 = vsel %vm2486, %v3676, 0.0
      %v3936 = vadd.f32 %v3934, %v3935
      %v3937 = vsel %vm2486, %v3677, 0.0
      %v3938 = vadd.f32 %v3936, %v3937
      %v3939 = vsel %vm2486, %v3678, 0.0
      %v3940 = vadd.f32 %v3938, %v3939
      %v3941 = vsel %vm2486, %v3679, 0.0
      %v3942 = vadd.f32 %v3940, %v3941
      %v3943 = vrot.slane %v3942, 4
      %v3944 = vadd.f32 %v3942, %v3943
      %v3945 = vrot.slane %v3944, 2
      %v3946 = vadd.f32 %v3944, %v3945
      %v3947 = vrot.slane %v3946, 1
      %v3948 = vadd.f32 %v3946, %v3947
      %vm3949 = vcmask 1040384
      %v3950 = vsel %vm3949, %v3415, %v3948
      %vm3951 = vcmask 58368
      %3952 = vst.msk [vmem:[%s181] sm:$0x3] %vm3951, %v3950
      %v3953 = vpack.c.bf16 %v2620, %v2619
      %v3954 = vpack.c.bf16 %v2622, %v2621
      %v3955 = vpack.c.bf16 %v2624, %v2623
      %v3956 = vpack.c.bf16 %v2626, %v2625
      %v3957 = vpack.c.bf16 %v2628, %v2627
      %v3958 = vpack.c.bf16 %v2630, %v2629
      %v3959 = vpack.c.bf16 %v2632, %v2631
      %v3960 = vpack.c.bf16 %v2634, %v2633
      %v3961 = vpack.c.bf16 %v2636, %v2635
      %v3962 = vpack.c.bf16 %v2638, %v2637
      %v3963 = vpack.c.bf16 %v2640, %v2639
      %v3964 = vpack.c.bf16 %v2642, %v2641
      %v3965 = vpack.c.bf16 %v2644, %v2643
      %v3966 = vpack.c.bf16 %v2646, %v2645
      %v3967 = vpack.c.bf16 %v2648, %v2647
      %v3968 = vpack.c.bf16 %v2650, %v2649
      %v3969 = vpack.c.bf16 %v2652, %v2651
      %v3970 = vpack.c.bf16 %v2654, %v2653
      %v3971 = vpack.c.bf16 %v2656, %v2655
      %v3972 = vpack.c.bf16 %v2658, %v2657
      %v3973 = vpack.c.bf16 %v2660, %v2659
      %v3974 = vpack.c.bf16 %v2662, %v2661
      %v3975 = vpack.c.bf16 %v2664, %v2663
      %v3976 = vpack.c.bf16 %v2666, %v2665
      %v3977 = vpack.c.bf16 %v2668, %v2667
      %v3978 = vpack.c.bf16 %v2670, %v2669
      %v3979 = vpack.c.bf16 %v2672, %v2671
      %v3980 = vpack.c.bf16 %v2674, %v2673
      %v3981 = vpack.c.bf16 %v2676, %v2675
      %v3982 = vpack.c.bf16 %v2678, %v2677
      %v3983 = vpack.c.bf16 %v2680, %v2679
      %v3984 = vpack.c.bf16 %v2682, %v2681
      %v3985 = vpack.c.bf16 %v2684, %v2683
      %v3986 = vpack.c.bf16 %v2686, %v2685
      %v3987 = vpack.c.bf16 %v2688, %v2687
      %v3988 = vpack.c.bf16 %v2690, %v2689
      %v3989 = vpack.c.bf16 %v2692, %v2691
      %v3990 = vpack.c.bf16 %v2694, %v2693
      %v3991 = vpack.c.bf16 %v2696, %v2695
      %v3992 = vpack.c.bf16 %v2698, %v2697
      %v3993 = vpack.c.bf16 %v2700, %v2699
      %v3994 = vpack.c.bf16 %v2702, %v2701
      %v3995 = vpack.c.bf16 %v2704, %v2703
      %v3996 = vpack.c.bf16 %v2706, %v2705
      %v3997 = vpack.c.bf16 %v2708, %v2707
      %v3998 = vpack.c.bf16 %v2710, %v2709
      %v3999 = vpack.c.bf16 %v2712, %v2711
      %v4000 = vpack.c.bf16 %v2714, %v2713
      %v4001 = vpack.c.bf16 %v2716, %v2715
      %v4002 = vpack.c.bf16 %v2718, %v2717
      %v4003 = vpack.c.bf16 %v2720, %v2719
      %v4004 = vpack.c.bf16 %v2722, %v2721
      %v4005 = vpack.c.bf16 %v2724, %v2723
      %v4006 = vpack.c.bf16 %v2726, %v2725
      %v4007 = vpack.c.bf16 %v2728, %v2727
      %v4008 = vpack.c.bf16 %v2730, %v2729
      %v4009 = vpack.c.bf16 %v2732, %v2731
      %v4010 = vpack.c.bf16 %v2734, %v2733
      %v4011 = vpack.c.bf16 %v2736, %v2735
      %v4012 = vpack.c.bf16 %v2738, %v2737
      %v4013 = vpack.c.bf16 %v2740, %v2739
      %v4014 = vpack.c.bf16 %v2742, %v2741
      %v4015 = vpack.c.bf16 %v2744, %v2743
      %v4016 = vpack.c.bf16 %v2746, %v2745
      %v4017 = vpack.c.bf16 %v2748, %v2747
      %v4018 = vpack.c.bf16 %v2750, %v2749
      %v4085 = vunpack.c.l.b16 %v3953
      %v4086 = vunpack.c.h.b16 %v3953
      %v4087 = vunpack.c.l.b16 %v3954
      %v4088 = vunpack.c.h.b16 %v3954
      %v4089 = vunpack.c.l.b16 %v3955
      %v4090 = vunpack.c.h.b16 %v3955
      %v4091 = vunpack.c.l.b16 %v3956
      %v4092 = vunpack.c.h.b16 %v3956
      %v4093 = vunpack.c.l.b16 %v3957
      %v4094 = vunpack.c.h.b16 %v3957
      %v4095 = vunpack.c.l.b16 %v3958
      %v4096 = vunpack.c.h.b16 %v3958
      %v4097 = vunpack.c.l.b16 %v3959
      %v4098 = vunpack.c.h.b16 %v3959
      %v4099 = vunpack.c.l.b16 %v3960
      %v4100 = vunpack.c.h.b16 %v3960
      %v4101 = vunpack.c.l.b16 %v3961
      %v4102 = vunpack.c.h.b16 %v3961
      %v4103 = vunpack.c.l.b16 %v3962
      %v4104 = vunpack.c.h.b16 %v3962
      %v4105 = vunpack.c.l.b16 %v3963
      %v4106 = vunpack.c.h.b16 %v3963
      %v4107 = vunpack.c.l.b16 %v3964
      %v4108 = vunpack.c.h.b16 %v3964
      %v4109 = vunpack.c.l.b16 %v3965
      %v4110 = vunpack.c.h.b16 %v3965
      %v4111 = vunpack.c.l.b16 %v3966
      %v4112 = vunpack.c.h.b16 %v3966
      %v4113 = vunpack.c.l.b16 %v3967
      %v4114 = vunpack.c.h.b16 %v3967
      %v4115 = vunpack.c.l.b16 %v3968
      %v4116 = vunpack.c.h.b16 %v3968
      %v4117 = vunpack.c.l.b16 %v3969
      %v4118 = vunpack.c.h.b16 %v3969
      %v4119 = vunpack.c.l.b16 %v3970
      %v4120 = vunpack.c.h.b16 %v3970
      %v4121 = vunpack.c.l.b16 %v3971
      %v4122 = vunpack.c.h.b16 %v3971
      %v4123 = vunpack.c.l.b16 %v3972
      %v4124 = vunpack.c.h.b16 %v3972
      %v4125 = vunpack.c.l.b16 %v3973
      %v4126 = vunpack.c.h.b16 %v3973
      %v4127 = vunpack.c.l.b16 %v3974
      %v4128 = vunpack.c.h.b16 %v3974
      %v4129 = vunpack.c.l.b16 %v3975
      %v4130 = vunpack.c.h.b16 %v3975
      %v4131 = vunpack.c.l.b16 %v3976
      %v4132 = vunpack.c.h.b16 %v3976
      %v4133 = vunpack.c.l.b16 %v3977
      %v4134 = vunpack.c.h.b16 %v3977
      %v4135 = vunpack.c.l.b16 %v3978
      %v4136 = vunpack.c.h.b16 %v3978
      %v4137 = vunpack.c.l.b16 %v3979
      %v4138 = vunpack.c.h.b16 %v3979
      %v4139 = vunpack.c.l.b16 %v3980
      %v4140 = vunpack.c.h.b16 %v3980
      %v4141 = vunpack.c.l.b16 %v3981
      %v4142 = vunpack.c.h.b16 %v3981
      %v4143 = vunpack.c.l.b16 %v3982
      %v4144 = vunpack.c.h.b16 %v3982
      %v4145 = vunpack.c.l.b16 %v3983
      %v4146 = vunpack.c.h.b16 %v3983
      %v4147 = vunpack.c.l.b16 %v3984
      %v4148 = vunpack.c.h.b16 %v3984
      %v4149 = vunpack.c.l.b16 %v3985
      %v4150 = vunpack.c.h.b16 %v3985
      %v4151 = vunpack.c.l.b16 %v3986
      %v4152 = vunpack.c.h.b16 %v3986
      %v4153 = vunpack.c.l.b16 %v3987
      %v4154 = vunpack.c.h.b16 %v3987
      %v4155 = vunpack.c.l.b16 %v3988
      %v4156 = vunpack.c.h.b16 %v3988
      %v4157 = vunpack.c.l.b16 %v3989
      %v4158 = vunpack.c.h.b16 %v3989
      %v4159 = vunpack.c.l.b16 %v3990
      %v4160 = vunpack.c.h.b16 %v3990
      %v4161 = vunpack.c.l.b16 %v3991
      %v4162 = vunpack.c.h.b16 %v3991
      %v4163 = vunpack.c.l.b16 %v3992
      %v4164 = vunpack.c.h.b16 %v3992
      %v4165 = vunpack.c.l.b16 %v3993
      %v4166 = vunpack.c.h.b16 %v3993
      %v4167 = vunpack.c.l.b16 %v3994
      %v4168 = vunpack.c.h.b16 %v3994
      %v4169 = vunpack.c.l.b16 %v3995
      %v4170 = vunpack.c.h.b16 %v3995
      %v4171 = vunpack.c.l.b16 %v3996
      %v4172 = vunpack.c.h.b16 %v3996
      %v4173 = vunpack.c.l.b16 %v3997
      %v4174 = vunpack.c.h.b16 %v3997
      %v4175 = vunpack.c.l.b16 %v3998
      %v4176 = vunpack.c.h.b16 %v3998
      %v4177 = vunpack.c.l.b16 %v3999
      %v4178 = vunpack.c.h.b16 %v3999
      %v4179 = vunpack.c.l.b16 %v4000
      %v4180 = vunpack.c.h.b16 %v4000
      %v4181 = vunpack.c.l.b16 %v4001
      %v4182 = vunpack.c.h.b16 %v4001
      %v4183 = vunpack.c.l.b16 %v4002
      %v4184 = vunpack.c.h.b16 %v4002
      %v4185 = vunpack.c.l.b16 %v4003
      %v4186 = vunpack.c.h.b16 %v4003
      %v4187 = vunpack.c.l.b16 %v4004
      %v4188 = vunpack.c.h.b16 %v4004
      %v4189 = vunpack.c.l.b16 %v4005
      %v4190 = vunpack.c.h.b16 %v4005
      %v4191 = vunpack.c.l.b16 %v4006
      %v4192 = vunpack.c.h.b16 %v4006
      %v4193 = vunpack.c.l.b16 %v4007
      %v4194 = vunpack.c.h.b16 %v4007
      %v4195 = vunpack.c.l.b16 %v4008
      %v4196 = vunpack.c.h.b16 %v4008
      %v4197 = vunpack.c.l.b16 %v4009
      %v4198 = vunpack.c.h.b16 %v4009
      %v4199 = vunpack.c.l.b16 %v4010
      %v4200 = vunpack.c.h.b16 %v4010
      %v4201 = vunpack.c.l.b16 %v4011
      %v4202 = vunpack.c.h.b16 %v4011
      %v4203 = vunpack.c.l.b16 %v4012
      %v4204 = vunpack.c.h.b16 %v4012
      %v4205 = vunpack.c.l.b16 %v4013
      %v4206 = vunpack.c.h.b16 %v4013
      %v4207 = vunpack.c.l.b16 %v4014
      %v4208 = vunpack.c.h.b16 %v4014
      %v4209 = vunpack.c.l.b16 %v4015
      %v4210 = vunpack.c.h.b16 %v4015
      %v4211 = vunpack.c.l.b16 %v4016
      %v4212 = vunpack.c.h.b16 %v4016
      %v4213 = vunpack.c.l.b16 %v4017
      %v4214 = vunpack.c.h.b16 %v4017
      %v4215 = vunpack.c.l.b16 %v4018
      %v4216 = vunpack.c.h.b16 %v4018
      %v4217 = vpack.c.b16 %v4085, %v4085
      %v4218 = vpack.c.b16 %v4086, %v4086
      %v4219 = vpack.c.b16 %v4087, %v4087
      %v4220 = vpack.c.b16 %v4088, %v4088
      %v4221 = vpack.c.b16 %v4089, %v4089
      %v4222 = vpack.c.b16 %v4090, %v4090
      %v4223 = vpack.c.b16 %v4091, %v4091
      %v4224 = vpack.c.b16 %v4092, %v4092
      %v4225 = vpack.c.b16 %v4093, %v4093
      %v4226 = vpack.c.b16 %v4094, %v4094
      %v4227 = vpack.c.b16 %v4095, %v4095
      %v4228 = vpack.c.b16 %v4096, %v4096
      %v4229 = vpack.c.b16 %v4097, %v4097
      %v4230 = vpack.c.b16 %v4098, %v4098
      %v4231 = vpack.c.b16 %v4099, %v4099
      %v4232 = vpack.c.b16 %v4100, %v4100
      %v4233 = vpack.c.b16 %v4101, %v4101
      %v4234 = vpack.c.b16 %v4102, %v4102
      %v4235 = vpack.c.b16 %v4103, %v4103
      %v4236 = vpack.c.b16 %v4104, %v4104
      %v4237 = vpack.c.b16 %v4105, %v4105
      %v4238 = vpack.c.b16 %v4106, %v4106
      %v4239 = vpack.c.b16 %v4107, %v4107
      %v4240 = vpack.c.b16 %v4108, %v4108
      %v4241 = vpack.c.b16 %v4109, %v4109
      %v4242 = vpack.c.b16 %v4110, %v4110
      %v4243 = vpack.c.b16 %v4111, %v4111
      %v4244 = vpack.c.b16 %v4112, %v4112
      %v4245 = vpack.c.b16 %v4113, %v4113
      %v4246 = vpack.c.b16 %v4114, %v4114
      %v4247 = vpack.c.b16 %v4115, %v4115
      %v4248 = vpack.c.b16 %v4116, %v4116
      %v4249 = vpack.c.b16 %v4117, %v4117
      %v4250 = vpack.c.b16 %v4118, %v4118
      %v4251 = vpack.c.b16 %v4119, %v4119
      %v4252 = vpack.c.b16 %v4120, %v4120
      %v4253 = vpack.c.b16 %v4121, %v4121
      %v4254 = vpack.c.b16 %v4122, %v4122
      %v4255 = vpack.c.b16 %v4123, %v4123
      %v4256 = vpack.c.b16 %v4124, %v4124
      %v4257 = vpack.c.b16 %v4125, %v4125
      %v4258 = vpack.c.b16 %v4126, %v4126
      %v4259 = vpack.c.b16 %v4127, %v4127
      %v4260 = vpack.c.b16 %v4128, %v4128
      %v4261 = vpack.c.b16 %v4129, %v4129
      %v4262 = vpack.c.b16 %v4130, %v4130
      %v4263 = vpack.c.b16 %v4131, %v4131
      %v4264 = vpack.c.b16 %v4132, %v4132
      %v4265 = vpack.c.b16 %v4133, %v4133
      %v4266 = vpack.c.b16 %v4134, %v4134
      %v4267 = vpack.c.b16 %v4135, %v4135
      %v4268 = vpack.c.b16 %v4136, %v4136
      %v4269 = vpack.c.b16 %v4137, %v4137
      %v4270 = vpack.c.b16 %v4138, %v4138
      %v4271 = vpack.c.b16 %v4139, %v4139
      %v4272 = vpack.c.b16 %v4140, %v4140
      %v4273 = vpack.c.b16 %v4141, %v4141
      %v4274 = vpack.c.b16 %v4142, %v4142
      %v4275 = vpack.c.b16 %v4143, %v4143
      %v4276 = vpack.c.b16 %v4144, %v4144
      %v4277 = vpack.c.b16 %v4145, %v4145
      %v4278 = vpack.c.b16 %v4146, %v4146
      %v4279 = vpack.c.b16 %v4147, %v4147
      %v4280 = vpack.c.b16 %v4148, %v4148
      %v4281 = vpack.c.b16 %v4149, %v4149
      %v4282 = vpack.c.b16 %v4150, %v4150
      %v4283 = vpack.c.b16 %v4151, %v4151
      %v4284 = vpack.c.b16 %v4152, %v4152
      %v4285 = vpack.c.b16 %v4153, %v4153
      %v4286 = vpack.c.b16 %v4154, %v4154
      %v4287 = vpack.c.b16 %v4155, %v4155
      %v4288 = vpack.c.b16 %v4156, %v4156
      %v4289 = vpack.c.b16 %v4157, %v4157
      %v4290 = vpack.c.b16 %v4158, %v4158
      %v4291 = vpack.c.b16 %v4159, %v4159
      %v4292 = vpack.c.b16 %v4160, %v4160
      %v4293 = vpack.c.b16 %v4161, %v4161
      %v4294 = vpack.c.b16 %v4162, %v4162
      %v4295 = vpack.c.b16 %v4163, %v4163
      %v4296 = vpack.c.b16 %v4164, %v4164
      %v4297 = vpack.c.b16 %v4165, %v4165
      %v4298 = vpack.c.b16 %v4166, %v4166
      %v4299 = vpack.c.b16 %v4167, %v4167
      %v4300 = vpack.c.b16 %v4168, %v4168
      %v4301 = vpack.c.b16 %v4169, %v4169
      %v4302 = vpack.c.b16 %v4170, %v4170
      %v4303 = vpack.c.b16 %v4171, %v4171
      %v4304 = vpack.c.b16 %v4172, %v4172
      %v4305 = vpack.c.b16 %v4173, %v4173
      %v4306 = vpack.c.b16 %v4174, %v4174
      %v4307 = vpack.c.b16 %v4175, %v4175
      %v4308 = vpack.c.b16 %v4176, %v4176
      %v4309 = vpack.c.b16 %v4177, %v4177
      %v4310 = vpack.c.b16 %v4178, %v4178
      %v4311 = vpack.c.b16 %v4179, %v4179
      %v4312 = vpack.c.b16 %v4180, %v4180
      %v4313 = vpack.c.b16 %v4181, %v4181
      %v4314 = vpack.c.b16 %v4182, %v4182
      %v4315 = vpack.c.b16 %v4183, %v4183
      %v4316 = vpack.c.b16 %v4184, %v4184
      %v4317 = vpack.c.b16 %v4185, %v4185
      %v4318 = vpack.c.b16 %v4186, %v4186
      %v4319 = vpack.c.b16 %v4187, %v4187
      %v4320 = vpack.c.b16 %v4188, %v4188
      %v4321 = vpack.c.b16 %v4189, %v4189
      %v4322 = vpack.c.b16 %v4190, %v4190
      %v4323 = vpack.c.b16 %v4191, %v4191
      %v4324 = vpack.c.b16 %v4192, %v4192
      %v4325 = vpack.c.b16 %v4193, %v4193
      %v4326 = vpack.c.b16 %v4194, %v4194
      %v4327 = vpack.c.b16 %v4195, %v4195
      %v4328 = vpack.c.b16 %v4196, %v4196
      %v4329 = vpack.c.b16 %v4197, %v4197
      %v4330 = vpack.c.b16 %v4198, %v4198
      %v4331 = vpack.c.b16 %v4199, %v4199
      %v4332 = vpack.c.b16 %v4200, %v4200
      %v4333 = vpack.c.b16 %v4201, %v4201
      %v4334 = vpack.c.b16 %v4202, %v4202
      %v4335 = vpack.c.b16 %v4203, %v4203
      %v4336 = vpack.c.b16 %v4204, %v4204
      %v4337 = vpack.c.b16 %v4205, %v4205
      %v4338 = vpack.c.b16 %v4206, %v4206
      %v4339 = vpack.c.b16 %v4207, %v4207
      %v4340 = vpack.c.b16 %v4208, %v4208
      %v4341 = vpack.c.b16 %v4209, %v4209
      %v4342 = vpack.c.b16 %v4210, %v4210
      %v4343 = vpack.c.b16 %v4211, %v4211
      %v4344 = vpack.c.b16 %v4212, %v4212
      %v4345 = vpack.c.b16 %v4213, %v4213
      %v4346 = vpack.c.b16 %v4214, %v4214
      %v4347 = vpack.c.b16 %v4215, %v4215
      %v4348 = vpack.c.b16 %v4216, %v4216
      %vm4481 = vcmask 60416
      %4482 = vst.msk [vmem:[%s177] sm:$0xf] %vm4481, %v4217
      %4483 = vst.msk [vmem:[%s177 + $0x4] sm:$0xf] %vm4481, %v4218
      %4484 = vst.msk [vmem:[%s177 + $0x8] sm:$0xf] %vm4481, %v4219
      %4485 = vst.msk [vmem:[%s177 + $0xc] sm:$0xf] %vm4481, %v4220
      %4486 = vst.msk [vmem:[%s177 + $0x10] sm:$0xf] %vm4481, %v4221
      %4487 = vst.msk [vmem:[%s177 + $0x14] sm:$0xf] %vm4481, %v4222
      %4488 = vst.msk [vmem:[%s177 + $0x18] sm:$0xf] %vm4481, %v4223
      %4489 = vst.msk [vmem:[%s177 + $0x1c] sm:$0xf] %vm4481, %v4224
      %4490 = vst.msk [vmem:[%s177 + $0x20] sm:$0xf] %vm4481, %v4225
      %4491 = vst.msk [vmem:[%s177 + $0x24] sm:$0xf] %vm4481, %v4226
      %4492 = vst.msk [vmem:[%s177 + $0x28] sm:$0xf] %vm4481, %v4227
      %4493 = vst.msk [vmem:[%s177 + $0x2c] sm:$0xf] %vm4481, %v4228
      %4494 = vst.msk [vmem:[%s177 + $0x30] sm:$0xf] %vm4481, %v4229
      %4495 = vst.msk [vmem:[%s177 + $0x34] sm:$0xf] %vm4481, %v4230
      %4496 = vst.msk [vmem:[%s177 + $0x38] sm:$0xf] %vm4481, %v4231
      %4497 = vst.msk [vmem:[%s177 + $0x3c] sm:$0xf] %vm4481, %v4232
      %4498 = vst.msk [vmem:[%s177 + $0x40] sm:$0xf] %vm4481, %v4233
      %4499 = vst.msk [vmem:[%s177 + $0x44] sm:$0xf] %vm4481, %v4234
      %4500 = vst.msk [vmem:[%s177 + $0x48] sm:$0xf] %vm4481, %v4235
      %4501 = vst.msk [vmem:[%s177 + $0x4c] sm:$0xf] %vm4481, %v4236
      %4502 = vst.msk [vmem:[%s177 + $0x50] sm:$0xf] %vm4481, %v4237
      %4503 = vst.msk [vmem:[%s177 + $0x54] sm:$0xf] %vm4481, %v4238
      %4504 = vst.msk [vmem:[%s177 + $0x58] sm:$0xf] %vm4481, %v4239
      %4505 = vst.msk [vmem:[%s177 + $0x5c] sm:$0xf] %vm4481, %v4240
      %4506 = vst.msk [vmem:[%s177 + $0x60] sm:$0xf] %vm4481, %v4241
      %4507 = vst.msk [vmem:[%s177 + $0x64] sm:$0xf] %vm4481, %v4242
      %4508 = vst.msk [vmem:[%s177 + $0x68] sm:$0xf] %vm4481, %v4243
      %4509 = vst.msk [vmem:[%s177 + $0x6c] sm:$0xf] %vm4481, %v4244
      %4510 = vst.msk [vmem:[%s177 + $0x70] sm:$0xf] %vm4481, %v4245
      %4511 = vst.msk [vmem:[%s177 + $0x74] sm:$0xf] %vm4481, %v4246
      %4512 = vst.msk [vmem:[%s177 + $0x78] sm:$0xf] %vm4481, %v4247
      %4513 = vst.msk [vmem:[%s177 + $0x7c] sm:$0xf] %vm4481, %v4248
      %4514 = vst.msk [vmem:[%s177 + $0x80] sm:$0xf] %vm4481, %v4249
      %4515 = vst.msk [vmem:[%s177 + $0x84] sm:$0xf] %vm4481, %v4250
      %4516 = vst.msk [vmem:[%s177 + $0x88] sm:$0xf] %vm4481, %v4251
      %4517 = vst.msk [vmem:[%s177 + $0x8c] sm:$0xf] %vm4481, %v4252
      %4518 = vst.msk [vmem:[%s177 + $0x90] sm:$0xf] %vm4481, %v4253
      %4519 = vst.msk [vmem:[%s177 + $0x94] sm:$0xf] %vm4481, %v4254
      %4520 = vst.msk [vmem:[%s177 + $0x98] sm:$0xf] %vm4481, %v4255
      %4521 = vst.msk [vmem:[%s177 + $0x9c] sm:$0xf] %vm4481, %v4256
      %4522 = vst.msk [vmem:[%s177 + $0xa0] sm:$0xf] %vm4481, %v4257
      %4523 = vst.msk [vmem:[%s177 + $0xa4] sm:$0xf] %vm4481, %v4258
      %4524 = vst.msk [vmem:[%s177 + $0xa8] sm:$0xf] %vm4481, %v4259
      %4525 = vst.msk [vmem:[%s177 + $0xac] sm:$0xf] %vm4481, %v4260
      %4526 = vst.msk [vmem:[%s177 + $0xb0] sm:$0xf] %vm4481, %v4261
      %4527 = vst.msk [vmem:[%s177 + $0xb4] sm:$0xf] %vm4481, %v4262
      %4528 = vst.msk [vmem:[%s177 + $0xb8] sm:$0xf] %vm4481, %v4263
      %4529 = vst.msk [vmem:[%s177 + $0xbc] sm:$0xf] %vm4481, %v4264
      %4530 = vst.msk [vmem:[%s177 + $0xc0] sm:$0xf] %vm4481, %v4265
      %4531 = vst.msk [vmem:[%s177 + $0xc4] sm:$0xf] %vm4481, %v4266
      %4532 = vst.msk [vmem:[%s177 + $0xc8] sm:$0xf] %vm4481, %v4267
      %4533 = vst.msk [vmem:[%s177 + $0xcc] sm:$0xf] %vm4481, %v4268
      %4534 = vst.msk [vmem:[%s177 + $0xd0] sm:$0xf] %vm4481, %v4269
      %4535 = vst.msk [vmem:[%s177 + $0xd4] sm:$0xf] %vm4481, %v4270
      %4536 = vst.msk [vmem:[%s177 + $0xd8] sm:$0xf] %vm4481, %v4271
      %4537 = vst.msk [vmem:[%s177 + $0xdc] sm:$0xf] %vm4481, %v4272
      %4538 = vst.msk [vmem:[%s177 + $0xe0] sm:$0xf] %vm4481, %v4273
      %4539 = vst.msk [vmem:[%s177 + $0xe4] sm:$0xf] %vm4481, %v4274
      %4540 = vst.msk [vmem:[%s177 + $0xe8] sm:$0xf] %vm4481, %v4275
      %4541 = vst.msk [vmem:[%s177 + $0xec] sm:$0xf] %vm4481, %v4276
      %4542 = vst.msk [vmem:[%s177 + $0xf0] sm:$0xf] %vm4481, %v4277
      %4543 = vst.msk [vmem:[%s177 + $0xf4] sm:$0xf] %vm4481, %v4278
      %4544 = vst.msk [vmem:[%s177 + $0xf8] sm:$0xf] %vm4481, %v4279
      %4545 = vst.msk [vmem:[%s177 + $0xfc] sm:$0xf] %vm4481, %v4280
      %4546 = vst.msk [vmem:[%s177 + $0x100] sm:$0xf] %vm4481, %v4281
      %4547 = vst.msk [vmem:[%s177 + $0x104] sm:$0xf] %vm4481, %v4282
      %4548 = vst.msk [vmem:[%s177 + $0x108] sm:$0xf] %vm4481, %v4283
      %4549 = vst.msk [vmem:[%s177 + $0x10c] sm:$0xf] %vm4481, %v4284
      %4550 = vst.msk [vmem:[%s177 + $0x110] sm:$0xf] %vm4481, %v4285
      %4551 = vst.msk [vmem:[%s177 + $0x114] sm:$0xf] %vm4481, %v4286
      %4552 = vst.msk [vmem:[%s177 + $0x118] sm:$0xf] %vm4481, %v4287
      %4553 = vst.msk [vmem:[%s177 + $0x11c] sm:$0xf] %vm4481, %v4288
      %4554 = vst.msk [vmem:[%s177 + $0x120] sm:$0xf] %vm4481, %v4289
      %4555 = vst.msk [vmem:[%s177 + $0x124] sm:$0xf] %vm4481, %v4290
      %4556 = vst.msk [vmem:[%s177 + $0x128] sm:$0xf] %vm4481, %v4291
      %4557 = vst.msk [vmem:[%s177 + $0x12c] sm:$0xf] %vm4481, %v4292
      %4558 = vst.msk [vmem:[%s177 + $0x130] sm:$0xf] %vm4481, %v4293
      %4559 = vst.msk [vmem:[%s177 + $0x134] sm:$0xf] %vm4481, %v4294
      %4560 = vst.msk [vmem:[%s177 + $0x138] sm:$0xf] %vm4481, %v4295
      %4561 = vst.msk [vmem:[%s177 + $0x13c] sm:$0xf] %vm4481, %v4296
      %4562 = vst.msk [vmem:[%s177 + $0x140] sm:$0xf] %vm4481, %v4297
      %4563 = vst.msk [vmem:[%s177 + $0x144] sm:$0xf] %vm4481, %v4298
      %4564 = vst.msk [vmem:[%s177 + $0x148] sm:$0xf] %vm4481, %v4299
      %4565 = vst.msk [vmem:[%s177 + $0x14c] sm:$0xf] %vm4481, %v4300
      %4566 = vst.msk [vmem:[%s177 + $0x150] sm:$0xf] %vm4481, %v4301
      %4567 = vst.msk [vmem:[%s177 + $0x154] sm:$0xf] %vm4481, %v4302
      %4568 = vst.msk [vmem:[%s177 + $0x158] sm:$0xf] %vm4481, %v4303
      %4569 = vst.msk [vmem:[%s177 + $0x15c] sm:$0xf] %vm4481, %v4304
      %4570 = vst.msk [vmem:[%s177 + $0x160] sm:$0xf] %vm4481, %v4305
      %4571 = vst.msk [vmem:[%s177 + $0x164] sm:$0xf] %vm4481, %v4306
      %4572 = vst.msk [vmem:[%s177 + $0x168] sm:$0xf] %vm4481, %v4307
      %4573 = vst.msk [vmem:[%s177 + $0x16c] sm:$0xf] %vm4481, %v4308
      %4574 = vst.msk [vmem:[%s177 + $0x170] sm:$0xf] %vm4481, %v4309
      %4575 = vst.msk [vmem:[%s177 + $0x174] sm:$0xf] %vm4481, %v4310
      %4576 = vst.msk [vmem:[%s177 + $0x178] sm:$0xf] %vm4481, %v4311
      %4577 = vst.msk [vmem:[%s177 + $0x17c] sm:$0xf] %vm4481, %v4312
      %4578 = vst.msk [vmem:[%s177 + $0x180] sm:$0xf] %vm4481, %v4313
      %4579 = vst.msk [vmem:[%s177 + $0x184] sm:$0xf] %vm4481, %v4314
      %4580 = vst.msk [vmem:[%s177 + $0x188] sm:$0xf] %vm4481, %v4315
      %4581 = vst.msk [vmem:[%s177 + $0x18c] sm:$0xf] %vm4481, %v4316
      %4582 = vst.msk [vmem:[%s177 + $0x190] sm:$0xf] %vm4481, %v4317
      %4583 = vst.msk [vmem:[%s177 + $0x194] sm:$0xf] %vm4481, %v4318
      %4584 = vst.msk [vmem:[%s177 + $0x198] sm:$0xf] %vm4481, %v4319
      %4585 = vst.msk [vmem:[%s177 + $0x19c] sm:$0xf] %vm4481, %v4320
      %4586 = vst.msk [vmem:[%s177 + $0x1a0] sm:$0xf] %vm4481, %v4321
      %4587 = vst.msk [vmem:[%s177 + $0x1a4] sm:$0xf] %vm4481, %v4322
      %4588 = vst.msk [vmem:[%s177 + $0x1a8] sm:$0xf] %vm4481, %v4323
      %4589 = vst.msk [vmem:[%s177 + $0x1ac] sm:$0xf] %vm4481, %v4324
      %4590 = vst.msk [vmem:[%s177 + $0x1b0] sm:$0xf] %vm4481, %v4325
      %4591 = vst.msk [vmem:[%s177 + $0x1b4] sm:$0xf] %vm4481, %v4326
      %4592 = vst.msk [vmem:[%s177 + $0x1b8] sm:$0xf] %vm4481, %v4327
      %4593 = vst.msk [vmem:[%s177 + $0x1bc] sm:$0xf] %vm4481, %v4328
      %4594 = vst.msk [vmem:[%s177 + $0x1c0] sm:$0xf] %vm4481, %v4329
      %4595 = vst.msk [vmem:[%s177 + $0x1c4] sm:$0xf] %vm4481, %v4330
      %4596 = vst.msk [vmem:[%s177 + $0x1c8] sm:$0xf] %vm4481, %v4331
      %4597 = vst.msk [vmem:[%s177 + $0x1cc] sm:$0xf] %vm4481, %v4332
      %4598 = vst.msk [vmem:[%s177 + $0x1d0] sm:$0xf] %vm4481, %v4333
      %4599 = vst.msk [vmem:[%s177 + $0x1d4] sm:$0xf] %vm4481, %v4334
      %4600 = vst.msk [vmem:[%s177 + $0x1d8] sm:$0xf] %vm4481, %v4335
      %4601 = vst.msk [vmem:[%s177 + $0x1dc] sm:$0xf] %vm4481, %v4336
      %4602 = vst.msk [vmem:[%s177 + $0x1e0] sm:$0xf] %vm4481, %v4337
      %4603 = vst.msk [vmem:[%s177 + $0x1e4] sm:$0xf] %vm4481, %v4338
      %4604 = vst.msk [vmem:[%s177 + $0x1e8] sm:$0xf] %vm4481, %v4339
      %4605 = vst.msk [vmem:[%s177 + $0x1ec] sm:$0xf] %vm4481, %v4340
      %4606 = vst.msk [vmem:[%s177 + $0x1f0] sm:$0xf] %vm4481, %v4341
      %4607 = vst.msk [vmem:[%s177 + $0x1f4] sm:$0xf] %vm4481, %v4342
      %4608 = vst.msk [vmem:[%s177 + $0x1f8] sm:$0xf] %vm4481, %v4343
      %4609 = vst.msk [vmem:[%s177 + $0x1fc] sm:$0xf] %vm4481, %v4344
      %4610 = vst.msk [vmem:[%s177 + $0x200] sm:$0xf] %vm4481, %v4345
      %4611 = vst.msk [vmem:[%s177 + $0x204] sm:$0xf] %vm4481, %v4346
      %4612 = vst.msk [vmem:[%s177 + $0x208] sm:$0xf] %vm4481, %v4347
      %4613 = vst.msk [vmem:[%s177 + $0x20c] sm:$0xf] %vm4481, %v4348
      %p4614 = scmp.lt.s32.totalorder %s15, 1
      %s4615 = scalar_select %p4614, %s15, 1
      %s4616 = smul.addr %s4615, 132
      %s4617 = smul.addr %s4616, 4
      %s4618 = scalar_lea.vmem %s2, %s4617
      %p4619 = scmp.lt.s32.totalorder %s15, 1
      %s4620 = scalar_select %p4619, %s15, 1
      %s4621 = smul.addr %s4620, 2
      %s4622 = scalar_lea.vmem %s3, %s4621
      // Predicated region
      $region29: #{discriminator_forward.9} parent=27 // pred_check
        %p4623 = pneg %p80
      $region30: #{discriminator_forward.9} parent=27 // pred_check_branch
        %4625 = sbr.rel (%p4623) target = $region32
      $region31: #{discriminator_forward.9} parent=27 // pred_region
        _
      $region32: #{discriminator_forward.9} parent=27 // pred_fallthru
        _
      // Predicated region
      $region33: #{discriminator_forward.9} parent=27 // pred_check
        %p4626 = pneg %p106
      $region34: #{discriminator_forward.9} parent=27 // pred_check_branch
        %4628 = sbr.rel (%p4626) target = $region36
      $region35: #{discriminator_forward.9} parent=27 // pred_region
        _
      $region36: #{discriminator_forward.9} parent=27 // pred_fallthru
        _
    $region28: #{discriminator_forward.9} parent=5 // pred_fallthru
      _
    %p4629 = scmp.le.s32.totalorder 2, %s10
    // Predicated region
    $region37: #{discriminator_forward.9} parent=5 // pred_check
      %p4630 = pneg %p4629
    $region38: #{discriminator_forward.9} parent=5 // pred_check_branch
      %4632 = sbr.rel (%p4630) target = $region40
    $region39: #{discriminator_forward.9} parent=5 // pred_region
      %s4633 = ssub.s32 %s10, 2
      // Predicated region
      $region41: #{discriminator_forward.9} parent=39 // pred_check
        %p4634 = pneg %p86
      $region42: #{discriminator_forward.9} parent=39 // pred_check_branch
        %4636 = sbr.rel (%p4634) target = $region44
      $region43: #{discriminator_forward.9} parent=39 // pred_region
        %p4637 = scmp.lt.s32.totalorder %s16, 1
        %s4638 = scalar_select %p4637, %s16, 1
        %s4639 = smul.addr %s4638, 132
        %s4640 = smul.addr %s4639, 4
        %s4641 = scalar_lea.vmem %s2, %s4640
      $region44: #{discriminator_forward.9} parent=39 // pred_fallthru
        _
      // Predicated region
      $region45: #{discriminator_forward.9} parent=39 // pred_check
        %p4642 = pneg %p112
      $region46: #{discriminator_forward.9} parent=39 // pred_check_branch
        %4644 = sbr.rel (%p4642) target = $region48
      $region47: #{discriminator_forward.9} parent=39 // pred_region
        %p4645 = scmp.lt.s32.totalorder %s16, 1
        %s4646 = scalar_select %p4645, %s16, 1
        %s4647 = smul.addr %s4646, 2
        %s4648 = scalar_lea.vmem %s3, %s4647
      $region48: #{discriminator_forward.9} parent=39 // pred_fallthru
        _
    $region40: #{discriminator_forward.9} parent=5 // pred_fallthru
      _
  $region6: #{discriminator_forward.9} parent=0 // loop_footer
    %s14 = sadd.s32 1, %s10
  $region7: #{discriminator_forward.9} parent=0 // loop_footer_branch
    %9 = sbr.rel target = $region3
  $region8: #{discriminator_forward.9} parent=0 // loop_exit
    _

// kernel: tile.53
$region0: #{tile.53}
  #allocation0 [shape = 's32[1]{0}', space=sflag, size = 0x4, scoped, tag = 'scoped memory for tile.53']
  %s0 = inlined_call_operand.vmem [shape: f32[16], index: 0, kind: input, shape index: {}]
  %s1 = inlined_call_operand.vmem [shape: f32[8,16], index: 1, kind: output, shape index: {}]
  // Predicated region
  $region2: #{tile.53} parent=0 // pred_check
    _
  $region3: #{tile.53} parent=0 // pred_check_branch
    %3 = sbr.rel (0) target = $region5
  $region4: #{tile.53} parent=0 // pred_region
    _
  $region5: #{tile.53} parent=0 // pred_fallthru
    _
  %v4 = vld [vmem:[%s0] ss:$0 sm:$0xff]
  %5 = vst [vmem:[%s1] sm:$0xff] %v4

// kernel: tile.54
$region0: #{tile.54}
  %s0 = inlined_call_operand.vmem [shape: f32[8,16], index: 0, kind: input, shape index: {}]
  %s1 = inlined_call_operand.vmem [shape: f32[1,128], index: 1, kind: output, shape index: {}]
  $region1: #{tile.54} parent=0
    #allocation0 [shape = 'u8[4096]{0}', space=vmem, size = 0x1000, scoped, tag = 'scoped mem for output reshape']
    %v2 = vld [vmem:[%s0] sm:$0x1]
    %vm3 = vcmask 130048
    %4 = vst.msk [vmem:[#allocation0] sm:$0x1] %vm3, %v2
    %s5 = scalar_lea.vmem %s0, 7
    %v6 = vld [vmem:[%s5] sm:$0x1]
    %7 = vrot.lane.b32.xlu0 %v6, 112
    %v8 = vpop.permute.xlu0 %7
    %vm9 = vcmask 1048448
    %10 = vst.msk [vmem:[#allocation0] sm:$0x1] %vm9, %v8
    %s11 = scalar_lea.vmem %s0, 6
    %v12 = vld [vmem:[%s11] sm:$0x1]
    %13 = vrot.lane.b32.xlu0 %v12, 96
    %v14 = vpop.permute.xlu0 %13
    %vm15 = vcmask 917248
    %16 = vst.msk [vmem:[#allocation0] sm:$0x1] %vm15, %v14
    %s17 = scalar_lea.vmem %s0, 5
    %v18 = vld [vmem:[%s17] sm:$0x1]
    %19 = vrot.lane.b32.xlu0 %v18, 80
    %v20 = vpop.permute.xlu0 %19
    %vm21 = vcmask 786048
    %22 = vst.msk [vmem:[#allocation0] sm:$0x1] %vm21, %v20
    %s23 = scalar_lea.vmem %s0, 4
    %v24 = vld [vmem:[%s23] sm:$0x1]
    %25 = vrot.lane.b32.xlu0 %v24, 64
    %v26 = vpop.permute.xlu0 %25
    %vm27 = vcmask 654848
    %28 = vst.msk [vmem:[#allocation0] sm:$0x1] %vm27, %v26
    %s29 = scalar_lea.vmem %s0, 3
    %v30 = vld [vmem:[%s29] sm:$0x1]
    %31 = vrot.lane.b32.xlu0 %v30, 48
    %v32 = vpop.permute.xlu0 %31
    %vm33 = vcmask 523648
    %34 = vst.msk [vmem:[#allocation0] sm:$0x1] %vm33, %v32
    %s35 = scalar_lea.vmem %s0, 2
    %v36 = vld [vmem:[%s35] sm:$0x1]
    %37 = vrot.lane.b32.xlu0 %v36, 32
    %v38 = vpop.permute.xlu0 %37
    %vm39 = vcmask 392448
    %40 = vst.msk [vmem:[#allocation0] sm:$0x1] %vm39, %v38
    %s41 = scalar_lea.vmem %s0, 1
    %v42 = vld [vmem:[%s41] sm:$0x1]
    %43 = vrot.lane.b32.xlu0 %v42, 16
    %v44 = vpop.permute.xlu0 %43
    %vm45 = vcmask 261248
    %46 = vst.msk [vmem:[#allocation0] sm:$0x1] %vm45, %v44
    %s48 = sshllo.u32 0, 1
    %v50 = vld [vmem:[#allocation0] sm:%s48]
    %s51 = sshllo.u32 0, 1
    %52 = vst [vmem:[%s1] sm:%s51] %v50

// kernel: discriminator_forward.11
$region0: #{discriminator_forward.11}
  #allocation0 [shape = 'u32[]', space=smem, size = 0x4, offset = 0x4, fixed_abs, tag = 'smem constant byte address 0x4 - core index']
  #allocation1 [shape = 'u32[144,128]{1,0:T(1,128)}', space=vmem, size = 0x12000, scoped, tag = 'internal scratch']
  #allocation2 [shape = 'f32[272,16]{1,0:T(8,128)}', space=vmem, size = 0x22000, scoped, tag = 'scratch operand']
  %s0 = inlined_call_operand.vmem [shape: bf16[2,272,128], index: 0, kind: input, shape index: {}]
  %s1 = inlined_call_operand.vmem [shape: bf16[1,128,16], index: 1, kind: input, shape index: {}]
  %s2 = inlined_call_operand.vmem [shape: bf16[2,272,16], index: 2, kind: output, shape index: {0}]
  %s3 = inlined_call_operand.vmem [shape: f32[2,2,16], index: 3, kind: output, shape index: {1}]
  %4 = xla_tuple %s2, %s3
  %s5 = sld [smem:[#allocation0]]
  $region49: #{discriminator_forward.11} parent=0
    _
  %s7 = ssub.s32 1, %s5
  %s8 = scalar_select 0, %s7, %s5
  loop: start=0, step=1, limit=4
  $region2: #{discriminator_forward.11} parent=0 // loop_pre_header
    _
  $region3: #{discriminator_forward.11} parent=0 // loop_header
    %s10 = sphi 0, %s14
    %p11 = scmp.ge.s32.totalorder %s10, 4
    %s20 = sphi 0, %s22
    %s23 = sphi 0, %s20
    %s24 = sphi 0, %s23
    %s40 = sphi 0, %s24
    %s44 = sphi 0, %s44
    %s46 = sphi 0, %s44
    %s47 = sphi 0, %s46
    %s61 = sphi 0, %s47
    %s67 = sphi 0, %s69
    %s70 = sphi 0, %s67
    %s71 = sphi 0, %s70
    %s87 = sphi 0, %s71
    %s93 = sphi 0, %s95
    %s96 = sphi 0, %s93
    %s97 = sphi 0, %s96
    %s113 = sphi 0, %s97
  $region4: #{discriminator_forward.11} parent=0 // loop_header_branch
    %13 = sbr.rel (%p11) target = $region8
  $region5: #{discriminator_forward.11} parent=0 // loop_body
    %s15 = ssub.s32 %s10, 1
    %s16 = ssub.s32 %s10, 2
    %s17 = sadd.s32 %s10, 1
    %s18 = ssub.s32 %s10, %s17
    %p19 = scmp.eq.s32.totalorder %s18, 0
    %s21 = sadd.s32 %s20, 1
    %s22 = scalar_select %p19, %s20, %s21
    %p25 = pneg %p19
    %p26 = scmp.eq.s32.totalorder %s10, 1
    %p27 = por %p25, %p26
    %p28 = scmp.ne.s32.totalorder %s20, %s23
    %p29 = scmp.eq.s32.totalorder %s10, 0
    %p30 = por %p28, %p29
    %p31 = scmp.ne.s32.totalorder %s20, %s23
    %p32 = scmp.eq.s32.totalorder %s15, 1
    %p33 = por %p31, %p32
    %p34 = scmp.ne.s32.totalorder %s23, %s24
    %p35 = scmp.eq.s32.totalorder %s15, 0
    %p36 = por %p34, %p35
    %p37 = scmp.ne.s32.totalorder %s23, %s24
    %p38 = scmp.eq.s32.totalorder %s16, 1
    %p39 = por %p37, %p38
    %p41 = scmp.ne.s32.totalorder %s24, %s40
    %p42 = scmp.eq.s32.totalorder %s16, 0
    %p43 = por %p41, %p42
    %s45 = sadd.s32 %s44, 1
    %p48 = scmp.eq.s32.totalorder %s10, 1
    %p49 = scmp.ne.s32.totalorder %s44, %s46
    %p50 = scmp.eq.s32.totalorder %s10, 0
    %p51 = por %p49, %p50
    %p52 = scmp.ne.s32.totalorder %s44, %s46
    %p53 = scmp.eq.s32.totalorder %s15, 1
    %p54 = por %p52, %p53
    %p55 = scmp.ne.s32.totalorder %s46, %s47
    %p56 = scmp.eq.s32.totalorder %s15, 0
    %p57 = por %p55, %p56
    %p58 = scmp.ne.s32.totalorder %s46, %s47
    %p59 = scmp.eq.s32.totalorder %s16, 1
    %p60 = por %p58, %p59
    %p62 = scmp.ne.s32.totalorder %s47, %s61
    %p63 = scmp.eq.s32.totalorder %s16, 0
    %p64 = por %p62, %p63
    %s65 = ssub.s32 %s10, %s17
    %p66 = scmp.eq.s32.totalorder %s65, 0
    %s68 = sadd.s32 %s67, 1
    %s69 = scalar_select %p66, %s67, %s68
    %p72 = pneg %p66
    %p73 = scmp.eq.s32.totalorder %s10, 1
    %p74 = por %p72, %p73
    %p75 = scmp.ne.s32.totalorder %s67, %s70
    %p76 = scmp.eq.s32.totalorder %s10, 0
    %p77 = por %p75, %p76
    %p78 = scmp.ne.s32.totalorder %s67, %s70
    %p79 = scmp.eq.s32.totalorder %s15, 1
    %p80 = por %p78, %p79
    %p81 = scmp.ne.s32.totalorder %s70, %s71
    %p82 = scmp.eq.s32.totalorder %s15, 0
    %p83 = por %p81, %p82
    %p84 = scmp.ne.s32.totalorder %s70, %s71
    %p85 = scmp.eq.s32.totalorder %s16, 1
    %p86 = por %p84, %p85
    %p88 = scmp.ne.s32.totalorder %s71, %s87
    %p89 = scmp.eq.s32.totalorder %s16, 0
    %p90 = por %p88, %p89
    %s91 = ssub.s32 %s10, %s17
    %p92 = scmp.eq.s32.totalorder %s91, 0
    %s94 = sadd.s32 %s93, 1
    %s95 = scalar_select %p92, %s93, %s94
    %p98 = pneg %p92
    %p99 = scmp.eq.s32.totalorder %s10, 1
    %p100 = por %p98, %p99
    %p101 = scmp.ne.s32.totalorder %s93, %s96
    %p102 = scmp.eq.s32.totalorder %s10, 0
    %p103 = por %p101, %p102
    %p104 = scmp.ne.s32.totalorder %s93, %s96
    %p105 = scmp.eq.s32.totalorder %s15, 1
    %p106 = por %p104, %p105
    %p107 = scmp.ne.s32.totalorder %s96, %s97
    %p108 = scmp.eq.s32.totalorder %s15, 0
    %p109 = por %p107, %p108
    %p110 = scmp.ne.s32.totalorder %s96, %s97
    %p111 = scmp.eq.s32.totalorder %s16, 1
    %p112 = por %p110, %p111
    %p114 = scmp.ne.s32.totalorder %s97, %s113
    %p115 = scmp.eq.s32.totalorder %s16, 0
    %p116 = por %p114, %p115
    %p117 = scmp.le.s32.totalorder 1, %s10
    %p118 = scmp.lt.s32.totalorder %s10, 3
    %p119 = pnand %p117, %p118
    %p120 = pneg %p119
    // Predicated region
    $region9: #{discriminator_forward.11} parent=5 // pred_check
      _
    $region10: #{discriminator_forward.11} parent=5 // pred_check_branch
      %122 = sbr.rel (%p119) target = $region12
    $region11: #{discriminator_forward.11} parent=5 // pred_region
      %s123 = ssub.s32 %s10, 1
      // Predicated region
      $region13: #{discriminator_forward.11} parent=11 // pred_check
        %p124 = pneg %p57
      $region14: #{discriminator_forward.11} parent=11 // pred_check_branch
        %126 = sbr.rel (%p124) target = $region16
      $region15: #{discriminator_forward.11} parent=11 // pred_region
        _
      $region16: #{discriminator_forward.11} parent=11 // pred_fallthru
        _
    $region12: #{discriminator_forward.11} parent=5 // pred_fallthru
      _
    %p127 = scmp.lt.s32.totalorder %s10, 2
    // Predicated region
    $region17: #{discriminator_forward.11} parent=5 // pred_check
      %p128 = pneg %p127
    $region18: #{discriminator_forward.11} parent=5 // pred_check_branch
      %130 = sbr.rel (%p128) target = $region20
    $region19: #{discriminator_forward.11} parent=5 // pred_region
      // Predicated region
      $region21: #{discriminator_forward.11} parent=19 // pred_check
        %p131 = pneg %p30
      $region22: #{discriminator_forward.11} parent=19 // pred_check_branch
        %133 = sbr.rel (%p131) target = $region24
      $region23: #{discriminator_forward.11} parent=19 // pred_region
        %p134 = scmp.lt.s32.totalorder %s10, 1
        %s135 = scalar_select %p134, %s10, 1
        %s136 = smul.addr %s135, 34
        %s137 = smul.addr %s136, 4
        %s138 = scalar_lea.vmem %s0, %s137
      $region24: #{discriminator_forward.11} parent=19 // pred_fallthru
        _
    $region20: #{discriminator_forward.11} parent=5 // pred_fallthru
      _
    %p139 = scmp.le.s32.totalorder 1, %s10
    %p140 = scmp.lt.s32.totalorder %s10, 3
    %p141 = pnand %p139, %p140
    %p142 = pneg %p141
    // Predicated region
    $region25: #{discriminator_forward.11} parent=5 // pred_check
      _
    $region26: #{discriminator_forward.11} parent=5 // pred_check_branch
      %144 = sbr.rel (%p141) target = $region28
    $region27: #{discriminator_forward.11} parent=5 // pred_region
      %s145 = ssub.s32 %s10, 1
      %p146 = scmp.lt.s32.totalorder %s15, 1
      %s147 = scalar_select %p146, %s15, 1
      %s148 = smul.addr %s147, 34
      %s149 = smul.addr %s148, 4
      %s150 = scalar_lea.vmem %s0, %s149
      %p151 = pneg %p36
      %p152 = pneg %p33
      %p153 = pneg %p57
      %p154 = pneg %p54
      %p155 = pneg %p83
      %p156 = pneg %p80
      %p157 = scmp.lt.s32.totalorder %s15, 1
      %s158 = scalar_select %p157, %s15, 1
      %s159 = smul.addr %s158, 34
      %s160 = smul.addr %s159, 4
      %s161 = scalar_lea.vmem %s2, %s160
      %p162 = pneg %p109
      %p163 = pneg %p106
      %p164 = scmp.lt.s32.totalorder %s15, 1
      %s165 = scalar_select %p164, %s15, 1
      %s166 = smul.addr %s165, 2
      %s167 = scalar_lea.vmem %s3, %s166
      %p168 = scmp.lt.s32.totalorder %s15, 1
      %s169 = scalar_select %p168, %s15, 1
      %s170 = smul.addr %s169, 34
      %s171 = smul.addr %s170, 4
      %s172 = scalar_lea.vmem %s0, %s171
      %p173 = scmp.lt.s32.totalorder %s15, 1
      %s174 = scalar_select %p173, %s15, 1
      %s175 = smul.addr %s174, 34
      %s176 = smul.addr %s175, 4
      %s177 = scalar_lea.vmem %s2, %s176
      %p178 = scmp.lt.s32.totalorder %s15, 1
      %s179 = scalar_select %p178, %s15, 1
      %s180 = smul.addr %s179, 2
      %s181 = scalar_lea.vmem %s3, %s180
      %v183 = vlaneseq
      %v184 = vshrl.u32 %v183, 7
      %v185 = vadd.s32 %v184, 8
      %v186 = vadd.s32 %v184, 16
      %v187 = vadd.s32 %v184, 24
      %v188 = vadd.s32 %v184, 32
      %v189 = vadd.s32 %v184, 40
      %v190 = vadd.s32 %v184, 48
      %v191 = vadd.s32 %v184, 56
      %v192 = vadd.s32 %v184, 64
      %v193 = vadd.s32 %v184, 72
      %v194 = vadd.s32 %v184, 80
      %v195 = vadd.s32 %v184, 88
      %v196 = vadd.s32 %v184, 96
      %v197 = vadd.s32 %v184, 104
      %v198 = vadd.s32 %v184, 112
      %v199 = vadd.s32 %v184, 120
      %v200 = vadd.s32 %v184, 128
      %v201 = vadd.s32 %v184, 136
      %v202 = vadd.s32 %v184, 144
      %v203 = vadd.s32 %v184, 152
      %v204 = vadd.s32 %v184, 160
      %v205 = vadd.s32 %v184, 168
      %v206 = vadd.s32 %v184, 176
      %v207 = vadd.s32 %v184, 184
      %v208 = vadd.s32 %v184, 192
      %v209 = vadd.s32 %v184, 200
      %v210 = vadd.s32 %v184, 208
      %v211 = vadd.s32 %v184, 216
      %v212 = vadd.s32 %v184, 224
      %v213 = vadd.s32 %v184, 232
      %v214 = vadd.s32 %v184, 240
      %v215 = vadd.s32 %v184, 248
      %v216 = vadd.s32 %v184, 256
      %v217 = vadd.s32 %v184, 264
      %v218 = vcvt.s32.f32 %v184
      %v219 = vcvt.s32.f32 %v185
      %v220 = vcvt.s32.f32 %v186
      %v221 = vcvt.s32.f32 %v187
      %v222 = vcvt.s32.f32 %v188
      %v223 = vcvt.s32.f32 %v189
      %v224 = vcvt.s32.f32 %v190
      %v225 = vcvt.s32.f32 %v191
      %v226 = vcvt.s32.f32 %v192
      %v227 = vcvt.s32.f32 %v193
      %v228 = vcvt.s32.f32 %v194
      %v229 = vcvt.s32.f32 %v195
      %v230 = vcvt.s32.f32 %v196
      %v231 = vcvt.s32.f32 %v197
      %v232 = vcvt.s32.f32 %v198
      %v233 = vcvt.s32.f32 %v199
      %v234 = vcvt.s32.f32 %v200
      %v235 = vcvt.s32.f32 %v201
      %v236 = vcvt.s32.f32 %v202
      %v237 = vcvt.s32.f32 %v203
      %v238 = vcvt.s32.f32 %v204
      %v239 = vcvt.s32.f32 %v205
      %v240 = vcvt.s32.f32 %v206
      %v241 = vcvt.s32.f32 %v207
      %v242 = vcvt.s32.f32 %v208
      %v243 = vcvt.s32.f32 %v209
      %v244 = vcvt.s32.f32 %v210
      %v245 = vcvt.s32.f32 %v211
      %v246 = vcvt.s32.f32 %v212
      %v247 = vcvt.s32.f32 %v213
      %v248 = vcvt.s32.f32 %v214
      %v249 = vcvt.s32.f32 %v215
      %v250 = vcvt.s32.f32 %v216
      %v251 = vcvt.s32.f32 %v217
      %v252 = vadd.f32 %v218, 0.5
      %v253 = vadd.f32 %v219, 0.5
      %v254 = vadd.f32 %v220, 0.5
      %v255 = vadd.f32 %v221, 0.5
      %v256 = vadd.f32 %v222, 0.5
      %v257 = vadd.f32 %v223, 0.5
      %v258 = vadd.f32 %v224, 0.5
      %v259 = vadd.f32 %v225, 0.5
      %v260 = vadd.f32 %v226, 0.5
      %v261 = vadd.f32 %v227, 0.5
      %v262 = vadd.f32 %v228, 0.5
      %v263 = vadd.f32 %v229, 0.5
      %v264 = vadd.f32 %v230, 0.5
      %v265 = vadd.f32 %v231, 0.5
      %v266 = vadd.f32 %v232, 0.5
      %v267 = vadd.f32 %v233, 0.5
      %v268 = vadd.f32 %v234, 0.5
      %v269 = vadd.f32 %v235, 0.5
      %v270 = vadd.f32 %v236, 0.5
      %v271 = vadd.f32 %v237, 0.5
      %v272 = vadd.f32 %v238, 0.5
      %v273 = vadd.f32 %v239, 0.5
      %v274 = vadd.f32 %v240, 0.5
      %v275 = vadd.f32 %v241, 0.5
      %v276 = vadd.f32 %v242, 0.5
      %v277 = vadd.f32 %v243, 0.5
      %v278 = vadd.f32 %v244, 0.5
      %v279 = vadd.f32 %v245, 0.5
      %v280 = vadd.f32 %v246, 0.5
      %v281 = vadd.f32 %v247, 0.5
      %v282 = vadd.f32 %v248, 0.5
      %v283 = vadd.f32 %v249, 0.5
      %v284 = vadd.f32 %v250, 0.5
      %v285 = vadd.f32 %v251, 0.5
      %v286 = vmul.f32 %v252, 0.05882353
      %v287 = vmul.f32 %v253, 0.05882353
      %v288 = vmul.f32 %v254, 0.05882353
      %v289 = vmul.f32 %v255, 0.05882353
      %v290 = vmul.f32 %v256, 0.05882353
      %v291 = vmul.f32 %v257, 0.05882353
      %v292 = vmul.f32 %v258, 0.05882353
      %v293 = vmul.f32 %v259, 0.05882353
      %v294 = vmul.f32 %v260, 0.05882353
      %v295 = vmul.f32 %v261, 0.05882353
      %v296 = vmul.f32 %v262, 0.05882353
      %v297 = vmul.f32 %v263, 0.05882353
      %v298 = vmul.f32 %v264, 0.05882353
      %v299 = vmul.f32 %v265, 0.05882353
      %v300 = vmul.f32 %v266, 0.05882353
      %v301 = vmul.f32 %v267, 0.05882353
      %v302 = vmul.f32 %v268, 0.05882353
      %v303 = vmul.f32 %v269, 0.05882353
      %v304 = vmul.f32 %v270, 0.05882353
      %v305 = vmul.f32 %v271, 0.05882353
      %v306 = vmul.f32 %v272, 0.05882353
      %v307 = vmul.f32 %v273, 0.05882353
      %v308 = vmul.f32 %v274, 0.05882353
      %v309 = vmul.f32 %v275, 0.05882353
      %v310 = vmul.f32 %v276, 0.05882353
      %v311 = vmul.f32 %v277, 0.05882353
      %v312 = vmul.f32 %v278, 0.05882353
      %v313 = vmul.f32 %v279, 0.05882353
      %v314 = vmul.f32 %v280, 0.05882353
      %v315 = vmul.f32 %v281, 0.05882353
      %v316 = vmul.f32 %v282, 0.05882353
      %v317 = vmul.f32 %v283, 0.05882353
      %v318 = vmul.f32 %v284, 0.05882353
      %v319 = vmul.f32 %v285, 0.05882353
      %v320 = vfloor.f32 %v286
      %v321 = vfloor.f32 %v287
      %v322 = vfloor.f32 %v288
      %v323 = vfloor.f32 %v289
      %v324 = vfloor.f32 %v290
      %v325 = vfloor.f32 %v291
      %v326 = vfloor.f32 %v292
      %v327 = vfloor.f32 %v293
      %v328 = vfloor.f32 %v294
      %v329 = vfloor.f32 %v295
      %v330 = vfloor.f32 %v296
      %v331 = vfloor.f32 %v297
      %v332 = vfloor.f32 %v298
      %v333 = vfloor.f32 %v299
      %v334 = vfloor.f32 %v300
      %v335 = vfloor.f32 %v301
      %v336 = vfloor.f32 %v302
      %v337 = vfloor.f32 %v303
      %v338 = vfloor.f32 %v304
      %v339 = vfloor.f32 %v305
      %v340 = vfloor.f32 %v306
      %v341 = vfloor.f32 %v307
      %v342 = vfloor.f32 %v308
      %v343 = vfloor.f32 %v309
      %v344 = vfloor.f32 %v310
      %v345 = vfloor.f32 %v311
      %v346 = vfloor.f32 %v312
      %v347 = vfloor.f32 %v313
      %v348 = vfloor.f32 %v314
      %v349 = vfloor.f32 %v315
      %v350 = vfloor.f32 %v316
      %v351 = vfloor.f32 %v317
      %v352 = vfloor.f32 %v318
      %v353 = vfloor.f32 %v319
      %v354 = vmul.f32 %v320, 17.0
      %v355 = vmul.f32 %v321, 17.0
      %v356 = vmul.f32 %v322, 17.0
      %v357 = vmul.f32 %v323, 17.0
      %v358 = vmul.f32 %v324, 17.0
      %v359 = vmul.f32 %v325, 17.0
      %v360 = vmul.f32 %v326, 17.0
      %v361 = vmul.f32 %v327, 17.0
      %v362 = vmul.f32 %v328, 17.0
      %v363 = vmul.f32 %v329, 17.0
      %v364 = vmul.f32 %v330, 17.0
      %v365 = vmul.f32 %v331, 17.0
      %v366 = vmul.f32 %v332, 17.0
      %v367 = vmul.f32 %v333, 17.0
      %v368 = vmul.f32 %v334, 17.0
      %v369 = vmul.f32 %v335, 17.0
      %v370 = vmul.f32 %v336, 17.0
      %v371 = vmul.f32 %v337, 17.0
      %v372 = vmul.f32 %v338, 17.0
      %v373 = vmul.f32 %v339, 17.0
      %v374 = vmul.f32 %v340, 17.0
      %v375 = vmul.f32 %v341, 17.0
      %v376 = vmul.f32 %v342, 17.0
      %v377 = vmul.f32 %v343, 17.0
      %v378 = vmul.f32 %v344, 17.0
      %v379 = vmul.f32 %v345, 17.0
      %v380 = vmul.f32 %v346, 17.0
      %v381 = vmul.f32 %v347, 17.0
      %v382 = vmul.f32 %v348, 17.0
      %v383 = vmul.f32 %v349, 17.0
      %v384 = vmul.f32 %v350, 17.0
      %v385 = vmul.f32 %v351, 17.0
      %v386 = vmul.f32 %v352, 17.0
      %v387 = vmul.f32 %v353, 17.0
      %v388 = vsub.f32 %v218, %v354
      %v389 = vsub.f32 %v219, %v355
      %v390 = vsub.f32 %v220, %v356
      %v391 = vsub.f32 %v221, %v357
      %v392 = vsub.f32 %v222, %v358
      %v393 = vsub.f32 %v223, %v359
      %v394 = vsub.f32 %v224, %v360
      %v395 = vsub.f32 %v225, %v361
      %v396 = vsub.f32 %v226, %v362
      %v397 = vsub.f32 %v227, %v363
      %v398 = vsub.f32 %v228, %v364
      %v399 = vsub.f32 %v229, %v365
      %v400 = vsub.f32 %v230, %v366
      %v401 = vsub.f32 %v231, %v367
      %v402 = vsub.f32 %v232, %v368
      %v403 = vsub.f32 %v233, %v369
      %v404 = vsub.f32 %v234, %v370
      %v405 = vsub.f32 %v235, %v371
      %v406 = vsub.f32 %v236, %v372
      %v407 = vsub.f32 %v237, %v373
      %v408 = vsub.f32 %v238, %v374
      %v409 = vsub.f32 %v239, %v375
      %v410 = vsub.f32 %v240, %v376
      %v411 = vsub.f32 %v241, %v377
      %v412 = vsub.f32 %v242, %v378
      %v413 = vsub.f32 %v243, %v379
      %v414 = vsub.f32 %v244, %v380
      %v415 = vsub.f32 %v245, %v381
      %v416 = vsub.f32 %v246, %v382
      %v417 = vsub.f32 %v247, %v383
      %v418 = vsub.f32 %v248, %v384
      %v419 = vsub.f32 %v249, %v385
      %v420 = vsub.f32 %v250, %v386
      %v421 = vsub.f32 %v251, %v387
      %vm422 = vcmp.lt.f32.partialorder %v388, 15.5
      %vm423 = vcmp.lt.f32.partialorder %v389, 15.5
      %vm424 = vcmp.lt.f32.partialorder %v390, 15.5
      %vm425 = vcmp.lt.f32.partialorder %v391, 15.5
      %vm426 = vcmp.lt.f32.partialorder %v392, 15.5
      %vm427 = vcmp.lt.f32.partialorder %v393, 15.5
      %vm428 = vcmp.lt.f32.partialorder %v394, 15.5
      %vm429 = vcmp.lt.f32.partialorder %v395, 15.5
      %vm430 = vcmp.lt.f32.partialorder %v396, 15.5
      %vm431 = vcmp.lt.f32.partialorder %v397, 15.5
      %vm432 = vcmp.lt.f32.partialorder %v398, 15.5
      %vm433 = vcmp.lt.f32.partialorder %v399, 15.5
      %vm434 = vcmp.lt.f32.partialorder %v400, 15.5
      %vm435 = vcmp.lt.f32.partialorder %v401, 15.5
      %vm436 = vcmp.lt.f32.partialorder %v402, 15.5
      %vm437 = vcmp.lt.f32.partialorder %v403, 15.5
      %vm438 = vcmp.lt.f32.partialorder %v404, 15.5
      %vm439 = vcmp.lt.f32.partialorder %v405, 15.5
      %vm440 = vcmp.lt.f32.partialorder %v406, 15.5
      %vm441 = vcmp.lt.f32.partialorder %v407, 15.5
      %vm442 = vcmp.lt.f32.partialorder %v408, 15.5
      %vm443 = vcmp.lt.f32.partialorder %v409, 15.5
      %vm444 = vcmp.lt.f32.partialorder %v410, 15.5
      %vm445 = vcmp.lt.f32.partialorder %v411, 15.5
      %vm446 = vcmp.lt.f32.partialorder %v412, 15.5
      %vm447 = vcmp.lt.f32.partialorder %v413, 15.5
      %vm448 = vcmp.lt.f32.partialorder %v414, 15.5
      %vm449 = vcmp.lt.f32.partialorder %v415, 15.5
      %vm450 = vcmp.lt.f32.partialorder %v416, 15.5
      %vm451 = vcmp.lt.f32.partialorder %v417, 15.5
      %vm452 = vcmp.lt.f32.partialorder %v418, 15.5
      %vm453 = vcmp.lt.f32.partialorder %v419, 15.5
      %vm454 = vcmp.lt.f32.partialorder %v420, 15.5
      %vm455 = vcmp.lt.f32.partialorder %v421, 15.5
      %v456 = vld [vmem:[%s172] sm:$0xf]
      %v457 = vld [vmem:[%s172 + $0x4] sm:$0xf]
      %v458 = vld [vmem:[%s172 + $0x8] sm:$0xf]
      %v459 = vld [vmem:[%s172 + $0xc] sm:$0xf]
      %v460 = vld [vmem:[%s172 + $0x10] sm:$0xf]
      %v461 = vld [vmem:[%s172 + $0x14] sm:$0xf]
      %v462 = vld [vmem:[%s172 + $0x18] sm:$0xf]
      %v463 = vld [vmem:[%s172 + $0x1c] sm:$0xf]
      %v464 = vld [vmem:[%s172 + $0x20] sm:$0xf]
      %v465 = vld [vmem:[%s172 + $0x24] sm:$0xf]
      %v466 = vld [vmem:[%s172 + $0x28] sm:$0xf]
      %v467 = vld [vmem:[%s172 + $0x2c] sm:$0xf]
      %v468 = vld [vmem:[%s172 + $0x30] sm:$0xf]
      %v469 = vld [vmem:[%s172 + $0x34] sm:$0xf]
      %v470 = vld [vmem:[%s172 + $0x38] sm:$0xf]
      %v471 = vld [vmem:[%s172 + $0x3c] sm:$0xf]
      %v472 = vld [vmem:[%s172 + $0x40] sm:$0xf]
      %v473 = vld [vmem:[%s172 + $0x44] sm:$0xf]
      %v474 = vld [vmem:[%s172 + $0x48] sm:$0xf]
      %v475 = vld [vmem:[%s172 + $0x4c] sm:$0xf]
      %v476 = vld [vmem:[%s172 + $0x50] sm:$0xf]
      %v477 = vld [vmem:[%s172 + $0x54] sm:$0xf]
      %v478 = vld [vmem:[%s172 + $0x58] sm:$0xf]
      %v479 = vld [vmem:[%s172 + $0x5c] sm:$0xf]
      %v480 = vld [vmem:[%s172 + $0x60] sm:$0xf]
      %v481 = vld [vmem:[%s172 + $0x64] sm:$0xf]
      %v482 = vld [vmem:[%s172 + $0x68] sm:$0xf]
      %v483 = vld [vmem:[%s172 + $0x6c] sm:$0xf]
      %v484 = vld [vmem:[%s172 + $0x70] sm:$0xf]
      %v485 = vld [vmem:[%s172 + $0x74] sm:$0xf]
      %v486 = vld [vmem:[%s172 + $0x78] sm:$0xf]
      %v487 = vld [vmem:[%s172 + $0x7c] sm:$0xf]
      %v488 = vld [vmem:[%s172 + $0x80] sm:$0xf]
      %v489 = vld [vmem:[%s172 + $0x84] sm:$0xf]
      %v490 = vld [vmem:[%s1] sm:$0xf]
      %v491 = vld [vmem:[%s1 + $0x4] sm:$0xf]
      %v492 = vld [vmem:[%s1 + $0x8] sm:$0xf]
      %v493 = vld [vmem:[%s1 + $0xc] sm:$0xf]
      %v494 = vld [vmem:[%s1 + $0x10] sm:$0xf]
      %v495 = vld [vmem:[%s1 + $0x14] sm:$0xf]
      %v496 = vld [vmem:[%s1 + $0x18] sm:$0xf]
      %v497 = vld [vmem:[%s1 + $0x1c] sm:$0xf]
      %v498 = vld [vmem:[%s1 + $0x20] sm:$0xf]
      %v499 = vld [vmem:[%s1 + $0x24] sm:$0xf]
      %v500 = vld [vmem:[%s1 + $0x28] sm:$0xf]
      %v501 = vld [vmem:[%s1 + $0x2c] sm:$0xf]
      %v502 = vld [vmem:[%s1 + $0x30] sm:$0xf]
      %v503 = vld [vmem:[%s1 + $0x34] sm:$0xf]
      %v504 = vld [vmem:[%s1 + $0x38] sm:$0xf]
      %v505 = vld [vmem:[%s1 + $0x3c] sm:$0xf]
      %v540 = vunpack.c.l.b16 %v456
      %v541 = vunpack.c.l.b16 %v457
      %v542 = vunpack.c.l.b16 %v458
      %v543 = vunpack.c.l.b16 %v459
      %v544 = vunpack.c.l.b16 %v460
      %v545 = vunpack.c.l.b16 %v461
      %v546 = vunpack.c.l.b16 %v462
      %v547 = vunpack.c.l.b16 %v463
      %v548 = vunpack.c.l.b16 %v464
      %v549 = vunpack.c.l.b16 %v465
      %v550 = vunpack.c.l.b16 %v466
      %v551 = vunpack.c.l.b16 %v467
      %v552 = vunpack.c.l.b16 %v468
      %v553 = vunpack.c.l.b16 %v469
      %v554 = vunpack.c.l.b16 %v470
      %v555 = vunpack.c.l.b16 %v471
      %v556 = vunpack.c.l.b16 %v472
      %v557 = vunpack.c.l.b16 %v473
      %v558 = vunpack.c.l.b16 %v474
      %v559 = vunpack.c.l.b16 %v475
      %v560 = vunpack.c.l.b16 %v476
      %v561 = vunpack.c.l.b16 %v477
      %v562 = vunpack.c.l.b16 %v478
      %v563 = vunpack.c.l.b16 %v479
      %v564 = vunpack.c.l.b16 %v480
      %v565 = vunpack.c.l.b16 %v481
      %v566 = vunpack.c.l.b16 %v482
      %v567 = vunpack.c.l.b16 %v483
      %v568 = vunpack.c.l.b16 %v484
      %v569 = vunpack.c.l.b16 %v485
      %v570 = vunpack.c.l.b16 %v486
      %v571 = vunpack.c.l.b16 %v487
      %v572 = vunpack.c.l.b16 %v488
      %v573 = vunpack.c.l.b16 %v489
      %v574 = vpack.c.b16 %v541, %v540
      %v575 = vpack.c.b16 %v543, %v542
      %v576 = vpack.c.b16 %v545, %v544
      %v577 = vpack.c.b16 %v547, %v546
      %v578 = vpack.c.b16 %v549, %v548
      %v579 = vpack.c.b16 %v551, %v550
      %v580 = vpack.c.b16 %v553, %v552
      %v581 = vpack.c.b16 %v555, %v554
      %v582 = vpack.c.b16 %v557, %v556
      %v583 = vpack.c.b16 %v559, %v558
      %v584 = vpack.c.b16 %v561, %v560
      %v585 = vpack.c.b16 %v563, %v562
      %v586 = vpack.c.b16 %v565, %v564
      %v587 = vpack.c.b16 %v567, %v566
      %v588 = vpack.c.b16 %v569, %v568
      %v589 = vpack.c.b16 %v571, %v570
      %v590 = vpack.c.b16 %v573, %v572
      %v624 = vunpack.c.l.b16 %v490
      %v625 = vunpack.c.l.b16 %v491
      %v626 = vunpack.c.l.b16 %v492
      %v627 = vunpack.c.l.b16 %v493
      %v628 = vunpack.c.l.b16 %v494
      %v629 = vunpack.c.l.b16 %v495
      %v630 = vunpack.c.l.b16 %v496
      %v631 = vunpack.c.l.b16 %v497
      %v632 = vunpack.c.l.b16 %v498
      %v633 = vunpack.c.l.b16 %v499
      %v634 = vunpack.c.l.b16 %v500
      %v635 = vunpack.c.l.b16 %v501
      %v636 = vunpack.c.l.b16 %v502
      %v637 = vunpack.c.l.b16 %v503
      %v638 = vunpack.c.l.b16 %v504
      %v639 = vunpack.c.l.b16 %v505
      %v640 = vpack.c.b16 %v625, %v624
      %v641 = vpack.c.b16 %v627, %v626
      %v642 = vpack.c.b16 %v629, %v628
      %v643 = vpack.c.b16 %v631, %v630
      %v644 = vpack.c.b16 %v633, %v632
      %v645 = vpack.c.b16 %v635, %v634
      %v646 = vpack.c.b16 %v637, %v636
      %v647 = vpack.c.b16 %v639, %v638
      %656 = vmatprep.subr.bf16.mxu0 0
      %657 = vmatpush1.bf16.msra.mxu0 %v640
      %658 = vmatprep.subr.bf16.mxu0 0
      %659 = vmatpush1.bf16.msra.mxu0 %v641
      %660 = vmatprep.subr.bf16.mxu0 0
      %661 = vmatpush1.bf16.msra.mxu0 %v642
      %662 = vmatprep.subr.bf16.mxu0 0
      %663 = vmatpush1.bf16.msra.mxu0 %v643
      %664 = vmatprep.subr.bf16.mxu0 0
      %665 = vmatpush1.bf16.msra.mxu0 %v644
      %666 = vmatprep.subr.bf16.mxu0 0
      %667 = vmatpush1.bf16.msra.mxu0 %v645
      %668 = vmatprep.subr.bf16.mxu0 0
      %669 = vmatpush1.bf16.msra.mxu0 %v646
      %670 = vmatprep.subr.bf16.mxu0 0
      %671 = vmatpush1.bf16.msra.mxu0 %v647
      %672 = vmatprep.subr.bf16.mxu0 0
      %673 = vmatpush1.bf16.msra.mxu0 0
      %674 = vmatprep.subr.bf16.mxu0 0
      %675 = vmatpush1.bf16.msra.mxu0 0
      %676 = vmatprep.subr.bf16.mxu0 0
      %677 = vmatpush1.bf16.msra.mxu0 0
      %678 = vmatprep.subr.bf16.mxu0 0
      %679 = vmatpush1.bf16.msra.mxu0 0
      %680 = vmatprep.subr.bf16.mxu0 0
      %681 = vmatpush1.bf16.msra.mxu0 0
      %682 = vmatprep.subr.bf16.mxu0 0
      %683 = vmatpush1.bf16.msra.mxu0 0
      %684 = vmatprep.subr.bf16.mxu0 0
      %685 = vmatpush1.bf16.msra.mxu0 0
      %686 = vmatprep.subr.bf16.mxu0 0
      %687 = vmatpush1.bf16.msra.mxu0 0
      %688 = vmatprep.mubr.bf16.mxu0 0
      %689 = vmatmul.mubr.bf16.gmra.mrb[0].mxu0 %v574
      %v690 = vpop.f32.mrb[0].mxu0
      %v691 = vadd.f32 0.0, %v690
      %v692 = vpop.f32.mrb[0].mxu0
      %v693 = vpop.f32.mrb[0].mxu0
      %v694 = vadd.f32 0.0, %v693
      %v695 = vpop.f32.mrb[0].mxu0
      %696 = vmatprep.mubr.bf16.mxu0 0
      %697 = vmatmul.mubr.bf16.gmra.mrb[0].mxu0 %v575
      %v698 = vpop.f32.mrb[0].mxu0
      %v699 = vadd.f32 0.0, %v698
      %v700 = vpop.f32.mrb[0].mxu0
      %v701 = vpop.f32.mrb[0].mxu0
      %v702 = vadd.f32 0.0, %v701
      %v703 = vpop.f32.mrb[0].mxu0
      %704 = vmatprep.mubr.bf16.mxu0 0
      %705 = vmatmul.mubr.bf16.gmra.mrb[0].mxu0 %v576
      %v706 = vpop.f32.mrb[0].mxu0
      %v707 = vadd.f32 0.0, %v706
      %v708 = vpop.f32.mrb[0].mxu0
      %v709 = vpop.f32.mrb[0].mxu0
      %v710 = vadd.f32 0.0, %v709
      %v711 = vpop.f32.mrb[0].mxu0
      %712 = vmatprep.mubr.bf16.mxu0 0
      %713 = vmatmul.mubr.bf16.gmra.mrb[0].mxu0 %v577
      %v714 = vpop.f32.mrb[0].mxu0
      %v715 = vadd.f32 0.0, %v714
      %v716 = vpop.f32.mrb[0].mxu0
      %v717 = vpop.f32.mrb[0].mxu0
      %v718 = vadd.f32 0.0, %v717
      %v719 = vpop.f32.mrb[0].mxu0
      %720 = vmatprep.mubr.bf16.mxu0 0
      %721 = vmatmul.mubr.bf16.gmra.mrb[0].mxu0 %v578
      %v722 = vpop.f32.mrb[0].mxu0
      %v723 = vadd.f32 0.0, %v722
      %v724 = vpop.f32.mrb[0].mxu0
      %v725 = vpop.f32.mrb[0].mxu0
      %v726 = vadd.f32 0.0, %v725
      %v727 = vpop.f32.mrb[0].mxu0
      %728 = vmatprep.mubr.bf16.mxu0 0
      %729 = vmatmul.mubr.bf16.gmra.mrb[0].mxu0 %v579
      %v730 = vpop.f32.mrb[0].mxu0
      %v731 = vadd.f32 0.0, %v730
      %v732 = vpop.f32.mrb[0].mxu0
      %v733 = vpop.f32.mrb[0].mxu0
      %v734 = vadd.f32 0.0, %v733
      %v735 = vpop.f32.mrb[0].mxu0
      %736 = vmatprep.mubr.bf16.mxu0 0
      %737 = vmatmul.mubr.bf16.gmra.mrb[0].mxu0 %v580
      %v738 = vpop.f32.mrb[0].mxu0
      %v739 = vadd.f32 0.0, %v738
      %v740 = vpop.f32.mrb[0].mxu0
      %v741 = vpop.f32.mrb[0].mxu0
      %v742 = vadd.f32 0.0, %v741
      %v743 = vpop.f32.mrb[0].mxu0
      %744 = vmatprep.mubr.bf16.mxu0 0
      %745 = vmatmul.mubr.bf16.gmra.mrb[0].mxu0 %v581
      %v746 = vpop.f32.mrb[0].mxu0
      %v747 = vadd.f32 0.0, %v746
      %v748 = vpop.f32.mrb[0].mxu0
      %v749 = vpop.f32.mrb[0].mxu0
      %v750 = vadd.f32 0.0, %v749
      %v751 = vpop.f32.mrb[0].mxu0
      %752 = vmatprep.mubr.bf16.mxu0 0
      %753 = vmatmul.mubr.bf16.gmra.mrb[0].mxu0 %v582
      %v754 = vpop.f32.mrb[0].mxu0
      %v755 = vadd.f32 0.0, %v754
      %v756 = vpop.f32.mrb[0].mxu0
      %v757 = vpop.f32.mrb[0].mxu0
      %v758 = vadd.f32 0.0, %v757
      %v759 = vpop.f32.mrb[0].mxu0
      %760 = vmatprep.mubr.bf16.mxu0 0
      %761 = vmatmul.mubr.bf16.gmra.mrb[0].mxu0 %v583
      %v762 = vpop.f32.mrb[0].mxu0
      %v763 = vadd.f32 0.0, %v762
      %v764 = vpop.f32.mrb[0].mxu0
      %v765 = vpop.f32.mrb[0].mxu0
      %v766 = vadd.f32 0.0, %v765
      %v767 = vpop.f32.mrb[0].mxu0
      %768 = vmatprep.mubr.bf16.mxu0 0
      %769 = vmatmul.mubr.bf16.gmra.mrb[0].mxu0 %v584
      %v770 = vpop.f32.mrb[0].mxu0
      %v771 = vadd.f32 0.0, %v770
      %v772 = vpop.f32.mrb[0].mxu0
      %v773 = vpop.f32.mrb[0].mxu0
      %v774 = vadd.f32 0.0, %v773
      %v775 = vpop.f32.mrb[0].mxu0
      %776 = vmatprep.mubr.bf16.mxu0 0
      %777 = vmatmul.mubr.bf16.gmra.mrb[0].mxu0 %v585
      %v778 = vpop.f32.mrb[0].mxu0
      %v779 = vadd.f32 0.0, %v778
      %v780 = vpop.f32.mrb[0].mxu0
      %v781 = vpop.f32.mrb[0].mxu0
      %v782 = vadd.f32 0.0, %v781
      %v783 = vpop.f32.mrb[0].mxu0
      %784 = vmatprep.mubr.bf16.mxu0 0
      %785 = vmatmul.mubr.bf16.gmra.mrb[0].mxu0 %v586
      %v786 = vpop.f32.mrb[0].mxu0
      %v787 = vadd.f32 0.0, %v786
      %v788 = vpop.f32.mrb[0].mxu0
      %v789 = vpop.f32.mrb[0].mxu0
      %v790 = vadd.f32 0.0, %v789
      %v791 = vpop.f32.mrb[0].mxu0
      %792 = vmatprep.mubr.bf16.mxu0 0
      %793 = vmatmul.mubr.bf16.gmra.mrb[0].mxu0 %v587
      %v794 = vpop.f32.mrb[0].mxu0
      %v795 = vadd.f32 0.0, %v794
      %v796 = vpop.f32.mrb[0].mxu0
      %v797 = vpop.f32.mrb[0].mxu0
      %v798 = vadd.f32 0.0, %v797
      %v799 = vpop.f32.mrb[0].mxu0
      %800 = vmatprep.mubr.bf16.mxu0 0
      %801 = vmatmul.mubr.bf16.gmra.mrb[0].mxu0 %v588
      %v802 = vpop.f32.mrb[0].mxu0
      %v803 = vadd.f32 0.0, %v802
      %v804 = vpop.f32.mrb[0].mxu0
      %v805 = vpop.f32.mrb[0].mxu0
      %v806 = vadd.f32 0.0, %v805
      %v807 = vpop.f32.mrb[0].mxu0
      %808 = vmatprep.mubr.bf16.mxu0 0
      %809 = vmatmul.mubr.bf16.gmra.mrb[0].mxu0 %v589
      %v810 = vpop.f32.mrb[0].mxu0
      %v811 = vadd.f32 0.0, %v810
      %v812 = vpop.f32.mrb[0].mxu0
      %v813 = vpop.f32.mrb[0].mxu0
      %v814 = vadd.f32 0.0, %v813
      %v815 = vpop.f32.mrb[0].mxu0
      %816 = vmatprep.mubr.bf16.mxu0 0
      %817 = vmatmul.mubr.bf16.gmra.mrb[0].mxu0 %v590
      %v818 = vpop.f32.mrb[0].mxu0
      %v819 = vadd.f32 0.0, %v818
      %v820 = vpop.f32.mrb[0].mxu0
      %v821 = vpop.f32.mrb[0].mxu0
      %v822 = vadd.f32 0.0, %v821
      %v823 = vpop.f32.mrb[0].mxu0
      %824 = vdwg.mxu0
      %vm825 = vcmask 130048
      %826 = vst.msk [vmem:[#allocation2] sm:$0xff] %vm825, %v691
      %827 = vst.msk [vmem:[#allocation2 + $0x8] sm:$0xff] %vm825, %v694
      %828 = vst.msk [vmem:[#allocation2 + $0x10] sm:$0xff] %vm825, %v699
      %829 = vst.msk [vmem:[#allocation2 + $0x18] sm:$0xff] %vm825, %v702
      %830 = vst.msk [vmem:[#allocation2 + $0x20] sm:$0xff] %vm825, %v707
      %831 = vst.msk [vmem:[#allocation2 + $0x28] sm:$0xff] %vm825, %v710
      %832 = vst.msk [vmem:[#allocation2 + $0x30] sm:$0xff] %vm825, %v715
      %833 = vst.msk [vmem:[#allocation2 + $0x38] sm:$0xff] %vm825, %v718
      %834 = vst.msk [vmem:[#allocation2 + $0x40] sm:$0xff] %vm825, %v723
      %835 = vst.msk [vmem:[#allocation2 + $0x48] sm:$0xff] %vm825, %v726
      %836 = vst.msk [vmem:[#allocation2 + $0x50] sm:$0xff] %vm825, %v731
      %837 = vst.msk [vmem:[#allocation2 + $0x58] sm:$0xff] %vm825, %v734
      %838 = vst.msk [vmem:[#allocation2 + $0x60] sm:$0xff] %vm825, %v739
      %839 = vst.msk [vmem:[#allocation2 + $0x68] sm:$0xff] %vm825, %v742
      %840 = vst.msk [vmem:[#allocation2 + $0x70] sm:$0xff] %vm825, %v747
      %841 = vst.msk [vmem:[#allocation2 + $0x78] sm:$0xff] %vm825, %v750
      %842 = vst.msk [vmem:[#allocation2 + $0x80] sm:$0xff] %vm825, %v755
      %843 = vst.msk [vmem:[#allocation2 + $0x88] sm:$0xff] %vm825, %v758
      %844 = vst.msk [vmem:[#allocation2 + $0x90] sm:$0xff] %vm825, %v763
      %845 = vst.msk [vmem:[#allocation2 + $0x98] sm:$0xff] %vm825, %v766
      %846 = vst.msk [vmem:[#allocation2 + $0xa0] sm:$0xff] %vm825, %v771
      %847 = vst.msk [vmem:[#allocation2 + $0xa8] sm:$0xff] %vm825, %v774
      %848 = vst.msk [vmem:[#allocation2 + $0xb0] sm:$0xff] %vm825, %v779
      %849 = vst.msk [vmem:[#allocation2 + $0xb8] sm:$0xff] %vm825, %v782
      %850 = vst.msk [vmem:[#allocation2 + $0xc0] sm:$0xff] %vm825, %v787
      %851 = vst.msk [vmem:[#allocation2 + $0xc8] sm:$0xff] %vm825, %v790
      %852 = vst.msk [vmem:[#allocation2 + $0xd0] sm:$0xff] %vm825, %v795
      %853 = vst.msk [vmem:[#allocation2 + $0xd8] sm:$0xff] %vm825, %v798
      %854 = vst.msk [vmem:[#allocation2 + $0xe0] sm:$0xff] %vm825, %v803
      %855 = vst.msk [vmem:[#allocation2 + $0xe8] sm:$0xff] %vm825, %v806
      %856 = vst.msk [vmem:[#allocation2 + $0xf0] sm:$0xff] %vm825, %v811
      %857 = vst.msk [vmem:[#allocation2 + $0xf8] sm:$0xff] %vm825, %v814
      %858 = vst.msk [vmem:[#allocation2 + $0x100] sm:$0xff] %vm825, %v819
      %859 = vst.msk [vmem:[#allocation2 + $0x108] sm:$0xff] %vm825, %v822
      %v860 = vld [vmem:[#allocation2] sm:$0xff]
      %v861 = vld [vmem:[#allocation2 + $0x8] sm:$0xff]
      %v862 = vld [vmem:[#allocation2 + $0x10] sm:$0xff]
      %v863 = vld [vmem:[#allocation2 + $0x18] sm:$0xff]
      %v864 = vld [vmem:[#allocation2 + $0x20] sm:$0xff]
      %v865 = vld [vmem:[#allocation2 + $0x28] sm:$0xff]
      %v866 = vld [vmem:[#allocation2 + $0x30] sm:$0xff]
      %v867 = vld [vmem:[#allocation2 + $0x38] sm:$0xff]
      %v868 = vld [vmem:[#allocation2 + $0x40] sm:$0xff]
      %v869 = vld [vmem:[#allocation2 + $0x48] sm:$0xff]
      %v870 = vld [vmem:[#allocation2 + $0x50] sm:$0xff]
      %v871 = vld [vmem:[#allocation2 + $0x58] sm:$0xff]
      %v872 = vld [vmem:[#allocation2 + $0x60] sm:$0xff]
      %v873 = vld [vmem:[#allocation2 + $0x68] sm:$0xff]
      %v874 = vld [vmem:[#allocation2 + $0x70] sm:$0xff]
      %v875 = vld [vmem:[#allocation2 + $0x78] sm:$0xff]
      %v876 = vld [vmem:[#allocation2 + $0x80] sm:$0xff]
      %v877 = vld [vmem:[#allocation2 + $0x88] sm:$0xff]
      %v878 = vld [vmem:[#allocation2 + $0x90] sm:$0xff]
      %v879 = vld [vmem:[#allocation2 + $0x98] sm:$0xff]
      %v880 = vld [vmem:[#allocation2 + $0xa0] sm:$0xff]
      %v881 = vld [vmem:[#allocation2 + $0xa8] sm:$0xff]
      %v882 = vld [vmem:[#allocation2 + $0xb0] sm:$0xff]
      %v883 = vld [vmem:[#allocation2 + $0xb8] sm:$0xff]
      %v884 = vld [vmem:[#allocation2 + $0xc0] sm:$0xff]
      %v885 = vld [vmem:[#allocation2 + $0xc8] sm:$0xff]
      %v886 = vld [vmem:[#allocation2 + $0xd0] sm:$0xff]
      %v887 = vld [vmem:[#allocation2 + $0xd8] sm:$0xff]
      %v888 = vld [vmem:[#allocation2 + $0xe0] sm:$0xff]
      %v889 = vld [vmem:[#allocation2 + $0xe8] sm:$0xff]
      %v890 = vld [vmem:[#allocation2 + $0xf0] sm:$0xff]
      %v891 = vld [vmem:[#allocation2 + $0xf8] sm:$0xff]
      %v892 = vld [vmem:[#allocation2 + $0x100] sm:$0xff]
      %v893 = vld [vmem:[#allocation2 + $0x108] sm:$0xff]
      %v894 = vsel %vm422, 1, 0
      %v895 = vsel %vm423, 1, 0
      %v896 = vsel %vm424, 1, 0
      %v897 = vsel %vm425, 1, 0
      %v898 = vsel %vm426, 1, 0
      %v899 = vsel %vm427, 1, 0
      %v900 = vsel %vm428, 1, 0
      %v901 = vsel %vm429, 1, 0
      %v902 = vsel %vm430, 1, 0
      %v903 = vsel %vm431, 1, 0
      %v904 = vsel %vm432, 1, 0
      %v905 = vsel %vm433, 1, 0
      %v906 = vsel %vm434, 1, 0
      %v907 = vsel %vm435, 1, 0
      %v908 = vsel %vm436, 1, 0
      %v909 = vsel %vm437, 1, 0
      %v910 = vsel %vm438, 1, 0
      %v911 = vsel %vm439, 1, 0
      %v912 = vsel %vm440, 1, 0
      %v913 = vsel %vm441, 1, 0
      %v914 = vsel %vm442, 1, 0
      %v915 = vsel %vm443, 1, 0
      %v916 = vsel %vm444, 1, 0
      %v917 = vsel %vm445, 1, 0
      %v918 = vsel %vm446, 1, 0
      %v919 = vsel %vm447, 1, 0
      %v920 = vsel %vm448, 1, 0
      %v921 = vsel %vm449, 1, 0
      %v922 = vsel %vm450, 1, 0
      %v923 = vsel %vm451, 1, 0
      %v924 = vsel %vm452, 1, 0
      %v925 = vsel %vm453, 1, 0
      %v926 = vsel %vm454, 1, 0
      %v927 = vsel %vm455, 1, 0
      %vm928 = vcmp.eq.s32.totalorder %v894, 1
      %vm929 = vcmp.eq.s32.totalorder %v895, 1
      %vm930 = vcmp.eq.s32.totalorder %v896, 1
      %vm931 = vcmp.eq.s32.totalorder %v897, 1
      %vm932 = vcmp.eq.s32.totalorder %v898, 1
      %vm933 = vcmp.eq.s32.totalorder %v899, 1
      %vm934 = vcmp.eq.s32.totalorder %v900, 1
      %vm935 = vcmp.eq.s32.totalorder %v901, 1
      %vm936 = vcmp.eq.s32.totalorder %v902, 1
      %vm937 = vcmp.eq.s32.totalorder %v903, 1
      %vm938 = vcmp.eq.s32.totalorder %v904, 1
      %vm939 = vcmp.eq.s32.totalorder %v905, 1
      %vm940 = vcmp.eq.s32.totalorder %v906, 1
      %vm941 = vcmp.eq.s32.totalorder %v907, 1
      %vm942 = vcmp.eq.s32.totalorder %v908, 1
      %vm943 = vcmp.eq.s32.totalorder %v909, 1
      %vm944 = vcmp.eq.s32.totalorder %v910, 1
      %vm945 = vcmp.eq.s32.totalorder %v911, 1
      %vm946 = vcmp.eq.s32.totalorder %v912, 1
      %vm947 = vcmp.eq.s32.totalorder %v913, 1
      %vm948 = vcmp.eq.s32.totalorder %v914, 1
      %vm949 = vcmp.eq.s32.totalorder %v915, 1
      %vm950 = vcmp.eq.s32.totalorder %v916, 1
      %vm951 = vcmp.eq.s32.totalorder %v917, 1
      %vm952 = vcmp.eq.s32.totalorder %v918, 1
      %vm953 = vcmp.eq.s32.totalorder %v919, 1
      %vm954 = vcmp.eq.s32.totalorder %v920, 1
      %vm955 = vcmp.eq.s32.totalorder %v921, 1
      %vm956 = vcmp.eq.s32.totalorder %v922, 1
      %vm957 = vcmp.eq.s32.totalorder %v923, 1
      %vm958 = vcmp.eq.s32.totalorder %v924, 1
      %vm959 = vcmp.eq.s32.totalorder %v925, 1
      %vm960 = vcmp.eq.s32.totalorder %v926, 1
      %vm961 = vcmp.eq.s32.totalorder %v927, 1
      %v962 = vsel %vm928, %v860, 0.0
      %v963 = vsel %vm929, %v861, 0.0
      %v964 = vsel %vm930, %v862, 0.0
      %v965 = vsel %vm931, %v863, 0.0
      %v966 = vsel %vm932, %v864, 0.0
      %v967 = vsel %vm933, %v865, 0.0
      %v968 = vsel %vm934, %v866, 0.0
      %v969 = vsel %vm935, %v867, 0.0
      %v970 = vsel %vm936, %v868, 0.0
      %v971 = vsel %vm937, %v869, 0.0
      %v972 = vsel %vm938, %v870, 0.0
      %v973 = vsel %vm939, %v871, 0.0
      %v974 = vsel %vm940, %v872, 0.0
      %v975 = vsel %vm941, %v873, 0.0
      %v976 = vsel %vm942, %v874, 0.0
      %v977 = vsel %vm943, %v875, 0.0
      %v978 = vsel %vm944, %v876, 0.0
      %v979 = vsel %vm945, %v877, 0.0
      %v980 = vsel %vm946, %v878, 0.0
      %v981 = vsel %vm947, %v879, 0.0
      %v982 = vsel %vm948, %v880, 0.0
      %v983 = vsel %vm949, %v881, 0.0
      %v984 = vsel %vm950, %v882, 0.0
      %v985 = vsel %vm951, %v883, 0.0
      %v986 = vsel %vm952, %v884, 0.0
      %v987 = vsel %vm953, %v885, 0.0
      %v988 = vsel %vm954, %v886, 0.0
      %v989 = vsel %vm955, %v887, 0.0
      %v990 = vsel %vm956, %v888, 0.0
      %v991 = vsel %vm957, %v889, 0.0
      %v992 = vsel %vm958, %v890, 0.0
      %v993 = vsel %vm959, %v891, 0.0
      %v994 = vsel %vm960, %v892, 0.0
      %v995 = vsel %vm961, %v893, 0.0
      %v996 = vsel %vm825, %v962, 0.0
      %v997 = vsel %vm825, %v963, 0.0
      %v998 = vadd.f32 %v996, %v997
      %v999 = vsel %vm825, %v964, 0.0
      %v1000 = vadd.f32 %v998, %v999
      %v1001 = vsel %vm825, %v965, 0.0
      %v1002 = vadd.f32 %v1000, %v1001
      %v1003 = vsel %vm825, %v966, 0.0
      %v1004 = vadd.f32 %v1002, %v1003
      %v1005 = vsel %vm825, %v967, 0.0
      %v1006 = vadd.f32 %v1004, %v1005
      %v1007 = vsel %vm825, %v968, 0.0
      %v1008 = vadd.f32 %v1006, %v1007
      %v1009 = vsel %vm825, %v969, 0.0
      %v1010 = vadd.f32 %v1008, %v1009
      %v1011 = vsel %vm825, %v970, 0.0
      %v1012 = vadd.f32 %v1010, %v1011
      %v1013 = vsel %vm825, %v971, 0.0
      %v1014 = vadd.f32 %v1012, %v1013
      %v1015 = vsel %vm825, %v972, 0.0
      %v1016 = vadd.f32 %v1014, %v1015
      %v1017 = vsel %vm825, %v973, 0.0
      %v1018 = vadd.f32 %v1016, %v1017
      %v1019 = vsel %vm825, %v974, 0.0
      %v1020 = vadd.f32 %v1018, %v1019
      %v1021 = vsel %vm825, %v975, 0.0
      %v1022 = vadd.f32 %v1020, %v1021
      %v1023 = vsel %vm825, %v976, 0.0
      %v1024 = vadd.f32 %v1022, %v1023
      %v1025 = vsel %vm825, %v977, 0.0
      %v1026 = vadd.f32 %v1024, %v1025
      %v1027 = vsel %vm825, %v978, 0.0
      %v1028 = vadd.f32 %v1026, %v1027
      %v1029 = vsel %vm825, %v979, 0.0
      %v1030 = vadd.f32 %v1028, %v1029
      %v1031 = vsel %vm825, %v980, 0.0
      %v1032 = vadd.f32 %v1030, %v1031
      %v1033 = vsel %vm825, %v981, 0.0
      %v1034 = vadd.f32 %v1032, %v1033
      %v1035 = vsel %vm825, %v982, 0.0
      %v1036 = vadd.f32 %v1034, %v1035
      %v1037 = vsel %vm825, %v983, 0.0
      %v1038 = vadd.f32 %v1036, %v1037
      %v1039 = vsel %vm825, %v984, 0.0
      %v1040 = vadd.f32 %v1038, %v1039
      %v1041 = vsel %vm825, %v985, 0.0
      %v1042 = vadd.f32 %v1040, %v1041
      %v1043 = vsel %vm825, %v986, 0.0
      %v1044 = vadd.f32 %v1042, %v1043
      %v1045 = vsel %vm825, %v987, 0.0
      %v1046 = vadd.f32 %v1044, %v1045
      %v1047 = vsel %vm825, %v988, 0.0
      %v1048 = vadd.f32 %v1046, %v1047
      %v1049 = vsel %vm825, %v989, 0.0
      %v1050 = vadd.f32 %v1048, %v1049
      %v1051 = vsel %vm825, %v990, 0.0
      %v1052 = vadd.f32 %v1050, %v1051
      %v1053 = vsel %vm825, %v991, 0.0
      %v1054 = vadd.f32 %v1052, %v1053
      %v1055 = vsel %vm825, %v992, 0.0
      %v1056 = vadd.f32 %v1054, %v1055
      %v1057 = vsel %vm825, %v993, 0.0
      %v1058 = vadd.f32 %v1056, %v1057
      %v1059 = vsel %vm825, %v994, 0.0
      %v1060 = vadd.f32 %v1058, %v1059
      %v1061 = vsel %vm825, %v995, 0.0
      %v1062 = vadd.f32 %v1060, %v1061
      %v1063 = vrot.slane %v1062, 4
      %v1064 = vadd.f32 %v1062, %v1063
      %v1065 = vrot.slane %v1064, 2
      %v1066 = vadd.f32 %v1064, %v1065
      %v1067 = vrot.slane %v1066, 1
      %v1068 = vadd.f32 %v1066, %v1067
      %v1069 = vmul.f32 %v860, %v860
      %v1070 = vmul.f32 %v861, %v861
      %v1071 = vmul.f32 %v862, %v862
      %v1072 = vmul.f32 %v863, %v863
      %v1073 = vmul.f32 %v864, %v864
      %v1074 = vmul.f32 %v865, %v865
      %v1075 = vmul.f32 %v866, %v866
      %v1076 = vmul.f32 %v867, %v867
      %v1077 = vmul.f32 %v868, %v868
      %v1078 = vmul.f32 %v869, %v869
      %v1079 = vmul.f32 %v870, %v870
      %v1080 = vmul.f32 %v871, %v871
      %v1081 = vmul.f32 %v872, %v872
      %v1082 = vmul.f32 %v873, %v873
      %v1083 = vmul.f32 %v874, %v874
      %v1084 = vmul.f32 %v875, %v875
      %v1085 = vmul.f32 %v876, %v876
      %v1086 = vmul.f32 %v877, %v877
      %v1087 = vmul.f32 %v878, %v878
      %v1088 = vmul.f32 %v879, %v879
      %v1089 = vmul.f32 %v880, %v880
      %v1090 = vmul.f32 %v881, %v881
      %v1091 = vmul.f32 %v882, %v882
      %v1092 = vmul.f32 %v883, %v883
      %v1093 = vmul.f32 %v884, %v884
      %v1094 = vmul.f32 %v885, %v885
      %v1095 = vmul.f32 %v886, %v886
      %v1096 = vmul.f32 %v887, %v887
      %v1097 = vmul.f32 %v888, %v888
      %v1098 = vmul.f32 %v889, %v889
      %v1099 = vmul.f32 %v890, %v890
      %v1100 = vmul.f32 %v891, %v891
      %v1101 = vmul.f32 %v892, %v892
      %v1102 = vmul.f32 %v893, %v893
      %v1103 = vsel %vm928, %v1069, 0.0
      %v1104 = vsel %vm929, %v1070, 0.0
      %v1105 = vsel %vm930, %v1071, 0.0
      %v1106 = vsel %vm931, %v1072, 0.0
      %v1107 = vsel %vm932, %v1073, 0.0
      %v1108 = vsel %vm933, %v1074, 0.0
      %v1109 = vsel %vm934, %v1075, 0.0
      %v1110 = vsel %vm935, %v1076, 0.0
      %v1111 = vsel %vm936, %v1077, 0.0
      %v1112 = vsel %vm937, %v1078, 0.0
      %v1113 = vsel %vm938, %v1079, 0.0
      %v1114 = vsel %vm939, %v1080, 0.0
      %v1115 = vsel %vm940, %v1081, 0.0
      %v1116 = vsel %vm941, %v1082, 0.0
      %v1117 = vsel %vm942, %v1083, 0.0
      %v1118 = vsel %vm943, %v1084, 0.0
      %v1119 = vsel %vm944, %v1085, 0.0
      %v1120 = vsel %vm945, %v1086, 0.0
      %v1121 = vsel %vm946, %v1087, 0.0
      %v1122 = vsel %vm947, %v1088, 0.0
      %v1123 = vsel %vm948, %v1089, 0.0
      %v1124 = vsel %vm949, %v1090, 0.0
      %v1125 = vsel %vm950, %v1091, 0.0
      %v1126 = vsel %vm951, %v1092, 0.0
      %v1127 = vsel %vm952, %v1093, 0.0
      %v1128 = vsel %vm953, %v1094, 0.0
      %v1129 = vsel %vm954, %v1095, 0.0
      %v1130 = vsel %vm955, %v1096, 0.0
      %v1131 = vsel %vm956, %v1097, 0.0
      %v1132 = vsel %vm957, %v1098, 0.0
      %v1133 = vsel %vm958, %v1099, 0.0
      %v1134 = vsel %vm959, %v1100, 0.0
      %v1135 = vsel %vm960, %v1101, 0.0
      %v1136 = vsel %vm961, %v1102, 0.0
      %v1137 = vsel %vm825, %v1103, 0.0
      %v1138 = vsel %vm825, %v1104, 0.0
      %v1139 = vadd.f32 %v1137, %v1138
      %v1140 = vsel %vm825, %v1105, 0.0
      %v1141 = vadd.f32 %v1139, %v1140
      %v1142 = vsel %vm825, %v1106, 0.0
      %v1143 = vadd.f32 %v1141, %v1142
      %v1144 = vsel %vm825, %v1107, 0.0
      %v1145 = vadd.f32 %v1143, %v1144
      %v1146 = vsel %vm825, %v1108, 0.0
      %v1147 = vadd.f32 %v1145, %v1146
      %v1148 = vsel %vm825, %v1109, 0.0
      %v1149 = vadd.f32 %v1147, %v1148
      %v1150 = vsel %vm825, %v1110, 0.0
      %v1151 = vadd.f32 %v1149, %v1150
      %v1152 = vsel %vm825, %v1111, 0.0
      %v1153 = vadd.f32 %v1151, %v1152
      %v1154 = vsel %vm825, %v1112, 0.0
      %v1155 = vadd.f32 %v1153, %v1154
      %v1156 = vsel %vm825, %v1113, 0.0
      %v1157 = vadd.f32 %v1155, %v1156
      %v1158 = vsel %vm825, %v1114, 0.0
      %v1159 = vadd.f32 %v1157, %v1158
      %v1160 = vsel %vm825, %v1115, 0.0
      %v1161 = vadd.f32 %v1159, %v1160
      %v1162 = vsel %vm825, %v1116, 0.0
      %v1163 = vadd.f32 %v1161, %v1162
      %v1164 = vsel %vm825, %v1117, 0.0
      %v1165 = vadd.f32 %v1163, %v1164
      %v1166 = vsel %vm825, %v1118, 0.0
      %v1167 = vadd.f32 %v1165, %v1166
      %v1168 = vsel %vm825, %v1119, 0.0
      %v1169 = vadd.f32 %v1167, %v1168
      %v1170 = vsel %vm825, %v1120, 0.0
      %v1171 = vadd.f32 %v1169, %v1170
      %v1172 = vsel %vm825, %v1121, 0.0
      %v1173 = vadd.f32 %v1171, %v1172
      %v1174 = vsel %vm825, %v1122, 0.0
      %v1175 = vadd.f32 %v1173, %v1174
      %v1176 = vsel %vm825, %v1123, 0.0
      %v1177 = vadd.f32 %v1175, %v1176
      %v1178 = vsel %vm825, %v1124, 0.0
      %v1179 = vadd.f32 %v1177, %v1178
      %v1180 = vsel %vm825, %v1125, 0.0
      %v1181 = vadd.f32 %v1179, %v1180
      %v1182 = vsel %vm825, %v1126, 0.0
      %v1183 = vadd.f32 %v1181, %v1182
      %v1184 = vsel %vm825, %v1127, 0.0
      %v1185 = vadd.f32 %v1183, %v1184
      %v1186 = vsel %vm825, %v1128, 0.0
      %v1187 = vadd.f32 %v1185, %v1186
      %v1188 = vsel %vm825, %v1129, 0.0
      %v1189 = vadd.f32 %v1187, %v1188
      %v1190 = vsel %vm825, %v1130, 0.0
      %v1191 = vadd.f32 %v1189, %v1190
      %v1192 = vsel %vm825, %v1131, 0.0
      %v1193 = vadd.f32 %v1191, %v1192
      %v1194 = vsel %vm825, %v1132, 0.0
      %v1195 = vadd.f32 %v1193, %v1194
      %v1196 = vsel %vm825, %v1133, 0.0
      %v1197 = vadd.f32 %v1195, %v1196
      %v1198 = vsel %vm825, %v1134, 0.0
      %v1199 = vadd.f32 %v1197, %v1198
      %v1200 = vsel %vm825, %v1135, 0.0
      %v1201 = vadd.f32 %v1199, %v1200
      %v1202 = vsel %vm825, %v1136, 0.0
      %v1203 = vadd.f32 %v1201, %v1202
      %v1204 = vrot.slane %v1203, 4
      %v1205 = vadd.f32 %v1203, %v1204
      %v1206 = vrot.slane %v1205, 2
      %v1207 = vadd.f32 %v1205, %v1206
      %v1208 = vrot.slane %v1207, 1
      %v1209 = vadd.f32 %v1207, %v1208
      %vm1210 = vcmask 1040384
      %v1211 = vsel %vm1210, %v1068, %v1209
      %vm1212 = vcmask 123904
      %1213 = vst.msk [vmem:[%s181] sm:$0x3] %vm1212, %v1211
      %v1214 = vpack.c.bf16 %v861, %v860
      %v1215 = vpack.c.bf16 %v863, %v862
      %v1216 = vpack.c.bf16 %v865, %v864
      %v1217 = vpack.c.bf16 %v867, %v866
      %v1218 = vpack.c.bf16 %v869, %v868
      %v1219 = vpack.c.bf16 %v871, %v870
      %v1220 = vpack.c.bf16 %v873, %v872
      %v1221 = vpack.c.bf16 %v875, %v874
      %v1222 = vpack.c.bf16 %v877, %v876
      %v1223 = vpack.c.bf16 %v879, %v878
      %v1224 = vpack.c.bf16 %v881, %v880
      %v1225 = vpack.c.bf16 %v883, %v882
      %v1226 = vpack.c.bf16 %v885, %v884
      %v1227 = vpack.c.bf16 %v887, %v886
      %v1228 = vpack.c.bf16 %v889, %v888
      %v1229 = vpack.c.bf16 %v891, %v890
      %v1230 = vpack.c.bf16 %v893, %v892
      %v1248 = vunpack.c.l.b16 %v1214
      %v1249 = vunpack.c.h.b16 %v1214
      %v1250 = vunpack.c.l.b16 %v1215
      %v1251 = vunpack.c.h.b16 %v1215
      %v1252 = vunpack.c.l.b16 %v1216
      %v1253 = vunpack.c.h.b16 %v1216
      %v1254 = vunpack.c.l.b16 %v1217
      %v1255 = vunpack.c.h.b16 %v1217
      %v1256 = vunpack.c.l.b16 %v1218
      %v1257 = vunpack.c.h.b16 %v1218
      %v1258 = vunpack.c.l.b16 %v1219
      %v1259 = vunpack.c.h.b16 %v1219
      %v1260 = vunpack.c.l.b16 %v1220
      %v1261 = vunpack.c.h.b16 %v1220
      %v1262 = vunpack.c.l.b16 %v1221
      %v1263 = vunpack.c.h.b16 %v1221
      %v1264 = vunpack.c.l.b16 %v1222
      %v1265 = vunpack.c.h.b16 %v1222
      %v1266 = vunpack.c.l.b16 %v1223
      %v1267 = vunpack.c.h.b16 %v1223
      %v1268 = vunpack.c.l.b16 %v1224
      %v1269 = vunpack.c.h.b16 %v1224
      %v1270 = vunpack.c.l.b16 %v1225
      %v1271 = vunpack.c.h.b16 %v1225
      %v1272 = vunpack.c.l.b16 %v1226
      %v1273 = vunpack.c.h.b16 %v1226
      %v1274 = vunpack.c.l.b16 %v1227
      %v1275 = vunpack.c.h.b16 %v1227
      %v1276 = vunpack.c.l.b16 %v1228
      %v1277 = vunpack.c.h.b16 %v1228
      %v1278 = vunpack.c.l.b16 %v1229
      %v1279 = vunpack.c.h.b16 %v1229
      %v1280 = vunpack.c.l.b16 %v1230
      %v1281 = vunpack.c.h.b16 %v1230
      %v1282 = vpack.c.b16 %v1248, %v1248
      %v1283 = vpack.c.b16 %v1249, %v1249
      %v1284 = vpack.c.b16 %v1250, %v1250
      %v1285 = vpack.c.b16 %v1251, %v1251
      %v1286 = vpack.c.b16 %v1252, %v1252
      %v1287 = vpack.c.b16 %v1253, %v1253
      %v1288 = vpack.c.b16 %v1254, %v1254
      %v1289 = vpack.c.b16 %v1255, %v1255
      %v1290 = vpack.c.b16 %v1256, %v1256
      %v1291 = vpack.c.b16 %v1257, %v1257
      %v1292 = vpack.c.b16 %v1258, %v1258
      %v1293 = vpack.c.b16 %v1259, %v1259
      %v1294 = vpack.c.b16 %v1260, %v1260
      %v1295 = vpack.c.b16 %v1261, %v1261
      %v1296 = vpack.c.b16 %v1262, %v1262
      %v1297 = vpack.c.b16 %v1263, %v1263
      %v1298 = vpack.c.b16 %v1264, %v1264
      %v1299 = vpack.c.b16 %v1265, %v1265
      %v1300 = vpack.c.b16 %v1266, %v1266
      %v1301 = vpack.c.b16 %v1267, %v1267
      %v1302 = vpack.c.b16 %v1268, %v1268
      %v1303 = vpack.c.b16 %v1269, %v1269
      %v1304 = vpack.c.b16 %v1270, %v1270
      %v1305 = vpack.c.b16 %v1271, %v1271
      %v1306 = vpack.c.b16 %v1272, %v1272
      %v1307 = vpack.c.b16 %v1273, %v1273
      %v1308 = vpack.c.b16 %v1274, %v1274
      %v1309 = vpack.c.b16 %v1275, %v1275
      %v1310 = vpack.c.b16 %v1276, %v1276
      %v1311 = vpack.c.b16 %v1277, %v1277
      %v1312 = vpack.c.b16 %v1278, %v1278
      %v1313 = vpack.c.b16 %v1279, %v1279
      %v1314 = vpack.c.b16 %v1280, %v1280
      %v1315 = vpack.c.b16 %v1281, %v1281
      %vm1350 = vcmask 125952
      %1351 = vst.msk [vmem:[%s177] sm:$0xf] %vm1350, %v1282
      %1352 = vst.msk [vmem:[%s177 + $0x4] sm:$0xf] %vm1350, %v1283
      %1353 = vst.msk [vmem:[%s177 + $0x8] sm:$0xf] %vm1350, %v1284
      %1354 = vst.msk [vmem:[%s177 + $0xc] sm:$0xf] %vm1350, %v1285
      %1355 = vst.msk [vmem:[%s177 + $0x10] sm:$0xf] %vm1350, %v1286
      %1356 = vst.msk [vmem:[%s177 + $0x14] sm:$0xf] %vm1350, %v1287
      %1357 = vst.msk [vmem:[%s177 + $0x18] sm:$0xf] %vm1350, %v1288
      %1358 = vst.msk [vmem:[%s177 + $0x1c] sm:$0xf] %vm1350, %v1289
      %1359 = vst.msk [vmem:[%s177 + $0x20] sm:$0xf] %vm1350, %v1290
      %1360 = vst.msk [vmem:[%s177 + $0x24] sm:$0xf] %vm1350, %v1291
      %1361 = vst.msk [vmem:[%s177 + $0x28] sm:$0xf] %vm1350, %v1292
      %1362 = vst.msk [vmem:[%s177 + $0x2c] sm:$0xf] %vm1350, %v1293
      %1363 = vst.msk [vmem:[%s177 + $0x30] sm:$0xf] %vm1350, %v1294
      %1364 = vst.msk [vmem:[%s177 + $0x34] sm:$0xf] %vm1350, %v1295
      %1365 = vst.msk [vmem:[%s177 + $0x38] sm:$0xf] %vm1350, %v1296
      %1366 = vst.msk [vmem:[%s177 + $0x3c] sm:$0xf] %vm1350, %v1297
      %1367 = vst.msk [vmem:[%s177 + $0x40] sm:$0xf] %vm1350, %v1298
      %1368 = vst.msk [vmem:[%s177 + $0x44] sm:$0xf] %vm1350, %v1299
      %1369 = vst.msk [vmem:[%s177 + $0x48] sm:$0xf] %vm1350, %v1300
      %1370 = vst.msk [vmem:[%s177 + $0x4c] sm:$0xf] %vm1350, %v1301
      %1371 = vst.msk [vmem:[%s177 + $0x50] sm:$0xf] %vm1350, %v1302
      %1372 = vst.msk [vmem:[%s177 + $0x54] sm:$0xf] %vm1350, %v1303
      %1373 = vst.msk [vmem:[%s177 + $0x58] sm:$0xf] %vm1350, %v1304
      %1374 = vst.msk [vmem:[%s177 + $0x5c] sm:$0xf] %vm1350, %v1305
      %1375 = vst.msk [vmem:[%s177 + $0x60] sm:$0xf] %vm1350, %v1306
      %1376 = vst.msk [vmem:[%s177 + $0x64] sm:$0xf] %vm1350, %v1307
      %1377 = vst.msk [vmem:[%s177 + $0x68] sm:$0xf] %vm1350, %v1308
      %1378 = vst.msk [vmem:[%s177 + $0x6c] sm:$0xf] %vm1350, %v1309
      %1379 = vst.msk [vmem:[%s177 + $0x70] sm:$0xf] %vm1350, %v1310
      %1380 = vst.msk [vmem:[%s177 + $0x74] sm:$0xf] %vm1350, %v1311
      %1381 = vst.msk [vmem:[%s177 + $0x78] sm:$0xf] %vm1350, %v1312
      %1382 = vst.msk [vmem:[%s177 + $0x7c] sm:$0xf] %vm1350, %v1313
      %1383 = vst.msk [vmem:[%s177 + $0x80] sm:$0xf] %vm1350, %v1314
      %1384 = vst.msk [vmem:[%s177 + $0x84] sm:$0xf] %vm1350, %v1315
      %p1385 = scmp.lt.s32.totalorder %s15, 1
      %s1386 = scalar_select %p1385, %s15, 1
      %s1387 = smul.addr %s1386, 34
      %s1388 = smul.addr %s1387, 4
      %s1389 = scalar_lea.vmem %s2, %s1388
      %p1390 = scmp.lt.s32.totalorder %s15, 1
      %s1391 = scalar_select %p1390, %s15, 1
      %s1392 = smul.addr %s1391, 2
      %s1393 = scalar_lea.vmem %s3, %s1392
      // Predicated region
      $region29: #{discriminator_forward.11} parent=27 // pred_check
        %p1394 = pneg %p80
      $region30: #{discriminator_forward.11} parent=27 // pred_check_branch
        %1396 = sbr.rel (%p1394) target = $region32
      $region31: #{discriminator_forward.11} parent=27 // pred_region
        _
      $region32: #{discriminator_forward.11} parent=27 // pred_fallthru
        _
      // Predicated region
      $region33: #{discriminator_forward.11} parent=27 // pred_check
        %p1397 = pneg %p106
      $region34: #{discriminator_forward.11} parent=27 // pred_check_branch
        %1399 = sbr.rel (%p1397) target = $region36
      $region35: #{discriminator_forward.11} parent=27 // pred_region
        _
      $region36: #{discriminator_forward.11} parent=27 // pred_fallthru
        _
    $region28: #{discriminator_forward.11} parent=5 // pred_fallthru
      _
    %p1400 = scmp.le.s32.totalorder 2, %s10
    // Predicated region
    $region37: #{discriminator_forward.11} parent=5 // pred_check
      %p1401 = pneg %p1400
    $region38: #{discriminator_forward.11} parent=5 // pred_check_branch
      %1403 = sbr.rel (%p1401) target = $region40
    $region39: #{discriminator_forward.11} parent=5 // pred_region
      %s1404 = ssub.s32 %s10, 2
      // Predicated region
      $region41: #{discriminator_forward.11} parent=39 // pred_check
        %p1405 = pneg %p86
      $region42: #{discriminator_forward.11} parent=39 // pred_check_branch
        %1407 = sbr.rel (%p1405) target = $region44
      $region43: #{discriminator_forward.11} parent=39 // pred_region
        %p1408 = scmp.lt.s32.totalorder %s16, 1
        %s1409 = scalar_select %p1408, %s16, 1
        %s1410 = smul.addr %s1409, 34
        %s1411 = smul.addr %s1410, 4
        %s1412 = scalar_lea.vmem %s2, %s1411
      $region44: #{discriminator_forward.11} parent=39 // pred_fallthru
        _
      // Predicated region
      $region45: #{discriminator_forward.11} parent=39 // pred_check
        %p1413 = pneg %p112
      $region46: #{discriminator_forward.11} parent=39 // pred_check_branch
        %1415 = sbr.rel (%p1413) target = $region48
      $region47: #{discriminator_forward.11} parent=39 // pred_region
        %p1416 = scmp.lt.s32.totalorder %s16, 1
        %s1417 = scalar_select %p1416, %s16, 1
        %s1418 = smul.addr %s1417, 2
        %s1419 = scalar_lea.vmem %s3, %s1418
      $region48: #{discriminator_forward.11} parent=39 // pred_fallthru
        _
    $region40: #{discriminator_forward.11} parent=5 // pred_fallthru
      _
  $region6: #{discriminator_forward.11} parent=0 // loop_footer
    %s14 = sadd.s32 1, %s10
  $region7: #{discriminator_forward.11} parent=0 // loop_footer_branch
    %9 = sbr.rel target = $region3
  $region8: #{discriminator_forward.11} parent=0 // loop_exit
    _

// kernel: discriminator_forward.12
$region0: #{discriminator_forward.12}
  #allocation0 [shape = 'u32[]', space=smem, size = 0x4, offset = 0x4, fixed_abs, tag = 'smem constant byte address 0x4 - core index']
  #allocation1 [shape = 'u32[144,128]{1,0:T(1,128)}', space=vmem, size = 0x12000, scoped, tag = 'internal scratch']
  %s0 = inlined_call_operand.vmem [shape: bf16[2,34,128], index: 0, kind: input, shape index: {}]
  %s1 = inlined_call_operand.vmem [shape: f32[1,128], index: 1, kind: input, shape index: {}]
  %s2 = inlined_call_operand.vmem [shape: f32[1,128], index: 2, kind: input, shape index: {}]
  %s3 = inlined_call_operand.vmem [shape: bf16[2,34,128], index: 3, kind: output, shape index: {}]
  %s4 = sld [smem:[#allocation0]]
  $region45: #{discriminator_forward.12} parent=0
    _
  %s6 = ssub.s32 1, %s4
  %s7 = scalar_select 0, %s6, %s4
  loop: start=0, step=1, limit=4
  $region2: #{discriminator_forward.12} parent=0 // loop_pre_header
    _
  $region3: #{discriminator_forward.12} parent=0 // loop_header
    %s9 = sphi 0, %s13
    %p10 = scmp.ge.s32.totalorder %s9, 4
    %s19 = sphi 0, %s21
    %s22 = sphi 0, %s19
    %s23 = sphi 0, %s22
    %s39 = sphi 0, %s23
    %s43 = sphi 0, %s43
    %s45 = sphi 0, %s43
    %s46 = sphi 0, %s45
    %s60 = sphi 0, %s46
    %s64 = sphi 0, %s64
    %s66 = sphi 0, %s64
    %s67 = sphi 0, %s66
    %s81 = sphi 0, %s67
    %s87 = sphi 0, %s89
    %s90 = sphi 0, %s87
    %s91 = sphi 0, %s90
    %s107 = sphi 0, %s91
  $region4: #{discriminator_forward.12} parent=0 // loop_header_branch
    %12 = sbr.rel (%p10) target = $region8
  $region5: #{discriminator_forward.12} parent=0 // loop_body
    %s14 = ssub.s32 %s9, 1
    %s15 = ssub.s32 %s9, 2
    %s16 = sadd.s32 %s9, 1
    %s17 = ssub.s32 %s9, %s16
    %p18 = scmp.eq.s32.totalorder %s17, 0
    %s20 = sadd.s32 %s19, 1
    %s21 = scalar_select %p18, %s19, %s20
    %p24 = pneg %p18
    %p25 = scmp.eq.s32.totalorder %s9, 1
    %p26 = por %p24, %p25
    %p27 = scmp.ne.s32.totalorder %s19, %s22
    %p28 = scmp.eq.s32.totalorder %s9, 0
    %p29 = por %p27, %p28
    %p30 = scmp.ne.s32.totalorder %s19, %s22
    %p31 = scmp.eq.s32.totalorder %s14, 1
    %p32 = por %p30, %p31
    %p33 = scmp.ne.s32.totalorder %s22, %s23
    %p34 = scmp.eq.s32.totalorder %s14, 0
    %p35 = por %p33, %p34
    %p36 = scmp.ne.s32.totalorder %s22, %s23
    %p37 = scmp.eq.s32.totalorder %s15, 1
    %p38 = por %p36, %p37
    %p40 = scmp.ne.s32.totalorder %s23, %s39
    %p41 = scmp.eq.s32.totalorder %s15, 0
    %p42 = por %p40, %p41
    %s44 = sadd.s32 %s43, 1
    %p47 = scmp.eq.s32.totalorder %s9, 1
    %p48 = scmp.ne.s32.totalorder %s43, %s45
    %p49 = scmp.eq.s32.totalorder %s9, 0
    %p50 = por %p48, %p49
    %p51 = scmp.ne.s32.totalorder %s43, %s45
    %p52 = scmp.eq.s32.totalorder %s14, 1
    %p53 = por %p51, %p52
    %p54 = scmp.ne.s32.totalorder %s45, %s46
    %p55 = scmp.eq.s32.totalorder %s14, 0
    %p56 = por %p54, %p55
    %p57 = scmp.ne.s32.totalorder %s45, %s46
    %p58 = scmp.eq.s32.totalorder %s15, 1
    %p59 = por %p57, %p58
    %p61 = scmp.ne.s32.totalorder %s46, %s60
    %p62 = scmp.eq.s32.totalorder %s15, 0
    %p63 = por %p61, %p62
    %s65 = sadd.s32 %s64, 1
    %p68 = scmp.eq.s32.totalorder %s9, 1
    %p69 = scmp.ne.s32.totalorder %s64, %s66
    %p70 = scmp.eq.s32.totalorder %s9, 0
    %p71 = por %p69, %p70
    %p72 = scmp.ne.s32.totalorder %s64, %s66
    %p73 = scmp.eq.s32.totalorder %s14, 1
    %p74 = por %p72, %p73
    %p75 = scmp.ne.s32.totalorder %s66, %s67
    %p76 = scmp.eq.s32.totalorder %s14, 0
    %p77 = por %p75, %p76
    %p78 = scmp.ne.s32.totalorder %s66, %s67
    %p79 = scmp.eq.s32.totalorder %s15, 1
    %p80 = por %p78, %p79
    %p82 = scmp.ne.s32.totalorder %s67, %s81
    %p83 = scmp.eq.s32.totalorder %s15, 0
    %p84 = por %p82, %p83
    %s85 = ssub.s32 %s9, %s16
    %p86 = scmp.eq.s32.totalorder %s85, 0
    %s88 = sadd.s32 %s87, 1
    %s89 = scalar_select %p86, %s87, %s88
    %p92 = pneg %p86
    %p93 = scmp.eq.s32.totalorder %s9, 1
    %p94 = por %p92, %p93
    %p95 = scmp.ne.s32.totalorder %s87, %s90
    %p96 = scmp.eq.s32.totalorder %s9, 0
    %p97 = por %p95, %p96
    %p98 = scmp.ne.s32.totalorder %s87, %s90
    %p99 = scmp.eq.s32.totalorder %s14, 1
    %p100 = por %p98, %p99
    %p101 = scmp.ne.s32.totalorder %s90, %s91
    %p102 = scmp.eq.s32.totalorder %s14, 0
    %p103 = por %p101, %p102
    %p104 = scmp.ne.s32.totalorder %s90, %s91
    %p105 = scmp.eq.s32.totalorder %s15, 1
    %p106 = por %p104, %p105
    %p108 = scmp.ne.s32.totalorder %s91, %s107
    %p109 = scmp.eq.s32.totalorder %s15, 0
    %p110 = por %p108, %p109
    %p111 = scmp.le.s32.totalorder 1, %s9
    %p112 = scmp.lt.s32.totalorder %s9, 3
    %p113 = pnand %p111, %p112
    %p114 = pneg %p113
    // Predicated region
    $region9: #{discriminator_forward.12} parent=5 // pred_check
      _
    $region10: #{discriminator_forward.12} parent=5 // pred_check_branch
      %116 = sbr.rel (%p113) target = $region12
    $region11: #{discriminator_forward.12} parent=5 // pred_region
      %s117 = ssub.s32 %s9, 1
      // Predicated region
      $region13: #{discriminator_forward.12} parent=11 // pred_check
        %p118 = pneg %p56
      $region14: #{discriminator_forward.12} parent=11 // pred_check_branch
        %120 = sbr.rel (%p118) target = $region16
      $region15: #{discriminator_forward.12} parent=11 // pred_region
        _
      $region16: #{discriminator_forward.12} parent=11 // pred_fallthru
        _
      // Predicated region
      $region17: #{discriminator_forward.12} parent=11 // pred_check
        %p121 = pneg %p77
      $region18: #{discriminator_forward.12} parent=11 // pred_check_branch
        %123 = sbr.rel (%p121) target = $region20
      $region19: #{discriminator_forward.12} parent=11 // pred_region
        _
      $region20: #{discriminator_forward.12} parent=11 // pred_fallthru
        _
    $region12: #{discriminator_forward.12} parent=5 // pred_fallthru
      _
    %p124 = scmp.lt.s32.totalorder %s9, 2
    // Predicated region
    $region21: #{discriminator_forward.12} parent=5 // pred_check
      %p125 = pneg %p124
    $region22: #{discriminator_forward.12} parent=5 // pred_check_branch
      %127 = sbr.rel (%p125) target = $region24
    $region23: #{discriminator_forward.12} parent=5 // pred_region
      // Predicated region
      $region25: #{discriminator_forward.12} parent=23 // pred_check
        %p128 = pneg %p29
      $region26: #{discriminator_forward.12} parent=23 // pred_check_branch
        %130 = sbr.rel (%p128) target = $region28
      $region27: #{discriminator_forward.12} parent=23 // pred_region
        %p131 = scmp.lt.s32.totalorder %s9, 1
        %s132 = scalar_select %p131, %s9, 1
        %s133 = smul.addr %s132, 5
        %s134 = smul.addr %s133, 4
        %s135 = scalar_lea.vmem %s0, %s134
      $region28: #{discriminator_forward.12} parent=23 // pred_fallthru
        _
    $region24: #{discriminator_forward.12} parent=5 // pred_fallthru
      _
    %p136 = scmp.le.s32.totalorder 1, %s9
    %p137 = scmp.lt.s32.totalorder %s9, 3
    %p138 = pnand %p136, %p137
    %p139 = pneg %p138
    // Predicated region
    $region29: #{discriminator_forward.12} parent=5 // pred_check
      _
    $region30: #{discriminator_forward.12} parent=5 // pred_check_branch
      %141 = sbr.rel (%p138) target = $region32
    $region31: #{discriminator_forward.12} parent=5 // pred_region
      %s142 = ssub.s32 %s9, 1
      %p143 = scmp.lt.s32.totalorder %s14, 1
      %s144 = scalar_select %p143, %s14, 1
      %s145 = smul.addr %s144, 5
      %s146 = smul.addr %s145, 4
      %s147 = scalar_lea.vmem %s0, %s146
      %p148 = pneg %p35
      %p149 = pneg %p32
      %p150 = pneg %p56
      %p151 = pneg %p53
      %p152 = pneg %p77
      %p153 = pneg %p74
      %p154 = pneg %p103
      %p155 = pneg %p100
      %p156 = scmp.lt.s32.totalorder %s14, 1
      %s157 = scalar_select %p156, %s14, 1
      %s158 = smul.addr %s157, 5
      %s159 = smul.addr %s158, 4
      %s160 = scalar_lea.vmem %s3, %s159
      %p161 = scmp.lt.s32.totalorder %s14, 1
      %s162 = scalar_select %p161, %s14, 1
      %s163 = smul.addr %s162, 5
      %s164 = smul.addr %s163, 4
      %s165 = scalar_lea.vmem %s0, %s164
      %p166 = scmp.lt.s32.totalorder %s14, 1
      %s167 = scalar_select %p166, %s14, 1
      %s168 = smul.addr %s167, 5
      %s169 = smul.addr %s168, 4
      %s170 = scalar_lea.vmem %s3, %s169
      %v171 = vld [vmem:[%s165] sm:$0xf]
      %v172 = vld [vmem:[%s165 + $0x4] sm:$0xf]
      %v173 = vld [vmem:[%s165 + $0x8] sm:$0xf]
      %v174 = vld [vmem:[%s165 + $0xc] sm:$0xf]
      %v175 = vld [vmem:[%s165 + $0x10] sm:$0x1]
      %v176 = vunpack.c.l.bf16 %v171
      %v177 = vunpack.c.l.bf16 %v172
      %v178 = vunpack.c.l.bf16 %v173
      %v179 = vunpack.c.l.bf16 %v174
      %v180 = vunpack.c.l.bf16 %v175
      %v181 = vld [vmem:[%s1] sm:$0x1]
      %v183 = vlaneseq
      %v184 = vshrl.u32 %v183, 7
      %v185 = vsub.s32 0, %v184
      %v186 = vrot.slane %v181, %v185
      %v188 = vmul.f32 %v176, %v186
      %v189 = vmul.f32 %v177, %v186
      %v190 = vmul.f32 %v178, %v186
      %v191 = vmul.f32 %v179, %v186
      %v192 = vmul.f32 %v180, %v186
      %v193 = vld [vmem:[%s2] sm:$0x1]
      %v195 = vlaneseq
      %v196 = vshrl.u32 %v195, 7
      %v197 = vsub.s32 0, %v196
      %v198 = vrot.slane %v193, %v197
      %v200 = vadd.f32 %v188, %v198
      %v201 = vadd.f32 %v189, %v198
      %v202 = vadd.f32 %v190, %v198
      %v203 = vadd.f32 %v191, %v198
      %v204 = vadd.f32 %v192, %v198
      %vm205 = vcmp.ge.f32.partialorder %v200, 0.0
      %vm206 = vcmp.ge.f32.partialorder %v201, 0.0
      %vm207 = vcmp.ge.f32.partialorder %v202, 0.0
      %vm208 = vcmp.ge.f32.partialorder %v203, 0.0
      %vm209 = vcmp.ge.f32.partialorder %v204, 0.0
      %v210 = vmul.f32 %v200, 0.2
      %v211 = vmul.f32 %v201, 0.2
      %v212 = vmul.f32 %v202, 0.2
      %v213 = vmul.f32 %v203, 0.2
      %v214 = vmul.f32 %v204, 0.2
      %v215 = vsel %vm205, %v200, %v210
      %v216 = vsel %vm206, %v201, %v211
      %v217 = vsel %vm207, %v202, %v212
      %v218 = vsel %vm208, %v203, %v213
      %v219 = vsel %vm209, %v204, %v214
      %v220 = vpack.c.bf16 %v216, %v215
      %v221 = vpack.c.bf16 %v218, %v217
      %v222 = vpack.c.bf16 %v219, %v219
      %v226 = vunpack.c.l.b16 %v220
      %v227 = vunpack.c.h.b16 %v220
      %v228 = vunpack.c.l.b16 %v221
      %v229 = vunpack.c.h.b16 %v221
      %v230 = vunpack.c.l.b16 %v222
      %v231 = vpack.c.b16 %v226, %v226
      %v232 = vpack.c.b16 %v227, %v227
      %v233 = vpack.c.b16 %v228, %v228
      %v234 = vpack.c.b16 %v229, %v229
      %v235 = vpack.c.b16 %v230, %v230
      %241 = vst [vmem:[%s170] sm:$0xf] %v231
      %242 = vst [vmem:[%s170 + $0x4] sm:$0xf] %v232
      %243 = vst [vmem:[%s170 + $0x8] sm:$0xf] %v233
      %244 = vst [vmem:[%s170 + $0xc] sm:$0xf] %v234
      %245 = vst [vmem:[%s170 + $0x10] sm:$0x1] %v235
      %p246 = scmp.lt.s32.totalorder %s14, 1
      %s247 = scalar_select %p246, %s14, 1
      %s248 = smul.addr %s247, 5
      %s249 = smul.addr %s248, 4
      %s250 = scalar_lea.vmem %s3, %s249
      // Predicated region
      $region33: #{discriminator_forward.12} parent=31 // pred_check
        %p251 = pneg %p100
      $region34: #{discriminator_forward.12} parent=31 // pred_check_branch
        %253 = sbr.rel (%p251) target = $region36
      $region35: #{discriminator_forward.12} parent=31 // pred_region
        _
      $region36: #{discriminator_forward.12} parent=31 // pred_fallthru
        _
    $region32: #{discriminator_forward.12} parent=5 // pred_fallthru
      _
    %p254 = scmp.le.s32.totalorder 2, %s9
    // Predicated region
    $region37: #{discriminator_forward.12} parent=5 // pred_check
      %p255 = pneg %p254
    $region38: #{discriminator_forward.12} parent=5 // pred_check_branch
      %257 = sbr.rel (%p255) target = $region40
    $region39: #{discriminator_forward.12} parent=5 // pred_region
      %s258 = ssub.s32 %s9, 2
      // Predicated region
      $region41: #{discriminator_forward.12} parent=39 // pred_check
        %p259 = pneg %p106
      $region42: #{discriminator_forward.12} parent=39 // pred_check_branch
        %261 = sbr.rel (%p259) target = $region44
      $region43: #{discriminator_forward.12} parent=39 // pred_region
        %p262 = scmp.lt.s32.totalorder %s15, 1
        %s263 = scalar_select %p262, %s15, 1
        %s264 = smul.addr %s263, 5
        %s265 = smul.addr %s264, 4
        %s266 = scalar_lea.vmem %s3, %s265
      $region44: #{discriminator_forward.12} parent=39 // pred_fallthru
        _
    $region40: #{discriminator_forward.12} parent=5 // pred_fallthru
      _
  $region6: #{discriminator_forward.12} parent=0 // loop_footer
    %s13 = sadd.s32 1, %s9
  $region7: #{discriminator_forward.12} parent=0 // loop_footer_branch
    %8 = sbr.rel target = $region3
  $region8: #{discriminator_forward.12} parent=0 // loop_exit
    _

// kernel: tile.63
$region0: #{tile.63}
  #allocation0 [shape = 's32[1]{0}', space=sflag, size = 0x4, scoped, tag = 'scoped memory for tile.63']
  %s0 = inlined_call_operand.vmem [shape: f32[32], index: 0, kind: input, shape index: {}]
  %s1 = inlined_call_operand.vmem [shape: f32[4,32], index: 1, kind: output, shape index: {}]
  // Predicated region
  $region2: #{tile.63} parent=0 // pred_check
    _
  $region3: #{tile.63} parent=0 // pred_check_branch
    %3 = sbr.rel (0) target = $region5
  $region4: #{tile.63} parent=0 // pred_region
    _
  $region5: #{tile.63} parent=0 // pred_fallthru
    _
  %v4 = vld [vmem:[%s0] ss:$0 sm:$0xff]
  %5 = vst [vmem:[%s1] sm:$0xf] %v4

// kernel: tile.64
$region0: #{tile.64}
  %s0 = inlined_call_operand.vmem [shape: f32[4,32], index: 0, kind: input, shape index: {}]
  %s1 = inlined_call_operand.vmem [shape: f32[1,128], index: 1, kind: output, shape index: {}]
  $region1: #{tile.64} parent=0
    #allocation0 [shape = 'u8[4096]{0}', space=vmem, size = 0x1000, scoped, tag = 'scoped mem for output reshape']
    #allocation1 [shape = 'u8[4096]{0}', space=vmem, size = 0x1000, scoped, tag = 'scoped mem for input reshape']
    %s3 = sshllo.u32 0, 4
    %v4 = vld [vmem:[%s0] sm:%s3]
    %5 = vst [vmem:[#allocation1] sm:%s3] %v4
    %v6 = vld [vmem:[#allocation1] sm:$0x1]
    %vm7 = vcmask 261120
    %8 = vst.msk [vmem:[#allocation0] sm:$0x1] %vm7, %v6
    %s9 = scalar_lea.vmem [#allocation1], 3
    %v10 = vld [vmem:[%s9] sm:$0x1]
    %11 = vrot.lane.b32.xlu0 %v10, 96
    %v12 = vpop.permute.xlu0 %11
    %vm13 = vcmask 1048320
    %14 = vst.msk [vmem:[#allocation0] sm:$0x1] %vm13, %v12
    %s15 = scalar_lea.vmem [#allocation1], 2
    %v16 = vld [vmem:[%s15] sm:$0x1]
    %17 = vrot.lane.b32.xlu0 %v16, 64
    %v18 = vpop.permute.xlu0 %17
    %vm19 = vcmask 785920
    %20 = vst.msk [vmem:[#allocation0] sm:$0x1] %vm19, %v18
    %s21 = scalar_lea.vmem [#allocation1], 1
    %v22 = vld [vmem:[%s21] sm:$0x1]
    %23 = vrot.lane.b32.xlu0 %v22, 32
    %v24 = vpop.permute.xlu0 %23
    %vm25 = vcmask 523520
    %26 = vst.msk [vmem:[#allocation0] sm:$0x1] %vm25, %v24
    %s28 = sshllo.u32 0, 1
    %v30 = vld [vmem:[#allocation0] sm:%s28]
    %s31 = sshllo.u32 0, 1
    %32 = vst [vmem:[%s1] sm:%s31] %v30

// kernel: discriminator_forward.14
$region0: #{discriminator_forward.14}
  #allocation0 [shape = 'u32[]', space=smem, size = 0x4, offset = 0x4, fixed_abs, tag = 'smem constant byte address 0x4 - core index']
  #allocation1 [shape = 'u32[144,128]{1,0:T(1,128)}', space=vmem, size = 0x12000, scoped, tag = 'internal scratch']
  %s0 = inlined_call_operand.vmem [shape: bf16[2,18,128], index: 0, kind: input, shape index: {}]
  %s1 = inlined_call_operand.vmem [shape: f32[1,128], index: 1, kind: input, shape index: {}]
  %s2 = inlined_call_operand.vmem [shape: f32[1,128], index: 2, kind: input, shape index: {}]
  %s3 = inlined_call_operand.vmem [shape: bf16[2,18,128], index: 3, kind: output, shape index: {}]
  %s4 = sld [smem:[#allocation0]]
  $region45: #{discriminator_forward.14} parent=0
    _
  %s6 = ssub.s32 1, %s4
  %s7 = scalar_select 0, %s6, %s4
  loop: start=0, step=1, limit=4
  $region2: #{discriminator_forward.14} parent=0 // loop_pre_header
    _
  $region3: #{discriminator_forward.14} parent=0 // loop_header
    %s9 = sphi 0, %s13
    %p10 = scmp.ge.s32.totalorder %s9, 4
    %s19 = sphi 0, %s21
    %s22 = sphi 0, %s19
    %s23 = sphi 0, %s22
    %s39 = sphi 0, %s23
    %s43 = sphi 0, %s43
    %s45 = sphi 0, %s43
    %s46 = sphi 0, %s45
    %s60 = sphi 0, %s46
    %s64 = sphi 0, %s64
    %s66 = sphi 0, %s64
    %s67 = sphi 0, %s66
    %s81 = sphi 0, %s67
    %s87 = sphi 0, %s89
    %s90 = sphi 0, %s87
    %s91 = sphi 0, %s90
    %s107 = sphi 0, %s91
  $region4: #{discriminator_forward.14} parent=0 // loop_header_branch
    %12 = sbr.rel (%p10) target = $region8
  $region5: #{discriminator_forward.14} parent=0 // loop_body
    %s14 = ssub.s32 %s9, 1
    %s15 = ssub.s32 %s9, 2
    %s16 = sadd.s32 %s9, 1
    %s17 = ssub.s32 %s9, %s16
    %p18 = scmp.eq.s32.totalorder %s17, 0
    %s20 = sadd.s32 %s19, 1
    %s21 = scalar_select %p18, %s19, %s20
    %p24 = pneg %p18
    %p25 = scmp.eq.s32.totalorder %s9, 1
    %p26 = por %p24, %p25
    %p27 = scmp.ne.s32.totalorder %s19, %s22
    %p28 = scmp.eq.s32.totalorder %s9, 0
    %p29 = por %p27, %p28
    %p30 = scmp.ne.s32.totalorder %s19, %s22
    %p31 = scmp.eq.s32.totalorder %s14, 1
    %p32 = por %p30, %p31
    %p33 = scmp.ne.s32.totalorder %s22, %s23
    %p34 = scmp.eq.s32.totalorder %s14, 0
    %p35 = por %p33, %p34
    %p36 = scmp.ne.s32.totalorder %s22, %s23
    %p37 = scmp.eq.s32.totalorder %s15, 1
    %p38 = por %p36, %p37
    %p40 = scmp.ne.s32.totalorder %s23, %s39
    %p41 = scmp.eq.s32.totalorder %s15, 0
    %p42 = por %p40, %p41
    %s44 = sadd.s32 %s43, 1
    %p47 = scmp.eq.s32.totalorder %s9, 1
    %p48 = scmp.ne.s32.totalorder %s43, %s45
    %p49 = scmp.eq.s32.totalorder %s9, 0
    %p50 = por %p48, %p49
    %p51 = scmp.ne.s32.totalorder %s43, %s45
    %p52 = scmp.eq.s32.totalorder %s14, 1
    %p53 = por %p51, %p52
    %p54 = scmp.ne.s32.totalorder %s45, %s46
    %p55 = scmp.eq.s32.totalorder %s14, 0
    %p56 = por %p54, %p55
    %p57 = scmp.ne.s32.totalorder %s45, %s46
    %p58 = scmp.eq.s32.totalorder %s15, 1
    %p59 = por %p57, %p58
    %p61 = scmp.ne.s32.totalorder %s46, %s60
    %p62 = scmp.eq.s32.totalorder %s15, 0
    %p63 = por %p61, %p62
    %s65 = sadd.s32 %s64, 1
    %p68 = scmp.eq.s32.totalorder %s9, 1
    %p69 = scmp.ne.s32.totalorder %s64, %s66
    %p70 = scmp.eq.s32.totalorder %s9, 0
    %p71 = por %p69, %p70
    %p72 = scmp.ne.s32.totalorder %s64, %s66
    %p73 = scmp.eq.s32.totalorder %s14, 1
    %p74 = por %p72, %p73
    %p75 = scmp.ne.s32.totalorder %s66, %s67
    %p76 = scmp.eq.s32.totalorder %s14, 0
    %p77 = por %p75, %p76
    %p78 = scmp.ne.s32.totalorder %s66, %s67
    %p79 = scmp.eq.s32.totalorder %s15, 1
    %p80 = por %p78, %p79
    %p82 = scmp.ne.s32.totalorder %s67, %s81
    %p83 = scmp.eq.s32.totalorder %s15, 0
    %p84 = por %p82, %p83
    %s85 = ssub.s32 %s9, %s16
    %p86 = scmp.eq.s32.totalorder %s85, 0
    %s88 = sadd.s32 %s87, 1
    %s89 = scalar_select %p86, %s87, %s88
    %p92 = pneg %p86
    %p93 = scmp.eq.s32.totalorder %s9, 1
    %p94 = por %p92, %p93
    %p95 = scmp.ne.s32.totalorder %s87, %s90
    %p96 = scmp.eq.s32.totalorder %s9, 0
    %p97 = por %p95, %p96
    %p98 = scmp.ne.s32.totalorder %s87, %s90
    %p99 = scmp.eq.s32.totalorder %s14, 1
    %p100 = por %p98, %p99
    %p101 = scmp.ne.s32.totalorder %s90, %s91
    %p102 = scmp.eq.s32.totalorder %s14, 0
    %p103 = por %p101, %p102
    %p104 = scmp.ne.s32.totalorder %s90, %s91
    %p105 = scmp.eq.s32.totalorder %s15, 1
    %p106 = por %p104, %p105
    %p108 = scmp.ne.s32.totalorder %s91, %s107
    %p109 = scmp.eq.s32.totalorder %s15, 0
    %p110 = por %p108, %p109
    %p111 = scmp.le.s32.totalorder 1, %s9
    %p112 = scmp.lt.s32.totalorder %s9, 3
    %p113 = pnand %p111, %p112
    %p114 = pneg %p113
    // Predicated region
    $region9: #{discriminator_forward.14} parent=5 // pred_check
      _
    $region10: #{discriminator_forward.14} parent=5 // pred_check_branch
      %116 = sbr.rel (%p113) target = $region12
    $region11: #{discriminator_forward.14} parent=5 // pred_region
      %s117 = ssub.s32 %s9, 1
      // Predicated region
      $region13: #{discriminator_forward.14} parent=11 // pred_check
        %p118 = pneg %p56
      $region14: #{discriminator_forward.14} parent=11 // pred_check_branch
        %120 = sbr.rel (%p118) target = $region16
      $region15: #{discriminator_forward.14} parent=11 // pred_region
        _
      $region16: #{discriminator_forward.14} parent=11 // pred_fallthru
        _
      // Predicated region
      $region17: #{discriminator_forward.14} parent=11 // pred_check
        %p121 = pneg %p77
      $region18: #{discriminator_forward.14} parent=11 // pred_check_branch
        %123 = sbr.rel (%p121) target = $region20
      $region19: #{discriminator_forward.14} parent=11 // pred_region
        _
      $region20: #{discriminator_forward.14} parent=11 // pred_fallthru
        _
    $region12: #{discriminator_forward.14} parent=5 // pred_fallthru
      _
    %p124 = scmp.lt.s32.totalorder %s9, 2
    // Predicated region
    $region21: #{discriminator_forward.14} parent=5 // pred_check
      %p125 = pneg %p124
    $region22: #{discriminator_forward.14} parent=5 // pred_check_branch
      %127 = sbr.rel (%p125) target = $region24
    $region23: #{discriminator_forward.14} parent=5 // pred_region
      // Predicated region
      $region25: #{discriminator_forward.14} parent=23 // pred_check
        %p128 = pneg %p29
      $region26: #{discriminator_forward.14} parent=23 // pred_check_branch
        %130 = sbr.rel (%p128) target = $region28
      $region27: #{discriminator_forward.14} parent=23 // pred_region
        %p131 = scmp.lt.s32.totalorder %s9, 1
        %s132 = scalar_select %p131, %s9, 1
        %s133 = smul.addr %s132, 3
        %s134 = smul.addr %s133, 4
        %s135 = scalar_lea.vmem %s0, %s134
      $region28: #{discriminator_forward.14} parent=23 // pred_fallthru
        _
    $region24: #{discriminator_forward.14} parent=5 // pred_fallthru
      _
    %p136 = scmp.le.s32.totalorder 1, %s9
    %p137 = scmp.lt.s32.totalorder %s9, 3
    %p138 = pnand %p136, %p137
    %p139 = pneg %p138
    // Predicated region
    $region29: #{discriminator_forward.14} parent=5 // pred_check
      _
    $region30: #{discriminator_forward.14} parent=5 // pred_check_branch
      %141 = sbr.rel (%p138) target = $region32
    $region31: #{discriminator_forward.14} parent=5 // pred_region
      %s142 = ssub.s32 %s9, 1
      %p143 = scmp.lt.s32.totalorder %s14, 1
      %s144 = scalar_select %p143, %s14, 1
      %s145 = smul.addr %s144, 3
      %s146 = smul.addr %s145, 4
      %s147 = scalar_lea.vmem %s0, %s146
      %p148 = pneg %p35
      %p149 = pneg %p32
      %p150 = pneg %p56
      %p151 = pneg %p53
      %p152 = pneg %p77
      %p153 = pneg %p74
      %p154 = pneg %p103
      %p155 = pneg %p100
      %p156 = scmp.lt.s32.totalorder %s14, 1
      %s157 = scalar_select %p156, %s14, 1
      %s158 = smul.addr %s157, 3
      %s159 = smul.addr %s158, 4
      %s160 = scalar_lea.vmem %s3, %s159
      %p161 = scmp.lt.s32.totalorder %s14, 1
      %s162 = scalar_select %p161, %s14, 1
      %s163 = smul.addr %s162, 3
      %s164 = smul.addr %s163, 4
      %s165 = scalar_lea.vmem %s0, %s164
      %p166 = scmp.lt.s32.totalorder %s14, 1
      %s167 = scalar_select %p166, %s14, 1
      %s168 = smul.addr %s167, 3
      %s169 = smul.addr %s168, 4
      %s170 = scalar_lea.vmem %s3, %s169
      %v171 = vld [vmem:[%s165] sm:$0xf]
      %v172 = vld [vmem:[%s165 + $0x4] sm:$0xf]
      %v173 = vld [vmem:[%s165 + $0x8] sm:$0x1]
      %v174 = vunpack.c.l.bf16 %v171
      %v175 = vunpack.c.l.bf16 %v172
      %v176 = vunpack.c.l.bf16 %v173
      %v177 = vld [vmem:[%s1] sm:$0x1]
      %v179 = vlaneseq
      %v180 = vshrl.u32 %v179, 7
      %v181 = vsub.s32 0, %v180
      %v182 = vrot.slane %v177, %v181
      %v184 = vmul.f32 %v174, %v182
      %v185 = vmul.f32 %v175, %v182
      %v186 = vmul.f32 %v176, %v182
      %v187 = vld [vmem:[%s2] sm:$0x1]
      %v189 = vlaneseq
      %v190 = vshrl.u32 %v189, 7
      %v191 = vsub.s32 0, %v190
      %v192 = vrot.slane %v187, %v191
      %v194 = vadd.f32 %v184, %v192
      %v195 = vadd.f32 %v185, %v192
      %v196 = vadd.f32 %v186, %v192
      %vm197 = vcmp.ge.f32.partialorder %v194, 0.0
      %vm198 = vcmp.ge.f32.partialorder %v195, 0.0
      %vm199 = vcmp.ge.f32.partialorder %v196, 0.0
      %v200 = vmul.f32 %v194, 0.2
      %v201 = vmul.f32 %v195, 0.2
      %v202 = vmul.f32 %v196, 0.2
      %v203 = vsel %vm197, %v194, %v200
      %v204 = vsel %vm198, %v195, %v201
      %v205 = vsel %vm199, %v196, %v202
      %v206 = vpack.c.bf16 %v204, %v203
      %v207 = vpack.c.bf16 %v205, %v205
      %v210 = vunpack.c.l.b16 %v206
      %v211 = vunpack.c.h.b16 %v206
      %v212 = vunpack.c.l.b16 %v207
      %v213 = vpack.c.b16 %v210, %v210
      %v214 = vpack.c.b16 %v211, %v211
      %v215 = vpack.c.b16 %v212, %v212
      %219 = vst [vmem:[%s170] sm:$0xf] %v213
      %220 = vst [vmem:[%s170 + $0x4] sm:$0xf] %v214
      %221 = vst [vmem:[%s170 + $0x8] sm:$0x1] %v215
      %p222 = scmp.lt.s32.totalorder %s14, 1
      %s223 = scalar_select %p222, %s14, 1
      %s224 = smul.addr %s223, 3
      %s225 = smul.addr %s224, 4
      %s226 = scalar_lea.vmem %s3, %s225
      // Predicated region
      $region33: #{discriminator_forward.14} parent=31 // pred_check
        %p227 = pneg %p100
      $region34: #{discriminator_forward.14} parent=31 // pred_check_branch
        %229 = sbr.rel (%p227) target = $region36
      $region35: #{discriminator_forward.14} parent=31 // pred_region
        _
      $region36: #{discriminator_forward.14} parent=31 // pred_fallthru
        _
    $region32: #{discriminator_forward.14} parent=5 // pred_fallthru
      _
    %p230 = scmp.le.s32.totalorder 2, %s9
    // Predicated region
    $region37: #{discriminator_forward.14} parent=5 // pred_check
      %p231 = pneg %p230
    $region38: #{discriminator_forward.14} parent=5 // pred_check_branch
      %233 = sbr.rel (%p231) target = $region40
    $region39: #{discriminator_forward.14} parent=5 // pred_region
      %s234 = ssub.s32 %s9, 2
      // Predicated region
      $region41: #{discriminator_forward.14} parent=39 // pred_check
        %p235 = pneg %p106
      $region42: #{discriminator_forward.14} parent=39 // pred_check_branch
        %237 = sbr.rel (%p235) target = $region44
      $region43: #{discriminator_forward.14} parent=39 // pred_region
        %p238 = scmp.lt.s32.totalorder %s15, 1
        %s239 = scalar_select %p238, %s15, 1
        %s240 = smul.addr %s239, 3
        %s241 = smul.addr %s240, 4
        %s242 = scalar_lea.vmem %s3, %s241
      $region44: #{discriminator_forward.14} parent=39 // pred_fallthru
        _
    $region40: #{discriminator_forward.14} parent=5 // pred_fallthru
      _
  $region6: #{discriminator_forward.14} parent=0 // loop_footer
    %s13 = sadd.s32 1, %s9
  $region7: #{discriminator_forward.14} parent=0 // loop_footer_branch
    %8 = sbr.rel target = $region3
  $region8: #{discriminator_forward.14} parent=0 // loop_exit
    _

// kernel: discriminator_forward.13
$region0: #{discriminator_forward.13}
  #allocation0 [shape = 'u32[]', space=smem, size = 0x4, offset = 0x4, fixed_abs, tag = 'smem constant byte address 0x4 - core index']
  #allocation1 [shape = 'u32[144,128]{1,0:T(1,128)}', space=vmem, size = 0x12000, scoped, tag = 'internal scratch']
  #allocation2 [shape = 'f32[72,32]{1,0:T(8,128)}', space=vmem, size = 0x9000, scoped, tag = 'scratch operand']
  %s0 = inlined_call_operand.vmem [shape: bf16[2,96,64], index: 0, kind: input, shape index: {}]
  %s1 = inlined_call_operand.vmem [shape: bf16[4,64,32], index: 1, kind: input, shape index: {}]
  %s2 = inlined_call_operand.vmem [shape: bf16[2,72,32], index: 2, kind: output, shape index: {0}]
  %s3 = inlined_call_operand.vmem [shape: f32[2,2,32], index: 3, kind: output, shape index: {1}]
  %4 = xla_tuple %s2, %s3
  %s5 = sld [smem:[#allocation0]]
  $region49: #{discriminator_forward.13} parent=0
    _
  %s7 = ssub.s32 1, %s5
  %s8 = scalar_select 0, %s7, %s5
  loop: start=0, step=1, limit=4
  $region2: #{discriminator_forward.13} parent=0 // loop_pre_header
    _
  $region3: #{discriminator_forward.13} parent=0 // loop_header
    %s10 = sphi 0, %s14
    %p11 = scmp.ge.s32.totalorder %s10, 4
    %s20 = sphi 0, %s22
    %s23 = sphi 0, %s20
    %s24 = sphi 0, %s23
    %s40 = sphi 0, %s24
    %s44 = sphi 0, %s44
    %s46 = sphi 0, %s44
    %s47 = sphi 0, %s46
    %s61 = sphi 0, %s47
    %s67 = sphi 0, %s69
    %s70 = sphi 0, %s67
    %s71 = sphi 0, %s70
    %s87 = sphi 0, %s71
    %s93 = sphi 0, %s95
    %s96 = sphi 0, %s93
    %s97 = sphi 0, %s96
    %s113 = sphi 0, %s97
  $region4: #{discriminator_forward.13} parent=0 // loop_header_branch
    %13 = sbr.rel (%p11) target = $region8
  $region5: #{discriminator_forward.13} parent=0 // loop_body
    %s15 = ssub.s32 %s10, 1
    %s16 = ssub.s32 %s10, 2
    %s17 = sadd.s32 %s10, 1
    %s18 = ssub.s32 %s10, %s17
    %p19 = scmp.eq.s32.totalorder %s18, 0
    %s21 = sadd.s32 %s20, 1
    %s22 = scalar_select %p19, %s20, %s21
    %p25 = pneg %p19
    %p26 = scmp.eq.s32.totalorder %s10, 1
    %p27 = por %p25, %p26
    %p28 = scmp.ne.s32.totalorder %s20, %s23
    %p29 = scmp.eq.s32.totalorder %s10, 0
    %p30 = por %p28, %p29
    %p31 = scmp.ne.s32.totalorder %s20, %s23
    %p32 = scmp.eq.s32.totalorder %s15, 1
    %p33 = por %p31, %p32
    %p34 = scmp.ne.s32.totalorder %s23, %s24
    %p35 = scmp.eq.s32.totalorder %s15, 0
    %p36 = por %p34, %p35
    %p37 = scmp.ne.s32.totalorder %s23, %s24
    %p38 = scmp.eq.s32.totalorder %s16, 1
    %p39 = por %p37, %p38
    %p41 = scmp.ne.s32.totalorder %s24, %s40
    %p42 = scmp.eq.s32.totalorder %s16, 0
    %p43 = por %p41, %p42
    %s45 = sadd.s32 %s44, 1
    %p48 = scmp.eq.s32.totalorder %s10, 1
    %p49 = scmp.ne.s32.totalorder %s44, %s46
    %p50 = scmp.eq.s32.totalorder %s10, 0
    %p51 = por %p49, %p50
    %p52 = scmp.ne.s32.totalorder %s44, %s46
    %p53 = scmp.eq.s32.totalorder %s15, 1
    %p54 = por %p52, %p53
    %p55 = scmp.ne.s32.totalorder %s46, %s47
    %p56 = scmp.eq.s32.totalorder %s15, 0
    %p57 = por %p55, %p56
    %p58 = scmp.ne.s32.totalorder %s46, %s47
    %p59 = scmp.eq.s32.totalorder %s16, 1
    %p60 = por %p58, %p59
    %p62 = scmp.ne.s32.totalorder %s47, %s61
    %p63 = scmp.eq.s32.totalorder %s16, 0
    %p64 = por %p62, %p63
    %s65 = ssub.s32 %s10, %s17
    %p66 = scmp.eq.s32.totalorder %s65, 0
    %s68 = sadd.s32 %s67, 1
    %s69 = scalar_select %p66, %s67, %s68
    %p72 = pneg %p66
    %p73 = scmp.eq.s32.totalorder %s10, 1
    %p74 = por %p72, %p73
    %p75 = scmp.ne.s32.totalorder %s67, %s70
    %p76 = scmp.eq.s32.totalorder %s10, 0
    %p77 = por %p75, %p76
    %p78 = scmp.ne.s32.totalorder %s67, %s70
    %p79 = scmp.eq.s32.totalorder %s15, 1
    %p80 = por %p78, %p79
    %p81 = scmp.ne.s32.totalorder %s70, %s71
    %p82 = scmp.eq.s32.totalorder %s15, 0
    %p83 = por %p81, %p82
    %p84 = scmp.ne.s32.totalorder %s70, %s71
    %p85 = scmp.eq.s32.totalorder %s16, 1
    %p86 = por %p84, %p85
    %p88 = scmp.ne.s32.totalorder %s71, %s87
    %p89 = scmp.eq.s32.totalorder %s16, 0
    %p90 = por %p88, %p89
    %s91 = ssub.s32 %s10, %s17
    %p92 = scmp.eq.s32.totalorder %s91, 0
    %s94 = sadd.s32 %s93, 1
    %s95 = scalar_select %p92, %s93, %s94
    %p98 = pneg %p92
    %p99 = scmp.eq.s32.totalorder %s10, 1
    %p100 = por %p98, %p99
    %p101 = scmp.ne.s32.totalorder %s93, %s96
    %p102 = scmp.eq.s32.totalorder %s10, 0
    %p103 = por %p101, %p102
    %p104 = scmp.ne.s32.totalorder %s93, %s96
    %p105 = scmp.eq.s32.totalorder %s15, 1
    %p106 = por %p104, %p105
    %p107 = scmp.ne.s32.totalorder %s96, %s97
    %p108 = scmp.eq.s32.totalorder %s15, 0
    %p109 = por %p107, %p108
    %p110 = scmp.ne.s32.totalorder %s96, %s97
    %p111 = scmp.eq.s32.totalorder %s16, 1
    %p112 = por %p110, %p111
    %p114 = scmp.ne.s32.totalorder %s97, %s113
    %p115 = scmp.eq.s32.totalorder %s16, 0
    %p116 = por %p114, %p115
    %p117 = scmp.le.s32.totalorder 1, %s10
    %p118 = scmp.lt.s32.totalorder %s10, 3
    %p119 = pnand %p117, %p118
    %p120 = pneg %p119
    // Predicated region
    $region9: #{discriminator_forward.13} parent=5 // pred_check
      _
    $region10: #{discriminator_forward.13} parent=5 // pred_check_branch
      %122 = sbr.rel (%p119) target = $region12
    $region11: #{discriminator_forward.13} parent=5 // pred_region
      %s123 = ssub.s32 %s10, 1
      // Predicated region
      $region13: #{discriminator_forward.13} parent=11 // pred_check
        %p124 = pneg %p57
      $region14: #{discriminator_forward.13} parent=11 // pred_check_branch
        %126 = sbr.rel (%p124) target = $region16
      $region15: #{discriminator_forward.13} parent=11 // pred_region
        _
      $region16: #{discriminator_forward.13} parent=11 // pred_fallthru
        _
    $region12: #{discriminator_forward.13} parent=5 // pred_fallthru
      _
    %p127 = scmp.lt.s32.totalorder %s10, 2
    // Predicated region
    $region17: #{discriminator_forward.13} parent=5 // pred_check
      %p128 = pneg %p127
    $region18: #{discriminator_forward.13} parent=5 // pred_check_branch
      %130 = sbr.rel (%p128) target = $region20
    $region19: #{discriminator_forward.13} parent=5 // pred_region
      // Predicated region
      $region21: #{discriminator_forward.13} parent=19 // pred_check
        %p131 = pneg %p30
      $region22: #{discriminator_forward.13} parent=19 // pred_check_branch
        %133 = sbr.rel (%p131) target = $region24
      $region23: #{discriminator_forward.13} parent=19 // pred_region
        %p134 = scmp.lt.s32.totalorder %s10, 1
        %s135 = scalar_select %p134, %s10, 1
        %s136 = smul.addr %s135, 12
        %s137 = smul.addr %s136, 4
        %s138 = scalar_lea.vmem %s0, %s137
      $region24: #{discriminator_forward.13} parent=19 // pred_fallthru
        _
    $region20: #{discriminator_forward.13} parent=5 // pred_fallthru
      _
    %p139 = scmp.le.s32.totalorder 1, %s10
    %p140 = scmp.lt.s32.totalorder %s10, 3
    %p141 = pnand %p139, %p140
    %p142 = pneg %p141
    // Predicated region
    $region25: #{discriminator_forward.13} parent=5 // pred_check
      _
    $region26: #{discriminator_forward.13} parent=5 // pred_check_branch
      %144 = sbr.rel (%p141) target = $region28
    $region27: #{discriminator_forward.13} parent=5 // pred_region
      %s145 = ssub.s32 %s10, 1
      %p146 = scmp.lt.s32.totalorder %s15, 1
      %s147 = scalar_select %p146, %s15, 1
      %s148 = smul.addr %s147, 12
      %s149 = smul.addr %s148, 4
      %s150 = scalar_lea.vmem %s0, %s149
      %p151 = pneg %p36
      %p152 = pneg %p33
      %p153 = pneg %p57
      %p154 = pneg %p54
      %p155 = pneg %p83
      %p156 = pneg %p80
      %p157 = scmp.lt.s32.totalorder %s15, 1
      %s158 = scalar_select %p157, %s15, 1
      %s159 = smul.addr %s158, 9
      %s160 = smul.addr %s159, 4
      %s161 = scalar_lea.vmem %s2, %s160
      %p162 = pneg %p109
      %p163 = pneg %p106
      %p164 = scmp.lt.s32.totalorder %s15, 1
      %s165 = scalar_select %p164, %s15, 1
      %s166 = smul.addr %s165, 2
      %s167 = scalar_lea.vmem %s3, %s166
      %p168 = scmp.lt.s32.totalorder %s15, 1
      %s169 = scalar_select %p168, %s15, 1
      %s170 = smul.addr %s169, 12
      %s171 = smul.addr %s170, 4
      %s172 = scalar_lea.vmem %s0, %s171
      %p173 = scmp.lt.s32.totalorder %s15, 1
      %s174 = scalar_select %p173, %s15, 1
      %s175 = smul.addr %s174, 9
      %s176 = smul.addr %s175, 4
      %s177 = scalar_lea.vmem %s2, %s176
      %p178 = scmp.lt.s32.totalorder %s15, 1
      %s179 = scalar_select %p178, %s15, 1
      %s180 = smul.addr %s179, 2
      %s181 = scalar_lea.vmem %s3, %s180
      %v183 = vlaneseq
      %v184 = vshrl.u32 %v183, 7
      %v185 = vadd.s32 %v184, 8
      %v186 = vadd.s32 %v184, 16
      %v187 = vadd.s32 %v184, 24
      %v188 = vadd.s32 %v184, 32
      %v189 = vadd.s32 %v184, 40
      %v190 = vadd.s32 %v184, 48
      %v191 = vadd.s32 %v184, 56
      %v192 = vadd.s32 %v184, 64
      %v193 = vcvt.s32.f32 %v184
      %v194 = vcvt.s32.f32 %v185
      %v195 = vcvt.s32.f32 %v186
      %v196 = vcvt.s32.f32 %v187
      %v197 = vcvt.s32.f32 %v188
      %v198 = vcvt.s32.f32 %v189
      %v199 = vcvt.s32.f32 %v190
      %v200 = vcvt.s32.f32 %v191
      %v201 = vcvt.s32.f32 %v192
      %v202 = vadd.f32 %v193, 0.5
      %v203 = vadd.f32 %v194, 0.5
      %v204 = vadd.f32 %v195, 0.5
      %v205 = vadd.f32 %v196, 0.5
      %v206 = vadd.f32 %v197, 0.5
      %v207 = vadd.f32 %v198, 0.5
      %v208 = vadd.f32 %v199, 0.5
      %v209 = vadd.f32 %v200, 0.5
      %v210 = vadd.f32 %v201, 0.5
      %v211 = vmul.f32 %v202, 0.11111111
      %v212 = vmul.f32 %v203, 0.11111111
      %v213 = vmul.f32 %v204, 0.11111111
      %v214 = vmul.f32 %v205, 0.11111111
      %v215 = vmul.f32 %v206, 0.11111111
      %v216 = vmul.f32 %v207, 0.11111111
      %v217 = vmul.f32 %v208, 0.11111111
      %v218 = vmul.f32 %v209, 0.11111111
      %v219 = vmul.f32 %v210, 0.11111111
      %v220 = vfloor.f32 %v211
      %v221 = vfloor.f32 %v212
      %v222 = vfloor.f32 %v213
      %v223 = vfloor.f32 %v214
      %v224 = vfloor.f32 %v215
      %v225 = vfloor.f32 %v216
      %v226 = vfloor.f32 %v217
      %v227 = vfloor.f32 %v218
      %v228 = vfloor.f32 %v219
      %v229 = vmul.f32 %v220, 9.0
      %v230 = vmul.f32 %v221, 9.0
      %v231 = vmul.f32 %v222, 9.0
      %v232 = vmul.f32 %v223, 9.0
      %v233 = vmul.f32 %v224, 9.0
      %v234 = vmul.f32 %v225, 9.0
      %v235 = vmul.f32 %v226, 9.0
      %v236 = vmul.f32 %v227, 9.0
      %v237 = vmul.f32 %v228, 9.0
      %v238 = vsub.f32 %v193, %v229
      %v239 = vsub.f32 %v194, %v230
      %v240 = vsub.f32 %v195, %v231
      %v241 = vsub.f32 %v196, %v232
      %v242 = vsub.f32 %v197, %v233
      %v243 = vsub.f32 %v198, %v234
      %v244 = vsub.f32 %v199, %v235
      %v245 = vsub.f32 %v200, %v236
      %v246 = vsub.f32 %v201, %v237
      %vm247 = vcmp.lt.f32.partialorder %v238, 7.5
      %vm248 = vcmp.lt.f32.partialorder %v239, 7.5
      %vm249 = vcmp.lt.f32.partialorder %v240, 7.5
      %vm250 = vcmp.lt.f32.partialorder %v241, 7.5
      %vm251 = vcmp.lt.f32.partialorder %v242, 7.5
      %vm252 = vcmp.lt.f32.partialorder %v243, 7.5
      %vm253 = vcmp.lt.f32.partialorder %v244, 7.5
      %vm254 = vcmp.lt.f32.partialorder %v245, 7.5
      %vm255 = vcmp.lt.f32.partialorder %v246, 7.5
      %v256 = vld [vmem:[%s172] sm:$0xf]
      %v257 = vld [vmem:[%s172 + $0x4] sm:$0xf]
      %v258 = vld [vmem:[%s172 + $0x8] sm:$0xf]
      %v259 = vld [vmem:[%s172 + $0xc] sm:$0xf]
      %v260 = vld [vmem:[%s172 + $0x10] sm:$0xf]
      %v261 = vld [vmem:[%s172 + $0x14] sm:$0xf]
      %v262 = vld [vmem:[%s172 + $0x18] sm:$0xf]
      %v263 = vld [vmem:[%s172 + $0x1c] sm:$0xf]
      %v264 = vld [vmem:[%s172 + $0x20] sm:$0xf]
      %v265 = vld [vmem:[%s1] sm:$0xf]
      %v266 = vld [vmem:[%s1 + $0x4] sm:$0xf]
      %v267 = vld [vmem:[%s1 + $0x8] sm:$0xf]
      %v268 = vld [vmem:[%s1 + $0xc] sm:$0xf]
      %v269 = vld [vmem:[%s1 + $0x10] sm:$0xf]
      %v270 = vld [vmem:[%s1 + $0x14] sm:$0xf]
      %v271 = vld [vmem:[%s1 + $0x18] sm:$0xf]
      %v272 = vld [vmem:[%s1 + $0x1c] sm:$0xf]
      %v282 = vunpack.c.l.b16 %v256
      %v283 = vunpack.c.l.b16 %v257
      %v284 = vunpack.c.l.b16 %v258
      %v285 = vunpack.c.l.b16 %v259
      %v286 = vunpack.c.l.b16 %v260
      %v287 = vunpack.c.l.b16 %v261
      %v288 = vunpack.c.l.b16 %v262
      %v289 = vunpack.c.l.b16 %v263
      %v290 = vunpack.c.l.b16 %v264
      %v291 = vpack.c.b16 %v283, %v282
      %v292 = vpack.c.b16 %v285, %v284
      %v293 = vpack.c.b16 %v287, %v286
      %v294 = vpack.c.b16 %v289, %v288
      %v295 = vpack.c.b16 %v290, %v290
      %v304 = vunpack.c.l.b16 %v265
      %v305 = vunpack.c.l.b16 %v266
      %v306 = vunpack.c.l.b16 %v267
      %v307 = vunpack.c.l.b16 %v268
      %v308 = vunpack.c.l.b16 %v269
      %v309 = vunpack.c.l.b16 %v270
      %v310 = vunpack.c.l.b16 %v271
      %v311 = vunpack.c.l.b16 %v272
      %v312 = vpack.c.b16 %v305, %v304
      %v313 = vpack.c.b16 %v307, %v306
      %v314 = vpack.c.b16 %v309, %v308
      %v315 = vpack.c.b16 %v311, %v310
      %vm320 = vcmask 523264
      %v322 = vsel %vm320, %v291, 0
      %v325 = vsel %vm320, %v292, 0
      %v328 = vsel %vm320, %v293, 0
      %v331 = vsel %vm320, %v294, 0
      %v334 = vsel %vm320, %v295, 0
      %336 = vmatprep.subr.bf16.mxu0 0
      %337 = vmatpush1.bf16.msra.mxu0 %v312
      %338 = vmatprep.subr.bf16.mxu0 0
      %339 = vmatpush1.bf16.msra.mxu0 %v313
      %340 = vmatprep.subr.bf16.mxu0 0
      %341 = vmatpush1.bf16.msra.mxu0 %v314
      %342 = vmatprep.subr.bf16.mxu0 0
      %343 = vmatpush1.bf16.msra.mxu0 %v315
      %344 = vmatprep.subr.bf16.mxu0 0
      %345 = vmatpush1.bf16.msra.mxu0 0
      %346 = vmatprep.subr.bf16.mxu0 0
      %347 = vmatpush1.bf16.msra.mxu0 0
      %348 = vmatprep.subr.bf16.mxu0 0
      %349 = vmatpush1.bf16.msra.mxu0 0
      %350 = vmatprep.subr.bf16.mxu0 0
      %351 = vmatpush1.bf16.msra.mxu0 0
      %352 = vmatprep.subr.bf16.mxu0 0
      %353 = vmatpush1.bf16.msra.mxu0 0
      %354 = vmatprep.subr.bf16.mxu0 0
      %355 = vmatpush1.bf16.msra.mxu0 0
      %356 = vmatprep.subr.bf16.mxu0 0
      %357 = vmatpush1.bf16.msra.mxu0 0
      %358 = vmatprep.subr.bf16.mxu0 0
      %359 = vmatpush1.bf16.msra.mxu0 0
      %360 = vmatprep.subr.bf16.mxu0 0
      %361 = vmatpush1.bf16.msra.mxu0 0
      %362 = vmatprep.subr.bf16.mxu0 0
      %363 = vmatpush1.bf16.msra.mxu0 0
      %364 = vmatprep.subr.bf16.mxu0 0
      %365 = vmatpush1.bf16.msra.mxu0 0
      %366 = vmatprep.subr.bf16.mxu0 0
      %367 = vmatpush1.bf16.msra.mxu0 0
      %368 = vmatprep.mubr.bf16.mxu0 0
      %369 = vmatmul.mubr.bf16.gmra.mrb[0].mxu0 %v322
      %v370 = vpop.f32.mrb[0].mxu0
      %v371 = vadd.f32 0.0, %v370
      %v372 = vpop.f32.mrb[0].mxu0
      %v373 = vpop.f32.mrb[0].mxu0
      %v374 = vadd.f32 0.0, %v373
      %v375 = vpop.f32.mrb[0].mxu0
      %376 = vmatprep.mubr.bf16.mxu0 0
      %377 = vmatmul.mubr.bf16.gmra.mrb[0].mxu0 %v325
      %v378 = vpop.f32.mrb[0].mxu0
      %v379 = vadd.f32 0.0, %v378
      %v380 = vpop.f32.mrb[0].mxu0
      %v381 = vpop.f32.mrb[0].mxu0
      %v382 = vadd.f32 0.0, %v381
      %v383 = vpop.f32.mrb[0].mxu0
      %384 = vmatprep.mubr.bf16.mxu0 0
      %385 = vmatmul.mubr.bf16.gmra.mrb[0].mxu0 %v328
      %v386 = vpop.f32.mrb[0].mxu0
      %v387 = vadd.f32 0.0, %v386
      %v388 = vpop.f32.mrb[0].mxu0
      %v389 = vpop.f32.mrb[0].mxu0
      %v390 = vadd.f32 0.0, %v389
      %v391 = vpop.f32.mrb[0].mxu0
      %392 = vmatprep.mubr.bf16.mxu0 0
      %393 = vmatmul.mubr.bf16.gmra.mrb[0].mxu0 %v331
      %v394 = vpop.f32.mrb[0].mxu0
      %v395 = vadd.f32 0.0, %v394
      %v396 = vpop.f32.mrb[0].mxu0
      %v397 = vpop.f32.mrb[0].mxu0
      %v398 = vadd.f32 0.0, %v397
      %v399 = vpop.f32.mrb[0].mxu0
      %400 = vmatprep.mubr.bf16.mxu0 0
      %401 = vmatmul.mubr.bf16.gmra.mrb[0].mxu0 %v334
      %v402 = vpop.f32.mrb[0].mxu0
      %v403 = vadd.f32 0.0, %v402
      %v404 = vpop.f32.mrb[0].mxu0
      %v405 = vpop.f32.mrb[0].mxu0
      %v406 = vpop.f32.mrb[0].mxu0
      %407 = vdwg.mxu0
      %vm408 = vcmask 261120
      %409 = vst.msk [vmem:[#allocation2] sm:$0xff] %vm408, %v371
      %410 = vst.msk [vmem:[#allocation2 + $0x8] sm:$0xff] %vm408, %v374
      %411 = vst.msk [vmem:[#allocation2 + $0x10] sm:$0xff] %vm408, %v379
      %412 = vst.msk [vmem:[#allocation2 + $0x18] sm:$0xff] %vm408, %v382
      %413 = vst.msk [vmem:[#allocation2 + $0x20] sm:$0xff] %vm408, %v387
      %414 = vst.msk [vmem:[#allocation2 + $0x28] sm:$0xff] %vm408, %v390
      %415 = vst.msk [vmem:[#allocation2 + $0x30] sm:$0xff] %vm408, %v395
      %416 = vst.msk [vmem:[#allocation2 + $0x38] sm:$0xff] %vm408, %v398
      %417 = vst.msk [vmem:[#allocation2 + $0x40] sm:$0xff] %vm408, %v403
      %v418 = vld [vmem:[#allocation2] sm:$0xff]
      %v419 = vld [vmem:[#allocation2 + $0x8] sm:$0xff]
      %v420 = vld [vmem:[#allocation2 + $0x10] sm:$0xff]
      %v421 = vld [vmem:[#allocation2 + $0x18] sm:$0xff]
      %v422 = vld [vmem:[#allocation2 + $0x20] sm:$0xff]
      %v423 = vld [vmem:[#allocation2 + $0x28] sm:$0xff]
      %v424 = vld [vmem:[#allocation2 + $0x30] sm:$0xff]
      %v425 = vld [vmem:[#allocation2 + $0x38] sm:$0xff]
      %v426 = vld [vmem:[#allocation2 + $0x40] sm:$0xff]
      %v427 = vld [vmem:[%s172] sm:$0xf]
      %v428 = vld [vmem:[%s172 + $0x4] sm:$0xf]
      %v429 = vld [vmem:[%s172 + $0x8] sm:$0xf]
      %v430 = vld [vmem:[%s172 + $0xc] sm:$0xf]
      %v431 = vld [vmem:[%s172 + $0x10] sm:$0xf]
      %v432 = vld [vmem:[%s172 + $0x14] sm:$0xf]
      %v433 = vld [vmem:[%s172 + $0x18] sm:$0xf]
      %v434 = vld [vmem:[%s172 + $0x1c] sm:$0xf]
      %v435 = vld [vmem:[%s172 + $0x20] sm:$0xf]
      %v436 = vld [vmem:[%s172 + $0x24] sm:$0x1]
      %s437 = scalar_lea.vmem %s1, 32
      %v438 = vld [vmem:[%s437] sm:$0xf]
      %v439 = vld [vmem:[%s437 + $0x4] sm:$0xf]
      %v440 = vld [vmem:[%s437 + $0x8] sm:$0xf]
      %v441 = vld [vmem:[%s437 + $0xc] sm:$0xf]
      %v442 = vld [vmem:[%s437 + $0x10] sm:$0xf]
      %v443 = vld [vmem:[%s437 + $0x14] sm:$0xf]
      %v444 = vld [vmem:[%s437 + $0x18] sm:$0xf]
      %v445 = vld [vmem:[%s437 + $0x1c] sm:$0xf]
      %v456 = vunpack.c.l.b16 %v427
      %v457 = vunpack.c.l.b16 %v428
      %v458 = vunpack.c.l.b16 %v429
      %v459 = vunpack.c.l.b16 %v430
      %v460 = vunpack.c.l.b16 %v431
      %v461 = vunpack.c.l.b16 %v432
      %v462 = vunpack.c.l.b16 %v433
      %v463 = vunpack.c.l.b16 %v434
      %v464 = vunpack.c.l.b16 %v435
      %v465 = vunpack.c.l.b16 %v436
      %v466 = vpack.c.b16 %v457, %v456
      %v467 = vpack.c.b16 %v459, %v458
      %v468 = vpack.c.b16 %v461, %v460
      %v469 = vpack.c.b16 %v463, %v462
      %v470 = vpack.c.b16 %v465, %v464
      %vm471 = vsmask.f32 7424
      %v473 = vshrl.u32 %v466, 16
      %v475 = vshll.u32 %v466, 16
      %v477 = vrot.slane %v475, 1
      %v478 = vor.u32 %v473, %v477
      %v480 = vshll.u32 %v467, 16
      %v482 = vrot.slane %v480, 1
      %v483 = vsel %vm471, %v478, %v482
      %v484 = vshrl.u32 %v467, 16
      %v486 = vor.u32 %v484, %v482
      %v488 = vshll.u32 %v468, 16
      %v490 = vrot.slane %v488, 1
      %v491 = vsel %vm471, %v486, %v490
      %v492 = vshrl.u32 %v468, 16
      %v494 = vor.u32 %v492, %v490
      %v496 = vshll.u32 %v469, 16
      %v498 = vrot.slane %v496, 1
      %v499 = vsel %vm471, %v494, %v498
      %v500 = vshrl.u32 %v469, 16
      %v502 = vor.u32 %v500, %v498
      %v504 = vshll.u32 %v470, 16
      %v506 = vrot.slane %v504, 1
      %v507 = vsel %vm471, %v502, %v506
      %v508 = vshrl.u32 %v470, 16
      %v510 = vor.u32 %v508, %v506
      %v519 = vunpack.c.l.b16 %v438
      %v520 = vunpack.c.l.b16 %v439
      %v521 = vunpack.c.l.b16 %v440
      %v522 = vunpack.c.l.b16 %v441
      %v523 = vunpack.c.l.b16 %v442
      %v524 = vunpack.c.l.b16 %v443
      %v525 = vunpack.c.l.b16 %v444
      %v526 = vunpack.c.l.b16 %v445
      %v527 = vpack.c.b16 %v520, %v519
      %v528 = vpack.c.b16 %v522, %v521
      %v529 = vpack.c.b16 %v524, %v523
      %v530 = vpack.c.b16 %v526, %v525
      %v536 = vsel %vm320, %v483, 0
      %v539 = vsel %vm320, %v491, 0
      %v542 = vsel %vm320, %v499, 0
      %v545 = vsel %vm320, %v507, 0
      %v548 = vsel %vm320, %v510, 0
      %550 = vmatprep.subr.bf16.mxu0 0
      %551 = vmatpush1.bf16.msra.mxu0 %v527
      %552 = vmatprep.subr.bf16.mxu0 0
      %553 = vmatpush1.bf16.msra.mxu0 %v528
      %554 = vmatprep.subr.bf16.mxu0 0
      %555 = vmatpush1.bf16.msra.mxu0 %v529
      %556 = vmatprep.subr.bf16.mxu0 0
      %557 = vmatpush1.bf16.msra.mxu0 %v530
      %558 = vmatprep.subr.bf16.mxu0 0
      %559 = vmatpush1.bf16.msra.mxu0 0
      %560 = vmatprep.subr.bf16.mxu0 0
      %561 = vmatpush1.bf16.msra.mxu0 0
      %562 = vmatprep.subr.bf16.mxu0 0
      %563 = vmatpush1.bf16.msra.mxu0 0
      %564 = vmatprep.subr.bf16.mxu0 0
      %565 = vmatpush1.bf16.msra.mxu0 0
      %566 = vmatprep.subr.bf16.mxu0 0
      %567 = vmatpush1.bf16.msra.mxu0 0
      %568 = vmatprep.subr.bf16.mxu0 0
      %569 = vmatpush1.bf16.msra.mxu0 0
      %570 = vmatprep.subr.bf16.mxu0 0
      %571 = vmatpush1.bf16.msra.mxu0 0
      %572 = vmatprep.subr.bf16.mxu0 0
      %573 = vmatpush1.bf16.msra.mxu0 0
      %574 = vmatprep.subr.bf16.mxu0 0
      %575 = vmatpush1.bf16.msra.mxu0 0
      %576 = vmatprep.subr.bf16.mxu0 0
      %577 = vmatpush1.bf16.msra.mxu0 0
      %578 = vmatprep.subr.bf16.mxu0 0
      %579 = vmatpush1.bf16.msra.mxu0 0
      %580 = vmatprep.subr.bf16.mxu0 0
      %581 = vmatpush1.bf16.msra.mxu0 0
      %582 = vmatprep.mubr.bf16.mxu0 0
      %583 = vmatmul.mubr.bf16.gmra.mrb[0].mxu0 %v536
      %v584 = vpop.f32.mrb[0].mxu0
      %v585 = vadd.f32 0.0, %v584
      %v586 = vpop.f32.mrb[0].mxu0
      %v587 = vpop.f32.mrb[0].mxu0
      %v588 = vadd.f32 0.0, %v587
      %v589 = vpop.f32.mrb[0].mxu0
      %590 = vmatprep.mubr.bf16.mxu0 0
      %591 = vmatmul.mubr.bf16.gmra.mrb[0].mxu0 %v539
      %v592 = vpop.f32.mrb[0].mxu0
      %v593 = vadd.f32 0.0, %v592
      %v594 = vpop.f32.mrb[0].mxu0
      %v595 = vpop.f32.mrb[0].mxu0
      %v596 = vadd.f32 0.0, %v595
      %v597 = vpop.f32.mrb[0].mxu0
      %598 = vmatprep.mubr.bf16.mxu0 0
      %599 = vmatmul.mubr.bf16.gmra.mrb[0].mxu0 %v542
      %v600 = vpop.f32.mrb[0].mxu0
      %v601 = vadd.f32 0.0, %v600
      %v602 = vpop.f32.mrb[0].mxu0
      %v603 = vpop.f32.mrb[0].mxu0
      %v604 = vadd.f32 0.0, %v603
      %v605 = vpop.f32.mrb[0].mxu0
      %606 = vmatprep.mubr.bf16.mxu0 0
      %607 = vmatmul.mubr.bf16.gmra.mrb[0].mxu0 %v545
      %v608 = vpop.f32.mrb[0].mxu0
      %v609 = vadd.f32 0.0, %v608
      %v610 = vpop.f32.mrb[0].mxu0
      %v611 = vpop.f32.mrb[0].mxu0
      %v612 = vadd.f32 0.0, %v611
      %v613 = vpop.f32.mrb[0].mxu0
      %614 = vmatprep.mubr.bf16.mxu0 0
      %615 = vmatmul.mubr.bf16.gmra.mrb[0].mxu0 %v548
      %v616 = vpop.f32.mrb[0].mxu0
      %v617 = vadd.f32 0.0, %v616
      %v618 = vpop.f32.mrb[0].mxu0
      %v619 = vpop.f32.mrb[0].mxu0
      %v620 = vpop.f32.mrb[0].mxu0
      %621 = vdwg.mxu0
      %v622 = vadd.f32 %v418, %v585
      %v623 = vadd.f32 %v419, %v588
      %v624 = vadd.f32 %v420, %v593
      %v625 = vadd.f32 %v421, %v596
      %v626 = vadd.f32 %v422, %v601
      %v627 = vadd.f32 %v423, %v604
      %v628 = vadd.f32 %v424, %v609
      %v629 = vadd.f32 %v425, %v612
      %v630 = vadd.f32 %v426, %v617
      %631 = vst.msk [vmem:[#allocation2] sm:$0xff] %vm408, %v622
      %632 = vst.msk [vmem:[#allocation2 + $0x8] sm:$0xff] %vm408, %v623
      %633 = vst.msk [vmem:[#allocation2 + $0x10] sm:$0xff] %vm408, %v624
      %634 = vst.msk [vmem:[#allocation2 + $0x18] sm:$0xff] %vm408, %v625
      %635 = vst.msk [vmem:[#allocation2 + $0x20] sm:$0xff] %vm408, %v626
      %636 = vst.msk [vmem:[#allocation2 + $0x28] sm:$0xff] %vm408, %v627
      %637 = vst.msk [vmem:[#allocation2 + $0x30] sm:$0xff] %vm408, %v628
      %638 = vst.msk [vmem:[#allocation2 + $0x38] sm:$0xff] %vm408, %v629
      %639 = vst.msk [vmem:[#allocation2 + $0x40] sm:$0xff] %vm408, %v630
      %v640 = vld [vmem:[#allocation2] sm:$0xff]
      %v641 = vld [vmem:[#allocation2 + $0x8] sm:$0xff]
      %v642 = vld [vmem:[#allocation2 + $0x10] sm:$0xff]
      %v643 = vld [vmem:[#allocation2 + $0x18] sm:$0xff]
      %v644 = vld [vmem:[#allocation2 + $0x20] sm:$0xff]
      %v645 = vld [vmem:[#allocation2 + $0x28] sm:$0xff]
      %v646 = vld [vmem:[#allocation2 + $0x30] sm:$0xff]
      %v647 = vld [vmem:[#allocation2 + $0x38] sm:$0xff]
      %v648 = vld [vmem:[#allocation2 + $0x40] sm:$0xff]
      %v649 = vld [vmem:[%s172 + $0x4] sm:$0xf]
      %v650 = vld [vmem:[%s172 + $0x8] sm:$0xf]
      %v651 = vld [vmem:[%s172 + $0xc] sm:$0xf]
      %v652 = vld [vmem:[%s172 + $0x10] sm:$0xf]
      %v653 = vld [vmem:[%s172 + $0x14] sm:$0xf]
      %v654 = vld [vmem:[%s172 + $0x18] sm:$0xf]
      %v655 = vld [vmem:[%s172 + $0x1c] sm:$0xf]
      %v656 = vld [vmem:[%s172 + $0x20] sm:$0xf]
      %v657 = vld [vmem:[%s172 + $0x24] sm:$0xf]
      %v658 = vld [vmem:[%s172 + $0x28] sm:$0x1]
      %s659 = scalar_lea.vmem %s1, 64
      %v660 = vld [vmem:[%s659] sm:$0xf]
      %v661 = vld [vmem:[%s659 + $0x4] sm:$0xf]
      %v662 = vld [vmem:[%s659 + $0x8] sm:$0xf]
      %v663 = vld [vmem:[%s659 + $0xc] sm:$0xf]
      %v664 = vld [vmem:[%s659 + $0x10] sm:$0xf]
      %v665 = vld [vmem:[%s659 + $0x14] sm:$0xf]
      %v666 = vld [vmem:[%s659 + $0x18] sm:$0xf]
      %v667 = vld [vmem:[%s659 + $0x1c] sm:$0xf]
      %v678 = vunpack.c.l.b16 %v649
      %v679 = vunpack.c.l.b16 %v650
      %v680 = vunpack.c.l.b16 %v651
      %v681 = vunpack.c.l.b16 %v652
      %v682 = vunpack.c.l.b16 %v653
      %v683 = vunpack.c.l.b16 %v654
      %v684 = vunpack.c.l.b16 %v655
      %v685 = vunpack.c.l.b16 %v656
      %v686 = vunpack.c.l.b16 %v657
      %v687 = vunpack.c.l.b16 %v658
      %v688 = vpack.c.b16 %v679, %v678
      %v689 = vpack.c.b16 %v681, %v680
      %v690 = vpack.c.b16 %v683, %v682
      %v691 = vpack.c.b16 %v685, %v684
      %v692 = vpack.c.b16 %v687, %v686
      %v694 = vshrl.u32 %v688, 16
      %v696 = vshll.u32 %v688, 16
      %v698 = vrot.slane %v696, 1
      %v699 = vor.u32 %v694, %v698
      %v701 = vshll.u32 %v689, 16
      %v703 = vrot.slane %v701, 1
      %v704 = vsel %vm471, %v699, %v703
      %v705 = vshrl.u32 %v689, 16
      %v707 = vor.u32 %v705, %v703
      %v709 = vshll.u32 %v690, 16
      %v711 = vrot.slane %v709, 1
      %v712 = vsel %vm471, %v707, %v711
      %v713 = vshrl.u32 %v690, 16
      %v715 = vor.u32 %v713, %v711
      %v717 = vshll.u32 %v691, 16
      %v719 = vrot.slane %v717, 1
      %v720 = vsel %vm471, %v715, %v719
      %v721 = vshrl.u32 %v691, 16
      %v723 = vor.u32 %v721, %v719
      %v725 = vshll.u32 %v692, 16
      %v727 = vrot.slane %v725, 1
      %v728 = vsel %vm471, %v723, %v727
      %v729 = vshrl.u32 %v692, 16
      %v731 = vor.u32 %v729, %v727
      %v740 = vunpack.c.l.b16 %v660
      %v741 = vunpack.c.l.b16 %v661
      %v742 = vunpack.c.l.b16 %v662
      %v743 = vunpack.c.l.b16 %v663
      %v744 = vunpack.c.l.b16 %v664
      %v745 = vunpack.c.l.b16 %v665
      %v746 = vunpack.c.l.b16 %v666
      %v747 = vunpack.c.l.b16 %v667
      %v748 = vpack.c.b16 %v741, %v740
      %v749 = vpack.c.b16 %v743, %v742
      %v750 = vpack.c.b16 %v745, %v744
      %v751 = vpack.c.b16 %v747, %v746
      %v757 = vsel %vm320, %v704, 0
      %v760 = vsel %vm320, %v712, 0
      %v763 = vsel %vm320, %v720, 0
      %v766 = vsel %vm320, %v728, 0
      %v769 = vsel %vm320, %v731, 0
      %771 = vmatprep.subr.bf16.mxu0 0
      %772 = vmatpush1.bf16.msra.mxu0 %v748
      %773 = vmatprep.subr.bf16.mxu0 0
      %774 = vmatpush1.bf16.msra.mxu0 %v749
      %775 = vmatprep.subr.bf16.mxu0 0
      %776 = vmatpush1.bf16.msra.mxu0 %v750
      %777 = vmatprep.subr.bf16.mxu0 0
      %778 = vmatpush1.bf16.msra.mxu0 %v751
      %779 = vmatprep.subr.bf16.mxu0 0
      %780 = vmatpush1.bf16.msra.mxu0 0
      %781 = vmatprep.subr.bf16.mxu0 0
      %782 = vmatpush1.bf16.msra.mxu0 0
      %783 = vmatprep.subr.bf16.mxu0 0
      %784 = vmatpush1.bf16.msra.mxu0 0
      %785 = vmatprep.subr.bf16.mxu0 0
      %786 = vmatpush1.bf16.msra.mxu0 0
      %787 = vmatprep.subr.bf16.mxu0 0
      %788 = vmatpush1.bf16.msra.mxu0 0
      %789 = vmatprep.subr.bf16.mxu0 0
      %790 = vmatpush1.bf16.msra.mxu0 0
      %791 = vmatprep.subr.bf16.mxu0 0
      %792 = vmatpush1.bf16.msra.mxu0 0
      %793 = vmatprep.subr.bf16.mxu0 0
      %794 = vmatpush1.bf16.msra.mxu0 0
      %795 = vmatprep.subr.bf16.mxu0 0
      %796 = vmatpush1.bf16.msra.mxu0 0
      %797 = vmatprep.subr.bf16.mxu0 0
      %798 = vmatpush1.bf16.msra.mxu0 0
      %799 = vmatprep.subr.bf16.mxu0 0
      %800 = vmatpush1.bf16.msra.mxu0 0
      %801 = vmatprep.subr.bf16.mxu0 0
      %802 = vmatpush1.bf16.msra.mxu0 0
      %803 = vmatprep.mubr.bf16.mxu0 0
      %804 = vmatmul.mubr.bf16.gmra.mrb[0].mxu0 %v757
      %v805 = vpop.f32.mrb[0].mxu0
      %v806 = vadd.f32 0.0, %v805
      %v807 = vpop.f32.mrb[0].mxu0
      %v808 = vpop.f32.mrb[0].mxu0
      %v809 = vadd.f32 0.0, %v808
      %v810 = vpop.f32.mrb[0].mxu0
      %811 = vmatprep.mubr.bf16.mxu0 0
      %812 = vmatmul.mubr.bf16.gmra.mrb[0].mxu0 %v760
      %v813 = vpop.f32.mrb[0].mxu0
      %v814 = vadd.f32 0.0, %v813
      %v815 = vpop.f32.mrb[0].mxu0
      %v816 = vpop.f32.mrb[0].mxu0
      %v817 = vadd.f32 0.0, %v816
      %v818 = vpop.f32.mrb[0].mxu0
      %819 = vmatprep.mubr.bf16.mxu0 0
      %820 = vmatmul.mubr.bf16.gmra.mrb[0].mxu0 %v763
      %v821 = vpop.f32.mrb[0].mxu0
      %v822 = vadd.f32 0.0, %v821
      %v823 = vpop.f32.mrb[0].mxu0
      %v824 = vpop.f32.mrb[0].mxu0
      %v825 = vadd.f32 0.0, %v824
      %v826 = vpop.f32.mrb[0].mxu0
      %827 = vmatprep.mubr.bf16.mxu0 0
      %828 = vmatmul.mubr.bf16.gmra.mrb[0].mxu0 %v766
      %v829 = vpop.f32.mrb[0].mxu0
      %v830 = vadd.f32 0.0, %v829
      %v831 = vpop.f32.mrb[0].mxu0
      %v832 = vpop.f32.mrb[0].mxu0
      %v833 = vadd.f32 0.0, %v832
      %v834 = vpop.f32.mrb[0].mxu0
      %835 = vmatprep.mubr.bf16.mxu0 0
      %836 = vmatmul.mubr.bf16.gmra.mrb[0].mxu0 %v769
      %v837 = vpop.f32.mrb[0].mxu0
      %v838 = vadd.f32 0.0, %v837
      %v839 = vpop.f32.mrb[0].mxu0
      %v840 = vpop.f32.mrb[0].mxu0
      %v841 = vpop.f32.mrb[0].mxu0
      %842 = vdwg.mxu0
      %v843 = vadd.f32 %v640, %v806
      %v844 = vadd.f32 %v641, %v809
      %v845 = vadd.f32 %v642, %v814
      %v846 = vadd.f32 %v643, %v817
      %v847 = vadd.f32 %v644, %v822
      %v848 = vadd.f32 %v645, %v825
      %v849 = vadd.f32 %v646, %v830
      %v850 = vadd.f32 %v647, %v833
      %v851 = vadd.f32 %v648, %v838
      %852 = vst.msk [vmem:[#allocation2] sm:$0xff] %vm408, %v843
      %853 = vst.msk [vmem:[#allocation2 + $0x8] sm:$0xff] %vm408, %v844
      %854 = vst.msk [vmem:[#allocation2 + $0x10] sm:$0xff] %vm408, %v845
      %855 = vst.msk [vmem:[#allocation2 + $0x18] sm:$0xff] %vm408, %v846
      %856 = vst.msk [vmem:[#allocation2 + $0x20] sm:$0xff] %vm408, %v847
      %857 = vst.msk [vmem:[#allocation2 + $0x28] sm:$0xff] %vm408, %v848
      %858 = vst.msk [vmem:[#allocation2 + $0x30] sm:$0xff] %vm408, %v849
      %859 = vst.msk [vmem:[#allocation2 + $0x38] sm:$0xff] %vm408, %v850
      %860 = vst.msk [vmem:[#allocation2 + $0x40] sm:$0xff] %vm408, %v851
      %v861 = vld [vmem:[#allocation2] sm:$0xff]
      %v862 = vld [vmem:[#allocation2 + $0x8] sm:$0xff]
      %v863 = vld [vmem:[#allocation2 + $0x10] sm:$0xff]
      %v864 = vld [vmem:[#allocation2 + $0x18] sm:$0xff]
      %v865 = vld [vmem:[#allocation2 + $0x20] sm:$0xff]
      %v866 = vld [vmem:[#allocation2 + $0x28] sm:$0xff]
      %v867 = vld [vmem:[#allocation2 + $0x30] sm:$0xff]
      %v868 = vld [vmem:[#allocation2 + $0x38] sm:$0xff]
      %v869 = vld [vmem:[#allocation2 + $0x40] sm:$0xff]
      %v870 = vld [vmem:[%s172 + $0x4] sm:$0xe]
      %v871 = vld [vmem:[%s172 + $0x8] sm:$0xf]
      %v872 = vld [vmem:[%s172 + $0xc] sm:$0xf]
      %v873 = vld [vmem:[%s172 + $0x10] sm:$0xf]
      %v874 = vld [vmem:[%s172 + $0x14] sm:$0xf]
      %v875 = vld [vmem:[%s172 + $0x18] sm:$0xf]
      %v876 = vld [vmem:[%s172 + $0x1c] sm:$0xf]
      %v877 = vld [vmem:[%s172 + $0x20] sm:$0xf]
      %v878 = vld [vmem:[%s172 + $0x24] sm:$0xf]
      %v879 = vld [vmem:[%s172 + $0x28] sm:$0x1]
      %s880 = scalar_lea.vmem %s1, 96
      %v881 = vld [vmem:[%s880] sm:$0xf]
      %v882 = vld [vmem:[%s880 + $0x4] sm:$0xf]
      %v883 = vld [vmem:[%s880 + $0x8] sm:$0xf]
      %v884 = vld [vmem:[%s880 + $0xc] sm:$0xf]
      %v885 = vld [vmem:[%s880 + $0x10] sm:$0xf]
      %v886 = vld [vmem:[%s880 + $0x14] sm:$0xf]
      %v887 = vld [vmem:[%s880 + $0x18] sm:$0xf]
      %v888 = vld [vmem:[%s880 + $0x1c] sm:$0xf]
      %v899 = vunpack.c.l.b16 %v870
      %v900 = vunpack.c.l.b16 %v871
      %v901 = vunpack.c.l.b16 %v872
      %v902 = vunpack.c.l.b16 %v873
      %v903 = vunpack.c.l.b16 %v874
      %v904 = vunpack.c.l.b16 %v875
      %v905 = vunpack.c.l.b16 %v876
      %v906 = vunpack.c.l.b16 %v877
      %v907 = vunpack.c.l.b16 %v878
      %v908 = vunpack.c.l.b16 %v879
      %v909 = vpack.c.b16 %v900, %v899
      %v910 = vpack.c.b16 %v902, %v901
      %v911 = vpack.c.b16 %v904, %v903
      %v912 = vpack.c.b16 %v906, %v905
      %v913 = vpack.c.b16 %v908, %v907
      %vm914 = vcmask 1046528
      %v915 = vrot.slane %v909, 1
      %v916 = vrot.slane %v910, 1
      %v917 = vsel %vm914, %v915, %v916
      %v918 = vrot.slane %v911, 1
      %v919 = vsel %vm914, %v916, %v918
      %v920 = vrot.slane %v912, 1
      %v921 = vsel %vm914, %v918, %v920
      %v922 = vrot.slane %v913, 1
      %v923 = vsel %vm914, %v920, %v922
      %v932 = vunpack.c.l.b16 %v881
      %v933 = vunpack.c.l.b16 %v882
      %v934 = vunpack.c.l.b16 %v883
      %v935 = vunpack.c.l.b16 %v884
      %v936 = vunpack.c.l.b16 %v885
      %v937 = vunpack.c.l.b16 %v886
      %v938 = vunpack.c.l.b16 %v887
      %v939 = vunpack.c.l.b16 %v888
      %v940 = vpack.c.b16 %v933, %v932
      %v941 = vpack.c.b16 %v935, %v934
      %v942 = vpack.c.b16 %v937, %v936
      %v943 = vpack.c.b16 %v939, %v938
      %v949 = vsel %vm320, %v917, 0
      %v952 = vsel %vm320, %v919, 0
      %v955 = vsel %vm320, %v921, 0
      %v958 = vsel %vm320, %v923, 0
      %v961 = vsel %vm320, %v922, 0
      %963 = vmatprep.subr.bf16.mxu0 0
      %964 = vmatpush1.bf16.msra.mxu0 %v940
      %965 = vmatprep.subr.bf16.mxu0 0
      %966 = vmatpush1.bf16.msra.mxu0 %v941
      %967 = vmatprep.subr.bf16.mxu0 0
      %968 = vmatpush1.bf16.msra.mxu0 %v942
      %969 = vmatprep.subr.bf16.mxu0 0
      %970 = vmatpush1.bf16.msra.mxu0 %v943
      %971 = vmatprep.subr.bf16.mxu0 0
      %972 = vmatpush1.bf16.msra.mxu0 0
      %973 = vmatprep.subr.bf16.mxu0 0
      %974 = vmatpush1.bf16.msra.mxu0 0
      %975 = vmatprep.subr.bf16.mxu0 0
      %976 = vmatpush1.bf16.msra.mxu0 0
      %977 = vmatprep.subr.bf16.mxu0 0
      %978 = vmatpush1.bf16.msra.mxu0 0
      %979 = vmatprep.subr.bf16.mxu0 0
      %980 = vmatpush1.bf16.msra.mxu0 0
      %981 = vmatprep.subr.bf16.mxu0 0
      %982 = vmatpush1.bf16.msra.mxu0 0
      %983 = vmatprep.subr.bf16.mxu0 0
      %984 = vmatpush1.bf16.msra.mxu0 0
      %985 = vmatprep.subr.bf16.mxu0 0
      %986 = vmatpush1.bf16.msra.mxu0 0
      %987 = vmatprep.subr.bf16.mxu0 0
      %988 = vmatpush1.bf16.msra.mxu0 0
      %989 = vmatprep.subr.bf16.mxu0 0
      %990 = vmatpush1.bf16.msra.mxu0 0
      %991 = vmatprep.subr.bf16.mxu0 0
      %992 = vmatpush1.bf16.msra.mxu0 0
      %993 = vmatprep.subr.bf16.mxu0 0
      %994 = vmatpush1.bf16.msra.mxu0 0
      %995 = vmatprep.mubr.bf16.mxu0 0
      %996 = vmatmul.mubr.bf16.gmra.mrb[0].mxu0 %v949
      %v997 = vpop.f32.mrb[0].mxu0
      %v998 = vadd.f32 0.0, %v997
      %v999 = vpop.f32.mrb[0].mxu0
      %v1000 = vpop.f32.mrb[0].mxu0
      %v1001 = vadd.f32 0.0, %v1000
      %v1002 = vpop.f32.mrb[0].mxu0
      %1003 = vmatprep.mubr.bf16.mxu0 0
      %1004 = vmatmul.mubr.bf16.gmra.mrb[0].mxu0 %v952
      %v1005 = vpop.f32.mrb[0].mxu0
      %v1006 = vadd.f32 0.0, %v1005
      %v1007 = vpop.f32.mrb[0].mxu0
      %v1008 = vpop.f32.mrb[0].mxu0
      %v1009 = vadd.f32 0.0, %v1008
      %v1010 = vpop.f32.mrb[0].mxu0
      %1011 = vmatprep.mubr.bf16.mxu0 0
      %1012 = vmatmul.mubr.bf16.gmra.mrb[0].mxu0 %v955
      %v1013 = vpop.f32.mrb[0].mxu0
      %v1014 = vadd.f32 0.0, %v1013
      %v1015 = vpop.f32.mrb[0].mxu0
      %v1016 = vpop.f32.mrb[0].mxu0
      %v1017 = vadd.f32 0.0, %v1016
      %v1018 = vpop.f32.mrb[0].mxu0
      %1019 = vmatprep.mubr.bf16.mxu0 0
      %1020 = vmatmul.mubr.bf16.gmra.mrb[0].mxu0 %v958
      %v1021 = vpop.f32.mrb[0].mxu0
      %v1022 = vadd.f32 0.0, %v1021
      %v1023 = vpop.f32.mrb[0].mxu0
      %v1024 = vpop.f32.mrb[0].mxu0
      %v1025 = vadd.f32 0.0, %v1024
      %v1026 = vpop.f32.mrb[0].mxu0
      %1027 = vmatprep.mubr.bf16.mxu0 0
      %1028 = vmatmul.mubr.bf16.gmra.mrb[0].mxu0 %v961
      %v1029 = vpop.f32.mrb[0].mxu0
      %v1030 = vadd.f32 0.0, %v1029
      %v1031 = vpop.f32.mrb[0].mxu0
      %v1032 = vpop.f32.mrb[0].mxu0
      %v1033 = vpop.f32.mrb[0].mxu0
      %1034 = vdwg.mxu0
      %v1035 = vadd.f32 %v861, %v998
      %v1036 = vadd.f32 %v862, %v1001
      %v1037 = vadd.f32 %v863, %v1006
      %v1038 = vadd.f32 %v864, %v1009
      %v1039 = vadd.f32 %v865, %v1014
      %v1040 = vadd.f32 %v866, %v1017
      %v1041 = vadd.f32 %v867, %v1022
      %v1042 = vadd.f32 %v868, %v1025
      %v1043 = vadd.f32 %v869, %v1030
      %1044 = vst.msk [vmem:[#allocation2] sm:$0xff] %vm408, %v1035
      %1045 = vst.msk [vmem:[#allocation2 + $0x8] sm:$0xff] %vm408, %v1036
      %1046 = vst.msk [vmem:[#allocation2 + $0x10] sm:$0xff] %vm408, %v1037
      %1047 = vst.msk [vmem:[#allocation2 + $0x18] sm:$0xff] %vm408, %v1038
      %1048 = vst.msk [vmem:[#allocation2 + $0x20] sm:$0xff] %vm408, %v1039
      %1049 = vst.msk [vmem:[#allocation2 + $0x28] sm:$0xff] %vm408, %v1040
      %1050 = vst.msk [vmem:[#allocation2 + $0x30] sm:$0xff] %vm408, %v1041
      %1051 = vst.msk [vmem:[#allocation2 + $0x38] sm:$0xff] %vm408, %v1042
      %1052 = vst.msk [vmem:[#allocation2 + $0x40] sm:$0xff] %vm408, %v1043
      %v1053 = vld [vmem:[#allocation2] sm:$0xff]
      %v1054 = vld [vmem:[#allocation2 + $0x8] sm:$0xff]
      %v1055 = vld [vmem:[#allocation2 + $0x10] sm:$0xff]
      %v1056 = vld [vmem:[#allocation2 + $0x18] sm:$0xff]
      %v1057 = vld [vmem:[#allocation2 + $0x20] sm:$0xff]
      %v1058 = vld [vmem:[#allocation2 + $0x28] sm:$0xff]
      %v1059 = vld [vmem:[#allocation2 + $0x30] sm:$0xff]
      %v1060 = vld [vmem:[#allocation2 + $0x38] sm:$0xff]
      %v1061 = vld [vmem:[#allocation2 + $0x40] sm:$0xff]
      %v1062 = vsel %vm247, 1, 0
      %v1063 = vsel %vm248, 1, 0
      %v1064 = vsel %vm249, 1, 0
      %v1065 = vsel %vm250, 1, 0
      %v1066 = vsel %vm251, 1, 0
      %v1067 = vsel %vm252, 1, 0
      %v1068 = vsel %vm253, 1, 0
      %v1069 = vsel %vm254, 1, 0
      %v1070 = vsel %vm255, 1, 0
      %vm1071 = vcmp.eq.s32.totalorder %v1062, 1
      %vm1072 = vcmp.eq.s32.totalorder %v1063, 1
      %vm1073 = vcmp.eq.s32.totalorder %v1064, 1
      %vm1074 = vcmp.eq.s32.totalorder %v1065, 1
      %vm1075 = vcmp.eq.s32.totalorder %v1066, 1
      %vm1076 = vcmp.eq.s32.totalorder %v1067, 1
      %vm1077 = vcmp.eq.s32.totalorder %v1068, 1
      %vm1078 = vcmp.eq.s32.totalorder %v1069, 1
      %vm1079 = vcmp.eq.s32.totalorder %v1070, 1
      %v1080 = vsel %vm1071, %v1053, 0.0
      %v1081 = vsel %vm1072, %v1054, 0.0
      %v1082 = vsel %vm1073, %v1055, 0.0
      %v1083 = vsel %vm1074, %v1056, 0.0
      %v1084 = vsel %vm1075, %v1057, 0.0
      %v1085 = vsel %vm1076, %v1058, 0.0
      %v1086 = vsel %vm1077, %v1059, 0.0
      %v1087 = vsel %vm1078, %v1060, 0.0
      %v1088 = vsel %vm1079, %v1061, 0.0
      %v1089 = vsel %vm408, %v1080, 0.0
      %v1090 = vsel %vm408, %v1081, 0.0
      %v1091 = vadd.f32 %v1089, %v1090
      %v1092 = vsel %vm408, %v1082, 0.0
      %v1093 = vadd.f32 %v1091, %v1092
      %v1094 = vsel %vm408, %v1083, 0.0
      %v1095 = vadd.f32 %v1093, %v1094
      %v1096 = vsel %vm408, %v1084, 0.0
      %v1097 = vadd.f32 %v1095, %v1096
      %v1098 = vsel %vm408, %v1085, 0.0
      %v1099 = vadd.f32 %v1097, %v1098
      %v1100 = vsel %vm408, %v1086, 0.0
      %v1101 = vadd.f32 %v1099, %v1100
      %v1102 = vsel %vm408, %v1087, 0.0
      %v1103 = vadd.f32 %v1101, %v1102
      %v1104 = vsel %vm408, %v1088, 0.0
      %v1105 = vadd.f32 %v1103, %v1104
      %v1106 = vrot.slane %v1105, 4
      %v1107 = vadd.f32 %v1105, %v1106
      %v1108 = vrot.slane %v1107, 2
      %v1109 = vadd.f32 %v1107, %v1108
      %v1110 = vrot.slane %v1109, 1
      %v1111 = vadd.f32 %v1109, %v1110
      %v1112 = vmul.f32 %v1053, %v1053
      %v1113 = vmul.f32 %v1054, %v1054
      %v1114 = vmul.f32 %v1055, %v1055
      %v1115 = vmul.f32 %v1056, %v1056
      %v1116 = vmul.f32 %v1057, %v1057
      %v1117 = vmul.f32 %v1058, %v1058
      %v1118 = vmul.f32 %v1059, %v1059
      %v1119 = vmul.f32 %v1060, %v1060
      %v1120 = vmul.f32 %v1061, %v1061
      %v1121 = vsel %vm1071, %v1112, 0.0
      %v1122 = vsel %vm1072, %v1113, 0.0
      %v1123 = vsel %vm1073, %v1114, 0.0
      %v1124 = vsel %vm1074, %v1115, 0.0
      %v1125 = vsel %vm1075, %v1116, 0.0
      %v1126 = vsel %vm1076, %v1117, 0.0
      %v1127 = vsel %vm1077, %v1118, 0.0
      %v1128 = vsel %vm1078, %v1119, 0.0
      %v1129 = vsel %vm1079, %v1120, 0.0
      %v1130 = vsel %vm408, %v1121, 0.0
      %v1131 = vsel %vm408, %v1122, 0.0
      %v1132 = vadd.f32 %v1130, %v1131
      %v1133 = vsel %vm408, %v1123, 0.0
      %v1134 = vadd.f32 %v1132, %v1133
      %v1135 = vsel %vm408, %v1124, 0.0
      %v1136 = vadd.f32 %v1134, %v1135
      %v1137 = vsel %vm408, %v1125, 0.0
      %v1138 = vadd.f32 %v1136, %v1137
      %v1139 = vsel %vm408, %v1126, 0.0
      %v1140 = vadd.f32 %v1138, %v1139
      %v1141 = vsel %vm408, %v1127, 0.0
      %v1142 = vadd.f32 %v1140, %v1141
      %v1143 = vsel %vm408, %v1128, 0.0
      %v1144 = vadd.f32 %v1142, %v1143
      %v1145 = vsel %vm408, %v1129, 0.0
      %v1146 = vadd.f32 %v1144, %v1145
      %v1147 = vrot.slane %v1146, 4
      %v1148 = vadd.f32 %v1146, %v1147
      %v1149 = vrot.slane %v1148, 2
      %v1150 = vadd.f32 %v1148, %v1149
      %v1151 = vrot.slane %v1150, 1
      %v1152 = vadd.f32 %v1150, %v1151
      %vm1153 = vcmask 1040384
      %v1154 = vsel %vm1153, %v1111, %v1152
      %vm1155 = vcmask 254976
      %1156 = vst.msk [vmem:[%s181] sm:$0x3] %vm1155, %v1154
      %v1157 = vpack.c.bf16 %v1054, %v1053
      %v1158 = vpack.c.bf16 %v1056, %v1055
      %v1159 = vpack.c.bf16 %v1058, %v1057
      %v1160 = vpack.c.bf16 %v1060, %v1059
      %v1161 = vpack.c.bf16 %v1061, %v1061
      %v1167 = vunpack.c.l.b16 %v1157
      %v1168 = vunpack.c.h.b16 %v1157
      %v1169 = vunpack.c.l.b16 %v1158
      %v1170 = vunpack.c.h.b16 %v1158
      %v1171 = vunpack.c.l.b16 %v1159
      %v1172 = vunpack.c.h.b16 %v1159
      %v1173 = vunpack.c.l.b16 %v1160
      %v1174 = vunpack.c.h.b16 %v1160
      %v1175 = vunpack.c.l.b16 %v1161
      %v1176 = vpack.c.b16 %v1167, %v1167
      %v1177 = vpack.c.b16 %v1168, %v1168
      %v1178 = vpack.c.b16 %v1169, %v1169
      %v1179 = vpack.c.b16 %v1170, %v1170
      %v1180 = vpack.c.b16 %v1171, %v1171
      %v1181 = vpack.c.b16 %v1172, %v1172
      %v1182 = vpack.c.b16 %v1173, %v1173
      %v1183 = vpack.c.b16 %v1174, %v1174
      %v1184 = vpack.c.b16 %v1175, %v1175
      %vm1194 = vcmask 257024
      %1195 = vst.msk [vmem:[%s177] sm:$0xf] %vm1194, %v1176
      %1196 = vst.msk [vmem:[%s177 + $0x4] sm:$0xf] %vm1194, %v1177
      %1197 = vst.msk [vmem:[%s177 + $0x8] sm:$0xf] %vm1194, %v1178
      %1198 = vst.msk [vmem:[%s177 + $0xc] sm:$0xf] %vm1194, %v1179
      %1199 = vst.msk [vmem:[%s177 + $0x10] sm:$0xf] %vm1194, %v1180
      %1200 = vst.msk [vmem:[%s177 + $0x14] sm:$0xf] %vm1194, %v1181
      %1201 = vst.msk [vmem:[%s177 + $0x18] sm:$0xf] %vm1194, %v1182
      %1202 = vst.msk [vmem:[%s177 + $0x1c] sm:$0xf] %vm1194, %v1183
      %1203 = vst.msk [vmem:[%s177 + $0x20] sm:$0xf] %vm1194, %v1184
      %p1204 = scmp.lt.s32.totalorder %s15, 1
      %s1205 = scalar_select %p1204, %s15, 1
      %s1206 = smul.addr %s1205, 9
      %s1207 = smul.addr %s1206, 4
      %s1208 = scalar_lea.vmem %s2, %s1207
      %p1209 = scmp.lt.s32.totalorder %s15, 1
      %s1210 = scalar_select %p1209, %s15, 1
      %s1211 = smul.addr %s1210, 2
      %s1212 = scalar_lea.vmem %s3, %s1211
      // Predicated region
      $region29: #{discriminator_forward.13} parent=27 // pred_check
        %p1213 = pneg %p80
      $region30: #{discriminator_forward.13} parent=27 // pred_check_branch
        %1215 = sbr.rel (%p1213) target = $region32
      $region31: #{discriminator_forward.13} parent=27 // pred_region
        _
      $region32: #{discriminator_forward.13} parent=27 // pred_fallthru
        _
      // Predicated region
      $region33: #{discriminator_forward.13} parent=27 // pred_check
        %p1216 = pneg %p106
      $region34: #{discriminator_forward.13} parent=27 // pred_check_branch
        %1218 = sbr.rel (%p1216) target = $region36
      $region35: #{discriminator_forward.13} parent=27 // pred_region
        _
      $region36: #{discriminator_forward.13} parent=27 // pred_fallthru
        _
    $region28: #{discriminator_forward.13} parent=5 // pred_fallthru
      _
    %p1219 = scmp.le.s32.totalorder 2, %s10
    // Predicated region
    $region37: #{discriminator_forward.13} parent=5 // pred_check
      %p1220 = pneg %p1219
    $region38: #{discriminator_forward.13} parent=5 // pred_check_branch
      %1222 = sbr.rel (%p1220) target = $region40
    $region39: #{discriminator_forward.13} parent=5 // pred_region
      %s1223 = ssub.s32 %s10, 2
      // Predicated region
      $region41: #{discriminator_forward.13} parent=39 // pred_check
        %p1224 = pneg %p86
      $region42: #{discriminator_forward.13} parent=39 // pred_check_branch
        %1226 = sbr.rel (%p1224) target = $region44
      $region43: #{discriminator_forward.13} parent=39 // pred_region
        %p1227 = scmp.lt.s32.totalorder %s16, 1
        %s1228 = scalar_select %p1227, %s16, 1
        %s1229 = smul.addr %s1228, 9
        %s1230 = smul.addr %s1229, 4
        %s1231 = scalar_lea.vmem %s2, %s1230
      $region44: #{discriminator_forward.13} parent=39 // pred_fallthru
        _
      // Predicated region
      $region45: #{discriminator_forward.13} parent=39 // pred_check
        %p1232 = pneg %p112
      $region46: #{discriminator_forward.13} parent=39 // pred_check_branch
        %1234 = sbr.rel (%p1232) target = $region48
      $region47: #{discriminator_forward.13} parent=39 // pred_region
        %p1235 = scmp.lt.s32.totalorder %s16, 1
        %s1236 = scalar_select %p1235, %s16, 1
        %s1237 = smul.addr %s1236, 2
        %s1238 = scalar_lea.vmem %s3, %s1237
      $region48: #{discriminator_forward.13} parent=39 // pred_fallthru
        _
    $region40: #{discriminator_forward.13} parent=5 // pred_fallthru
      _
  $region6: #{discriminator_forward.13} parent=0 // loop_footer
    %s14 = sadd.s32 1, %s10
  $region7: #{discriminator_forward.13} parent=0 // loop_footer_branch
    %9 = sbr.rel target = $region3
  $region8: #{discriminator_forward.13} parent=0 // loop_exit
    _

// kernel: tile.73
$region0: #{tile.73}
  #allocation0 [shape = 's32[1]{0}', space=sflag, size = 0x4, scoped, tag = 'scoped memory for tile.73']
  %s0 = inlined_call_operand.vmem [shape: f32[64], index: 0, kind: input, shape index: {}]
  %s1 = inlined_call_operand.vmem [shape: f32[2,64], index: 1, kind: output, shape index: {}]
  // Predicated region
  $region2: #{tile.73} parent=0 // pred_check
    _
  $region3: #{tile.73} parent=0 // pred_check_branch
    %3 = sbr.rel (0) target = $region5
  $region4: #{tile.73} parent=0 // pred_region
    _
  $region5: #{tile.73} parent=0 // pred_fallthru
    _
  %v4 = vld [vmem:[%s0] ss:$0 sm:$0xff]
  %5 = vst [vmem:[%s1] sm:$0x3] %v4

// kernel: tile.74
$region0: #{tile.74}
  %s0 = inlined_call_operand.vmem [shape: f32[2,64], index: 0, kind: input, shape index: {}]
  %s1 = inlined_call_operand.vmem [shape: f32[1,128], index: 1, kind: output, shape index: {}]
  $region1: #{tile.74} parent=0
    #allocation0 [shape = 'u8[4096]{0}', space=vmem, size = 0x1000, scoped, tag = 'scoped mem for output reshape']
    #allocation1 [shape = 'u8[4096]{0}', space=vmem, size = 0x1000, scoped, tag = 'scoped mem for input reshape']
    %s3 = sshllo.u32 0, 2
    %v4 = vld [vmem:[%s0] sm:%s3]
    %5 = vst [vmem:[#allocation1] sm:%s3] %v4
    %v6 = vld [vmem:[#allocation1] sm:$0x1]
    %vm7 = vcmask 523264
    %8 = vst.msk [vmem:[#allocation0] sm:$0x1] %vm7, %v6
    %s9 = scalar_lea.vmem [#allocation1], 1
    %v10 = vld [vmem:[%s9] sm:$0x1]
    %11 = vrot.lane.b32.xlu0 %v10, 64
    %v12 = vpop.permute.xlu0 %11
    %vm13 = vcmask 1048064
    %14 = vst.msk [vmem:[#allocation0] sm:$0x1] %vm13, %v12
    %s16 = sshllo.u32 0, 1
    %v18 = vld [vmem:[#allocation0] sm:%s16]
    %s19 = sshllo.u32 0, 1
    %20 = vst [vmem:[%s1] sm:%s19] %v18

// kernel: discriminator_forward.16
$region0: #{discriminator_forward.16}
  #allocation0 [shape = 'u32[]', space=smem, size = 0x4, offset = 0x4, fixed_abs, tag = 'smem constant byte address 0x4 - core index']
  #allocation1 [shape = 'u32[144,128]{1,0:T(1,128)}', space=vmem, size = 0x12000, scoped, tag = 'internal scratch']
  %s0 = inlined_call_operand.vmem [shape: bf16[2,10,128], index: 0, kind: input, shape index: {}]
  %s1 = inlined_call_operand.vmem [shape: f32[1,128], index: 1, kind: input, shape index: {}]
  %s2 = inlined_call_operand.vmem [shape: f32[1,128], index: 2, kind: input, shape index: {}]
  %s3 = inlined_call_operand.vmem [shape: bf16[2,10,128], index: 3, kind: output, shape index: {}]
  %s4 = sld [smem:[#allocation0]]
  $region45: #{discriminator_forward.16} parent=0
    _
  %s6 = ssub.s32 1, %s4
  %s7 = scalar_select 0, %s6, %s4
  loop: start=0, step=1, limit=4
  $region2: #{discriminator_forward.16} parent=0 // loop_pre_header
    _
  $region3: #{discriminator_forward.16} parent=0 // loop_header
    %s9 = sphi 0, %s13
    %p10 = scmp.ge.s32.totalorder %s9, 4
    %s19 = sphi 0, %s21
    %s22 = sphi 0, %s19
    %s23 = sphi 0, %s22
    %s39 = sphi 0, %s23
    %s43 = sphi 0, %s43
    %s45 = sphi 0, %s43
    %s46 = sphi 0, %s45
    %s60 = sphi 0, %s46
    %s64 = sphi 0, %s64
    %s66 = sphi 0, %s64
    %s67 = sphi 0, %s66
    %s81 = sphi 0, %s67
    %s87 = sphi 0, %s89
    %s90 = sphi 0, %s87
    %s91 = sphi 0, %s90
    %s107 = sphi 0, %s91
  $region4: #{discriminator_forward.16} parent=0 // loop_header_branch
    %12 = sbr.rel (%p10) target = $region8
  $region5: #{discriminator_forward.16} parent=0 // loop_body
    %s14 = ssub.s32 %s9, 1
    %s15 = ssub.s32 %s9, 2
    %s16 = sadd.s32 %s9, 1
    %s17 = ssub.s32 %s9, %s16
    %p18 = scmp.eq.s32.totalorder %s17, 0
    %s20 = sadd.s32 %s19, 1
    %s21 = scalar_select %p18, %s19, %s20
    %p24 = pneg %p18
    %p25 = scmp.eq.s32.totalorder %s9, 1
    %p26 = por %p24, %p25
    %p27 = scmp.ne.s32.totalorder %s19, %s22
    %p28 = scmp.eq.s32.totalorder %s9, 0
    %p29 = por %p27, %p28
    %p30 = scmp.ne.s32.totalorder %s19, %s22
    %p31 = scmp.eq.s32.totalorder %s14, 1
    %p32 = por %p30, %p31
    %p33 = scmp.ne.s32.totalorder %s22, %s23
    %p34 = scmp.eq.s32.totalorder %s14, 0
    %p35 = por %p33, %p34
    %p36 = scmp.ne.s32.totalorder %s22, %s23
    %p37 = scmp.eq.s32.totalorder %s15, 1
    %p38 = por %p36, %p37
    %p40 = scmp.ne.s32.totalorder %s23, %s39
    %p41 = scmp.eq.s32.totalorder %s15, 0
    %p42 = por %p40, %p41
    %s44 = sadd.s32 %s43, 1
    %p47 = scmp.eq.s32.totalorder %s9, 1
    %p48 = scmp.ne.s32.totalorder %s43, %s45
    %p49 = scmp.eq.s32.totalorder %s9, 0
    %p50 = por %p48, %p49
    %p51 = scmp.ne.s32.totalorder %s43, %s45
    %p52 = scmp.eq.s32.totalorder %s14, 1
    %p53 = por %p51, %p52
    %p54 = scmp.ne.s32.totalorder %s45, %s46
    %p55 = scmp.eq.s32.totalorder %s14, 0
    %p56 = por %p54, %p55
    %p57 = scmp.ne.s32.totalorder %s45, %s46
    %p58 = scmp.eq.s32.totalorder %s15, 1
    %p59 = por %p57, %p58
    %p61 = scmp.ne.s32.totalorder %s46, %s60
    %p62 = scmp.eq.s32.totalorder %s15, 0
    %p63 = por %p61, %p62
    %s65 = sadd.s32 %s64, 1
    %p68 = scmp.eq.s32.totalorder %s9, 1
    %p69 = scmp.ne.s32.totalorder %s64, %s66
    %p70 = scmp.eq.s32.totalorder %s9, 0
    %p71 = por %p69, %p70
    %p72 = scmp.ne.s32.totalorder %s64, %s66
    %p73 = scmp.eq.s32.totalorder %s14, 1
    %p74 = por %p72, %p73
    %p75 = scmp.ne.s32.totalorder %s66, %s67
    %p76 = scmp.eq.s32.totalorder %s14, 0
    %p77 = por %p75, %p76
    %p78 = scmp.ne.s32.totalorder %s66, %s67
    %p79 = scmp.eq.s32.totalorder %s15, 1
    %p80 = por %p78, %p79
    %p82 = scmp.ne.s32.totalorder %s67, %s81
    %p83 = scmp.eq.s32.totalorder %s15, 0
    %p84 = por %p82, %p83
    %s85 = ssub.s32 %s9, %s16
    %p86 = scmp.eq.s32.totalorder %s85, 0
    %s88 = sadd.s32 %s87, 1
    %s89 = scalar_select %p86, %s87, %s88
    %p92 = pneg %p86
    %p93 = scmp.eq.s32.totalorder %s9, 1
    %p94 = por %p92, %p93
    %p95 = scmp.ne.s32.totalorder %s87, %s90
    %p96 = scmp.eq.s32.totalorder %s9, 0
    %p97 = por %p95, %p96
    %p98 = scmp.ne.s32.totalorder %s87, %s90
    %p99 = scmp.eq.s32.totalorder %s14, 1
    %p100 = por %p98, %p99
    %p101 = scmp.ne.s32.totalorder %s90, %s91
    %p102 = scmp.eq.s32.totalorder %s14, 0
    %p103 = por %p101, %p102
    %p104 = scmp.ne.s32.totalorder %s90, %s91
    %p105 = scmp.eq.s32.totalorder %s15, 1
    %p106 = por %p104, %p105
    %p108 = scmp.ne.s32.totalorder %s91, %s107
    %p109 = scmp.eq.s32.totalorder %s15, 0
    %p110 = por %p108, %p109
    %p111 = scmp.le.s32.totalorder 1, %s9
    %p112 = scmp.lt.s32.totalorder %s9, 3
    %p113 = pnand %p111, %p112
    %p114 = pneg %p113
    // Predicated region
    $region9: #{discriminator_forward.16} parent=5 // pred_check
      _
    $region10: #{discriminator_forward.16} parent=5 // pred_check_branch
      %116 = sbr.rel (%p113) target = $region12
    $region11: #{discriminator_forward.16} parent=5 // pred_region
      %s117 = ssub.s32 %s9, 1
      // Predicated region
      $region13: #{discriminator_forward.16} parent=11 // pred_check
        %p118 = pneg %p56
      $region14: #{discriminator_forward.16} parent=11 // pred_check_branch
        %120 = sbr.rel (%p118) target = $region16
      $region15: #{discriminator_forward.16} parent=11 // pred_region
        _
      $region16: #{discriminator_forward.16} parent=11 // pred_fallthru
        _
      // Predicated region
      $region17: #{discriminator_forward.16} parent=11 // pred_check
        %p121 = pneg %p77
      $region18: #{discriminator_forward.16} parent=11 // pred_check_branch
        %123 = sbr.rel (%p121) target = $region20
      $region19: #{discriminator_forward.16} parent=11 // pred_region
        _
      $region20: #{discriminator_forward.16} parent=11 // pred_fallthru
        _
    $region12: #{discriminator_forward.16} parent=5 // pred_fallthru
      _
    %p124 = scmp.lt.s32.totalorder %s9, 2
    // Predicated region
    $region21: #{discriminator_forward.16} parent=5 // pred_check
      %p125 = pneg %p124
    $region22: #{discriminator_forward.16} parent=5 // pred_check_branch
      %127 = sbr.rel (%p125) target = $region24
    $region23: #{discriminator_forward.16} parent=5 // pred_region
      // Predicated region
      $region25: #{discriminator_forward.16} parent=23 // pred_check
        %p128 = pneg %p29
      $region26: #{discriminator_forward.16} parent=23 // pred_check_branch
        %130 = sbr.rel (%p128) target = $region28
      $region27: #{discriminator_forward.16} parent=23 // pred_region
        %p131 = scmp.lt.s32.totalorder %s9, 1
        %s132 = scalar_select %p131, %s9, 1
        %s133 = smul.addr %s132, 2
        %s134 = smul.addr %s133, 4
        %s135 = scalar_lea.vmem %s0, %s134
      $region28: #{discriminator_forward.16} parent=23 // pred_fallthru
        _
    $region24: #{discriminator_forward.16} parent=5 // pred_fallthru
      _
    %p136 = scmp.le.s32.totalorder 1, %s9
    %p137 = scmp.lt.s32.totalorder %s9, 3
    %p138 = pnand %p136, %p137
    %p139 = pneg %p138
    // Predicated region
    $region29: #{discriminator_forward.16} parent=5 // pred_check
      _
    $region30: #{discriminator_forward.16} parent=5 // pred_check_branch
      %141 = sbr.rel (%p138) target = $region32
    $region31: #{discriminator_forward.16} parent=5 // pred_region
      %s142 = ssub.s32 %s9, 1
      %p143 = scmp.lt.s32.totalorder %s14, 1
      %s144 = scalar_select %p143, %s14, 1
      %s145 = smul.addr %s144, 2
      %s146 = smul.addr %s145, 4
      %s147 = scalar_lea.vmem %s0, %s146
      %p148 = pneg %p35
      %p149 = pneg %p32
      %p150 = pneg %p56
      %p151 = pneg %p53
      %p152 = pneg %p77
      %p153 = pneg %p74
      %p154 = pneg %p103
      %p155 = pneg %p100
      %p156 = scmp.lt.s32.totalorder %s14, 1
      %s157 = scalar_select %p156, %s14, 1
      %s158 = smul.addr %s157, 2
      %s159 = smul.addr %s158, 4
      %s160 = scalar_lea.vmem %s3, %s159
      %p161 = scmp.lt.s32.totalorder %s14, 1
      %s162 = scalar_select %p161, %s14, 1
      %s163 = smul.addr %s162, 2
      %s164 = smul.addr %s163, 4
      %s165 = scalar_lea.vmem %s0, %s164
      %p166 = scmp.lt.s32.totalorder %s14, 1
      %s167 = scalar_select %p166, %s14, 1
      %s168 = smul.addr %s167, 2
      %s169 = smul.addr %s168, 4
      %s170 = scalar_lea.vmem %s3, %s169
      %v171 = vld [vmem:[%s165] sm:$0xf]
      %v172 = vld [vmem:[%s165 + $0x4] sm:$0x1]
      %v173 = vunpack.c.l.bf16 %v171
      %v174 = vunpack.c.l.bf16 %v172
      %v175 = vld [vmem:[%s1] sm:$0x1]
      %v177 = vlaneseq
      %v178 = vshrl.u32 %v177, 7
      %v179 = vsub.s32 0, %v178
      %v180 = vrot.slane %v175, %v179
      %v182 = vmul.f32 %v173, %v180
      %v183 = vmul.f32 %v174, %v180
      %v184 = vld [vmem:[%s2] sm:$0x1]
      %v186 = vlaneseq
      %v187 = vshrl.u32 %v186, 7
      %v188 = vsub.s32 0, %v187
      %v189 = vrot.slane %v184, %v188
      %v191 = vadd.f32 %v182, %v189
      %v192 = vadd.f32 %v183, %v189
      %vm193 = vcmp.ge.f32.partialorder %v191, 0.0
      %vm194 = vcmp.ge.f32.partialorder %v192, 0.0
      %v195 = vmul.f32 %v191, 0.2
      %v196 = vmul.f32 %v192, 0.2
      %v197 = vsel %vm193, %v191, %v195
      %v198 = vsel %vm194, %v192, %v196
      %v199 = vpack.c.bf16 %v198, %v197
      %v201 = vunpack.c.l.b16 %v199
      %v202 = vunpack.c.h.b16 %v199
      %v203 = vpack.c.b16 %v201, %v201
      %v204 = vpack.c.b16 %v202, %v202
      %207 = vst [vmem:[%s170] sm:$0xf] %v203
      %208 = vst [vmem:[%s170 + $0x4] sm:$0x1] %v204
      %p209 = scmp.lt.s32.totalorder %s14, 1
      %s210 = scalar_select %p209, %s14, 1
      %s211 = smul.addr %s210, 2
      %s212 = smul.addr %s211, 4
      %s213 = scalar_lea.vmem %s3, %s212
      // Predicated region
      $region33: #{discriminator_forward.16} parent=31 // pred_check
        %p214 = pneg %p100
      $region34: #{discriminator_forward.16} parent=31 // pred_check_branch
        %216 = sbr.rel (%p214) target = $region36
      $region35: #{discriminator_forward.16} parent=31 // pred_region
        _
      $region36: #{discriminator_forward.16} parent=31 // pred_fallthru
        _
    $region32: #{discriminator_forward.16} parent=5 // pred_fallthru
      _
    %p217 = scmp.le.s32.totalorder 2, %s9
    // Predicated region
    $region37: #{discriminator_forward.16} parent=5 // pred_check
      %p218 = pneg %p217
    $region38: #{discriminator_forward.16} parent=5 // pred_check_branch
      %220 = sbr.rel (%p218) target = $region40
    $region39: #{discriminator_forward.16} parent=5 // pred_region
      %s221 = ssub.s32 %s9, 2
      // Predicated region
      $region41: #{discriminator_forward.16} parent=39 // pred_check
        %p222 = pneg %p106
      $region42: #{discriminator_forward.16} parent=39 // pred_check_branch
        %224 = sbr.rel (%p222) target = $region44
      $region43: #{discriminator_forward.16} parent=39 // pred_region
        %p225 = scmp.lt.s32.totalorder %s15, 1
        %s226 = scalar_select %p225, %s15, 1
        %s227 = smul.addr %s226, 2
        %s228 = smul.addr %s227, 4
        %s229 = scalar_lea.vmem %s3, %s228
      $region44: #{discriminator_forward.16} parent=39 // pred_fallthru
        _
    $region40: #{discriminator_forward.16} parent=5 // pred_fallthru
      _
  $region6: #{discriminator_forward.16} parent=0 // loop_footer
    %s13 = sadd.s32 1, %s9
  $region7: #{discriminator_forward.16} parent=0 // loop_footer_branch
    %8 = sbr.rel target = $region3
  $region8: #{discriminator_forward.16} parent=0 // loop_exit
    _

// kernel: discriminator_forward.17
$region0: #{discriminator_forward.17}
  #allocation0 [shape = 'u32[]', space=smem, size = 0x4, offset = 0x4, fixed_abs, tag = 'smem constant byte address 0x4 - core index']
  #allocation1 [shape = 'u32[144,128]{1,0:T(1,128)}', space=vmem, size = 0x12000, scoped, tag = 'internal scratch']
  %s0 = inlined_call_operand.vmem [shape: bf16[2,1024], index: 0, kind: input, shape index: {}]
  %s1 = inlined_call_operand.vmem [shape: f32[1,1024], index: 1, kind: input, shape index: {}]
  %s2 = inlined_call_operand.vmem [shape: f32[2,1], index: 2, kind: output, shape index: {}]
  %s3 = sld [smem:[#allocation0]]
  $region18: #{discriminator_forward.17} parent=0
    _
  %s5 = ssub.s32 1, %s3
  %s6 = scalar_select 0, %s5, %s3
  // Predicated region
  $region2: #{discriminator_forward.17} parent=0 // pred_check
    _
  $region3: #{discriminator_forward.17} parent=0 // pred_check_branch
    %8 = sbr.rel (0) target = $region5
  $region4: #{discriminator_forward.17} parent=0 // pred_region
    _
  $region5: #{discriminator_forward.17} parent=0 // pred_fallthru
    _
  // Predicated region
  $region6: #{discriminator_forward.17} parent=0 // pred_check
    _
  $region7: #{discriminator_forward.17} parent=0 // pred_check_branch
    %10 = sbr.rel (0) target = $region9
  $region8: #{discriminator_forward.17} parent=0 // pred_region
    _
  $region9: #{discriminator_forward.17} parent=0 // pred_fallthru
    _
  %v11 = vld [vmem:[%s0] sm:$0xff]
  %v12 = vunpack.c.l.bf16 %v11
  %v13 = vunpack.c.h.bf16 %v11
  %v14 = vld [vmem:[%s1] sm:$0xff]
  %v16 = vlaneseq
  %v17 = vshrl.u32 %v16, 7
  %v18 = vsub.s32 0, %v17
  %v19 = vrot.slane %v14, %v18
  %v20 = vlaneseq
  %v21 = vshrl.u32 %v20, 7
  %v22 = vsub.s32 1, %v21
  %v23 = vrot.slane %v14, %v22
  %v24 = vlaneseq
  %v25 = vshrl.u32 %v24, 7
  %v26 = vsub.s32 2, %v25
  %v27 = vrot.slane %v14, %v26
  %v28 = vlaneseq
  %v29 = vshrl.u32 %v28, 7
  %v30 = vsub.s32 3, %v29
  %v31 = vrot.slane %v14, %v30
  %v32 = vlaneseq
  %v33 = vshrl.u32 %v32, 7
  %v34 = vsub.s32 4, %v33
  %v35 = vrot.slane %v14, %v34
  %v36 = vlaneseq
  %v37 = vshrl.u32 %v36, 7
  %v38 = vsub.s32 5, %v37
  %v39 = vrot.slane %v14, %v38
  %v40 = vlaneseq
  %v41 = vshrl.u32 %v40, 7
  %v42 = vsub.s32 6, %v41
  %v43 = vrot.slane %v14, %v42
  %v44 = vlaneseq
  %v45 = vshrl.u32 %v44, 7
  %v46 = vsub.s32 7, %v45
  %v47 = vrot.slane %v14, %v46
  %v48 = vcombine.low %v19, %v23
  %v49 = vcombine.low %v27, %v31
  %v51 = vunpack.c.l.s4 1983009808
  %v52 = vunpack.c.0.s8 %v51
  %v53 = vlaneseq
  %v54 = vshrl.u32 %v53, 7
  %v55 = vsub.s32 %v52, %v54
  %v56 = vrot.slane %v48, %v55
  %v58 = vunpack.c.l.s4 1983009808
  %v59 = vunpack.c.0.s8 %v58
  %v60 = vlaneseq
  %v61 = vshrl.u32 %v60, 7
  %v62 = vsub.s32 %v59, %v61
  %v63 = vrot.slane %v49, %v62
  %v64 = vcombine.low %v56, %v63
  %v65 = vcombine.low %v35, %v39
  %v66 = vcombine.low %v43, %v47
  %v68 = vunpack.c.l.s4 1983009808
  %v69 = vunpack.c.0.s8 %v68
  %v70 = vlaneseq
  %v71 = vshrl.u32 %v70, 7
  %v72 = vsub.s32 %v69, %v71
  %v73 = vrot.slane %v65, %v72
  %v75 = vunpack.c.l.s4 1983009808
  %v76 = vunpack.c.0.s8 %v75
  %v77 = vlaneseq
  %v78 = vshrl.u32 %v77, 7
  %v79 = vsub.s32 %v76, %v78
  %v80 = vrot.slane %v66, %v79
  %v81 = vcombine.low %v73, %v80
  %v84 = vmul.f32 %v12, %v64
  %v85 = vmul.f32 %v13, %v81
  %v88 = vcombine.high %v84, %v84
  %v90 = vunpack.c.l.s4 1983009808
  %v91 = vunpack.c.0.s8 %v90
  %v92 = vlaneseq
  %v93 = vshrl.u32 %v92, 7
  %v94 = vsub.s32 %v91, %v93
  %v95 = vrot.slane %v84, %v94
  %v97 = vunpack.c.l.s4 1983009808
  %v98 = vunpack.c.0.s8 %v97
  %v99 = vlaneseq
  %v100 = vshrl.u32 %v99, 7
  %v101 = vsub.s32 %v98, %v100
  %v102 = vrot.slane %v88, %v101
  %v103 = vcombine.high %v95, %v95
  %v104 = vcombine.high %v102, %v102
  %v105 = vcombine.high %v85, %v85
  %v107 = vunpack.c.l.s4 1983009808
  %v108 = vunpack.c.0.s8 %v107
  %v109 = vlaneseq
  %v110 = vshrl.u32 %v109, 7
  %v111 = vsub.s32 %v108, %v110
  %v112 = vrot.slane %v85, %v111
  %v114 = vunpack.c.l.s4 1983009808
  %v115 = vunpack.c.0.s8 %v114
  %v116 = vlaneseq
  %v117 = vshrl.u32 %v116, 7
  %v118 = vsub.s32 %v115, %v117
  %v119 = vrot.slane %v105, %v118
  %v120 = vcombine.high %v112, %v112
  %v121 = vcombine.high %v119, %v119
  %vm130 = vcmask 1041408
  %v131 = vsel %vm130, %v95, 0.0
  %v132 = vsel %vm130, %v103, 0.0
  %v133 = vadd.f32 %v131, %v132
  %v134 = vsel %vm130, %v102, 0.0
  %v135 = vadd.f32 %v133, %v134
  %v136 = vsel %vm130, %v104, 0.0
  %v137 = vadd.f32 %v135, %v136
  %v138 = vsel %vm130, %v112, 0.0
  %v139 = vadd.f32 %v137, %v138
  %v140 = vsel %vm130, %v120, 0.0
  %v141 = vadd.f32 %v139, %v140
  %v142 = vsel %vm130, %v119, 0.0
  %v143 = vadd.f32 %v141, %v142
  %v144 = vsel %vm130, %v121, 0.0
  %v145 = vadd.f32 %v143, %v144
  %146 = vadd.xlane.f32.xlu0 %v145
  %v147 = vpop.xlane.xlu0 %146
  %v148 = vsub.f32 0.0, %v147
  %v149 = vmul.f32 %v148, 1.442695
  %v150 = vpow.pop %v149
  %v151 = vadd.f32 %v150, 1.0
  %v152 = vrcp.pop %v151
  %v153 = vmul.f32 1.0, %v152
  %vm154 = vcmask 1024
  %155 = vst.msk [vmem:[%s2] sm:$0x3] %vm154, %v153
  // Predicated region
  $region10: #{discriminator_forward.17} parent=0 // pred_check
    _
  $region11: #{discriminator_forward.17} parent=0 // pred_check_branch
    %157 = sbr.rel (0) target = $region13
  $region12: #{discriminator_forward.17} parent=0 // pred_region
    _
  $region13: #{discriminator_forward.17} parent=0 // pred_fallthru
    _
  // Predicated region
  $region14: #{discriminator_forward.17} parent=0 // pred_check
    _
  $region15: #{discriminator_forward.17} parent=0 // pred_check_branch
    %159 = sbr.rel (0) target = $region17
  $region16: #{discriminator_forward.17} parent=0 // pred_region
    _
  $region17: #{discriminator_forward.17} parent=0 // pred_fallthru
    _

// kernel: discriminator_forward.15
$region0: #{discriminator_forward.15}
  #allocation0 [shape = 'u32[]', space=smem, size = 0x4, offset = 0x4, fixed_abs, tag = 'smem constant byte address 0x4 - core index']
  #allocation1 [shape = 'u32[144,128]{1,0:T(1,128)}', space=vmem, size = 0x12000, scoped, tag = 'internal scratch']
  #allocation2 [shape = 'f32[20,64]{1,0:T(8,128)}', space=vmem, size = 0x3000, scoped, tag = 'scratch operand']
  %s0 = inlined_call_operand.vmem [shape: bf16[2,32,128], index: 0, kind: input, shape index: {}]
  %s1 = inlined_call_operand.vmem [shape: bf16[4,128,64], index: 1, kind: input, shape index: {}]
  %s2 = inlined_call_operand.vmem [shape: bf16[2,20,64], index: 2, kind: output, shape index: {0}]
  %s3 = inlined_call_operand.vmem [shape: f32[2,2,64], index: 3, kind: output, shape index: {1}]
  %4 = xla_tuple %s2, %s3
  %s5 = sld [smem:[#allocation0]]
  $region49: #{discriminator_forward.15} parent=0
    _
  %s7 = ssub.s32 1, %s5
  %s8 = scalar_select 0, %s7, %s5
  loop: start=0, step=1, limit=4
  $region2: #{discriminator_forward.15} parent=0 // loop_pre_header
    _
  $region3: #{discriminator_forward.15} parent=0 // loop_header
    %s10 = sphi 0, %s14
    %p11 = scmp.ge.s32.totalorder %s10, 4
    %s20 = sphi 0, %s22
    %s23 = sphi 0, %s20
    %s24 = sphi 0, %s23
    %s40 = sphi 0, %s24
    %s44 = sphi 0, %s44
    %s46 = sphi 0, %s44
    %s47 = sphi 0, %s46
    %s61 = sphi 0, %s47
    %s67 = sphi 0, %s69
    %s70 = sphi 0, %s67
    %s71 = sphi 0, %s70
    %s87 = sphi 0, %s71
    %s93 = sphi 0, %s95
    %s96 = sphi 0, %s93
    %s97 = sphi 0, %s96
    %s113 = sphi 0, %s97
  $region4: #{discriminator_forward.15} parent=0 // loop_header_branch
    %13 = sbr.rel (%p11) target = $region8
  $region5: #{discriminator_forward.15} parent=0 // loop_body
    %s15 = ssub.s32 %s10, 1
    %s16 = ssub.s32 %s10, 2
    %s17 = sadd.s32 %s10, 1
    %s18 = ssub.s32 %s10, %s17
    %p19 = scmp.eq.s32.totalorder %s18, 0
    %s21 = sadd.s32 %s20, 1
    %s22 = scalar_select %p19, %s20, %s21
    %p25 = pneg %p19
    %p26 = scmp.eq.s32.totalorder %s10, 1
    %p27 = por %p25, %p26
    %p28 = scmp.ne.s32.totalorder %s20, %s23
    %p29 = scmp.eq.s32.totalorder %s10, 0
    %p30 = por %p28, %p29
    %p31 = scmp.ne.s32.totalorder %s20, %s23
    %p32 = scmp.eq.s32.totalorder %s15, 1
    %p33 = por %p31, %p32
    %p34 = scmp.ne.s32.totalorder %s23, %s24
    %p35 = scmp.eq.s32.totalorder %s15, 0
    %p36 = por %p34, %p35
    %p37 = scmp.ne.s32.totalorder %s23, %s24
    %p38 = scmp.eq.s32.totalorder %s16, 1
    %p39 = por %p37, %p38
    %p41 = scmp.ne.s32.totalorder %s24, %s40
    %p42 = scmp.eq.s32.totalorder %s16, 0
    %p43 = por %p41, %p42
    %s45 = sadd.s32 %s44, 1
    %p48 = scmp.eq.s32.totalorder %s10, 1
    %p49 = scmp.ne.s32.totalorder %s44, %s46
    %p50 = scmp.eq.s32.totalorder %s10, 0
    %p51 = por %p49, %p50
    %p52 = scmp.ne.s32.totalorder %s44, %s46
    %p53 = scmp.eq.s32.totalorder %s15, 1
    %p54 = por %p52, %p53
    %p55 = scmp.ne.s32.totalorder %s46, %s47
    %p56 = scmp.eq.s32.totalorder %s15, 0
    %p57 = por %p55, %p56
    %p58 = scmp.ne.s32.totalorder %s46, %s47
    %p59 = scmp.eq.s32.totalorder %s16, 1
    %p60 = por %p58, %p59
    %p62 = scmp.ne.s32.totalorder %s47, %s61
    %p63 = scmp.eq.s32.totalorder %s16, 0
    %p64 = por %p62, %p63
    %s65 = ssub.s32 %s10, %s17
    %p66 = scmp.eq.s32.totalorder %s65, 0
    %s68 = sadd.s32 %s67, 1
    %s69 = scalar_select %p66, %s67, %s68
    %p72 = pneg %p66
    %p73 = scmp.eq.s32.totalorder %s10, 1
    %p74 = por %p72, %p73
    %p75 = scmp.ne.s32.totalorder %s67, %s70
    %p76 = scmp.eq.s32.totalorder %s10, 0
    %p77 = por %p75, %p76
    %p78 = scmp.ne.s32.totalorder %s67, %s70
    %p79 = scmp.eq.s32.totalorder %s15, 1
    %p80 = por %p78, %p79
    %p81 = scmp.ne.s32.totalorder %s70, %s71
    %p82 = scmp.eq.s32.totalorder %s15, 0
    %p83 = por %p81, %p82
    %p84 = scmp.ne.s32.totalorder %s70, %s71
    %p85 = scmp.eq.s32.totalorder %s16, 1
    %p86 = por %p84, %p85
    %p88 = scmp.ne.s32.totalorder %s71, %s87
    %p89 = scmp.eq.s32.totalorder %s16, 0
    %p90 = por %p88, %p89
    %s91 = ssub.s32 %s10, %s17
    %p92 = scmp.eq.s32.totalorder %s91, 0
    %s94 = sadd.s32 %s93, 1
    %s95 = scalar_select %p92, %s93, %s94
    %p98 = pneg %p92
    %p99 = scmp.eq.s32.totalorder %s10, 1
    %p100 = por %p98, %p99
    %p101 = scmp.ne.s32.totalorder %s93, %s96
    %p102 = scmp.eq.s32.totalorder %s10, 0
    %p103 = por %p101, %p102
    %p104 = scmp.ne.s32.totalorder %s93, %s96
    %p105 = scmp.eq.s32.totalorder %s15, 1
    %p106 = por %p104, %p105
    %p107 = scmp.ne.s32.totalorder %s96, %s97
    %p108 = scmp.eq.s32.totalorder %s15, 0
    %p109 = por %p107, %p108
    %p110 = scmp.ne.s32.totalorder %s96, %s97
    %p111 = scmp.eq.s32.totalorder %s16, 1
    %p112 = por %p110, %p111
    %p114 = scmp.ne.s32.totalorder %s97, %s113
    %p115 = scmp.eq.s32.totalorder %s16, 0
    %p116 = por %p114, %p115
    %p117 = scmp.le.s32.totalorder 1, %s10
    %p118 = scmp.lt.s32.totalorder %s10, 3
    %p119 = pnand %p117, %p118
    %p120 = pneg %p119
    // Predicated region
    $region9: #{discriminator_forward.15} parent=5 // pred_check
      _
    $region10: #{discriminator_forward.15} parent=5 // pred_check_branch
      %122 = sbr.rel (%p119) target = $region12
    $region11: #{discriminator_forward.15} parent=5 // pred_region
      %s123 = ssub.s32 %s10, 1
      // Predicated region
      $region13: #{discriminator_forward.15} parent=11 // pred_check
        %p124 = pneg %p57
      $region14: #{discriminator_forward.15} parent=11 // pred_check_branch
        %126 = sbr.rel (%p124) target = $region16
      $region15: #{discriminator_forward.15} parent=11 // pred_region
        _
      $region16: #{discriminator_forward.15} parent=11 // pred_fallthru
        _
    $region12: #{discriminator_forward.15} parent=5 // pred_fallthru
      _
    %p127 = scmp.lt.s32.totalorder %s10, 2
    // Predicated region
    $region17: #{discriminator_forward.15} parent=5 // pred_check
      %p128 = pneg %p127
    $region18: #{discriminator_forward.15} parent=5 // pred_check_branch
      %130 = sbr.rel (%p128) target = $region20
    $region19: #{discriminator_forward.15} parent=5 // pred_region
      // Predicated region
      $region21: #{discriminator_forward.15} parent=19 // pred_check
        %p131 = pneg %p30
      $region22: #{discriminator_forward.15} parent=19 // pred_check_branch
        %133 = sbr.rel (%p131) target = $region24
      $region23: #{discriminator_forward.15} parent=19 // pred_region
        %p134 = scmp.lt.s32.totalorder %s10, 1
        %s135 = scalar_select %p134, %s10, 1
        %s136 = smul.addr %s135, 4
        %s137 = smul.addr %s136, 4
        %s138 = scalar_lea.vmem %s0, %s137
      $region24: #{discriminator_forward.15} parent=19 // pred_fallthru
        _
    $region20: #{discriminator_forward.15} parent=5 // pred_fallthru
      _
    %p139 = scmp.le.s32.totalorder 1, %s10
    %p140 = scmp.lt.s32.totalorder %s10, 3
    %p141 = pnand %p139, %p140
    %p142 = pneg %p141
    // Predicated region
    $region25: #{discriminator_forward.15} parent=5 // pred_check
      _
    $region26: #{discriminator_forward.15} parent=5 // pred_check_branch
      %144 = sbr.rel (%p141) target = $region28
    $region27: #{discriminator_forward.15} parent=5 // pred_region
      %s145 = ssub.s32 %s10, 1
      %p146 = scmp.lt.s32.totalorder %s15, 1
      %s147 = scalar_select %p146, %s15, 1
      %s148 = smul.addr %s147, 4
      %s149 = smul.addr %s148, 4
      %s150 = scalar_lea.vmem %s0, %s149
      %p151 = pneg %p36
      %p152 = pneg %p33
      %p153 = pneg %p57
      %p154 = pneg %p54
      %p155 = pneg %p83
      %p156 = pneg %p80
      %p157 = scmp.lt.s32.totalorder %s15, 1
      %s158 = scalar_select %p157, %s15, 1
      %s159 = smul.addr %s158, 3
      %s160 = smul.addr %s159, 4
      %s161 = scalar_lea.vmem %s2, %s160
      %p162 = pneg %p109
      %p163 = pneg %p106
      %p164 = scmp.lt.s32.totalorder %s15, 1
      %s165 = scalar_select %p164, %s15, 1
      %s166 = smul.addr %s165, 2
      %s167 = scalar_lea.vmem %s3, %s166
      %p168 = scmp.lt.s32.totalorder %s15, 1
      %s169 = scalar_select %p168, %s15, 1
      %s170 = smul.addr %s169, 4
      %s171 = smul.addr %s170, 4
      %s172 = scalar_lea.vmem %s0, %s171
      %p173 = scmp.lt.s32.totalorder %s15, 1
      %s174 = scalar_select %p173, %s15, 1
      %s175 = smul.addr %s174, 3
      %s176 = smul.addr %s175, 4
      %s177 = scalar_lea.vmem %s2, %s176
      %p178 = scmp.lt.s32.totalorder %s15, 1
      %s179 = scalar_select %p178, %s15, 1
      %s180 = smul.addr %s179, 2
      %s181 = scalar_lea.vmem %s3, %s180
      %v183 = vlaneseq
      %v184 = vshrl.u32 %v183, 7
      %v185 = vadd.s32 %v184, 8
      %v186 = vadd.s32 %v184, 16
      %v187 = vcvt.s32.f32 %v184
      %v188 = vcvt.s32.f32 %v185
      %v189 = vcvt.s32.f32 %v186
      %v190 = vadd.f32 %v187, 0.5
      %v191 = vadd.f32 %v188, 0.5
      %v192 = vadd.f32 %v189, 0.5
      %v193 = vmul.f32 %v190, 0.2
      %v194 = vmul.f32 %v191, 0.2
      %v195 = vmul.f32 %v192, 0.2
      %v196 = vfloor.f32 %v193
      %v197 = vfloor.f32 %v194
      %v198 = vfloor.f32 %v195
      %v199 = vmul.f32 %v196, 5.0
      %v200 = vmul.f32 %v197, 5.0
      %v201 = vmul.f32 %v198, 5.0
      %v202 = vsub.f32 %v187, %v199
      %v203 = vsub.f32 %v188, %v200
      %v204 = vsub.f32 %v189, %v201
      %vm205 = vcmp.lt.f32.partialorder %v202, 3.5
      %vm206 = vcmp.lt.f32.partialorder %v203, 3.5
      %vm207 = vcmp.lt.f32.partialorder %v204, 3.5
      %v208 = vld [vmem:[%s172] sm:$0xf]
      %v209 = vld [vmem:[%s172 + $0x4] sm:$0xf]
      %v210 = vld [vmem:[%s172 + $0x8] sm:$0x3]
      %v211 = vld [vmem:[%s1] sm:$0xf]
      %v212 = vld [vmem:[%s1 + $0x4] sm:$0xf]
      %v213 = vld [vmem:[%s1 + $0x8] sm:$0xf]
      %v214 = vld [vmem:[%s1 + $0xc] sm:$0xf]
      %v215 = vld [vmem:[%s1 + $0x10] sm:$0xf]
      %v216 = vld [vmem:[%s1 + $0x14] sm:$0xf]
      %v217 = vld [vmem:[%s1 + $0x18] sm:$0xf]
      %v218 = vld [vmem:[%s1 + $0x1c] sm:$0xf]
      %v219 = vld [vmem:[%s1 + $0x20] sm:$0xf]
      %v220 = vld [vmem:[%s1 + $0x24] sm:$0xf]
      %v221 = vld [vmem:[%s1 + $0x28] sm:$0xf]
      %v222 = vld [vmem:[%s1 + $0x2c] sm:$0xf]
      %v223 = vld [vmem:[%s1 + $0x30] sm:$0xf]
      %v224 = vld [vmem:[%s1 + $0x34] sm:$0xf]
      %v225 = vld [vmem:[%s1 + $0x38] sm:$0xf]
      %v226 = vld [vmem:[%s1 + $0x3c] sm:$0xf]
      %v230 = vunpack.c.l.b16 %v208
      %v231 = vunpack.c.l.b16 %v209
      %v232 = vunpack.c.l.b16 %v210
      %v233 = vpack.c.b16 %v231, %v230
      %v234 = vpack.c.b16 %v232, %v232
      %v253 = vunpack.c.l.b16 %v211
      %v254 = vunpack.c.l.b16 %v212
      %v255 = vunpack.c.l.b16 %v213
      %v256 = vunpack.c.l.b16 %v214
      %v257 = vunpack.c.l.b16 %v215
      %v258 = vunpack.c.l.b16 %v216
      %v259 = vunpack.c.l.b16 %v217
      %v260 = vunpack.c.l.b16 %v218
      %v261 = vunpack.c.l.b16 %v219
      %v262 = vunpack.c.l.b16 %v220
      %v263 = vunpack.c.l.b16 %v221
      %v264 = vunpack.c.l.b16 %v222
      %v265 = vunpack.c.l.b16 %v223
      %v266 = vunpack.c.l.b16 %v224
      %v267 = vunpack.c.l.b16 %v225
      %v268 = vunpack.c.l.b16 %v226
      %v269 = vpack.c.b16 %v254, %v253
      %v270 = vpack.c.b16 %v256, %v255
      %v271 = vpack.c.b16 %v258, %v257
      %v272 = vpack.c.b16 %v260, %v259
      %v273 = vpack.c.b16 %v262, %v261
      %v274 = vpack.c.b16 %v264, %v263
      %v275 = vpack.c.b16 %v266, %v265
      %v276 = vpack.c.b16 %v268, %v267
      %285 = vmatprep.subr.bf16.mxu0 0
      %286 = vmatpush1.bf16.msra.mxu0 %v269
      %287 = vmatprep.subr.bf16.mxu0 0
      %288 = vmatpush1.bf16.msra.mxu0 %v270
      %289 = vmatprep.subr.bf16.mxu0 0
      %290 = vmatpush1.bf16.msra.mxu0 %v271
      %291 = vmatprep.subr.bf16.mxu0 0
      %292 = vmatpush1.bf16.msra.mxu0 %v272
      %293 = vmatprep.subr.bf16.mxu0 0
      %294 = vmatpush1.bf16.msra.mxu0 %v273
      %295 = vmatprep.subr.bf16.mxu0 0
      %296 = vmatpush1.bf16.msra.mxu0 %v274
      %297 = vmatprep.subr.bf16.mxu0 0
      %298 = vmatpush1.bf16.msra.mxu0 %v275
      %299 = vmatprep.subr.bf16.mxu0 0
      %300 = vmatpush1.bf16.msra.mxu0 %v276
      %301 = vmatprep.subr.bf16.mxu0 0
      %302 = vmatpush1.bf16.msra.mxu0 0
      %303 = vmatprep.subr.bf16.mxu0 0
      %304 = vmatpush1.bf16.msra.mxu0 0
      %305 = vmatprep.subr.bf16.mxu0 0
      %306 = vmatpush1.bf16.msra.mxu0 0
      %307 = vmatprep.subr.bf16.mxu0 0
      %308 = vmatpush1.bf16.msra.mxu0 0
      %309 = vmatprep.subr.bf16.mxu0 0
      %310 = vmatpush1.bf16.msra.mxu0 0
      %311 = vmatprep.subr.bf16.mxu0 0
      %312 = vmatpush1.bf16.msra.mxu0 0
      %313 = vmatprep.subr.bf16.mxu0 0
      %314 = vmatpush1.bf16.msra.mxu0 0
      %315 = vmatprep.subr.bf16.mxu0 0
      %316 = vmatpush1.bf16.msra.mxu0 0
      %317 = vmatprep.mubr.bf16.mxu0 0
      %318 = vmatmul.mubr.bf16.gmra.mrb[0].mxu0 %v233
      %v319 = vpop.f32.mrb[0].mxu0
      %v320 = vadd.f32 0.0, %v319
      %v321 = vpop.f32.mrb[0].mxu0
      %v322 = vpop.f32.mrb[0].mxu0
      %v323 = vadd.f32 0.0, %v322
      %v324 = vpop.f32.mrb[0].mxu0
      %325 = vmatprep.mubr.bf16.mxu0 0
      %326 = vmatmul.mubr.bf16.gmra.mrb[0].mxu0 %v234
      %v327 = vpop.f32.mrb[0].mxu0
      %v328 = vadd.f32 0.0, %v327
      %v329 = vpop.f32.mrb[0].mxu0
      %v330 = vpop.f32.mrb[0].mxu0
      %v331 = vpop.f32.mrb[0].mxu0
      %332 = vdwg.mxu0
      %vm333 = vcmask 523264
      %334 = vst.msk [vmem:[#allocation2] sm:$0xff] %vm333, %v320
      %335 = vst.msk [vmem:[#allocation2 + $0x8] sm:$0xff] %vm333, %v323
      %vm336 = vcmask 519168
      %337 = vst.msk [vmem:[#allocation2 + $0x10] sm:$0xf] %vm336, %v328
      %v338 = vld [vmem:[#allocation2] sm:$0xff]
      %v339 = vld [vmem:[#allocation2 + $0x8] sm:$0xff]
      %v340 = vld [vmem:[#allocation2 + $0x10] sm:$0xf]
      %v341 = vld [vmem:[%s172] sm:$0xf]
      %v342 = vld [vmem:[%s172 + $0x4] sm:$0xf]
      %v343 = vld [vmem:[%s172 + $0x8] sm:$0x7]
      %s344 = scalar_lea.vmem %s1, 64
      %v345 = vld [vmem:[%s344] sm:$0xf]
      %v346 = vld [vmem:[%s344 + $0x4] sm:$0xf]
      %v347 = vld [vmem:[%s344 + $0x8] sm:$0xf]
      %v348 = vld [vmem:[%s344 + $0xc] sm:$0xf]
      %v349 = vld [vmem:[%s344 + $0x10] sm:$0xf]
      %v350 = vld [vmem:[%s344 + $0x14] sm:$0xf]
      %v351 = vld [vmem:[%s344 + $0x18] sm:$0xf]
      %v352 = vld [vmem:[%s344 + $0x1c] sm:$0xf]
      %v353 = vld [vmem:[%s344 + $0x20] sm:$0xf]
      %v354 = vld [vmem:[%s344 + $0x24] sm:$0xf]
      %v355 = vld [vmem:[%s344 + $0x28] sm:$0xf]
      %v356 = vld [vmem:[%s344 + $0x2c] sm:$0xf]
      %v357 = vld [vmem:[%s344 + $0x30] sm:$0xf]
      %v358 = vld [vmem:[%s344 + $0x34] sm:$0xf]
      %v359 = vld [vmem:[%s344 + $0x38] sm:$0xf]
      %v360 = vld [vmem:[%s344 + $0x3c] sm:$0xf]
      %v364 = vunpack.c.l.b16 %v341
      %v365 = vunpack.c.l.b16 %v342
      %v366 = vunpack.c.l.b16 %v343
      %v367 = vpack.c.b16 %v365, %v364
      %v368 = vpack.c.b16 %v366, %v366
      %vm369 = vsmask.f32 7424
      %v371 = vshrl.u32 %v367, 16
      %v373 = vshll.u32 %v367, 16
      %v375 = vrot.slane %v373, 1
      %v376 = vor.u32 %v371, %v375
      %v378 = vshll.u32 %v368, 16
      %v380 = vrot.slane %v378, 1
      %v381 = vsel %vm369, %v376, %v380
      %v382 = vshrl.u32 %v368, 16
      %v384 = vor.u32 %v382, %v380
      %v403 = vunpack.c.l.b16 %v345
      %v404 = vunpack.c.l.b16 %v346
      %v405 = vunpack.c.l.b16 %v347
      %v406 = vunpack.c.l.b16 %v348
      %v407 = vunpack.c.l.b16 %v349
      %v408 = vunpack.c.l.b16 %v350
      %v409 = vunpack.c.l.b16 %v351
      %v410 = vunpack.c.l.b16 %v352
      %v411 = vunpack.c.l.b16 %v353
      %v412 = vunpack.c.l.b16 %v354
      %v413 = vunpack.c.l.b16 %v355
      %v414 = vunpack.c.l.b16 %v356
      %v415 = vunpack.c.l.b16 %v357
      %v416 = vunpack.c.l.b16 %v358
      %v417 = vunpack.c.l.b16 %v359
      %v418 = vunpack.c.l.b16 %v360
      %v419 = vpack.c.b16 %v404, %v403
      %v420 = vpack.c.b16 %v406, %v405
      %v421 = vpack.c.b16 %v408, %v407
      %v422 = vpack.c.b16 %v410, %v409
      %v423 = vpack.c.b16 %v412, %v411
      %v424 = vpack.c.b16 %v414, %v413
      %v425 = vpack.c.b16 %v416, %v415
      %v426 = vpack.c.b16 %v418, %v417
      %435 = vmatprep.subr.bf16.mxu0 0
      %436 = vmatpush1.bf16.msra.mxu0 %v419
      %437 = vmatprep.subr.bf16.mxu0 0
      %438 = vmatpush1.bf16.msra.mxu0 %v420
      %439 = vmatprep.subr.bf16.mxu0 0
      %440 = vmatpush1.bf16.msra.mxu0 %v421
      %441 = vmatprep.subr.bf16.mxu0 0
      %442 = vmatpush1.bf16.msra.mxu0 %v422
      %443 = vmatprep.subr.bf16.mxu0 0
      %444 = vmatpush1.bf16.msra.mxu0 %v423
      %445 = vmatprep.subr.bf16.mxu0 0
      %446 = vmatpush1.bf16.msra.mxu0 %v424
      %447 = vmatprep.subr.bf16.mxu0 0
      %448 = vmatpush1.bf16.msra.mxu0 %v425
      %449 = vmatprep.subr.bf16.mxu0 0
      %450 = vmatpush1.bf16.msra.mxu0 %v426
      %451 = vmatprep.subr.bf16.mxu0 0
      %452 = vmatpush1.bf16.msra.mxu0 0
      %453 = vmatprep.subr.bf16.mxu0 0
      %454 = vmatpush1.bf16.msra.mxu0 0
      %455 = vmatprep.subr.bf16.mxu0 0
      %456 = vmatpush1.bf16.msra.mxu0 0
      %457 = vmatprep.subr.bf16.mxu0 0
      %458 = vmatpush1.bf16.msra.mxu0 0
      %459 = vmatprep.subr.bf16.mxu0 0
      %460 = vmatpush1.bf16.msra.mxu0 0
      %461 = vmatprep.subr.bf16.mxu0 0
      %462 = vmatpush1.bf16.msra.mxu0 0
      %463 = vmatprep.subr.bf16.mxu0 0
      %464 = vmatpush1.bf16.msra.mxu0 0
      %465 = vmatprep.subr.bf16.mxu0 0
      %466 = vmatpush1.bf16.msra.mxu0 0
      %467 = vmatprep.mubr.bf16.mxu0 0
      %468 = vmatmul.mubr.bf16.gmra.mrb[0].mxu0 %v381
      %v469 = vpop.f32.mrb[0].mxu0
      %v470 = vadd.f32 0.0, %v469
      %v471 = vpop.f32.mrb[0].mxu0
      %v472 = vpop.f32.mrb[0].mxu0
      %v473 = vadd.f32 0.0, %v472
      %v474 = vpop.f32.mrb[0].mxu0
      %475 = vmatprep.mubr.bf16.mxu0 0
      %476 = vmatmul.mubr.bf16.gmra.mrb[0].mxu0 %v384
      %v477 = vpop.f32.mrb[0].mxu0
      %v478 = vadd.f32 0.0, %v477
      %v479 = vpop.f32.mrb[0].mxu0
      %v480 = vpop.f32.mrb[0].mxu0
      %v481 = vpop.f32.mrb[0].mxu0
      %482 = vdwg.mxu0
      %v483 = vadd.f32 %v338, %v470
      %v484 = vadd.f32 %v339, %v473
      %v485 = vadd.f32 %v340, %v478
      %486 = vst.msk [vmem:[#allocation2] sm:$0xff] %vm333, %v483
      %487 = vst.msk [vmem:[#allocation2 + $0x8] sm:$0xff] %vm333, %v484
      %488 = vst.msk [vmem:[#allocation2 + $0x10] sm:$0xf] %vm336, %v485
      %v489 = vld [vmem:[#allocation2] sm:$0xff]
      %v490 = vld [vmem:[#allocation2 + $0x8] sm:$0xff]
      %v491 = vld [vmem:[#allocation2 + $0x10] sm:$0xf]
      %v492 = vld [vmem:[%s172] sm:$0xc]
      %v493 = vld [vmem:[%s172 + $0x4] sm:$0xf]
      %v494 = vld [vmem:[%s172 + $0x8] sm:$0xf]
      %v495 = vld [vmem:[%s172 + $0xc] sm:$0x1]
      %s496 = scalar_lea.vmem %s1, 128
      %v497 = vld [vmem:[%s496] sm:$0xf]
      %v498 = vld [vmem:[%s496 + $0x4] sm:$0xf]
      %v499 = vld [vmem:[%s496 + $0x8] sm:$0xf]
      %v500 = vld [vmem:[%s496 + $0xc] sm:$0xf]
      %v501 = vld [vmem:[%s496 + $0x10] sm:$0xf]
      %v502 = vld [vmem:[%s496 + $0x14] sm:$0xf]
      %v503 = vld [vmem:[%s496 + $0x18] sm:$0xf]
      %v504 = vld [vmem:[%s496 + $0x1c] sm:$0xf]
      %v505 = vld [vmem:[%s496 + $0x20] sm:$0xf]
      %v506 = vld [vmem:[%s496 + $0x24] sm:$0xf]
      %v507 = vld [vmem:[%s496 + $0x28] sm:$0xf]
      %v508 = vld [vmem:[%s496 + $0x2c] sm:$0xf]
      %v509 = vld [vmem:[%s496 + $0x30] sm:$0xf]
      %v510 = vld [vmem:[%s496 + $0x34] sm:$0xf]
      %v511 = vld [vmem:[%s496 + $0x38] sm:$0xf]
      %v512 = vld [vmem:[%s496 + $0x3c] sm:$0xf]
      %v517 = vunpack.c.l.b16 %v492
      %v518 = vunpack.c.l.b16 %v493
      %v519 = vunpack.c.l.b16 %v494
      %v520 = vunpack.c.l.b16 %v495
      %v521 = vpack.c.b16 %v518, %v517
      %v522 = vpack.c.b16 %v520, %v519
      %vm523 = vsmask.f32 5376
      %v525 = vshrl.u32 %v521, 16
      %v527 = vrot.slane %v525, 2
      %v528 = vshll.u32 %v521, 16
      %v530 = vrot.slane %v528, 3
      %v531 = vor.u32 %v527, %v530
      %v533 = vshrl.u32 %v522, 16
      %v535 = vrot.slane %v533, 2
      %v536 = vshll.u32 %v522, 16
      %v538 = vrot.slane %v536, 3
      %v539 = vor.u32 %v535, %v538
      %v540 = vsel %vm523, %v531, %v539
      %v559 = vunpack.c.l.b16 %v497
      %v560 = vunpack.c.l.b16 %v498
      %v561 = vunpack.c.l.b16 %v499
      %v562 = vunpack.c.l.b16 %v500
      %v563 = vunpack.c.l.b16 %v501
      %v564 = vunpack.c.l.b16 %v502
      %v565 = vunpack.c.l.b16 %v503
      %v566 = vunpack.c.l.b16 %v504
      %v567 = vunpack.c.l.b16 %v505
      %v568 = vunpack.c.l.b16 %v506
      %v569 = vunpack.c.l.b16 %v507
      %v570 = vunpack.c.l.b16 %v508
      %v571 = vunpack.c.l.b16 %v509
      %v572 = vunpack.c.l.b16 %v510
      %v573 = vunpack.c.l.b16 %v511
      %v574 = vunpack.c.l.b16 %v512
      %v575 = vpack.c.b16 %v560, %v559
      %v576 = vpack.c.b16 %v562, %v561
      %v577 = vpack.c.b16 %v564, %v563
      %v578 = vpack.c.b16 %v566, %v565
      %v579 = vpack.c.b16 %v568, %v567
      %v580 = vpack.c.b16 %v570, %v569
      %v581 = vpack.c.b16 %v572, %v571
      %v582 = vpack.c.b16 %v574, %v573
      %591 = vmatprep.subr.bf16.mxu0 0
      %592 = vmatpush1.bf16.msra.mxu0 %v575
      %593 = vmatprep.subr.bf16.mxu0 0
      %594 = vmatpush1.bf16.msra.mxu0 %v576
      %595 = vmatprep.subr.bf16.mxu0 0
      %596 = vmatpush1.bf16.msra.mxu0 %v577
      %597 = vmatprep.subr.bf16.mxu0 0
      %598 = vmatpush1.bf16.msra.mxu0 %v578
      %599 = vmatprep.subr.bf16.mxu0 0
      %600 = vmatpush1.bf16.msra.mxu0 %v579
      %601 = vmatprep.subr.bf16.mxu0 0
      %602 = vmatpush1.bf16.msra.mxu0 %v580
      %603 = vmatprep.subr.bf16.mxu0 0
      %604 = vmatpush1.bf16.msra.mxu0 %v581
      %605 = vmatprep.subr.bf16.mxu0 0
      %606 = vmatpush1.bf16.msra.mxu0 %v582
      %607 = vmatprep.subr.bf16.mxu0 0
      %608 = vmatpush1.bf16.msra.mxu0 0
      %609 = vmatprep.subr.bf16.mxu0 0
      %610 = vmatpush1.bf16.msra.mxu0 0
      %611 = vmatprep.subr.bf16.mxu0 0
      %612 = vmatpush1.bf16.msra.mxu0 0
      %613 = vmatprep.subr.bf16.mxu0 0
      %614 = vmatpush1.bf16.msra.mxu0 0
      %615 = vmatprep.subr.bf16.mxu0 0
      %616 = vmatpush1.bf16.msra.mxu0 0
      %617 = vmatprep.subr.bf16.mxu0 0
      %618 = vmatpush1.bf16.msra.mxu0 0
      %619 = vmatprep.subr.bf16.mxu0 0
      %620 = vmatpush1.bf16.msra.mxu0 0
      %621 = vmatprep.subr.bf16.mxu0 0
      %622 = vmatpush1.bf16.msra.mxu0 0
      %623 = vmatprep.mubr.bf16.mxu0 0
      %624 = vmatmul.mubr.bf16.gmra.mrb[0].mxu0 %v540
      %v625 = vpop.f32.mrb[0].mxu0
      %v626 = vadd.f32 0.0, %v625
      %v627 = vpop.f32.mrb[0].mxu0
      %v628 = vpop.f32.mrb[0].mxu0
      %v629 = vadd.f32 0.0, %v628
      %v630 = vpop.f32.mrb[0].mxu0
      %631 = vmatprep.mubr.bf16.mxu0 0
      %632 = vmatmul.mubr.bf16.gmra.mrb[0].mxu0 %v539
      %v633 = vpop.f32.mrb[0].mxu0
      %v634 = vadd.f32 0.0, %v633
      %v635 = vpop.f32.mrb[0].mxu0
      %v636 = vpop.f32.mrb[0].mxu0
      %v637 = vpop.f32.mrb[0].mxu0
      %638 = vdwg.mxu0
      %v639 = vadd.f32 %v489, %v626
      %v640 = vadd.f32 %v490, %v629
      %v641 = vadd.f32 %v491, %v634
      %642 = vst.msk [vmem:[#allocation2] sm:$0xff] %vm333, %v639
      %643 = vst.msk [vmem:[#allocation2 + $0x8] sm:$0xff] %vm333, %v640
      %644 = vst.msk [vmem:[#allocation2 + $0x10] sm:$0xf] %vm336, %v641
      %v645 = vld [vmem:[#allocation2] sm:$0xff]
      %v646 = vld [vmem:[#allocation2 + $0x8] sm:$0xff]
      %v647 = vld [vmem:[#allocation2 + $0x10] sm:$0xf]
      %v648 = vld [vmem:[%s172] sm:$0x8]
      %v649 = vld [vmem:[%s172 + $0x4] sm:$0xf]
      %v650 = vld [vmem:[%s172 + $0x8] sm:$0xf]
      %v651 = vld [vmem:[%s172 + $0xc] sm:$0x1]
      %s652 = scalar_lea.vmem %s1, 192
      %v653 = vld [vmem:[%s652] sm:$0xf]
      %v654 = vld [vmem:[%s652 + $0x4] sm:$0xf]
      %v655 = vld [vmem:[%s652 + $0x8] sm:$0xf]
      %v656 = vld [vmem:[%s652 + $0xc] sm:$0xf]
      %v657 = vld [vmem:[%s652 + $0x10] sm:$0xf]
      %v658 = vld [vmem:[%s652 + $0x14] sm:$0xf]
      %v659 = vld [vmem:[%s652 + $0x18] sm:$0xf]
      %v660 = vld [vmem:[%s652 + $0x1c] sm:$0xf]
      %v661 = vld [vmem:[%s652 + $0x20] sm:$0xf]
      %v662 = vld [vmem:[%s652 + $0x24] sm:$0xf]
      %v663 = vld [vmem:[%s652 + $0x28] sm:$0xf]
      %v664 = vld [vmem:[%s652 + $0x2c] sm:$0xf]
      %v665 = vld [vmem:[%s652 + $0x30] sm:$0xf]
      %v666 = vld [vmem:[%s652 + $0x34] sm:$0xf]
      %v667 = vld [vmem:[%s652 + $0x38] sm:$0xf]
      %v668 = vld [vmem:[%s652 + $0x3c] sm:$0xf]
      %v673 = vunpack.c.l.b16 %v648
      %v674 = vunpack.c.l.b16 %v649
      %v675 = vunpack.c.l.b16 %v650
      %v676 = vunpack.c.l.b16 %v651
      %v677 = vpack.c.b16 %v674, %v673
      %v678 = vpack.c.b16 %v676, %v675
      %vm679 = vcmask 1044480
      %v680 = vrot.slane %v677, 3
      %v681 = vrot.slane %v678, 3
      %v682 = vsel %vm679, %v680, %v681
      %v701 = vunpack.c.l.b16 %v653
      %v702 = vunpack.c.l.b16 %v654
      %v703 = vunpack.c.l.b16 %v655
      %v704 = vunpack.c.l.b16 %v656
      %v705 = vunpack.c.l.b16 %v657
      %v706 = vunpack.c.l.b16 %v658
      %v707 = vunpack.c.l.b16 %v659
      %v708 = vunpack.c.l.b16 %v660
      %v709 = vunpack.c.l.b16 %v661
      %v710 = vunpack.c.l.b16 %v662
      %v711 = vunpack.c.l.b16 %v663
      %v712 = vunpack.c.l.b16 %v664
      %v713 = vunpack.c.l.b16 %v665
      %v714 = vunpack.c.l.b16 %v666
      %v715 = vunpack.c.l.b16 %v667
      %v716 = vunpack.c.l.b16 %v668
      %v717 = vpack.c.b16 %v702, %v701
      %v718 = vpack.c.b16 %v704, %v703
      %v719 = vpack.c.b16 %v706, %v705
      %v720 = vpack.c.b16 %v708, %v707
      %v721 = vpack.c.b16 %v710, %v709
      %v722 = vpack.c.b16 %v712, %v711
      %v723 = vpack.c.b16 %v714, %v713
      %v724 = vpack.c.b16 %v716, %v715
      %733 = vmatprep.subr.bf16.mxu0 0
      %734 = vmatpush1.bf16.msra.mxu0 %v717
      %735 = vmatprep.subr.bf16.mxu0 0
      %736 = vmatpush1.bf16.msra.mxu0 %v718
      %737 = vmatprep.subr.bf16.mxu0 0
      %738 = vmatpush1.bf16.msra.mxu0 %v719
      %739 = vmatprep.subr.bf16.mxu0 0
      %740 = vmatpush1.bf16.msra.mxu0 %v720
      %741 = vmatprep.subr.bf16.mxu0 0
      %742 = vmatpush1.bf16.msra.mxu0 %v721
      %743 = vmatprep.subr.bf16.mxu0 0
      %744 = vmatpush1.bf16.msra.mxu0 %v722
      %745 = vmatprep.subr.bf16.mxu0 0
      %746 = vmatpush1.bf16.msra.mxu0 %v723
      %747 = vmatprep.subr.bf16.mxu0 0
      %748 = vmatpush1.bf16.msra.mxu0 %v724
      %749 = vmatprep.subr.bf16.mxu0 0
      %750 = vmatpush1.bf16.msra.mxu0 0
      %751 = vmatprep.subr.bf16.mxu0 0
      %752 = vmatpush1.bf16.msra.mxu0 0
      %753 = vmatprep.subr.bf16.mxu0 0
      %754 = vmatpush1.bf16.msra.mxu0 0
      %755 = vmatprep.subr.bf16.mxu0 0
      %756 = vmatpush1.bf16.msra.mxu0 0
      %757 = vmatprep.subr.bf16.mxu0 0
      %758 = vmatpush1.bf16.msra.mxu0 0
      %759 = vmatprep.subr.bf16.mxu0 0
      %760 = vmatpush1.bf16.msra.mxu0 0
      %761 = vmatprep.subr.bf16.mxu0 0
      %762 = vmatpush1.bf16.msra.mxu0 0
      %763 = vmatprep.subr.bf16.mxu0 0
      %764 = vmatpush1.bf16.msra.mxu0 0
      %765 = vmatprep.mubr.bf16.mxu0 0
      %766 = vmatmul.mubr.bf16.gmra.mrb[0].mxu0 %v682
      %v767 = vpop.f32.mrb[0].mxu0
      %v768 = vadd.f32 0.0, %v767
      %v769 = vpop.f32.mrb[0].mxu0
      %v770 = vpop.f32.mrb[0].mxu0
      %v771 = vadd.f32 0.0, %v770
      %v772 = vpop.f32.mrb[0].mxu0
      %773 = vmatprep.mubr.bf16.mxu0 0
      %774 = vmatmul.mubr.bf16.gmra.mrb[0].mxu0 %v681
      %v775 = vpop.f32.mrb[0].mxu0
      %v776 = vadd.f32 0.0, %v775
      %v777 = vpop.f32.mrb[0].mxu0
      %v778 = vpop.f32.mrb[0].mxu0
      %v779 = vpop.f32.mrb[0].mxu0
      %780 = vdwg.mxu0
      %v781 = vadd.f32 %v645, %v768
      %v782 = vadd.f32 %v646, %v771
      %v783 = vadd.f32 %v647, %v776
      %784 = vst.msk [vmem:[#allocation2] sm:$0xff] %vm333, %v781
      %785 = vst.msk [vmem:[#allocation2 + $0x8] sm:$0xff] %vm333, %v782
      %786 = vst.msk [vmem:[#allocation2 + $0x10] sm:$0xf] %vm336, %v783
      %v787 = vld [vmem:[#allocation2] sm:$0xff]
      %v788 = vld [vmem:[#allocation2 + $0x8] sm:$0xff]
      %v789 = vld [vmem:[#allocation2 + $0x10] sm:$0xf]
      %v790 = vsel %vm205, 1, 0
      %v791 = vsel %vm206, 1, 0
      %v792 = vsel %vm207, 1, 0
      %vm793 = vcmp.eq.s32.totalorder %v790, 1
      %vm794 = vcmp.eq.s32.totalorder %v791, 1
      %vm795 = vcmp.eq.s32.totalorder %v792, 1
      %v796 = vsel %vm793, %v787, 0.0
      %v797 = vsel %vm794, %v788, 0.0
      %v798 = vsel %vm795, %v789, 0.0
      %v799 = vsel %vm333, %v796, 0.0
      %v800 = vsel %vm333, %v797, 0.0
      %v801 = vadd.f32 %v799, %v800
      %v802 = vsel %vm336, %v798, 0.0
      %v803 = vadd.f32 %v801, %v802
      %v804 = vrot.slane %v803, 4
      %v805 = vadd.f32 %v803, %v804
      %v806 = vrot.slane %v805, 2
      %v807 = vadd.f32 %v805, %v806
      %v808 = vrot.slane %v807, 1
      %v809 = vadd.f32 %v807, %v808
      %v810 = vmul.f32 %v787, %v787
      %v811 = vmul.f32 %v788, %v788
      %v812 = vmul.f32 %v789, %v789
      %v813 = vsel %vm793, %v810, 0.0
      %v814 = vsel %vm794, %v811, 0.0
      %v815 = vsel %vm795, %v812, 0.0
      %v816 = vsel %vm333, %v813, 0.0
      %v817 = vsel %vm333, %v814, 0.0
      %v818 = vadd.f32 %v816, %v817
      %v819 = vsel %vm336, %v815, 0.0
      %v820 = vadd.f32 %v818, %v819
      %v821 = vrot.slane %v820, 4
      %v822 = vadd.f32 %v820, %v821
      %v823 = vrot.slane %v822, 2
      %v824 = vadd.f32 %v822, %v823
      %v825 = vrot.slane %v824, 1
      %v826 = vadd.f32 %v824, %v825
      %vm827 = vcmask 1040384
      %v828 = vsel %vm827, %v809, %v826
      %vm829 = vcmask 517120
      %830 = vst.msk [vmem:[%s181] sm:$0x3] %vm829, %v828
      %v831 = vpack.c.bf16 %v788, %v787
      %v832 = vpack.c.bf16 %v789, %v789
      %v835 = vunpack.c.l.b16 %v831
      %v836 = vunpack.c.h.b16 %v831
      %v837 = vunpack.c.l.b16 %v832
      %v838 = vpack.c.b16 %v835, %v835
      %v839 = vpack.c.b16 %v836, %v836
      %v840 = vpack.c.b16 %v837, %v837
      %844 = vst.msk [vmem:[%s177] sm:$0xf] %vm336, %v838
      %845 = vst.msk [vmem:[%s177 + $0x4] sm:$0xf] %vm336, %v839
      %846 = vst.msk [vmem:[%s177 + $0x8] sm:$0x3] %vm829, %v840
      %p847 = scmp.lt.s32.totalorder %s15, 1
      %s848 = scalar_select %p847, %s15, 1
      %s849 = smul.addr %s848, 3
      %s850 = smul.addr %s849, 4
      %s851 = scalar_lea.vmem %s2, %s850
      %p852 = scmp.lt.s32.totalorder %s15, 1
      %s853 = scalar_select %p852, %s15, 1
      %s854 = smul.addr %s853, 2
      %s855 = scalar_lea.vmem %s3, %s854
      // Predicated region
      $region29: #{discriminator_forward.15} parent=27 // pred_check
        %p856 = pneg %p80
      $region30: #{discriminator_forward.15} parent=27 // pred_check_branch
        %858 = sbr.rel (%p856) target = $region32
      $region31: #{discriminator_forward.15} parent=27 // pred_region
        _
      $region32: #{discriminator_forward.15} parent=27 // pred_fallthru
        _
      // Predicated region
      $region33: #{discriminator_forward.15} parent=27 // pred_check
        %p859 = pneg %p106
      $region34: #{discriminator_forward.15} parent=27 // pred_check_branch
        %861 = sbr.rel (%p859) target = $region36
      $region35: #{discriminator_forward.15} parent=27 // pred_region
        _
      $region36: #{discriminator_forward.15} parent=27 // pred_fallthru
        _
    $region28: #{discriminator_forward.15} parent=5 // pred_fallthru
      _
    %p862 = scmp.le.s32.totalorder 2, %s10
    // Predicated region
    $region37: #{discriminator_forward.15} parent=5 // pred_check
      %p863 = pneg %p862
    $region38: #{discriminator_forward.15} parent=5 // pred_check_branch
      %865 = sbr.rel (%p863) target = $region40
    $region39: #{discriminator_forward.15} parent=5 // pred_region
      %s866 = ssub.s32 %s10, 2
      // Predicated region
      $region41: #{discriminator_forward.15} parent=39 // pred_check
        %p867 = pneg %p86
      $region42: #{discriminator_forward.15} parent=39 // pred_check_branch
        %869 = sbr.rel (%p867) target = $region44
      $region43: #{discriminator_forward.15} parent=39 // pred_region
        %p870 = scmp.lt.s32.totalorder %s16, 1
        %s871 = scalar_select %p870, %s16, 1
        %s872 = smul.addr %s871, 3
        %s873 = smul.addr %s872, 4
        %s874 = scalar_lea.vmem %s2, %s873
      $region44: #{discriminator_forward.15} parent=39 // pred_fallthru
        _
      // Predicated region
      $region45: #{discriminator_forward.15} parent=39 // pred_check
        %p875 = pneg %p112
      $region46: #{discriminator_forward.15} parent=39 // pred_check_branch
        %877 = sbr.rel (%p875) target = $region48
      $region47: #{discriminator_forward.15} parent=39 // pred_region
        %p878 = scmp.lt.s32.totalorder %s16, 1
        %s879 = scalar_select %p878, %s16, 1
        %s880 = smul.addr %s879, 2
        %s881 = scalar_lea.vmem %s3, %s880
      $region48: #{discriminator_forward.15} parent=39 // pred_fallthru
        _
    $region40: #{discriminator_forward.15} parent=5 // pred_fallthru
      _
  $region6: #{discriminator_forward.15} parent=0 // loop_footer
    %s14 = sadd.s32 1, %s10
  $region7: #{discriminator_forward.15} parent=0 // loop_footer_branch
    %9 = sbr.rel target = $region3
  $region8: #{discriminator_forward.15} parent=0 // loop_exit
    _

</llo_original>
